<compile_context>
chip_gen: v7x
topology: tpu7x:2x2x1
jax: 0.10.0
libtpu: 0.0.40
codegen_flags: <defaults>
</compile_context>

<pallas_src>
import jax
import jax.numpy as jnp
from jax import lax
from jax.experimental import pallas as pl
from jax.experimental.pallas import tpu as pltpu


_EPS = 1e-5
_NEG_SLOPE = 0.2
_NORM_TILE_M = 2048     # row tile for the elementwise BN-normalize pass


def _vmem_limit_bytes():
    try:
        cap = int(pltpu.get_tpu_info().vmem_capacity_bytes)
    except Exception:
        cap = 64 * 1024 * 1024          # conservative fallback (v7x)
    return int(min(cap * 0.85, 112 * 1024 * 1024))


_VMEM_LIMIT = _vmem_limit_bytes()


def _mosaic_params():
    return pltpu.CompilerParams(
        dimension_semantics=("parallel",),
        vmem_limit_bytes=_VMEM_LIMIT)


# ----------------------------------------------------------------------------
# Pallas kernels
# ----------------------------------------------------------------------------
def _conv_row(x_ref, w_ref, r, keff, OW):
    """f32 conv output for one output row: sum of keff*keff shifted MXU dots."""
    acc = None
    for i in range(keff):
        for j in range(keff):
            xs = x_ref[r + i, j:j + OW, :]                       # (OW, Ceff) bf16
            part = jnp.dot(xs, w_ref[i * keff + j],
                           preferred_element_type=jnp.float32)   # (OW, Coutp) f32
            acc = part if acc is None else acc + part
    return acc


def _make_conv_bias_kernel(keff, OH, OW, has_act):
    """Fused im2col conv + bias [+ LeakyReLU] for one image (no BN)."""
    def kernel(x_ref, w_ref, b_ref, y_ref):
        def row(r, c):
            y = _conv_row(x_ref, w_ref, r, keff, OW) + b_ref[...]
            if has_act:
                y = jnp.where(y >= 0, y, _NEG_SLOPE * y)
            y_ref[r] = y.astype(y_ref.dtype)
            return c
        lax.fori_loop(0, OH, row, 0)
    return kernel


def _make_conv_bn_stats_kernel(keff, OH, OW):
    """Fused im2col conv for one image + per-image channel sum / sum-of-squares.

    y is stored bf16; the BN statistics are taken from the f32 MXU accumulator
    before narrowing, so they keep full precision.  BN conv layers have
    bias=False, so no bias term here.
    """
    def kernel(x_ref, w_ref, y_ref, s_ref):
        C = w_ref.shape[-1]

        def row(r, carry):
            s1, s2 = carry
            y = _conv_row(x_ref, w_ref, r, keff, OW)             # (OW, C) f32
            s1 = s1 + jnp.sum(y, axis=0, keepdims=True)
            s2 = s2 + jnp.sum(y * y, axis=0, keepdims=True)
            y_ref[r] = y.astype(y_ref.dtype)
            return (s1, s2)

        init = (jnp.zeros((1, C), jnp.float32),
                jnp.zeros((1, C), jnp.float32))
        s1, s2 = lax.fori_loop(0, OH, row, init)
        s_ref[...] = jnp.concatenate([s1, s2], axis=0)           # (2, C)
    return kernel


def _make_bn_norm_kernel(has_act):
    """BN pass 2: y * scale + shift [+ LeakyReLU]; f32 math, narrow at store."""
    def kernel(y_ref, scale_ref, shift_ref, o_ref):
        y = y_ref[...].astype(jnp.float32) * scale_ref[...] + shift_ref[...]
        if has_act:
            y = jnp.where(y >= 0, y, _NEG_SLOPE * y)
        o_ref[...] = y.astype(o_ref.dtype)
    return kernel


# ----------------------------------------------------------------------------
# Layer wrappers (pallas_calls)
# ----------------------------------------------------------------------------
def conv_bias_layer(xin, w_taps, bias, OH, OW, has_act, out_dtype):
    N, HP, WP, Ceff = xin.shape
    ntaps, _, Coutp = w_taps.shape
    keff = 2 if ntaps == 4 else 4
    return pl.pallas_call(
        _make_conv_bias_kernel(keff, OH, OW, has_act),
        out_shape=jax.ShapeDtypeStruct((N, OH, OW, Coutp), out_dtype),
        grid=(N,),
        in_specs=[
            pl.BlockSpec((None, HP, WP, Ceff), lambda n: (n, 0, 0, 0)),
            pl.BlockSpec((ntaps, Ceff, Coutp), lambda n: (0, 0, 0)),   # resident
            pl.BlockSpec((1, Coutp), lambda n: (0, 0)),
        ],
        out_specs=pl.BlockSpec((None, OH, OW, Coutp), lambda n: (n, 0, 0, 0)),
        compiler_params=_mosaic_params(),
    )(xin, w_taps, bias)


def conv_bn_stats_layer(xin, w_taps, OH, OW):
    N, HP, WP, Ceff = xin.shape
    ntaps, _, Coutp = w_taps.shape
    keff = 2 if ntaps == 4 else 4
    return pl.pallas_call(
        _make_conv_bn_stats_kernel(keff, OH, OW),
        out_shape=(jax.ShapeDtypeStruct((N, OH, OW, Coutp), jnp.bfloat16),
                   jax.ShapeDtypeStruct((N, 2, Coutp), jnp.float32)),
        grid=(N,),
        in_specs=[
            pl.BlockSpec((None, HP, WP, Ceff), lambda n: (n, 0, 0, 0)),
            pl.BlockSpec((ntaps, Ceff, Coutp), lambda n: (0, 0, 0)),   # resident
        ],
        out_specs=(
            pl.BlockSpec((None, OH, OW, Coutp), lambda n: (n, 0, 0, 0)),
            pl.BlockSpec((None, 2, Coutp), lambda n: (n, 0, 0)),
        ),
        compiler_params=_mosaic_params(),
    )(xin, w_taps)


def bn_normalize_layer(y2d, scale, shift, has_act, out_dtype):
    M, C = y2d.shape
    tm = M if M <= _NORM_TILE_M else _NORM_TILE_M
    return pl.pallas_call(
        _make_bn_norm_kernel(has_act),
        out_shape=jax.ShapeDtypeStruct((M, C), out_dtype),
        grid=(pl.cdiv(M, tm),),
        in_specs=[pl.BlockSpec((tm, C), lambda i: (i, 0)),
                  pl.BlockSpec((1, C), lambda i: (0, 0)),
                  pl.BlockSpec((1, C), lambda i: (0, 0))],
        out_specs=pl.BlockSpec((tm, C), lambda i: (i, 0)),
        compiler_params=_mosaic_params(),
    )(y2d, scale, shift)


# ----------------------------------------------------------------------------
# Glue: to_2d, input prep, layer config, parameter init / prep, full forward
# ----------------------------------------------------------------------------
def to_2d(x5):
    # torch: cat([x[:, :, i] for i in range(T)], dim=0) -> (T*B, C, H, W)
    B, C, T, H, W = x5.shape
    return jnp.transpose(x5, (2, 0, 1, 3, 4)).reshape(T * B, C, H, W)


def _prep_input(x_nhwc, stride):
    """Spatial pad=1; for stride-2 layers additionally 2x2 space-to-depth so
    every conv becomes a stride-1 conv with contiguous in-kernel slicing."""
    N, H, W, C = x_nhwc.shape
    xp = jnp.pad(x_nhwc, ((0, 0), (1, 1), (1, 1), (0, 0)))
    if stride == 1:
        return xp
    Hp, Wp = H + 2, W + 2
    Hp2, Wp2 = Hp + (Hp % 2), Wp + (Wp % 2)
    if (Hp2, Wp2) != (Hp, Wp):
        xp = jnp.pad(xp, ((0, 0), (0, Hp2 - Hp), (0, Wp2 - Wp), (0, 0)))
    x2 = xp.reshape(N, Hp2 // 2, 2, Wp2 // 2, 2, C)
    x2 = jnp.transpose(x2, (0, 1, 3, 2, 4, 5))
    return x2.reshape(N, Hp2 // 2, Wp2 // 2, 4 * C)


def build_layer_cfgs(input_nc, ndf, n_layers):
    # Mirrors NLayerDiscriminator.__init__ with use_actnorm=False
    # (norm_layer = BatchNorm2d  =>  use_bias = False for normed convs).
    cfgs = [dict(cin=input_nc, cout=ndf, stride=2,
                 bias=True, bn=False, act=True)]
    nf_mult = 1
    for n in range(1, n_layers):
        nf_mult_prev, nf_mult = nf_mult, min(2 ** n, 8)
        cfgs.append(dict(cin=ndf * nf_mult_prev, cout=ndf * nf_mult, stride=2,
                         bias=False, bn=True, act=True))
    nf_mult_prev, nf_mult = nf_mult, min(2 ** n_layers, 8)
    cfgs.append(dict(cin=ndf * nf_mult_prev, cout=ndf * nf_mult, stride=1,
                     bias=False, bn=True, act=True))
    cfgs.append(dict(cin=ndf * nf_mult, cout=1, stride=1,
                     bias=True, bn=False, act=False))
    return cfgs


def init_params(key, cfgs):
    # weights_init: Conv weights ~ N(0, 0.02); BN weight ~ N(1, 0.02), bias 0.
    params = []
    for cfg in cfgs:
        key, kw_, kb_, kg_ = jax.random.split(key, 4)
        p = dict(w=0.02 * jax.random.normal(
            kw_, (cfg['cout'], cfg['cin'], 4, 4), jnp.float32))
        if cfg['bias']:
            p['b'] = 0.02 * jax.random.normal(kb_, (cfg['cout'],), jnp.float32)
        if cfg['bn']:
            p['gamma'] = 1.0 + 0.02 * jax.random.normal(
                kg_, (cfg['cout'],), jnp.float32)
            p['beta'] = jnp.zeros((cfg['cout'],), jnp.float32)
        params.append(p)
    return params


def prepare_params(cfgs, params):
    """One-time conversion to tap-major, MXU-ready bf16 weights (outside jit).

    stride-2 convs are re-expressed as 2x2-tap stride-1 convs over the 2x2
    space-to-depth input (effective channel index = (2*di+dj)*Cin + c)."""
    prepared = []
    last = len(cfgs) - 1
    for li, (cfg, p) in enumerate(zip(cfgs, params)):
        cout, cin = cfg['cout'], cfg['cin']
        wt = jnp.transpose(p['w'], (2, 3, 1, 0))          # (4,4,Cin,Cout) [i,j,c,o]
        if cfg['stride'] == 2:
            wt = wt.reshape(2, 2, 2, 2, cin, cout)        # [a, di, b, dj, c, o]
            wt = jnp.transpose(wt, (0, 2, 1, 3, 4, 5))    # [a, b, di, dj, c, o]
            w_taps = wt.reshape(4, 4 * cin, cout)
        else:
            w_taps = wt.reshape(16, cin, cout)
        coutp = cout
        if li == last and cout < 128:
            # Pad the 1-channel head to 128 lanes (dense stores, comfortable
            # matmul N); sliced back to `cout` channels in JAX (tiny tensor).
            coutp = 128
            w_taps = jnp.pad(w_taps, ((0, 0), (0, 0), (0, coutp - cout)))
        q = dict(w=w_taps.astype(jnp.bfloat16))
        if cfg['bias']:
            q['b'] = jnp.zeros((1, coutp), jnp.float32).at[0, :cout].set(p['b'])
        if cfg['bn']:
            q['gamma'] = p['gamma'].astype(jnp.float32)
            q['beta'] = p['beta'].astype(jnp.float32)
        prepared.append(q)
    return prepared


def discriminator_forward(x5, cfgs, prepared):
    x = to_2d(x5)                                         # (N, C, H, W)
    x = jnp.transpose(x, (0, 2, 3, 1)).astype(jnp.bfloat16)   # NHWC bf16
    n_total = len(cfgs)
    for li, (cfg, q) in enumerate(zip(cfgs, prepared)):
        N, H, W, _ = x.shape
        OH = (H + 2 - 4) // cfg['stride'] + 1
        OW = (W + 2 - 4) // cfg['stride'] + 1
        xin = _prep_input(x, cfg['stride'])
        last = li == n_total - 1
        out_dtype = jnp.float32 if last else jnp.bfloat16
        if cfg['bn']:
            y, stats = conv_bn_stats_layer(xin, q['w'], OH, OW)
            cnt = jnp.float32(N * OH * OW)
            s1 = jnp.sum(stats[:, 0, :], axis=0)
            s2 = jnp.sum(stats[:, 1, :], axis=0)
            mean = s1 / cnt
            var = s2 / cnt - mean * mean                  # biased variance
            inv = lax.rsqrt(var + _EPS)
            scale = (q['gamma'] * inv)[None, :]
            shift = (q['beta'] - q['gamma'] * inv * mean)[None, :]
            cc = y.shape[-1]
            y2 = bn_normalize_layer(y.reshape(N * OH * OW, cc), scale, shift,
                                    cfg['act'], out_dtype)
            x = y2.reshape(N, OH, OW, cc)
        else:
            y = conv_bias_layer(xin, q['w'], q['b'], OH, OW,
                                cfg['act'], out_dtype)
            if y.shape[-1] != cfg['cout']:
                y = y[..., :cfg['cout']]
            x = y
    return jnp.transpose(x, (0, 3, 1, 2)).astype(jnp.float32)   # NCHW


# ----------------------------------------------------------------------------
# Pure-JAX reference (lax.conv, f32) for correctness
# ----------------------------------------------------------------------------
def reference_forward(x5, cfgs, params):
    x = to_2d(x5)
    for cfg, p in zip(cfgs, params):
        x = lax.conv_general_dilated(
            x, p['w'], window_strides=(cfg['stride'],) * 2,
            padding=((1, 1), (1, 1)),
            dimension_numbers=('NCHW', 'OIHW', 'NCHW'))
        if cfg['bias']:
            x = x + p['b'][None, :, None, None]
        if cfg['bn']:
            mean = jnp.mean(x, axis=(0, 2, 3), keepdims=True)
            var = jnp.var(x, axis=(0, 2, 3), keepdims=True)   # biased
            x = (x - mean) * lax.rsqrt(var + _EPS)
            x = x * p['gamma'][None, :, None, None] + p['beta'][None, :, None, None]
        if cfg['act']:
            x = jnp.where(x >= 0, x, _NEG_SLOPE * x)
    return x


if __name__ == "__main__":
    key = jax.random.PRNGKey(0)
    kx, kp = jax.random.split(key)

    # Small synthetic config: input_nc=3, ndf=16, n_layers=3.
    # Input is the 5-D (B, C, T, H, W) tensor expected by NLayerDiscriminator.
    B, C, T, H, W = 1, 3, 2, 32, 32
    x = jax.random.normal(kx, (B, C, T, H, W), jnp.float32)

    cfgs = build_layer_cfgs(input_nc=3, ndf=16, n_layers=3)
    params = init_params(kp, cfgs)
    prepared = prepare_params(cfgs, params)

    fwd = jax.jit(lambda x5, prm: discriminator_forward(x5, cfgs, prm))
    out = jax.block_until_ready(fwd(x, prepared))

    ref = jax.block_until_ready(reference_forward(x, cfgs, params))

    assert out.shape == ref.shape, (out.shape, ref.shape)
    err = float(jnp.max(jnp.abs(out - ref)))
    # bf16 inter-layer activations + bf16 BN intermediate vs f32 reference.
    assert err < 1e-1, f"max abs diff vs reference: {err}"

    print("KERNEL_OK")
</pallas_src>

<mosaic_0001>
module attributes {stable_mosaic.version = 11 : i64} {
  func.func @kernel(%arg0: i32, %arg1: memref<1x17x17x12xbf16, #tpu.memory_space<vmem>>, %arg2: memref<4x12x16xbf16, #tpu.memory_space<vmem>>, %arg3: memref<1x16xf32, #tpu.memory_space<vmem>>, %arg4: memref<1x16x16x16xbf16, #tpu.memory_space<vmem>>) attributes {dimension_semantics = [#tpu.dimension_semantics<parallel>], iteration_bounds = array<i64: 2>, scalar_prefetch = 0 : i64, scratch_operands = 0 : i64, tpu.core_type = #tpu.core_type<tc>, window_params = [{transform_indices = @transform_0, window_bounds = array<i64: 1, 17, 17, 12>}, {pipeline_mode = #tpu.pipeline_mode<synchronous>, transform_indices = @transform_1, window_bounds = array<i64: 4, 12, 16>}, {pipeline_mode = #tpu.pipeline_mode<synchronous>, transform_indices = @transform_2, window_bounds = array<i64: 1, 16>}, {transform_indices = @transform_3, window_bounds = array<i64: 1, 16, 16, 16>}]} {
    %c0_i32 = arith.constant 0 : i32
    %c16_i32 = arith.constant 16 : i32
    %0 = arith.addi %c0_i32, %c16_i32 : i32
    %c1_i32 = arith.constant 1 : i32
    scf.for %arg5 = %c0_i32 to %0 step %c1_i32  : i32 {
      %c0_i32_1 = arith.constant 0 : i32
      %1 = arith.addi %arg5, %c0_i32_1 : i32
      %c0 = arith.constant 0 : index
      %2 = arith.index_cast %1 : i32 to index
      %c0_2 = arith.constant 0 : index
      %c0_3 = arith.constant 0 : index
      %3 = vector.load %arg1[%c0, %2, %c0_2, %c0_3] : memref<1x17x17x12xbf16, #tpu.memory_space<vmem>>, vector<1x1x16x12xbf16>
      %4 = vector.shape_cast %3 : vector<1x1x16x12xbf16> to vector<16x12xbf16>
      %c0_4 = arith.constant 0 : index
      %c0_5 = arith.constant 0 : index
      %c0_6 = arith.constant 0 : index
      %5 = vector.load %arg2[%c0_4, %c0_5, %c0_6] : memref<4x12x16xbf16, #tpu.memory_space<vmem>>, vector<1x12x16xbf16>
      %6 = vector.shape_cast %5 : vector<1x12x16xbf16> to vector<12x16xbf16>
      %cst = arith.constant dense<0.000000e+00> : vector<16x16xf32>
      %7 = tpu.matmul %4, %6, %cst {dimension_numbers = #tpu.dot_dimension_numbers<[1], [0], [0], [1], [0, 0, 1, 1], [], []>} : vector<16x12xbf16>, vector<12x16xbf16>, vector<16x16xf32> -> vector<16x16xf32>
      %c0_i32_7 = arith.constant 0 : i32
      %8 = arith.addi %arg5, %c0_i32_7 : i32
      %c0_8 = arith.constant 0 : index
      %9 = arith.index_cast %8 : i32 to index
      %c1 = arith.constant 1 : index
      %c0_9 = arith.constant 0 : index
      %10 = vector.load %arg1[%c0_8, %9, %c1, %c0_9] : memref<1x17x17x12xbf16, #tpu.memory_space<vmem>>, vector<1x1x16x12xbf16>
      %11 = vector.shape_cast %10 : vector<1x1x16x12xbf16> to vector<16x12xbf16>
      %c1_10 = arith.constant 1 : index
      %c0_11 = arith.constant 0 : index
      %c0_12 = arith.constant 0 : index
      %12 = vector.load %arg2[%c1_10, %c0_11, %c0_12] : memref<4x12x16xbf16, #tpu.memory_space<vmem>>, vector<1x12x16xbf16>
      %13 = vector.shape_cast %12 : vector<1x12x16xbf16> to vector<12x16xbf16>
      %cst_13 = arith.constant dense<0.000000e+00> : vector<16x16xf32>
      %14 = tpu.matmul %11, %13, %cst_13 {dimension_numbers = #tpu.dot_dimension_numbers<[1], [0], [0], [1], [0, 0, 1, 1], [], []>} : vector<16x12xbf16>, vector<12x16xbf16>, vector<16x16xf32> -> vector<16x16xf32>
      %15 = arith.addf %7, %14 : vector<16x16xf32>
      %c1_i32_14 = arith.constant 1 : i32
      %16 = arith.addi %arg5, %c1_i32_14 : i32
      %c0_15 = arith.constant 0 : index
      %17 = arith.index_cast %16 : i32 to index
      %c0_16 = arith.constant 0 : index
      %c0_17 = arith.constant 0 : index
      %18 = vector.load %arg1[%c0_15, %17, %c0_16, %c0_17] : memref<1x17x17x12xbf16, #tpu.memory_space<vmem>>, vector<1x1x16x12xbf16>
      %19 = vector.shape_cast %18 : vector<1x1x16x12xbf16> to vector<16x12xbf16>
      %c2 = arith.constant 2 : index
      %c0_18 = arith.constant 0 : index
      %c0_19 = arith.constant 0 : index
      %20 = vector.load %arg2[%c2, %c0_18, %c0_19] : memref<4x12x16xbf16, #tpu.memory_space<vmem>>, vector<1x12x16xbf16>
      %21 = vector.shape_cast %20 : vector<1x12x16xbf16> to vector<12x16xbf16>
      %cst_20 = arith.constant dense<0.000000e+00> : vector<16x16xf32>
      %22 = tpu.matmul %19, %21, %cst_20 {dimension_numbers = #tpu.dot_dimension_numbers<[1], [0], [0], [1], [0, 0, 1, 1], [], []>} : vector<16x12xbf16>, vector<12x16xbf16>, vector<16x16xf32> -> vector<16x16xf32>
      %23 = arith.addf %15, %22 : vector<16x16xf32>
      %c1_i32_21 = arith.constant 1 : i32
      %24 = arith.addi %arg5, %c1_i32_21 : i32
      %c0_22 = arith.constant 0 : index
      %25 = arith.index_cast %24 : i32 to index
      %c1_23 = arith.constant 1 : index
      %c0_24 = arith.constant 0 : index
      %26 = vector.load %arg1[%c0_22, %25, %c1_23, %c0_24] : memref<1x17x17x12xbf16, #tpu.memory_space<vmem>>, vector<1x1x16x12xbf16>
      %27 = vector.shape_cast %26 : vector<1x1x16x12xbf16> to vector<16x12xbf16>
      %c3 = arith.constant 3 : index
      %c0_25 = arith.constant 0 : index
      %c0_26 = arith.constant 0 : index
      %28 = vector.load %arg2[%c3, %c0_25, %c0_26] : memref<4x12x16xbf16, #tpu.memory_space<vmem>>, vector<1x12x16xbf16>
      %29 = vector.shape_cast %28 : vector<1x12x16xbf16> to vector<12x16xbf16>
      %cst_27 = arith.constant dense<0.000000e+00> : vector<16x16xf32>
      %30 = tpu.matmul %27, %29, %cst_27 {dimension_numbers = #tpu.dot_dimension_numbers<[1], [0], [0], [1], [0, 0, 1, 1], [], []>} : vector<16x12xbf16>, vector<12x16xbf16>, vector<16x16xf32> -> vector<16x16xf32>
      %31 = arith.addf %23, %30 : vector<16x16xf32>
      %c0_28 = arith.constant 0 : index
      %c0_29 = arith.constant 0 : index
      %32 = vector.load %arg3[%c0_28, %c0_29] : memref<1x16xf32, #tpu.memory_space<vmem>>, vector<1x16xf32>
      %33 = vector.broadcast %32 : vector<1x16xf32> to vector<16x16xf32>
      %34 = arith.addf %31, %33 : vector<16x16xf32>
      %cst_30 = arith.constant 0.000000e+00 : f32
      %35 = vector.broadcast %cst_30 : f32 to vector<16x16xf32>
      %36 = arith.cmpf oge, %34, %35 : vector<16x16xf32>
      %cst_31 = arith.constant 2.000000e-01 : f32
      %37 = vector.broadcast %cst_31 : f32 to vector<16x16xf32>
      %38 = arith.mulf %37, %34 : vector<16x16xf32>
      %39 = arith.select %36, %34, %38 : vector<16x16xi1>, vector<16x16xf32>
      %40 = arith.truncf %39 : vector<16x16xf32> to vector<16x16xbf16>
      %c0_32 = arith.constant 0 : index
      %41 = arith.index_cast %arg5 : i32 to index
      %c0_33 = arith.constant 0 : index
      %c0_34 = arith.constant 0 : index
      %42 = vector.load %arg4[%c0_32, %41, %c0_33, %c0_34] : memref<1x16x16x16xbf16, #tpu.memory_space<vmem>>, vector<1x1x16x16xbf16>
      %43 = vector.shape_cast %42 : vector<1x1x16x16xbf16> to vector<16x16xbf16>
      %44 = vector.shape_cast %40 : vector<16x16xbf16> to vector<1x1x16x16xbf16>
      tpu.vector_store %arg4[%c0_32, %41, %c0_33, %c0_34], %44 {strides = array<i32>} : memref<1x16x16x16xbf16, #tpu.memory_space<vmem>>, vector<1x1x16x16xbf16>,
    }
    %c16_i32_0 = arith.constant 16 : i32
    return
  }
  func.func @transform_0(%arg0: i32) -> (i32, i32, i32, i32) {
    %c0_i32 = arith.constant 0 : i32
    %c0_i32_0 = arith.constant 0 : i32
    %c0_i32_1 = arith.constant 0 : i32
    %c0_i32_2 = arith.constant 0 : i32
    return %arg0, %c0_i32, %c0_i32_0, %c0_i32_1 : i32, i32, i32, i32
  }
  func.func @transform_1(%arg0: i32) -> (i32, i32, i32) {
    %c0_i32 = arith.constant 0 : i32
    %c0_i32_0 = arith.constant 0 : i32
    %c0_i32_1 = arith.constant 0 : i32
    %c0_i32_2 = arith.constant 0 : i32
    return %c0_i32, %c0_i32_0, %c0_i32_1 : i32, i32, i32
  }
  func.func @transform_2(%arg0: i32) -> (i32, i32) {
    %c0_i32 = arith.constant 0 : i32
    %c0_i32_0 = arith.constant 0 : i32
    %c0_i32_1 = arith.constant 0 : i32
    return %c0_i32, %c0_i32_0 : i32, i32
  }
  func.func @transform_3(%arg0: i32) -> (i32, i32, i32, i32) {
    %c0_i32 = arith.constant 0 : i32
    %c0_i32_0 = arith.constant 0 : i32
    %c0_i32_1 = arith.constant 0 : i32
    %c0_i32_2 = arith.constant 0 : i32
    return %arg0, %c0_i32, %c0_i32_0, %c0_i32_1 : i32, i32, i32, i32
  }
}

module attributes {stable_mosaic.version = 11 : i64} {
  func.func @kernel(%arg0: i32, %arg1: memref<1x9x9x64xbf16, #tpu.memory_space<vmem>>, %arg2: memref<4x64x32xbf16, #tpu.memory_space<vmem>>, %arg3: memref<1x8x8x32xbf16, #tpu.memory_space<vmem>>, %arg4: memref<1x2x32xf32, #tpu.memory_space<vmem>>) attributes {dimension_semantics = [#tpu.dimension_semantics<parallel>], iteration_bounds = array<i64: 2>, scalar_prefetch = 0 : i64, scratch_operands = 0 : i64, tpu.core_type = #tpu.core_type<tc>, window_params = [{transform_indices = @transform_0, window_bounds = array<i64: 1, 9, 9, 64>}, {pipeline_mode = #tpu.pipeline_mode<synchronous>, transform_indices = @transform_1, window_bounds = array<i64: 4, 64, 32>}, {transform_indices = @transform_2, window_bounds = array<i64: 1, 8, 8, 32>}, {transform_indices = @transform_3, window_bounds = array<i64: 1, 2, 32>}]} {
    %cst = arith.constant 0.000000e+00 : f32
    %0 = vector.broadcast %cst : f32 to vector<1x32xf32>
    %cst_0 = arith.constant 0.000000e+00 : f32
    %1 = vector.broadcast %cst_0 : f32 to vector<1x32xf32>
    %c0_i32 = arith.constant 0 : i32
    %c8_i32 = arith.constant 8 : i32
    %2 = arith.addi %c0_i32, %c8_i32 : i32
    %c1_i32 = arith.constant 1 : i32
    %3:2 = scf.for %arg5 = %c0_i32 to %2 step %c1_i32 iter_args(%arg6 = %0, %arg7 = %1) -> (vector<1x32xf32>, vector<1x32xf32>)  : i32 {
      %c0_i32_4 = arith.constant 0 : i32
      %8 = arith.addi %arg5, %c0_i32_4 : i32
      %c0_5 = arith.constant 0 : index
      %9 = arith.index_cast %8 : i32 to index
      %c0_6 = arith.constant 0 : index
      %c0_7 = arith.constant 0 : index
      %10 = vector.load %arg1[%c0_5, %9, %c0_6, %c0_7] : memref<1x9x9x64xbf16, #tpu.memory_space<vmem>>, vector<1x1x8x64xbf16>
      %11 = vector.shape_cast %10 : vector<1x1x8x64xbf16> to vector<8x64xbf16>
      %c0_8 = arith.constant 0 : index
      %c0_9 = arith.constant 0 : index
      %c0_10 = arith.constant 0 : index
      %12 = vector.load %arg2[%c0_8, %c0_9, %c0_10] : memref<4x64x32xbf16, #tpu.memory_space<vmem>>, vector<1x64x32xbf16>
      %13 = vector.shape_cast %12 : vector<1x64x32xbf16> to vector<64x32xbf16>
      %cst_11 = arith.constant dense<0.000000e+00> : vector<8x32xf32>
      %14 = tpu.matmul %11, %13, %cst_11 {dimension_numbers = #tpu.dot_dimension_numbers<[1], [0], [0], [1], [0, 0, 1, 1], [], []>} : vector<8x64xbf16>, vector<64x32xbf16>, vector<8x32xf32> -> vector<8x32xf32>
      %c0_i32_12 = arith.constant 0 : i32
      %15 = arith.addi %arg5, %c0_i32_12 : i32
      %c0_13 = arith.constant 0 : index
      %16 = arith.index_cast %15 : i32 to index
      %c1 = arith.constant 1 : index
      %c0_14 = arith.constant 0 : index
      %17 = vector.load %arg1[%c0_13, %16, %c1, %c0_14] : memref<1x9x9x64xbf16, #tpu.memory_space<vmem>>, vector<1x1x8x64xbf16>
      %18 = vector.shape_cast %17 : vector<1x1x8x64xbf16> to vector<8x64xbf16>
      %c1_15 = arith.constant 1 : index
      %c0_16 = arith.constant 0 : index
      %c0_17 = arith.constant 0 : index
      %19 = vector.load %arg2[%c1_15, %c0_16, %c0_17] : memref<4x64x32xbf16, #tpu.memory_space<vmem>>, vector<1x64x32xbf16>
      %20 = vector.shape_cast %19 : vector<1x64x32xbf16> to vector<64x32xbf16>
      %cst_18 = arith.constant dense<0.000000e+00> : vector<8x32xf32>
      %21 = tpu.matmul %18, %20, %cst_18 {dimension_numbers = #tpu.dot_dimension_numbers<[1], [0], [0], [1], [0, 0, 1, 1], [], []>} : vector<8x64xbf16>, vector<64x32xbf16>, vector<8x32xf32> -> vector<8x32xf32>
      %22 = arith.addf %14, %21 : vector<8x32xf32>
      %c1_i32_19 = arith.constant 1 : i32
      %23 = arith.addi %arg5, %c1_i32_19 : i32
      %c0_20 = arith.constant 0 : index
      %24 = arith.index_cast %23 : i32 to index
      %c0_21 = arith.constant 0 : index
      %c0_22 = arith.constant 0 : index
      %25 = vector.load %arg1[%c0_20, %24, %c0_21, %c0_22] : memref<1x9x9x64xbf16, #tpu.memory_space<vmem>>, vector<1x1x8x64xbf16>
      %26 = vector.shape_cast %25 : vector<1x1x8x64xbf16> to vector<8x64xbf16>
      %c2 = arith.constant 2 : index
      %c0_23 = arith.constant 0 : index
      %c0_24 = arith.constant 0 : index
      %27 = vector.load %arg2[%c2, %c0_23, %c0_24] : memref<4x64x32xbf16, #tpu.memory_space<vmem>>, vector<1x64x32xbf16>
      %28 = vector.shape_cast %27 : vector<1x64x32xbf16> to vector<64x32xbf16>
      %cst_25 = arith.constant dense<0.000000e+00> : vector<8x32xf32>
      %29 = tpu.matmul %26, %28, %cst_25 {dimension_numbers = #tpu.dot_dimension_numbers<[1], [0], [0], [1], [0, 0, 1, 1], [], []>} : vector<8x64xbf16>, vector<64x32xbf16>, vector<8x32xf32> -> vector<8x32xf32>
      %30 = arith.addf %22, %29 : vector<8x32xf32>
      %c1_i32_26 = arith.constant 1 : i32
      %31 = arith.addi %arg5, %c1_i32_26 : i32
      %c0_27 = arith.constant 0 : index
      %32 = arith.index_cast %31 : i32 to index
      %c1_28 = arith.constant 1 : index
      %c0_29 = arith.constant 0 : index
      %33 = vector.load %arg1[%c0_27, %32, %c1_28, %c0_29] : memref<1x9x9x64xbf16, #tpu.memory_space<vmem>>, vector<1x1x8x64xbf16>
      %34 = vector.shape_cast %33 : vector<1x1x8x64xbf16> to vector<8x64xbf16>
      %c3 = arith.constant 3 : index
      %c0_30 = arith.constant 0 : index
      %c0_31 = arith.constant 0 : index
      %35 = vector.load %arg2[%c3, %c0_30, %c0_31] : memref<4x64x32xbf16, #tpu.memory_space<vmem>>, vector<1x64x32xbf16>
      %36 = vector.shape_cast %35 : vector<1x64x32xbf16> to vector<64x32xbf16>
      %cst_32 = arith.constant dense<0.000000e+00> : vector<8x32xf32>
      %37 = tpu.matmul %34, %36, %cst_32 {dimension_numbers = #tpu.dot_dimension_numbers<[1], [0], [0], [1], [0, 0, 1, 1], [], []>} : vector<8x64xbf16>, vector<64x32xbf16>, vector<8x32xf32> -> vector<8x32xf32>
      %38 = arith.addf %30, %37 : vector<8x32xf32>
      %cst_33 = arith.constant dense<0.000000e+00> : vector<32xf32>
      %39 = vector.multi_reduction <add>, %38, %cst_33 [0] : vector<8x32xf32> to vector<32xf32>
      %40 = vector.shape_cast %39 : vector<32xf32> to vector<1x32xf32>
      %41 = arith.addf %arg6, %40 : vector<1x32xf32>
      %42 = arith.mulf %38, %38 : vector<8x32xf32>
      %cst_34 = arith.constant dense<0.000000e+00> : vector<32xf32>
      %43 = vector.multi_reduction <add>, %42, %cst_34 [0] : vector<8x32xf32> to vector<32xf32>
      %44 = vector.shape_cast %43 : vector<32xf32> to vector<1x32xf32>
      %45 = arith.addf %arg7, %44 : vector<1x32xf32>
      %46 = arith.truncf %38 : vector<8x32xf32> to vector<8x32xbf16>
      %c0_35 = arith.constant 0 : index
      %47 = arith.index_cast %arg5 : i32 to index
      %c0_36 = arith.constant 0 : index
      %c0_37 = arith.constant 0 : index
      %48 = vector.load %arg3[%c0_35, %47, %c0_36, %c0_37] : memref<1x8x8x32xbf16, #tpu.memory_space<vmem>>, vector<1x1x8x32xbf16>
      %49 = vector.shape_cast %48 : vector<1x1x8x32xbf16> to vector<8x32xbf16>
      %50 = vector.shape_cast %46 : vector<8x32xbf16> to vector<1x1x8x32xbf16>
      tpu.vector_store %arg3[%c0_35, %47, %c0_36, %c0_37], %50 {strides = array<i32>} : memref<1x8x8x32xbf16, #tpu.memory_space<vmem>>, vector<1x1x8x32xbf16>,
      scf.yield %41, %45 : vector<1x32xf32>, vector<1x32xf32>
    }
    %c8_i32_1 = arith.constant 8 : i32
    %4 = tpu.concatenate %3#0, %3#1 in 0 : vector<1x32xf32>, vector<1x32xf32> -> vector<2x32xf32>
    %c0 = arith.constant 0 : index
    %c0_2 = arith.constant 0 : index
    %c0_3 = arith.constant 0 : index
    %5 = vector.load %arg4[%c0, %c0_2, %c0_3] : memref<1x2x32xf32, #tpu.memory_space<vmem>>, vector<1x2x32xf32>
    %6 = vector.shape_cast %5 : vector<1x2x32xf32> to vector<2x32xf32>
    %7 = vector.shape_cast %4 : vector<2x32xf32> to vector<1x2x32xf32>
    tpu.vector_store %arg4[%c0, %c0_2, %c0_3], %7 {strides = array<i32>} : memref<1x2x32xf32, #tpu.memory_space<vmem>>, vector<1x2x32xf32>,
    return
  }
  func.func @transform_0(%arg0: i32) -> (i32, i32, i32, i32) {
    %c0_i32 = arith.constant 0 : i32
    %c0_i32_0 = arith.constant 0 : i32
    %c0_i32_1 = arith.constant 0 : i32
    %c0_i32_2 = arith.constant 0 : i32
    return %arg0, %c0_i32, %c0_i32_0, %c0_i32_1 : i32, i32, i32, i32
  }
  func.func @transform_1(%arg0: i32) -> (i32, i32, i32) {
    %c0_i32 = arith.constant 0 : i32
    %c0_i32_0 = arith.constant 0 : i32
    %c0_i32_1 = arith.constant 0 : i32
    %c0_i32_2 = arith.constant 0 : i32
    return %c0_i32, %c0_i32_0, %c0_i32_1 : i32, i32, i32
  }
  func.func @transform_2(%arg0: i32) -> (i32, i32, i32, i32) {
    %c0_i32 = arith.constant 0 : i32
    %c0_i32_0 = arith.constant 0 : i32
    %c0_i32_1 = arith.constant 0 : i32
    %c0_i32_2 = arith.constant 0 : i32
    return %arg0, %c0_i32, %c0_i32_0, %c0_i32_1 : i32, i32, i32, i32
  }
  func.func @transform_3(%arg0: i32) -> (i32, i32, i32) {
    %c0_i32 = arith.constant 0 : i32
    %c0_i32_0 = arith.constant 0 : i32
    %c0_i32_1 = arith.constant 0 : i32
    return %arg0, %c0_i32, %c0_i32_0 : i32, i32, i32
  }
}

module attributes {stable_mosaic.version = 11 : i64} {
  func.func @kernel(%arg0: i32, %arg1: memref<128x32xbf16, #tpu.memory_space<vmem>>, %arg2: memref<1x32xf32, #tpu.memory_space<vmem>>, %arg3: memref<1x32xf32, #tpu.memory_space<vmem>>, %arg4: memref<128x32xbf16, #tpu.memory_space<vmem>>) attributes {dimension_semantics = [#tpu.dimension_semantics<parallel>], iteration_bounds = array<i64: 1>, scalar_prefetch = 0 : i64, scratch_operands = 0 : i64, tpu.core_type = #tpu.core_type<tc>, window_params = [{transform_indices = @transform_0, window_bounds = array<i64: 128, 32>}, {pipeline_mode = #tpu.pipeline_mode<synchronous>, transform_indices = @transform_1, window_bounds = array<i64: 1, 32>}, {pipeline_mode = #tpu.pipeline_mode<synchronous>, transform_indices = @transform_2, window_bounds = array<i64: 1, 32>}, {transform_indices = @transform_3, window_bounds = array<i64: 128, 32>}]} {
    %c0 = arith.constant 0 : index
    %c0_0 = arith.constant 0 : index
    %0 = vector.load %arg1[%c0, %c0_0] : memref<128x32xbf16, #tpu.memory_space<vmem>>, vector<128x32xbf16>
    %1 = arith.extf %0 : vector<128x32xbf16> to vector<128x32xf32>
    %c0_1 = arith.constant 0 : index
    %c0_2 = arith.constant 0 : index
    %2 = vector.load %arg2[%c0_1, %c0_2] : memref<1x32xf32, #tpu.memory_space<vmem>>, vector<1x32xf32>
    %3 = vector.broadcast %2 : vector<1x32xf32> to vector<128x32xf32>
    %4 = arith.mulf %1, %3 : vector<128x32xf32>
    %c0_3 = arith.constant 0 : index
    %c0_4 = arith.constant 0 : index
    %5 = vector.load %arg3[%c0_3, %c0_4] : memref<1x32xf32, #tpu.memory_space<vmem>>, vector<1x32xf32>
    %6 = vector.broadcast %5 : vector<1x32xf32> to vector<128x32xf32>
    %7 = arith.addf %4, %6 : vector<128x32xf32>
    %cst = arith.constant 0.000000e+00 : f32
    %8 = vector.broadcast %cst : f32 to vector<128x32xf32>
    %9 = arith.cmpf oge, %7, %8 : vector<128x32xf32>
    %cst_5 = arith.constant 2.000000e-01 : f32
    %10 = vector.broadcast %cst_5 : f32 to vector<128x32xf32>
    %11 = arith.mulf %10, %7 : vector<128x32xf32>
    %12 = arith.select %9, %7, %11 : vector<128x32xi1>, vector<128x32xf32>
    %13 = arith.truncf %12 : vector<128x32xf32> to vector<128x32xbf16>
    %c0_6 = arith.constant 0 : index
    %c0_7 = arith.constant 0 : index
    %14 = vector.load %arg4[%c0_6, %c0_7] : memref<128x32xbf16, #tpu.memory_space<vmem>>, vector<128x32xbf16>
    tpu.vector_store %arg4[%c0_6, %c0_7], %13 {strides = array<i32>} : memref<128x32xbf16, #tpu.memory_space<vmem>>, vector<128x32xbf16>,
    return
  }
  func.func @transform_0(%arg0: i32) -> (i32, i32) {
    %c0_i32 = arith.constant 0 : i32
    %c0_i32_0 = arith.constant 0 : i32
    return %arg0, %c0_i32 : i32, i32
  }
  func.func @transform_1(%arg0: i32) -> (i32, i32) {
    %c0_i32 = arith.constant 0 : i32
    %c0_i32_0 = arith.constant 0 : i32
    %c0_i32_1 = arith.constant 0 : i32
    return %c0_i32, %c0_i32_0 : i32, i32
  }
  func.func @transform_2(%arg0: i32) -> (i32, i32) {
    %c0_i32 = arith.constant 0 : i32
    %c0_i32_0 = arith.constant 0 : i32
    %c0_i32_1 = arith.constant 0 : i32
    return %c0_i32, %c0_i32_0 : i32, i32
  }
  func.func @transform_3(%arg0: i32) -> (i32, i32) {
    %c0_i32 = arith.constant 0 : i32
    %c0_i32_0 = arith.constant 0 : i32
    return %arg0, %c0_i32 : i32, i32
  }
}

module attributes {stable_mosaic.version = 11 : i64} {
  func.func @kernel(%arg0: i32, %arg1: memref<1x5x5x128xbf16, #tpu.memory_space<vmem>>, %arg2: memref<4x128x64xbf16, #tpu.memory_space<vmem>>, %arg3: memref<1x4x4x64xbf16, #tpu.memory_space<vmem>>, %arg4: memref<1x2x64xf32, #tpu.memory_space<vmem>>) attributes {dimension_semantics = [#tpu.dimension_semantics<parallel>], iteration_bounds = array<i64: 2>, scalar_prefetch = 0 : i64, scratch_operands = 0 : i64, tpu.core_type = #tpu.core_type<tc>, window_params = [{transform_indices = @transform_0, window_bounds = array<i64: 1, 5, 5, 128>}, {pipeline_mode = #tpu.pipeline_mode<synchronous>, transform_indices = @transform_1, window_bounds = array<i64: 4, 128, 64>}, {transform_indices = @transform_2, window_bounds = array<i64: 1, 4, 4, 64>}, {transform_indices = @transform_3, window_bounds = array<i64: 1, 2, 64>}]} {
    %cst = arith.constant 0.000000e+00 : f32
    %0 = vector.broadcast %cst : f32 to vector<1x64xf32>
    %cst_0 = arith.constant 0.000000e+00 : f32
    %1 = vector.broadcast %cst_0 : f32 to vector<1x64xf32>
    %c0_i32 = arith.constant 0 : i32
    %c4_i32 = arith.constant 4 : i32
    %2 = arith.addi %c0_i32, %c4_i32 : i32
    %c1_i32 = arith.constant 1 : i32
    %3:2 = scf.for %arg5 = %c0_i32 to %2 step %c1_i32 iter_args(%arg6 = %0, %arg7 = %1) -> (vector<1x64xf32>, vector<1x64xf32>)  : i32 {
      %c0_i32_4 = arith.constant 0 : i32
      %8 = arith.addi %arg5, %c0_i32_4 : i32
      %c0_5 = arith.constant 0 : index
      %9 = arith.index_cast %8 : i32 to index
      %c0_6 = arith.constant 0 : index
      %c0_7 = arith.constant 0 : index
      %10 = vector.load %arg1[%c0_5, %9, %c0_6, %c0_7] : memref<1x5x5x128xbf16, #tpu.memory_space<vmem>>, vector<1x1x4x128xbf16>
      %11 = vector.shape_cast %10 : vector<1x1x4x128xbf16> to vector<4x128xbf16>
      %c0_8 = arith.constant 0 : index
      %c0_9 = arith.constant 0 : index
      %c0_10 = arith.constant 0 : index
      %12 = vector.load %arg2[%c0_8, %c0_9, %c0_10] : memref<4x128x64xbf16, #tpu.memory_space<vmem>>, vector<1x128x64xbf16>
      %13 = vector.shape_cast %12 : vector<1x128x64xbf16> to vector<128x64xbf16>
      %cst_11 = arith.constant dense<0.000000e+00> : vector<4x64xf32>
      %14 = tpu.matmul %11, %13, %cst_11 {dimension_numbers = #tpu.dot_dimension_numbers<[1], [0], [0], [1], [0, 0, 1, 1], [], []>} : vector<4x128xbf16>, vector<128x64xbf16>, vector<4x64xf32> -> vector<4x64xf32>
      %c0_i32_12 = arith.constant 0 : i32
      %15 = arith.addi %arg5, %c0_i32_12 : i32
      %c0_13 = arith.constant 0 : index
      %16 = arith.index_cast %15 : i32 to index
      %c1 = arith.constant 1 : index
      %c0_14 = arith.constant 0 : index
      %17 = vector.load %arg1[%c0_13, %16, %c1, %c0_14] : memref<1x5x5x128xbf16, #tpu.memory_space<vmem>>, vector<1x1x4x128xbf16>
      %18 = vector.shape_cast %17 : vector<1x1x4x128xbf16> to vector<4x128xbf16>
      %c1_15 = arith.constant 1 : index
      %c0_16 = arith.constant 0 : index
      %c0_17 = arith.constant 0 : index
      %19 = vector.load %arg2[%c1_15, %c0_16, %c0_17] : memref<4x128x64xbf16, #tpu.memory_space<vmem>>, vector<1x128x64xbf16>
      %20 = vector.shape_cast %19 : vector<1x128x64xbf16> to vector<128x64xbf16>
      %cst_18 = arith.constant dense<0.000000e+00> : vector<4x64xf32>
      %21 = tpu.matmul %18, %20, %cst_18 {dimension_numbers = #tpu.dot_dimension_numbers<[1], [0], [0], [1], [0, 0, 1, 1], [], []>} : vector<4x128xbf16>, vector<128x64xbf16>, vector<4x64xf32> -> vector<4x64xf32>
      %22 = arith.addf %14, %21 : vector<4x64xf32>
      %c1_i32_19 = arith.constant 1 : i32
      %23 = arith.addi %arg5, %c1_i32_19 : i32
      %c0_20 = arith.constant 0 : index
      %24 = arith.index_cast %23 : i32 to index
      %c0_21 = arith.constant 0 : index
      %c0_22 = arith.constant 0 : index
      %25 = vector.load %arg1[%c0_20, %24, %c0_21, %c0_22] : memref<1x5x5x128xbf16, #tpu.memory_space<vmem>>, vector<1x1x4x128xbf16>
      %26 = vector.shape_cast %25 : vector<1x1x4x128xbf16> to vector<4x128xbf16>
      %c2 = arith.constant 2 : index
      %c0_23 = arith.constant 0 : index
      %c0_24 = arith.constant 0 : index
      %27 = vector.load %arg2[%c2, %c0_23, %c0_24] : memref<4x128x64xbf16, #tpu.memory_space<vmem>>, vector<1x128x64xbf16>
      %28 = vector.shape_cast %27 : vector<1x128x64xbf16> to vector<128x64xbf16>
      %cst_25 = arith.constant dense<0.000000e+00> : vector<4x64xf32>
      %29 = tpu.matmul %26, %28, %cst_25 {dimension_numbers = #tpu.dot_dimension_numbers<[1], [0], [0], [1], [0, 0, 1, 1], [], []>} : vector<4x128xbf16>, vector<128x64xbf16>, vector<4x64xf32> -> vector<4x64xf32>
      %30 = arith.addf %22, %29 : vector<4x64xf32>
      %c1_i32_26 = arith.constant 1 : i32
      %31 = arith.addi %arg5, %c1_i32_26 : i32
      %c0_27 = arith.constant 0 : index
      %32 = arith.index_cast %31 : i32 to index
      %c1_28 = arith.constant 1 : index
      %c0_29 = arith.constant 0 : index
      %33 = vector.load %arg1[%c0_27, %32, %c1_28, %c0_29] : memref<1x5x5x128xbf16, #tpu.memory_space<vmem>>, vector<1x1x4x128xbf16>
      %34 = vector.shape_cast %33 : vector<1x1x4x128xbf16> to vector<4x128xbf16>
      %c3 = arith.constant 3 : index
      %c0_30 = arith.constant 0 : index
      %c0_31 = arith.constant 0 : index
      %35 = vector.load %arg2[%c3, %c0_30, %c0_31] : memref<4x128x64xbf16, #tpu.memory_space<vmem>>, vector<1x128x64xbf16>
      %36 = vector.shape_cast %35 : vector<1x128x64xbf16> to vector<128x64xbf16>
      %cst_32 = arith.constant dense<0.000000e+00> : vector<4x64xf32>
      %37 = tpu.matmul %34, %36, %cst_32 {dimension_numbers = #tpu.dot_dimension_numbers<[1], [0], [0], [1], [0, 0, 1, 1], [], []>} : vector<4x128xbf16>, vector<128x64xbf16>, vector<4x64xf32> -> vector<4x64xf32>
      %38 = arith.addf %30, %37 : vector<4x64xf32>
      %cst_33 = arith.constant dense<0.000000e+00> : vector<64xf32>
      %39 = vector.multi_reduction <add>, %38, %cst_33 [0] : vector<4x64xf32> to vector<64xf32>
      %40 = vector.shape_cast %39 : vector<64xf32> to vector<1x64xf32>
      %41 = arith.addf %arg6, %40 : vector<1x64xf32>
      %42 = arith.mulf %38, %38 : vector<4x64xf32>
      %cst_34 = arith.constant dense<0.000000e+00> : vector<64xf32>
      %43 = vector.multi_reduction <add>, %42, %cst_34 [0] : vector<4x64xf32> to vector<64xf32>
      %44 = vector.shape_cast %43 : vector<64xf32> to vector<1x64xf32>
      %45 = arith.addf %arg7, %44 : vector<1x64xf32>
      %46 = arith.truncf %38 : vector<4x64xf32> to vector<4x64xbf16>
      %c0_35 = arith.constant 0 : index
      %47 = arith.index_cast %arg5 : i32 to index
      %c0_36 = arith.constant 0 : index
      %c0_37 = arith.constant 0 : index
      %48 = vector.load %arg3[%c0_35, %47, %c0_36, %c0_37] : memref<1x4x4x64xbf16, #tpu.memory_space<vmem>>, vector<1x1x4x64xbf16>
      %49 = vector.shape_cast %48 : vector<1x1x4x64xbf16> to vector<4x64xbf16>
      %50 = vector.shape_cast %46 : vector<4x64xbf16> to vector<1x1x4x64xbf16>
      tpu.vector_store %arg3[%c0_35, %47, %c0_36, %c0_37], %50 {strides = array<i32>} : memref<1x4x4x64xbf16, #tpu.memory_space<vmem>>, vector<1x1x4x64xbf16>,
      scf.yield %41, %45 : vector<1x64xf32>, vector<1x64xf32>
    }
    %c4_i32_1 = arith.constant 4 : i32
    %4 = tpu.concatenate %3#0, %3#1 in 0 : vector<1x64xf32>, vector<1x64xf32> -> vector<2x64xf32>
    %c0 = arith.constant 0 : index
    %c0_2 = arith.constant 0 : index
    %c0_3 = arith.constant 0 : index
    %5 = vector.load %arg4[%c0, %c0_2, %c0_3] : memref<1x2x64xf32, #tpu.memory_space<vmem>>, vector<1x2x64xf32>
    %6 = vector.shape_cast %5 : vector<1x2x64xf32> to vector<2x64xf32>
    %7 = vector.shape_cast %4 : vector<2x64xf32> to vector<1x2x64xf32>
    tpu.vector_store %arg4[%c0, %c0_2, %c0_3], %7 {strides = array<i32>} : memref<1x2x64xf32, #tpu.memory_space<vmem>>, vector<1x2x64xf32>,
    return
  }
  func.func @transform_0(%arg0: i32) -> (i32, i32, i32, i32) {
    %c0_i32 = arith.constant 0 : i32
    %c0_i32_0 = arith.constant 0 : i32
    %c0_i32_1 = arith.constant 0 : i32
    %c0_i32_2 = arith.constant 0 : i32
    return %arg0, %c0_i32, %c0_i32_0, %c0_i32_1 : i32, i32, i32, i32
  }
  func.func @transform_1(%arg0: i32) -> (i32, i32, i32) {
    %c0_i32 = arith.constant 0 : i32
    %c0_i32_0 = arith.constant 0 : i32
    %c0_i32_1 = arith.constant 0 : i32
    %c0_i32_2 = arith.constant 0 : i32
    return %c0_i32, %c0_i32_0, %c0_i32_1 : i32, i32, i32
  }
  func.func @transform_2(%arg0: i32) -> (i32, i32, i32, i32) {
    %c0_i32 = arith.constant 0 : i32
    %c0_i32_0 = arith.constant 0 : i32
    %c0_i32_1 = arith.constant 0 : i32
    %c0_i32_2 = arith.constant 0 : i32
    return %arg0, %c0_i32, %c0_i32_0, %c0_i32_1 : i32, i32, i32, i32
  }
  func.func @transform_3(%arg0: i32) -> (i32, i32, i32) {
    %c0_i32 = arith.constant 0 : i32
    %c0_i32_0 = arith.constant 0 : i32
    %c0_i32_1 = arith.constant 0 : i32
    return %arg0, %c0_i32, %c0_i32_0 : i32, i32, i32
  }
}

module attributes {stable_mosaic.version = 11 : i64} {
  func.func @kernel(%arg0: i32, %arg1: memref<1x6x6x64xbf16, #tpu.memory_space<vmem>>, %arg2: memref<16x64x128xbf16, #tpu.memory_space<vmem>>, %arg3: memref<1x3x3x128xbf16, #tpu.memory_space<vmem>>, %arg4: memref<1x2x128xf32, #tpu.memory_space<vmem>>) attributes {dimension_semantics = [#tpu.dimension_semantics<parallel>], iteration_bounds = array<i64: 2>, scalar_prefetch = 0 : i64, scratch_operands = 0 : i64, tpu.core_type = #tpu.core_type<tc>, window_params = [{transform_indices = @transform_0, window_bounds = array<i64: 1, 6, 6, 64>}, {pipeline_mode = #tpu.pipeline_mode<synchronous>, transform_indices = @transform_1, window_bounds = array<i64: 16, 64, 128>}, {transform_indices = @transform_2, window_bounds = array<i64: 1, 3, 3, 128>}, {transform_indices = @transform_3, window_bounds = array<i64: 1, 2, 128>}]} {
    %cst = arith.constant 0.000000e+00 : f32
    %0 = vector.broadcast %cst : f32 to vector<1x128xf32>
    %cst_0 = arith.constant 0.000000e+00 : f32
    %1 = vector.broadcast %cst_0 : f32 to vector<1x128xf32>
    %c0_i32 = arith.constant 0 : i32
    %c3_i32 = arith.constant 3 : i32
    %2 = arith.addi %c0_i32, %c3_i32 : i32
    %c1_i32 = arith.constant 1 : i32
    %3:2 = scf.for %arg5 = %c0_i32 to %2 step %c1_i32 iter_args(%arg6 = %0, %arg7 = %1) -> (vector<1x128xf32>, vector<1x128xf32>)  : i32 {
      %c0_i32_4 = arith.constant 0 : i32
      %8 = arith.addi %arg5, %c0_i32_4 : i32
      %c0_5 = arith.constant 0 : index
      %9 = arith.index_cast %8 : i32 to index
      %c0_6 = arith.constant 0 : index
      %c0_7 = arith.constant 0 : index
      %10 = vector.load %arg1[%c0_5, %9, %c0_6, %c0_7] : memref<1x6x6x64xbf16, #tpu.memory_space<vmem>>, vector<1x1x3x64xbf16>
      %11 = vector.shape_cast %10 : vector<1x1x3x64xbf16> to vector<3x64xbf16>
      %c0_8 = arith.constant 0 : index
      %c0_9 = arith.constant 0 : index
      %c0_10 = arith.constant 0 : index
      %12 = vector.load %arg2[%c0_8, %c0_9, %c0_10] : memref<16x64x128xbf16, #tpu.memory_space<vmem>>, vector<1x64x128xbf16>
      %13 = vector.shape_cast %12 : vector<1x64x128xbf16> to vector<64x128xbf16>
      %cst_11 = arith.constant dense<0.000000e+00> : vector<3x128xf32>
      %14 = tpu.matmul %11, %13, %cst_11 {dimension_numbers = #tpu.dot_dimension_numbers<[1], [0], [0], [1], [0, 0, 1, 1], [], []>} : vector<3x64xbf16>, vector<64x128xbf16>, vector<3x128xf32> -> vector<3x128xf32>
      %c0_i32_12 = arith.constant 0 : i32
      %15 = arith.addi %arg5, %c0_i32_12 : i32
      %c0_13 = arith.constant 0 : index
      %16 = arith.index_cast %15 : i32 to index
      %c1 = arith.constant 1 : index
      %c0_14 = arith.constant 0 : index
      %17 = vector.load %arg1[%c0_13, %16, %c1, %c0_14] : memref<1x6x6x64xbf16, #tpu.memory_space<vmem>>, vector<1x1x3x64xbf16>
      %18 = vector.shape_cast %17 : vector<1x1x3x64xbf16> to vector<3x64xbf16>
      %c1_15 = arith.constant 1 : index
      %c0_16 = arith.constant 0 : index
      %c0_17 = arith.constant 0 : index
      %19 = vector.load %arg2[%c1_15, %c0_16, %c0_17] : memref<16x64x128xbf16, #tpu.memory_space<vmem>>, vector<1x64x128xbf16>
      %20 = vector.shape_cast %19 : vector<1x64x128xbf16> to vector<64x128xbf16>
      %cst_18 = arith.constant dense<0.000000e+00> : vector<3x128xf32>
      %21 = tpu.matmul %18, %20, %cst_18 {dimension_numbers = #tpu.dot_dimension_numbers<[1], [0], [0], [1], [0, 0, 1, 1], [], []>} : vector<3x64xbf16>, vector<64x128xbf16>, vector<3x128xf32> -> vector<3x128xf32>
      %22 = arith.addf %14, %21 : vector<3x128xf32>
      %c0_i32_19 = arith.constant 0 : i32
      %23 = arith.addi %arg5, %c0_i32_19 : i32
      %c0_20 = arith.constant 0 : index
      %24 = arith.index_cast %23 : i32 to index
      %c2 = arith.constant 2 : index
      %c0_21 = arith.constant 0 : index
      %25 = vector.load %arg1[%c0_20, %24, %c2, %c0_21] : memref<1x6x6x64xbf16, #tpu.memory_space<vmem>>, vector<1x1x3x64xbf16>
      %26 = vector.shape_cast %25 : vector<1x1x3x64xbf16> to vector<3x64xbf16>
      %c2_22 = arith.constant 2 : index
      %c0_23 = arith.constant 0 : index
      %c0_24 = arith.constant 0 : index
      %27 = vector.load %arg2[%c2_22, %c0_23, %c0_24] : memref<16x64x128xbf16, #tpu.memory_space<vmem>>, vector<1x64x128xbf16>
      %28 = vector.shape_cast %27 : vector<1x64x128xbf16> to vector<64x128xbf16>
      %cst_25 = arith.constant dense<0.000000e+00> : vector<3x128xf32>
      %29 = tpu.matmul %26, %28, %cst_25 {dimension_numbers = #tpu.dot_dimension_numbers<[1], [0], [0], [1], [0, 0, 1, 1], [], []>} : vector<3x64xbf16>, vector<64x128xbf16>, vector<3x128xf32> -> vector<3x128xf32>
      %30 = arith.addf %22, %29 : vector<3x128xf32>
      %c0_i32_26 = arith.constant 0 : i32
      %31 = arith.addi %arg5, %c0_i32_26 : i32
      %c0_27 = arith.constant 0 : index
      %32 = arith.index_cast %31 : i32 to index
      %c3 = arith.constant 3 : index
      %c0_28 = arith.constant 0 : index
      %33 = vector.load %arg1[%c0_27, %32, %c3, %c0_28] : memref<1x6x6x64xbf16, #tpu.memory_space<vmem>>, vector<1x1x3x64xbf16>
      %34 = vector.shape_cast %33 : vector<1x1x3x64xbf16> to vector<3x64xbf16>
      %c3_29 = arith.constant 3 : index
      %c0_30 = arith.constant 0 : index
      %c0_31 = arith.constant 0 : index
      %35 = vector.load %arg2[%c3_29, %c0_30, %c0_31] : memref<16x64x128xbf16, #tpu.memory_space<vmem>>, vector<1x64x128xbf16>
      %36 = vector.shape_cast %35 : vector<1x64x128xbf16> to vector<64x128xbf16>
      %cst_32 = arith.constant dense<0.000000e+00> : vector<3x128xf32>
      %37 = tpu.matmul %34, %36, %cst_32 {dimension_numbers = #tpu.dot_dimension_numbers<[1], [0], [0], [1], [0, 0, 1, 1], [], []>} : vector<3x64xbf16>, vector<64x128xbf16>, vector<3x128xf32> -> vector<3x128xf32>
      %38 = arith.addf %30, %37 : vector<3x128xf32>
      %c1_i32_33 = arith.constant 1 : i32
      %39 = arith.addi %arg5, %c1_i32_33 : i32
      %c0_34 = arith.constant 0 : index
      %40 = arith.index_cast %39 : i32 to index
      %c0_35 = arith.constant 0 : index
      %c0_36 = arith.constant 0 : index
      %41 = vector.load %arg1[%c0_34, %40, %c0_35, %c0_36] : memref<1x6x6x64xbf16, #tpu.memory_space<vmem>>, vector<1x1x3x64xbf16>
      %42 = vector.shape_cast %41 : vector<1x1x3x64xbf16> to vector<3x64xbf16>
      %c4 = arith.constant 4 : index
      %c0_37 = arith.constant 0 : index
      %c0_38 = arith.constant 0 : index
      %43 = vector.load %arg2[%c4, %c0_37, %c0_38] : memref<16x64x128xbf16, #tpu.memory_space<vmem>>, vector<1x64x128xbf16>
      %44 = vector.shape_cast %43 : vector<1x64x128xbf16> to vector<64x128xbf16>
      %cst_39 = arith.constant dense<0.000000e+00> : vector<3x128xf32>
      %45 = tpu.matmul %42, %44, %cst_39 {dimension_numbers = #tpu.dot_dimension_numbers<[1], [0], [0], [1], [0, 0, 1, 1], [], []>} : vector<3x64xbf16>, vector<64x128xbf16>, vector<3x128xf32> -> vector<3x128xf32>
      %46 = arith.addf %38, %45 : vector<3x128xf32>
      %c1_i32_40 = arith.constant 1 : i32
      %47 = arith.addi %arg5, %c1_i32_40 : i32
      %c0_41 = arith.constant 0 : index
      %48 = arith.index_cast %47 : i32 to index
      %c1_42 = arith.constant 1 : index
      %c0_43 = arith.constant 0 : index
      %49 = vector.load %arg1[%c0_41, %48, %c1_42, %c0_43] : memref<1x6x6x64xbf16, #tpu.memory_space<vmem>>, vector<1x1x3x64xbf16>
      %50 = vector.shape_cast %49 : vector<1x1x3x64xbf16> to vector<3x64xbf16>
      %c5 = arith.constant 5 : index
      %c0_44 = arith.constant 0 : index
      %c0_45 = arith.constant 0 : index
      %51 = vector.load %arg2[%c5, %c0_44, %c0_45] : memref<16x64x128xbf16, #tpu.memory_space<vmem>>, vector<1x64x128xbf16>
      %52 = vector.shape_cast %51 : vector<1x64x128xbf16> to vector<64x128xbf16>
      %cst_46 = arith.constant dense<0.000000e+00> : vector<3x128xf32>
      %53 = tpu.matmul %50, %52, %cst_46 {dimension_numbers = #tpu.dot_dimension_numbers<[1], [0], [0], [1], [0, 0, 1, 1], [], []>} : vector<3x64xbf16>, vector<64x128xbf16>, vector<3x128xf32> -> vector<3x128xf32>
      %54 = arith.addf %46, %53 : vector<3x128xf32>
      %c1_i32_47 = arith.constant 1 : i32
      %55 = arith.addi %arg5, %c1_i32_47 : i32
      %c0_48 = arith.constant 0 : index
      %56 = arith.index_cast %55 : i32 to index
      %c2_49 = arith.constant 2 : index
      %c0_50 = arith.constant 0 : index
      %57 = vector.load %arg1[%c0_48, %56, %c2_49, %c0_50] : memref<1x6x6x64xbf16, #tpu.memory_space<vmem>>, vector<1x1x3x64xbf16>
      %58 = vector.shape_cast %57 : vector<1x1x3x64xbf16> to vector<3x64xbf16>
      %c6 = arith.constant 6 : index
      %c0_51 = arith.constant 0 : index
      %c0_52 = arith.constant 0 : index
      %59 = vector.load %arg2[%c6, %c0_51, %c0_52] : memref<16x64x128xbf16, #tpu.memory_space<vmem>>, vector<1x64x128xbf16>
      %60 = vector.shape_cast %59 : vector<1x64x128xbf16> to vector<64x128xbf16>
      %cst_53 = arith.constant dense<0.000000e+00> : vector<3x128xf32>
      %61 = tpu.matmul %58, %60, %cst_53 {dimension_numbers = #tpu.dot_dimension_numbers<[1], [0], [0], [1], [0, 0, 1, 1], [], []>} : vector<3x64xbf16>, vector<64x128xbf16>, vector<3x128xf32> -> vector<3x128xf32>
      %62 = arith.addf %54, %61 : vector<3x128xf32>
      %c1_i32_54 = arith.constant 1 : i32
      %63 = arith.addi %arg5, %c1_i32_54 : i32
      %c0_55 = arith.constant 0 : index
      %64 = arith.index_cast %63 : i32 to index
      %c3_56 = arith.constant 3 : index
      %c0_57 = arith.constant 0 : index
      %65 = vector.load %arg1[%c0_55, %64, %c3_56, %c0_57] : memref<1x6x6x64xbf16, #tpu.memory_space<vmem>>, vector<1x1x3x64xbf16>
      %66 = vector.shape_cast %65 : vector<1x1x3x64xbf16> to vector<3x64xbf16>
      %c7 = arith.constant 7 : index
      %c0_58 = arith.constant 0 : index
      %c0_59 = arith.constant 0 : index
      %67 = vector.load %arg2[%c7, %c0_58, %c0_59] : memref<16x64x128xbf16, #tpu.memory_space<vmem>>, vector<1x64x128xbf16>
      %68 = vector.shape_cast %67 : vector<1x64x128xbf16> to vector<64x128xbf16>
      %cst_60 = arith.constant dense<0.000000e+00> : vector<3x128xf32>
      %69 = tpu.matmul %66, %68, %cst_60 {dimension_numbers = #tpu.dot_dimension_numbers<[1], [0], [0], [1], [0, 0, 1, 1], [], []>} : vector<3x64xbf16>, vector<64x128xbf16>, vector<3x128xf32> -> vector<3x128xf32>
      %70 = arith.addf %62, %69 : vector<3x128xf32>
      %c2_i32 = arith.constant 2 : i32
      %71 = arith.addi %arg5, %c2_i32 : i32
      %c0_61 = arith.constant 0 : index
      %72 = arith.index_cast %71 : i32 to index
      %c0_62 = arith.constant 0 : index
      %c0_63 = arith.constant 0 : index
      %73 = vector.load %arg1[%c0_61, %72, %c0_62, %c0_63] : memref<1x6x6x64xbf16, #tpu.memory_space<vmem>>, vector<1x1x3x64xbf16>
      %74 = vector.shape_cast %73 : vector<1x1x3x64xbf16> to vector<3x64xbf16>
      %c8 = arith.constant 8 : index
      %c0_64 = arith.constant 0 : index
      %c0_65 = arith.constant 0 : index
      %75 = vector.load %arg2[%c8, %c0_64, %c0_65] : memref<16x64x128xbf16, #tpu.memory_space<vmem>>, vector<1x64x128xbf16>
      %76 = vector.shape_cast %75 : vector<1x64x128xbf16> to vector<64x128xbf16>
      %cst_66 = arith.constant dense<0.000000e+00> : vector<3x128xf32>
      %77 = tpu.matmul %74, %76, %cst_66 {dimension_numbers = #tpu.dot_dimension_numbers<[1], [0], [0], [1], [0, 0, 1, 1], [], []>} : vector<3x64xbf16>, vector<64x128xbf16>, vector<3x128xf32> -> vector<3x128xf32>
      %78 = arith.addf %70, %77 : vector<3x128xf32>
      %c2_i32_67 = arith.constant 2 : i32
      %79 = arith.addi %arg5, %c2_i32_67 : i32
      %c0_68 = arith.constant 0 : index
      %80 = arith.index_cast %79 : i32 to index
      %c1_69 = arith.constant 1 : index
      %c0_70 = arith.constant 0 : index
      %81 = vector.load %arg1[%c0_68, %80, %c1_69, %c0_70] : memref<1x6x6x64xbf16, #tpu.memory_space<vmem>>, vector<1x1x3x64xbf16>
      %82 = vector.shape_cast %81 : vector<1x1x3x64xbf16> to vector<3x64xbf16>
      %c9 = arith.constant 9 : index
      %c0_71 = arith.constant 0 : index
      %c0_72 = arith.constant 0 : index
      %83 = vector.load %arg2[%c9, %c0_71, %c0_72] : memref<16x64x128xbf16, #tpu.memory_space<vmem>>, vector<1x64x128xbf16>
      %84 = vector.shape_cast %83 : vector<1x64x128xbf16> to vector<64x128xbf16>
      %cst_73 = arith.constant dense<0.000000e+00> : vector<3x128xf32>
      %85 = tpu.matmul %82, %84, %cst_73 {dimension_numbers = #tpu.dot_dimension_numbers<[1], [0], [0], [1], [0, 0, 1, 1], [], []>} : vector<3x64xbf16>, vector<64x128xbf16>, vector<3x128xf32> -> vector<3x128xf32>
      %86 = arith.addf %78, %85 : vector<3x128xf32>
      %c2_i32_74 = arith.constant 2 : i32
      %87 = arith.addi %arg5, %c2_i32_74 : i32
      %c0_75 = arith.constant 0 : index
      %88 = arith.index_cast %87 : i32 to index
      %c2_76 = arith.constant 2 : index
      %c0_77 = arith.constant 0 : index
      %89 = vector.load %arg1[%c0_75, %88, %c2_76, %c0_77] : memref<1x6x6x64xbf16, #tpu.memory_space<vmem>>, vector<1x1x3x64xbf16>
      %90 = vector.shape_cast %89 : vector<1x1x3x64xbf16> to vector<3x64xbf16>
      %c10 = arith.constant 10 : index
      %c0_78 = arith.constant 0 : index
      %c0_79 = arith.constant 0 : index
      %91 = vector.load %arg2[%c10, %c0_78, %c0_79] : memref<16x64x128xbf16, #tpu.memory_space<vmem>>, vector<1x64x128xbf16>
      %92 = vector.shape_cast %91 : vector<1x64x128xbf16> to vector<64x128xbf16>
      %cst_80 = arith.constant dense<0.000000e+00> : vector<3x128xf32>
      %93 = tpu.matmul %90, %92, %cst_80 {dimension_numbers = #tpu.dot_dimension_numbers<[1], [0], [0], [1], [0, 0, 1, 1], [], []>} : vector<3x64xbf16>, vector<64x128xbf16>, vector<3x128xf32> -> vector<3x128xf32>
      %94 = arith.addf %86, %93 : vector<3x128xf32>
      %c2_i32_81 = arith.constant 2 : i32
      %95 = arith.addi %arg5, %c2_i32_81 : i32
      %c0_82 = arith.constant 0 : index
      %96 = arith.index_cast %95 : i32 to index
      %c3_83 = arith.constant 3 : index
      %c0_84 = arith.constant 0 : index
      %97 = vector.load %arg1[%c0_82, %96, %c3_83, %c0_84] : memref<1x6x6x64xbf16, #tpu.memory_space<vmem>>, vector<1x1x3x64xbf16>
      %98 = vector.shape_cast %97 : vector<1x1x3x64xbf16> to vector<3x64xbf16>
      %c11 = arith.constant 11 : index
      %c0_85 = arith.constant 0 : index
      %c0_86 = arith.constant 0 : index
      %99 = vector.load %arg2[%c11, %c0_85, %c0_86] : memref<16x64x128xbf16, #tpu.memory_space<vmem>>, vector<1x64x128xbf16>
      %100 = vector.shape_cast %99 : vector<1x64x128xbf16> to vector<64x128xbf16>
      %cst_87 = arith.constant dense<0.000000e+00> : vector<3x128xf32>
      %101 = tpu.matmul %98, %100, %cst_87 {dimension_numbers = #tpu.dot_dimension_numbers<[1], [0], [0], [1], [0, 0, 1, 1], [], []>} : vector<3x64xbf16>, vector<64x128xbf16>, vector<3x128xf32> -> vector<3x128xf32>
      %102 = arith.addf %94, %101 : vector<3x128xf32>
      %c3_i32_88 = arith.constant 3 : i32
      %103 = arith.addi %arg5, %c3_i32_88 : i32
      %c0_89 = arith.constant 0 : index
      %104 = arith.index_cast %103 : i32 to index
      %c0_90 = arith.constant 0 : index
      %c0_91 = arith.constant 0 : index
      %105 = vector.load %arg1[%c0_89, %104, %c0_90, %c0_91] : memref<1x6x6x64xbf16, #tpu.memory_space<vmem>>, vector<1x1x3x64xbf16>
      %106 = vector.shape_cast %105 : vector<1x1x3x64xbf16> to vector<3x64xbf16>
      %c12 = arith.constant 12 : index
      %c0_92 = arith.constant 0 : index
      %c0_93 = arith.constant 0 : index
      %107 = vector.load %arg2[%c12, %c0_92, %c0_93] : memref<16x64x128xbf16, #tpu.memory_space<vmem>>, vector<1x64x128xbf16>
      %108 = vector.shape_cast %107 : vector<1x64x128xbf16> to vector<64x128xbf16>
      %cst_94 = arith.constant dense<0.000000e+00> : vector<3x128xf32>
      %109 = tpu.matmul %106, %108, %cst_94 {dimension_numbers = #tpu.dot_dimension_numbers<[1], [0], [0], [1], [0, 0, 1, 1], [], []>} : vector<3x64xbf16>, vector<64x128xbf16>, vector<3x128xf32> -> vector<3x128xf32>
      %110 = arith.addf %102, %109 : vector<3x128xf32>
      %c3_i32_95 = arith.constant 3 : i32
      %111 = arith.addi %arg5, %c3_i32_95 : i32
      %c0_96 = arith.constant 0 : index
      %112 = arith.index_cast %111 : i32 to index
      %c1_97 = arith.constant 1 : index
      %c0_98 = arith.constant 0 : index
      %113 = vector.load %arg1[%c0_96, %112, %c1_97, %c0_98] : memref<1x6x6x64xbf16, #tpu.memory_space<vmem>>, vector<1x1x3x64xbf16>
      %114 = vector.shape_cast %113 : vector<1x1x3x64xbf16> to vector<3x64xbf16>
      %c13 = arith.constant 13 : index
      %c0_99 = arith.constant 0 : index
      %c0_100 = arith.constant 0 : index
      %115 = vector.load %arg2[%c13, %c0_99, %c0_100] : memref<16x64x128xbf16, #tpu.memory_space<vmem>>, vector<1x64x128xbf16>
      %116 = vector.shape_cast %115 : vector<1x64x128xbf16> to vector<64x128xbf16>
      %cst_101 = arith.constant dense<0.000000e+00> : vector<3x128xf32>
      %117 = tpu.matmul %114, %116, %cst_101 {dimension_numbers = #tpu.dot_dimension_numbers<[1], [0], [0], [1], [0, 0, 1, 1], [], []>} : vector<3x64xbf16>, vector<64x128xbf16>, vector<3x128xf32> -> vector<3x128xf32>
      %118 = arith.addf %110, %117 : vector<3x128xf32>
      %c3_i32_102 = arith.constant 3 : i32
      %119 = arith.addi %arg5, %c3_i32_102 : i32
      %c0_103 = arith.constant 0 : index
      %120 = arith.index_cast %119 : i32 to index
      %c2_104 = arith.constant 2 : index
      %c0_105 = arith.constant 0 : index
      %121 = vector.load %arg1[%c0_103, %120, %c2_104, %c0_105] : memref<1x6x6x64xbf16, #tpu.memory_space<vmem>>, vector<1x1x3x64xbf16>
      %122 = vector.shape_cast %121 : vector<1x1x3x64xbf16> to vector<3x64xbf16>
      %c14 = arith.constant 14 : index
      %c0_106 = arith.constant 0 : index
      %c0_107 = arith.constant 0 : index
      %123 = vector.load %arg2[%c14, %c0_106, %c0_107] : memref<16x64x128xbf16, #tpu.memory_space<vmem>>, vector<1x64x128xbf16>
      %124 = vector.shape_cast %123 : vector<1x64x128xbf16> to vector<64x128xbf16>
      %cst_108 = arith.constant dense<0.000000e+00> : vector<3x128xf32>
      %125 = tpu.matmul %122, %124, %cst_108 {dimension_numbers = #tpu.dot_dimension_numbers<[1], [0], [0], [1], [0, 0, 1, 1], [], []>} : vector<3x64xbf16>, vector<64x128xbf16>, vector<3x128xf32> -> vector<3x128xf32>
      %126 = arith.addf %118, %125 : vector<3x128xf32>
      %c3_i32_109 = arith.constant 3 : i32
      %127 = arith.addi %arg5, %c3_i32_109 : i32
      %c0_110 = arith.constant 0 : index
      %128 = arith.index_cast %127 : i32 to index
      %c3_111 = arith.constant 3 : index
      %c0_112 = arith.constant 0 : index
      %129 = vector.load %arg1[%c0_110, %128, %c3_111, %c0_112] : memref<1x6x6x64xbf16, #tpu.memory_space<vmem>>, vector<1x1x3x64xbf16>
      %130 = vector.shape_cast %129 : vector<1x1x3x64xbf16> to vector<3x64xbf16>
      %c15 = arith.constant 15 : index
      %c0_113 = arith.constant 0 : index
      %c0_114 = arith.constant 0 : index
      %131 = vector.load %arg2[%c15, %c0_113, %c0_114] : memref<16x64x128xbf16, #tpu.memory_space<vmem>>, vector<1x64x128xbf16>
      %132 = vector.shape_cast %131 : vector<1x64x128xbf16> to vector<64x128xbf16>
      %cst_115 = arith.constant dense<0.000000e+00> : vector<3x128xf32>
      %133 = tpu.matmul %130, %132, %cst_115 {dimension_numbers = #tpu.dot_dimension_numbers<[1], [0], [0], [1], [0, 0, 1, 1], [], []>} : vector<3x64xbf16>, vector<64x128xbf16>, vector<3x128xf32> -> vector<3x128xf32>
      %134 = arith.addf %126, %133 : vector<3x128xf32>
      %cst_116 = arith.constant dense<0.000000e+00> : vector<128xf32>
      %135 = vector.multi_reduction <add>, %134, %cst_116 [0] : vector<3x128xf32> to vector<128xf32>
      %136 = vector.shape_cast %135 : vector<128xf32> to vector<1x128xf32>
      %137 = arith.addf %arg6, %136 : vector<1x128xf32>
      %138 = arith.mulf %134, %134 : vector<3x128xf32>
      %cst_117 = arith.constant dense<0.000000e+00> : vector<128xf32>
      %139 = vector.multi_reduction <add>, %138, %cst_117 [0] : vector<3x128xf32> to vector<128xf32>
      %140 = vector.shape_cast %139 : vector<128xf32> to vector<1x128xf32>
      %141 = arith.addf %arg7, %140 : vector<1x128xf32>
      %142 = arith.truncf %134 : vector<3x128xf32> to vector<3x128xbf16>
      %c0_118 = arith.constant 0 : index
      %143 = arith.index_cast %arg5 : i32 to index
      %c0_119 = arith.constant 0 : index
      %c0_120 = arith.constant 0 : index
      %144 = vector.load %arg3[%c0_118, %143, %c0_119, %c0_120] : memref<1x3x3x128xbf16, #tpu.memory_space<vmem>>, vector<1x1x3x128xbf16>
      %145 = vector.shape_cast %144 : vector<1x1x3x128xbf16> to vector<3x128xbf16>
      %146 = vector.shape_cast %142 : vector<3x128xbf16> to vector<1x1x3x128xbf16>
      tpu.vector_store %arg3[%c0_118, %143, %c0_119, %c0_120], %146 {strides = array<i32>} : memref<1x3x3x128xbf16, #tpu.memory_space<vmem>>, vector<1x1x3x128xbf16>,
      scf.yield %137, %141 : vector<1x128xf32>, vector<1x128xf32>
    }
    %c3_i32_1 = arith.constant 3 : i32
    %4 = tpu.concatenate %3#0, %3#1 in 0 : vector<1x128xf32>, vector<1x128xf32> -> vector<2x128xf32>
    %c0 = arith.constant 0 : index
    %c0_2 = arith.constant 0 : index
    %c0_3 = arith.constant 0 : index
    %5 = vector.load %arg4[%c0, %c0_2, %c0_3] : memref<1x2x128xf32, #tpu.memory_space<vmem>>, vector<1x2x128xf32>
    %6 = vector.shape_cast %5 : vector<1x2x128xf32> to vector<2x128xf32>
    %7 = vector.shape_cast %4 : vector<2x128xf32> to vector<1x2x128xf32>
    tpu.vector_store %arg4[%c0, %c0_2, %c0_3], %7 {strides = array<i32>} : memref<1x2x128xf32, #tpu.memory_space<vmem>>, vector<1x2x128xf32>,
    return
  }
  func.func @transform_0(%arg0: i32) -> (i32, i32, i32, i32) {
    %c0_i32 = arith.constant 0 : i32
    %c0_i32_0 = arith.constant 0 : i32
    %c0_i32_1 = arith.constant 0 : i32
    %c0_i32_2 = arith.constant 0 : i32
    return %arg0, %c0_i32, %c0_i32_0, %c0_i32_1 : i32, i32, i32, i32
  }
  func.func @transform_1(%arg0: i32) -> (i32, i32, i32) {
    %c0_i32 = arith.constant 0 : i32
    %c0_i32_0 = arith.constant 0 : i32
    %c0_i32_1 = arith.constant 0 : i32
    %c0_i32_2 = arith.constant 0 : i32
    return %c0_i32, %c0_i32_0, %c0_i32_1 : i32, i32, i32
  }
  func.func @transform_2(%arg0: i32) -> (i32, i32, i32, i32) {
    %c0_i32 = arith.constant 0 : i32
    %c0_i32_0 = arith.constant 0 : i32
    %c0_i32_1 = arith.constant 0 : i32
    %c0_i32_2 = arith.constant 0 : i32
    return %arg0, %c0_i32, %c0_i32_0, %c0_i32_1 : i32, i32, i32, i32
  }
  func.func @transform_3(%arg0: i32) -> (i32, i32, i32) {
    %c0_i32 = arith.constant 0 : i32
    %c0_i32_0 = arith.constant 0 : i32
    %c0_i32_1 = arith.constant 0 : i32
    return %arg0, %c0_i32, %c0_i32_0 : i32, i32, i32
  }
}

module attributes {stable_mosaic.version = 11 : i64} {
  func.func @kernel(%arg0: i32, %arg1: memref<32x64xbf16, #tpu.memory_space<vmem>>, %arg2: memref<1x64xf32, #tpu.memory_space<vmem>>, %arg3: memref<1x64xf32, #tpu.memory_space<vmem>>, %arg4: memref<32x64xbf16, #tpu.memory_space<vmem>>) attributes {dimension_semantics = [#tpu.dimension_semantics<parallel>], iteration_bounds = array<i64: 1>, scalar_prefetch = 0 : i64, scratch_operands = 0 : i64, tpu.core_type = #tpu.core_type<tc>, window_params = [{transform_indices = @transform_0, window_bounds = array<i64: 32, 64>}, {pipeline_mode = #tpu.pipeline_mode<synchronous>, transform_indices = @transform_1, window_bounds = array<i64: 1, 64>}, {pipeline_mode = #tpu.pipeline_mode<synchronous>, transform_indices = @transform_2, window_bounds = array<i64: 1, 64>}, {transform_indices = @transform_3, window_bounds = array<i64: 32, 64>}]} {
    %c0 = arith.constant 0 : index
    %c0_0 = arith.constant 0 : index
    %0 = vector.load %arg1[%c0, %c0_0] : memref<32x64xbf16, #tpu.memory_space<vmem>>, vector<32x64xbf16>
    %1 = arith.extf %0 : vector<32x64xbf16> to vector<32x64xf32>
    %c0_1 = arith.constant 0 : index
    %c0_2 = arith.constant 0 : index
    %2 = vector.load %arg2[%c0_1, %c0_2] : memref<1x64xf32, #tpu.memory_space<vmem>>, vector<1x64xf32>
    %3 = vector.broadcast %2 : vector<1x64xf32> to vector<32x64xf32>
    %4 = arith.mulf %1, %3 : vector<32x64xf32>
    %c0_3 = arith.constant 0 : index
    %c0_4 = arith.constant 0 : index
    %5 = vector.load %arg3[%c0_3, %c0_4] : memref<1x64xf32, #tpu.memory_space<vmem>>, vector<1x64xf32>
    %6 = vector.broadcast %5 : vector<1x64xf32> to vector<32x64xf32>
    %7 = arith.addf %4, %6 : vector<32x64xf32>
    %cst = arith.constant 0.000000e+00 : f32
    %8 = vector.broadcast %cst : f32 to vector<32x64xf32>
    %9 = arith.cmpf oge, %7, %8 : vector<32x64xf32>
    %cst_5 = arith.constant 2.000000e-01 : f32
    %10 = vector.broadcast %cst_5 : f32 to vector<32x64xf32>
    %11 = arith.mulf %10, %7 : vector<32x64xf32>
    %12 = arith.select %9, %7, %11 : vector<32x64xi1>, vector<32x64xf32>
    %13 = arith.truncf %12 : vector<32x64xf32> to vector<32x64xbf16>
    %c0_6 = arith.constant 0 : index
    %c0_7 = arith.constant 0 : index
    %14 = vector.load %arg4[%c0_6, %c0_7] : memref<32x64xbf16, #tpu.memory_space<vmem>>, vector<32x64xbf16>
    tpu.vector_store %arg4[%c0_6, %c0_7], %13 {strides = array<i32>} : memref<32x64xbf16, #tpu.memory_space<vmem>>, vector<32x64xbf16>,
    return
  }
  func.func @transform_0(%arg0: i32) -> (i32, i32) {
    %c0_i32 = arith.constant 0 : i32
    %c0_i32_0 = arith.constant 0 : i32
    return %arg0, %c0_i32 : i32, i32
  }
  func.func @transform_1(%arg0: i32) -> (i32, i32) {
    %c0_i32 = arith.constant 0 : i32
    %c0_i32_0 = arith.constant 0 : i32
    %c0_i32_1 = arith.constant 0 : i32
    return %c0_i32, %c0_i32_0 : i32, i32
  }
  func.func @transform_2(%arg0: i32) -> (i32, i32) {
    %c0_i32 = arith.constant 0 : i32
    %c0_i32_0 = arith.constant 0 : i32
    %c0_i32_1 = arith.constant 0 : i32
    return %c0_i32, %c0_i32_0 : i32, i32
  }
  func.func @transform_3(%arg0: i32) -> (i32, i32) {
    %c0_i32 = arith.constant 0 : i32
    %c0_i32_0 = arith.constant 0 : i32
    return %arg0, %c0_i32 : i32, i32
  }
}

module attributes {stable_mosaic.version = 11 : i64} {
  func.func @kernel(%arg0: i32, %arg1: memref<18x128xbf16, #tpu.memory_space<vmem>>, %arg2: memref<1x128xf32, #tpu.memory_space<vmem>>, %arg3: memref<1x128xf32, #tpu.memory_space<vmem>>, %arg4: memref<18x128xbf16, #tpu.memory_space<vmem>>) attributes {dimension_semantics = [#tpu.dimension_semantics<parallel>], iteration_bounds = array<i64: 1>, scalar_prefetch = 0 : i64, scratch_operands = 0 : i64, tpu.core_type = #tpu.core_type<tc>, window_params = [{transform_indices = @transform_0, window_bounds = array<i64: 18, 128>}, {pipeline_mode = #tpu.pipeline_mode<synchronous>, transform_indices = @transform_1, window_bounds = array<i64: 1, 128>}, {pipeline_mode = #tpu.pipeline_mode<synchronous>, transform_indices = @transform_2, window_bounds = array<i64: 1, 128>}, {transform_indices = @transform_3, window_bounds = array<i64: 18, 128>}]} {
    %c0 = arith.constant 0 : index
    %c0_0 = arith.constant 0 : index
    %0 = vector.load %arg1[%c0, %c0_0] : memref<18x128xbf16, #tpu.memory_space<vmem>>, vector<18x128xbf16>
    %1 = arith.extf %0 : vector<18x128xbf16> to vector<18x128xf32>
    %c0_1 = arith.constant 0 : index
    %c0_2 = arith.constant 0 : index
    %2 = vector.load %arg2[%c0_1, %c0_2] : memref<1x128xf32, #tpu.memory_space<vmem>>, vector<1x128xf32>
    %3 = vector.broadcast %2 : vector<1x128xf32> to vector<18x128xf32>
    %4 = arith.mulf %1, %3 : vector<18x128xf32>
    %c0_3 = arith.constant 0 : index
    %c0_4 = arith.constant 0 : index
    %5 = vector.load %arg3[%c0_3, %c0_4] : memref<1x128xf32, #tpu.memory_space<vmem>>, vector<1x128xf32>
    %6 = vector.broadcast %5 : vector<1x128xf32> to vector<18x128xf32>
    %7 = arith.addf %4, %6 : vector<18x128xf32>
    %cst = arith.constant 0.000000e+00 : f32
    %8 = vector.broadcast %cst : f32 to vector<18x128xf32>
    %9 = arith.cmpf oge, %7, %8 : vector<18x128xf32>
    %cst_5 = arith.constant 2.000000e-01 : f32
    %10 = vector.broadcast %cst_5 : f32 to vector<18x128xf32>
    %11 = arith.mulf %10, %7 : vector<18x128xf32>
    %12 = arith.select %9, %7, %11 : vector<18x128xi1>, vector<18x128xf32>
    %13 = arith.truncf %12 : vector<18x128xf32> to vector<18x128xbf16>
    %c0_6 = arith.constant 0 : index
    %c0_7 = arith.constant 0 : index
    %14 = vector.load %arg4[%c0_6, %c0_7] : memref<18x128xbf16, #tpu.memory_space<vmem>>, vector<18x128xbf16>
    tpu.vector_store %arg4[%c0_6, %c0_7], %13 {strides = array<i32>} : memref<18x128xbf16, #tpu.memory_space<vmem>>, vector<18x128xbf16>,
    return
  }
  func.func @transform_0(%arg0: i32) -> (i32, i32) {
    %c0_i32 = arith.constant 0 : i32
    %c0_i32_0 = arith.constant 0 : i32
    return %arg0, %c0_i32 : i32, i32
  }
  func.func @transform_1(%arg0: i32) -> (i32, i32) {
    %c0_i32 = arith.constant 0 : i32
    %c0_i32_0 = arith.constant 0 : i32
    %c0_i32_1 = arith.constant 0 : i32
    return %c0_i32, %c0_i32_0 : i32, i32
  }
  func.func @transform_2(%arg0: i32) -> (i32, i32) {
    %c0_i32 = arith.constant 0 : i32
    %c0_i32_0 = arith.constant 0 : i32
    %c0_i32_1 = arith.constant 0 : i32
    return %c0_i32, %c0_i32_0 : i32, i32
  }
  func.func @transform_3(%arg0: i32) -> (i32, i32) {
    %c0_i32 = arith.constant 0 : i32
    %c0_i32_0 = arith.constant 0 : i32
    return %arg0, %c0_i32 : i32, i32
  }
}

module attributes {stable_mosaic.version = 11 : i64} {
  func.func @kernel(%arg0: i32, %arg1: memref<1x5x5x128xbf16, #tpu.memory_space<vmem>>, %arg2: memref<16x128x128xbf16, #tpu.memory_space<vmem>>, %arg3: memref<1x128xf32, #tpu.memory_space<vmem>>, %arg4: memref<1x2x2x128xf32, #tpu.memory_space<vmem>>) attributes {dimension_semantics = [#tpu.dimension_semantics<parallel>], iteration_bounds = array<i64: 2>, scalar_prefetch = 0 : i64, scratch_operands = 0 : i64, tpu.core_type = #tpu.core_type<tc>, window_params = [{transform_indices = @transform_0, window_bounds = array<i64: 1, 5, 5, 128>}, {pipeline_mode = #tpu.pipeline_mode<synchronous>, transform_indices = @transform_1, window_bounds = array<i64: 16, 128, 128>}, {pipeline_mode = #tpu.pipeline_mode<synchronous>, transform_indices = @transform_2, window_bounds = array<i64: 1, 128>}, {transform_indices = @transform_3, window_bounds = array<i64: 1, 2, 2, 128>}]} {
    %c0_i32 = arith.constant 0 : i32
    %c2_i32 = arith.constant 2 : i32
    %0 = arith.addi %c0_i32, %c2_i32 : i32
    %c1_i32 = arith.constant 1 : i32
    scf.for %arg5 = %c0_i32 to %0 step %c1_i32  : i32 {
      %c0_i32_1 = arith.constant 0 : i32
      %1 = arith.addi %arg5, %c0_i32_1 : i32
      %c0 = arith.constant 0 : index
      %2 = arith.index_cast %1 : i32 to index
      %c0_2 = arith.constant 0 : index
      %c0_3 = arith.constant 0 : index
      %3 = vector.load %arg1[%c0, %2, %c0_2, %c0_3] : memref<1x5x5x128xbf16, #tpu.memory_space<vmem>>, vector<1x1x2x128xbf16>
      %4 = vector.shape_cast %3 : vector<1x1x2x128xbf16> to vector<2x128xbf16>
      %c0_4 = arith.constant 0 : index
      %c0_5 = arith.constant 0 : index
      %c0_6 = arith.constant 0 : index
      %5 = vector.load %arg2[%c0_4, %c0_5, %c0_6] : memref<16x128x128xbf16, #tpu.memory_space<vmem>>, vector<1x128x128xbf16>
      %6 = vector.shape_cast %5 : vector<1x128x128xbf16> to vector<128x128xbf16>
      %cst = arith.constant dense<0.000000e+00> : vector<2x128xf32>
      %7 = tpu.matmul %4, %6, %cst {dimension_numbers = #tpu.dot_dimension_numbers<[1], [0], [0], [1], [0, 0, 1, 1], [], []>} : vector<2x128xbf16>, vector<128x128xbf16>, vector<2x128xf32> -> vector<2x128xf32>
      %c0_i32_7 = arith.constant 0 : i32
      %8 = arith.addi %arg5, %c0_i32_7 : i32
      %c0_8 = arith.constant 0 : index
      %9 = arith.index_cast %8 : i32 to index
      %c1 = arith.constant 1 : index
      %c0_9 = arith.constant 0 : index
      %10 = vector.load %arg1[%c0_8, %9, %c1, %c0_9] : memref<1x5x5x128xbf16, #tpu.memory_space<vmem>>, vector<1x1x2x128xbf16>
      %11 = vector.shape_cast %10 : vector<1x1x2x128xbf16> to vector<2x128xbf16>
      %c1_10 = arith.constant 1 : index
      %c0_11 = arith.constant 0 : index
      %c0_12 = arith.constant 0 : index
      %12 = vector.load %arg2[%c1_10, %c0_11, %c0_12] : memref<16x128x128xbf16, #tpu.memory_space<vmem>>, vector<1x128x128xbf16>
      %13 = vector.shape_cast %12 : vector<1x128x128xbf16> to vector<128x128xbf16>
      %cst_13 = arith.constant dense<0.000000e+00> : vector<2x128xf32>
      %14 = tpu.matmul %11, %13, %cst_13 {dimension_numbers = #tpu.dot_dimension_numbers<[1], [0], [0], [1], [0, 0, 1, 1], [], []>} : vector<2x128xbf16>, vector<128x128xbf16>, vector<2x128xf32> -> vector<2x128xf32>
      %15 = arith.addf %7, %14 : vector<2x128xf32>
      %c0_i32_14 = arith.constant 0 : i32
      %16 = arith.addi %arg5, %c0_i32_14 : i32
      %c0_15 = arith.constant 0 : index
      %17 = arith.index_cast %16 : i32 to index
      %c2 = arith.constant 2 : index
      %c0_16 = arith.constant 0 : index
      %18 = vector.load %arg1[%c0_15, %17, %c2, %c0_16] : memref<1x5x5x128xbf16, #tpu.memory_space<vmem>>, vector<1x1x2x128xbf16>
      %19 = vector.shape_cast %18 : vector<1x1x2x128xbf16> to vector<2x128xbf16>
      %c2_17 = arith.constant 2 : index
      %c0_18 = arith.constant 0 : index
      %c0_19 = arith.constant 0 : index
      %20 = vector.load %arg2[%c2_17, %c0_18, %c0_19] : memref<16x128x128xbf16, #tpu.memory_space<vmem>>, vector<1x128x128xbf16>
      %21 = vector.shape_cast %20 : vector<1x128x128xbf16> to vector<128x128xbf16>
      %cst_20 = arith.constant dense<0.000000e+00> : vector<2x128xf32>
      %22 = tpu.matmul %19, %21, %cst_20 {dimension_numbers = #tpu.dot_dimension_numbers<[1], [0], [0], [1], [0, 0, 1, 1], [], []>} : vector<2x128xbf16>, vector<128x128xbf16>, vector<2x128xf32> -> vector<2x128xf32>
      %23 = arith.addf %15, %22 : vector<2x128xf32>
      %c0_i32_21 = arith.constant 0 : i32
      %24 = arith.addi %arg5, %c0_i32_21 : i32
      %c0_22 = arith.constant 0 : index
      %25 = arith.index_cast %24 : i32 to index
      %c3 = arith.constant 3 : index
      %c0_23 = arith.constant 0 : index
      %26 = vector.load %arg1[%c0_22, %25, %c3, %c0_23] : memref<1x5x5x128xbf16, #tpu.memory_space<vmem>>, vector<1x1x2x128xbf16>
      %27 = vector.shape_cast %26 : vector<1x1x2x128xbf16> to vector<2x128xbf16>
      %c3_24 = arith.constant 3 : index
      %c0_25 = arith.constant 0 : index
      %c0_26 = arith.constant 0 : index
      %28 = vector.load %arg2[%c3_24, %c0_25, %c0_26] : memref<16x128x128xbf16, #tpu.memory_space<vmem>>, vector<1x128x128xbf16>
      %29 = vector.shape_cast %28 : vector<1x128x128xbf16> to vector<128x128xbf16>
      %cst_27 = arith.constant dense<0.000000e+00> : vector<2x128xf32>
      %30 = tpu.matmul %27, %29, %cst_27 {dimension_numbers = #tpu.dot_dimension_numbers<[1], [0], [0], [1], [0, 0, 1, 1], [], []>} : vector<2x128xbf16>, vector<128x128xbf16>, vector<2x128xf32> -> vector<2x128xf32>
      %31 = arith.addf %23, %30 : vector<2x128xf32>
      %c1_i32_28 = arith.constant 1 : i32
      %32 = arith.addi %arg5, %c1_i32_28 : i32
      %c0_29 = arith.constant 0 : index
      %33 = arith.index_cast %32 : i32 to index
      %c0_30 = arith.constant 0 : index
      %c0_31 = arith.constant 0 : index
      %34 = vector.load %arg1[%c0_29, %33, %c0_30, %c0_31] : memref<1x5x5x128xbf16, #tpu.memory_space<vmem>>, vector<1x1x2x128xbf16>
      %35 = vector.shape_cast %34 : vector<1x1x2x128xbf16> to vector<2x128xbf16>
      %c4 = arith.constant 4 : index
      %c0_32 = arith.constant 0 : index
      %c0_33 = arith.constant 0 : index
      %36 = vector.load %arg2[%c4, %c0_32, %c0_33] : memref<16x128x128xbf16, #tpu.memory_space<vmem>>, vector<1x128x128xbf16>
      %37 = vector.shape_cast %36 : vector<1x128x128xbf16> to vector<128x128xbf16>
      %cst_34 = arith.constant dense<0.000000e+00> : vector<2x128xf32>
      %38 = tpu.matmul %35, %37, %cst_34 {dimension_numbers = #tpu.dot_dimension_numbers<[1], [0], [0], [1], [0, 0, 1, 1], [], []>} : vector<2x128xbf16>, vector<128x128xbf16>, vector<2x128xf32> -> vector<2x128xf32>
      %39 = arith.addf %31, %38 : vector<2x128xf32>
      %c1_i32_35 = arith.constant 1 : i32
      %40 = arith.addi %arg5, %c1_i32_35 : i32
      %c0_36 = arith.constant 0 : index
      %41 = arith.index_cast %40 : i32 to index
      %c1_37 = arith.constant 1 : index
      %c0_38 = arith.constant 0 : index
      %42 = vector.load %arg1[%c0_36, %41, %c1_37, %c0_38] : memref<1x5x5x128xbf16, #tpu.memory_space<vmem>>, vector<1x1x2x128xbf16>
      %43 = vector.shape_cast %42 : vector<1x1x2x128xbf16> to vector<2x128xbf16>
      %c5 = arith.constant 5 : index
      %c0_39 = arith.constant 0 : index
      %c0_40 = arith.constant 0 : index
      %44 = vector.load %arg2[%c5, %c0_39, %c0_40] : memref<16x128x128xbf16, #tpu.memory_space<vmem>>, vector<1x128x128xbf16>
      %45 = vector.shape_cast %44 : vector<1x128x128xbf16> to vector<128x128xbf16>
      %cst_41 = arith.constant dense<0.000000e+00> : vector<2x128xf32>
      %46 = tpu.matmul %43, %45, %cst_41 {dimension_numbers = #tpu.dot_dimension_numbers<[1], [0], [0], [1], [0, 0, 1, 1], [], []>} : vector<2x128xbf16>, vector<128x128xbf16>, vector<2x128xf32> -> vector<2x128xf32>
      %47 = arith.addf %39, %46 : vector<2x128xf32>
      %c1_i32_42 = arith.constant 1 : i32
      %48 = arith.addi %arg5, %c1_i32_42 : i32
      %c0_43 = arith.constant 0 : index
      %49 = arith.index_cast %48 : i32 to index
      %c2_44 = arith.constant 2 : index
      %c0_45 = arith.constant 0 : index
      %50 = vector.load %arg1[%c0_43, %49, %c2_44, %c0_45] : memref<1x5x5x128xbf16, #tpu.memory_space<vmem>>, vector<1x1x2x128xbf16>
      %51 = vector.shape_cast %50 : vector<1x1x2x128xbf16> to vector<2x128xbf16>
      %c6 = arith.constant 6 : index
      %c0_46 = arith.constant 0 : index
      %c0_47 = arith.constant 0 : index
      %52 = vector.load %arg2[%c6, %c0_46, %c0_47] : memref<16x128x128xbf16, #tpu.memory_space<vmem>>, vector<1x128x128xbf16>
      %53 = vector.shape_cast %52 : vector<1x128x128xbf16> to vector<128x128xbf16>
      %cst_48 = arith.constant dense<0.000000e+00> : vector<2x128xf32>
      %54 = tpu.matmul %51, %53, %cst_48 {dimension_numbers = #tpu.dot_dimension_numbers<[1], [0], [0], [1], [0, 0, 1, 1], [], []>} : vector<2x128xbf16>, vector<128x128xbf16>, vector<2x128xf32> -> vector<2x128xf32>
      %55 = arith.addf %47, %54 : vector<2x128xf32>
      %c1_i32_49 = arith.constant 1 : i32
      %56 = arith.addi %arg5, %c1_i32_49 : i32
      %c0_50 = arith.constant 0 : index
      %57 = arith.index_cast %56 : i32 to index
      %c3_51 = arith.constant 3 : index
      %c0_52 = arith.constant 0 : index
      %58 = vector.load %arg1[%c0_50, %57, %c3_51, %c0_52] : memref<1x5x5x128xbf16, #tpu.memory_space<vmem>>, vector<1x1x2x128xbf16>
      %59 = vector.shape_cast %58 : vector<1x1x2x128xbf16> to vector<2x128xbf16>
      %c7 = arith.constant 7 : index
      %c0_53 = arith.constant 0 : index
      %c0_54 = arith.constant 0 : index
      %60 = vector.load %arg2[%c7, %c0_53, %c0_54] : memref<16x128x128xbf16, #tpu.memory_space<vmem>>, vector<1x128x128xbf16>
      %61 = vector.shape_cast %60 : vector<1x128x128xbf16> to vector<128x128xbf16>
      %cst_55 = arith.constant dense<0.000000e+00> : vector<2x128xf32>
      %62 = tpu.matmul %59, %61, %cst_55 {dimension_numbers = #tpu.dot_dimension_numbers<[1], [0], [0], [1], [0, 0, 1, 1], [], []>} : vector<2x128xbf16>, vector<128x128xbf16>, vector<2x128xf32> -> vector<2x128xf32>
      %63 = arith.addf %55, %62 : vector<2x128xf32>
      %c2_i32_56 = arith.constant 2 : i32
      %64 = arith.addi %arg5, %c2_i32_56 : i32
      %c0_57 = arith.constant 0 : index
      %65 = arith.index_cast %64 : i32 to index
      %c0_58 = arith.constant 0 : index
      %c0_59 = arith.constant 0 : index
      %66 = vector.load %arg1[%c0_57, %65, %c0_58, %c0_59] : memref<1x5x5x128xbf16, #tpu.memory_space<vmem>>, vector<1x1x2x128xbf16>
      %67 = vector.shape_cast %66 : vector<1x1x2x128xbf16> to vector<2x128xbf16>
      %c8 = arith.constant 8 : index
      %c0_60 = arith.constant 0 : index
      %c0_61 = arith.constant 0 : index
      %68 = vector.load %arg2[%c8, %c0_60, %c0_61] : memref<16x128x128xbf16, #tpu.memory_space<vmem>>, vector<1x128x128xbf16>
      %69 = vector.shape_cast %68 : vector<1x128x128xbf16> to vector<128x128xbf16>
      %cst_62 = arith.constant dense<0.000000e+00> : vector<2x128xf32>
      %70 = tpu.matmul %67, %69, %cst_62 {dimension_numbers = #tpu.dot_dimension_numbers<[1], [0], [0], [1], [0, 0, 1, 1], [], []>} : vector<2x128xbf16>, vector<128x128xbf16>, vector<2x128xf32> -> vector<2x128xf32>
      %71 = arith.addf %63, %70 : vector<2x128xf32>
      %c2_i32_63 = arith.constant 2 : i32
      %72 = arith.addi %arg5, %c2_i32_63 : i32
      %c0_64 = arith.constant 0 : index
      %73 = arith.index_cast %72 : i32 to index
      %c1_65 = arith.constant 1 : index
      %c0_66 = arith.constant 0 : index
      %74 = vector.load %arg1[%c0_64, %73, %c1_65, %c0_66] : memref<1x5x5x128xbf16, #tpu.memory_space<vmem>>, vector<1x1x2x128xbf16>
      %75 = vector.shape_cast %74 : vector<1x1x2x128xbf16> to vector<2x128xbf16>
      %c9 = arith.constant 9 : index
      %c0_67 = arith.constant 0 : index
      %c0_68 = arith.constant 0 : index
      %76 = vector.load %arg2[%c9, %c0_67, %c0_68] : memref<16x128x128xbf16, #tpu.memory_space<vmem>>, vector<1x128x128xbf16>
      %77 = vector.shape_cast %76 : vector<1x128x128xbf16> to vector<128x128xbf16>
      %cst_69 = arith.constant dense<0.000000e+00> : vector<2x128xf32>
      %78 = tpu.matmul %75, %77, %cst_69 {dimension_numbers = #tpu.dot_dimension_numbers<[1], [0], [0], [1], [0, 0, 1, 1], [], []>} : vector<2x128xbf16>, vector<128x128xbf16>, vector<2x128xf32> -> vector<2x128xf32>
      %79 = arith.addf %71, %78 : vector<2x128xf32>
      %c2_i32_70 = arith.constant 2 : i32
      %80 = arith.addi %arg5, %c2_i32_70 : i32
      %c0_71 = arith.constant 0 : index
      %81 = arith.index_cast %80 : i32 to index
      %c2_72 = arith.constant 2 : index
      %c0_73 = arith.constant 0 : index
      %82 = vector.load %arg1[%c0_71, %81, %c2_72, %c0_73] : memref<1x5x5x128xbf16, #tpu.memory_space<vmem>>, vector<1x1x2x128xbf16>
      %83 = vector.shape_cast %82 : vector<1x1x2x128xbf16> to vector<2x128xbf16>
      %c10 = arith.constant 10 : index
      %c0_74 = arith.constant 0 : index
      %c0_75 = arith.constant 0 : index
      %84 = vector.load %arg2[%c10, %c0_74, %c0_75] : memref<16x128x128xbf16, #tpu.memory_space<vmem>>, vector<1x128x128xbf16>
      %85 = vector.shape_cast %84 : vector<1x128x128xbf16> to vector<128x128xbf16>
      %cst_76 = arith.constant dense<0.000000e+00> : vector<2x128xf32>
      %86 = tpu.matmul %83, %85, %cst_76 {dimension_numbers = #tpu.dot_dimension_numbers<[1], [0], [0], [1], [0, 0, 1, 1], [], []>} : vector<2x128xbf16>, vector<128x128xbf16>, vector<2x128xf32> -> vector<2x128xf32>
      %87 = arith.addf %79, %86 : vector<2x128xf32>
      %c2_i32_77 = arith.constant 2 : i32
      %88 = arith.addi %arg5, %c2_i32_77 : i32
      %c0_78 = arith.constant 0 : index
      %89 = arith.index_cast %88 : i32 to index
      %c3_79 = arith.constant 3 : index
      %c0_80 = arith.constant 0 : index
      %90 = vector.load %arg1[%c0_78, %89, %c3_79, %c0_80] : memref<1x5x5x128xbf16, #tpu.memory_space<vmem>>, vector<1x1x2x128xbf16>
      %91 = vector.shape_cast %90 : vector<1x1x2x128xbf16> to vector<2x128xbf16>
      %c11 = arith.constant 11 : index
      %c0_81 = arith.constant 0 : index
      %c0_82 = arith.constant 0 : index
      %92 = vector.load %arg2[%c11, %c0_81, %c0_82] : memref<16x128x128xbf16, #tpu.memory_space<vmem>>, vector<1x128x128xbf16>
      %93 = vector.shape_cast %92 : vector<1x128x128xbf16> to vector<128x128xbf16>
      %cst_83 = arith.constant dense<0.000000e+00> : vector<2x128xf32>
      %94 = tpu.matmul %91, %93, %cst_83 {dimension_numbers = #tpu.dot_dimension_numbers<[1], [0], [0], [1], [0, 0, 1, 1], [], []>} : vector<2x128xbf16>, vector<128x128xbf16>, vector<2x128xf32> -> vector<2x128xf32>
      %95 = arith.addf %87, %94 : vector<2x128xf32>
      %c3_i32 = arith.constant 3 : i32
      %96 = arith.addi %arg5, %c3_i32 : i32
      %c0_84 = arith.constant 0 : index
      %97 = arith.index_cast %96 : i32 to index
      %c0_85 = arith.constant 0 : index
      %c0_86 = arith.constant 0 : index
      %98 = vector.load %arg1[%c0_84, %97, %c0_85, %c0_86] : memref<1x5x5x128xbf16, #tpu.memory_space<vmem>>, vector<1x1x2x128xbf16>
      %99 = vector.shape_cast %98 : vector<1x1x2x128xbf16> to vector<2x128xbf16>
      %c12 = arith.constant 12 : index
      %c0_87 = arith.constant 0 : index
      %c0_88 = arith.constant 0 : index
      %100 = vector.load %arg2[%c12, %c0_87, %c0_88] : memref<16x128x128xbf16, #tpu.memory_space<vmem>>, vector<1x128x128xbf16>
      %101 = vector.shape_cast %100 : vector<1x128x128xbf16> to vector<128x128xbf16>
      %cst_89 = arith.constant dense<0.000000e+00> : vector<2x128xf32>
      %102 = tpu.matmul %99, %101, %cst_89 {dimension_numbers = #tpu.dot_dimension_numbers<[1], [0], [0], [1], [0, 0, 1, 1], [], []>} : vector<2x128xbf16>, vector<128x128xbf16>, vector<2x128xf32> -> vector<2x128xf32>
      %103 = arith.addf %95, %102 : vector<2x128xf32>
      %c3_i32_90 = arith.constant 3 : i32
      %104 = arith.addi %arg5, %c3_i32_90 : i32
      %c0_91 = arith.constant 0 : index
      %105 = arith.index_cast %104 : i32 to index
      %c1_92 = arith.constant 1 : index
      %c0_93 = arith.constant 0 : index
      %106 = vector.load %arg1[%c0_91, %105, %c1_92, %c0_93] : memref<1x5x5x128xbf16, #tpu.memory_space<vmem>>, vector<1x1x2x128xbf16>
      %107 = vector.shape_cast %106 : vector<1x1x2x128xbf16> to vector<2x128xbf16>
      %c13 = arith.constant 13 : index
      %c0_94 = arith.constant 0 : index
      %c0_95 = arith.constant 0 : index
      %108 = vector.load %arg2[%c13, %c0_94, %c0_95] : memref<16x128x128xbf16, #tpu.memory_space<vmem>>, vector<1x128x128xbf16>
      %109 = vector.shape_cast %108 : vector<1x128x128xbf16> to vector<128x128xbf16>
      %cst_96 = arith.constant dense<0.000000e+00> : vector<2x128xf32>
      %110 = tpu.matmul %107, %109, %cst_96 {dimension_numbers = #tpu.dot_dimension_numbers<[1], [0], [0], [1], [0, 0, 1, 1], [], []>} : vector<2x128xbf16>, vector<128x128xbf16>, vector<2x128xf32> -> vector<2x128xf32>
      %111 = arith.addf %103, %110 : vector<2x128xf32>
      %c3_i32_97 = arith.constant 3 : i32
      %112 = arith.addi %arg5, %c3_i32_97 : i32
      %c0_98 = arith.constant 0 : index
      %113 = arith.index_cast %112 : i32 to index
      %c2_99 = arith.constant 2 : index
      %c0_100 = arith.constant 0 : index
      %114 = vector.load %arg1[%c0_98, %113, %c2_99, %c0_100] : memref<1x5x5x128xbf16, #tpu.memory_space<vmem>>, vector<1x1x2x128xbf16>
      %115 = vector.shape_cast %114 : vector<1x1x2x128xbf16> to vector<2x128xbf16>
      %c14 = arith.constant 14 : index
      %c0_101 = arith.constant 0 : index
      %c0_102 = arith.constant 0 : index
      %116 = vector.load %arg2[%c14, %c0_101, %c0_102] : memref<16x128x128xbf16, #tpu.memory_space<vmem>>, vector<1x128x128xbf16>
      %117 = vector.shape_cast %116 : vector<1x128x128xbf16> to vector<128x128xbf16>
      %cst_103 = arith.constant dense<0.000000e+00> : vector<2x128xf32>
      %118 = tpu.matmul %115, %117, %cst_103 {dimension_numbers = #tpu.dot_dimension_numbers<[1], [0], [0], [1], [0, 0, 1, 1], [], []>} : vector<2x128xbf16>, vector<128x128xbf16>, vector<2x128xf32> -> vector<2x128xf32>
      %119 = arith.addf %111, %118 : vector<2x128xf32>
      %c3_i32_104 = arith.constant 3 : i32
      %120 = arith.addi %arg5, %c3_i32_104 : i32
      %c0_105 = arith.constant 0 : index
      %121 = arith.index_cast %120 : i32 to index
      %c3_106 = arith.constant 3 : index
      %c0_107 = arith.constant 0 : index
      %122 = vector.load %arg1[%c0_105, %121, %c3_106, %c0_107] : memref<1x5x5x128xbf16, #tpu.memory_space<vmem>>, vector<1x1x2x128xbf16>
      %123 = vector.shape_cast %122 : vector<1x1x2x128xbf16> to vector<2x128xbf16>
      %c15 = arith.constant 15 : index
      %c0_108 = arith.constant 0 : index
      %c0_109 = arith.constant 0 : index
      %124 = vector.load %arg2[%c15, %c0_108, %c0_109] : memref<16x128x128xbf16, #tpu.memory_space<vmem>>, vector<1x128x128xbf16>
      %125 = vector.shape_cast %124 : vector<1x128x128xbf16> to vector<128x128xbf16>
      %cst_110 = arith.constant dense<0.000000e+00> : vector<2x128xf32>
      %126 = tpu.matmul %123, %125, %cst_110 {dimension_numbers = #tpu.dot_dimension_numbers<[1], [0], [0], [1], [0, 0, 1, 1], [], []>} : vector<2x128xbf16>, vector<128x128xbf16>, vector<2x128xf32> -> vector<2x128xf32>
      %127 = arith.addf %119, %126 : vector<2x128xf32>
      %c0_111 = arith.constant 0 : index
      %c0_112 = arith.constant 0 : index
      %128 = vector.load %arg3[%c0_111, %c0_112] : memref<1x128xf32, #tpu.memory_space<vmem>>, vector<1x128xf32>
      %129 = vector.broadcast %128 : vector<1x128xf32> to vector<2x128xf32>
      %130 = arith.addf %127, %129 : vector<2x128xf32>
      %c0_113 = arith.constant 0 : index
      %131 = arith.index_cast %arg5 : i32 to index
      %c0_114 = arith.constant 0 : index
      %c0_115 = arith.constant 0 : index
      %132 = vector.load %arg4[%c0_113, %131, %c0_114, %c0_115] : memref<1x2x2x128xf32, #tpu.memory_space<vmem>>, vector<1x1x2x128xf32>
      %133 = vector.shape_cast %132 : vector<1x1x2x128xf32> to vector<2x128xf32>
      %134 = vector.shape_cast %130 : vector<2x128xf32> to vector<1x1x2x128xf32>
      tpu.vector_store %arg4[%c0_113, %131, %c0_114, %c0_115], %134 {strides = array<i32>} : memref<1x2x2x128xf32, #tpu.memory_space<vmem>>, vector<1x1x2x128xf32>,
    }
    %c2_i32_0 = arith.constant 2 : i32
    return
  }
  func.func @transform_0(%arg0: i32) -> (i32, i32, i32, i32) {
    %c0_i32 = arith.constant 0 : i32
    %c0_i32_0 = arith.constant 0 : i32
    %c0_i32_1 = arith.constant 0 : i32
    %c0_i32_2 = arith.constant 0 : i32
    return %arg0, %c0_i32, %c0_i32_0, %c0_i32_1 : i32, i32, i32, i32
  }
  func.func @transform_1(%arg0: i32) -> (i32, i32, i32) {
    %c0_i32 = arith.constant 0 : i32
    %c0_i32_0 = arith.constant 0 : i32
    %c0_i32_1 = arith.constant 0 : i32
    %c0_i32_2 = arith.constant 0 : i32
    return %c0_i32, %c0_i32_0, %c0_i32_1 : i32, i32, i32
  }
  func.func @transform_2(%arg0: i32) -> (i32, i32) {
    %c0_i32 = arith.constant 0 : i32
    %c0_i32_0 = arith.constant 0 : i32
    %c0_i32_1 = arith.constant 0 : i32
    return %c0_i32, %c0_i32_0 : i32, i32
  }
  func.func @transform_3(%arg0: i32) -> (i32, i32, i32, i32) {
    %c0_i32 = arith.constant 0 : i32
    %c0_i32_0 = arith.constant 0 : i32
    %c0_i32_1 = arith.constant 0 : i32
    %c0_i32_2 = arith.constant 0 : i32
    return %arg0, %c0_i32, %c0_i32_0, %c0_i32_1 : i32, i32, i32, i32
  }
}

</mosaic_0001>

<llo_original>
// kernel: _lambda_.8
$region0: #{_lambda_.8}
  #allocation0 [shape = 'u32[]', space=smem, size = 0x4, offset = 0x4, fixed_abs, tag = 'smem constant byte address 0x4 - core index']
  #allocation1 [shape = 'u32[144,128]{1,0:T(1,128)}', space=vmem, size = 0x12000, scoped, tag = 'internal scratch']
  %s0 = inlined_call_operand.vmem [shape: bf16[2,17,17,12], index: 0, kind: input, shape index: {}]
  %s1 = inlined_call_operand.vmem [shape: bf16[4,12,16], index: 1, kind: input, shape index: {}]
  %s2 = inlined_call_operand.vmem [shape: f32[1,16], index: 2, kind: input, shape index: {}]
  %s3 = inlined_call_operand.vmem [shape: bf16[2,16,16,16], index: 3, kind: output, shape index: {}]
  %s4 = sld [smem:[#allocation0]]
  $region52: #{_lambda_.8} parent=0
    _
  %s6 = ssub.s32 1, %s4
  %s7 = scalar_select 0, %s6, %s4
  loop: start=0, step=1, limit=4
  $region2: #{_lambda_.8} parent=0 // loop_pre_header
    _
  $region3: #{_lambda_.8} parent=0 // loop_header
    %s9 = sphi 0, %s13
    %p10 = scmp.ge.s32.totalorder %s9, 4
    %s19 = sphi 0, %s21
    %s22 = sphi 0, %s19
    %s23 = sphi 0, %s22
    %s39 = sphi 0, %s23
    %s43 = sphi 0, %s43
    %s45 = sphi 0, %s43
    %s46 = sphi 0, %s45
    %s60 = sphi 0, %s46
    %s64 = sphi 0, %s64
    %s66 = sphi 0, %s64
    %s67 = sphi 0, %s66
    %s81 = sphi 0, %s67
    %s87 = sphi 0, %s89
    %s90 = sphi 0, %s87
    %s91 = sphi 0, %s90
    %s107 = sphi 0, %s91
  $region4: #{_lambda_.8} parent=0 // loop_header_branch
    %12 = sbr.rel (%p10) target = $region8
  $region5: #{_lambda_.8} parent=0 // loop_body
    %s14 = ssub.s32 %s9, 1
    %s15 = ssub.s32 %s9, 2
    %s16 = sadd.s32 %s9, 1
    %s17 = ssub.s32 %s9, %s16
    %p18 = scmp.eq.s32.totalorder %s17, 0
    %s20 = sadd.s32 %s19, 1
    %s21 = scalar_select %p18, %s19, %s20
    %p24 = pneg %p18
    %p25 = scmp.eq.s32.totalorder %s9, 1
    %p26 = por %p24, %p25
    %p27 = scmp.ne.s32.totalorder %s19, %s22
    %p28 = scmp.eq.s32.totalorder %s9, 0
    %p29 = por %p27, %p28
    %p30 = scmp.ne.s32.totalorder %s19, %s22
    %p31 = scmp.eq.s32.totalorder %s14, 1
    %p32 = por %p30, %p31
    %p33 = scmp.ne.s32.totalorder %s22, %s23
    %p34 = scmp.eq.s32.totalorder %s14, 0
    %p35 = por %p33, %p34
    %p36 = scmp.ne.s32.totalorder %s22, %s23
    %p37 = scmp.eq.s32.totalorder %s15, 1
    %p38 = por %p36, %p37
    %p40 = scmp.ne.s32.totalorder %s23, %s39
    %p41 = scmp.eq.s32.totalorder %s15, 0
    %p42 = por %p40, %p41
    %s44 = sadd.s32 %s43, 1
    %p47 = scmp.eq.s32.totalorder %s9, 1
    %p48 = scmp.ne.s32.totalorder %s43, %s45
    %p49 = scmp.eq.s32.totalorder %s9, 0
    %p50 = por %p48, %p49
    %p51 = scmp.ne.s32.totalorder %s43, %s45
    %p52 = scmp.eq.s32.totalorder %s14, 1
    %p53 = por %p51, %p52
    %p54 = scmp.ne.s32.totalorder %s45, %s46
    %p55 = scmp.eq.s32.totalorder %s14, 0
    %p56 = por %p54, %p55
    %p57 = scmp.ne.s32.totalorder %s45, %s46
    %p58 = scmp.eq.s32.totalorder %s15, 1
    %p59 = por %p57, %p58
    %p61 = scmp.ne.s32.totalorder %s46, %s60
    %p62 = scmp.eq.s32.totalorder %s15, 0
    %p63 = por %p61, %p62
    %s65 = sadd.s32 %s64, 1
    %p68 = scmp.eq.s32.totalorder %s9, 1
    %p69 = scmp.ne.s32.totalorder %s64, %s66
    %p70 = scmp.eq.s32.totalorder %s9, 0
    %p71 = por %p69, %p70
    %p72 = scmp.ne.s32.totalorder %s64, %s66
    %p73 = scmp.eq.s32.totalorder %s14, 1
    %p74 = por %p72, %p73
    %p75 = scmp.ne.s32.totalorder %s66, %s67
    %p76 = scmp.eq.s32.totalorder %s14, 0
    %p77 = por %p75, %p76
    %p78 = scmp.ne.s32.totalorder %s66, %s67
    %p79 = scmp.eq.s32.totalorder %s15, 1
    %p80 = por %p78, %p79
    %p82 = scmp.ne.s32.totalorder %s67, %s81
    %p83 = scmp.eq.s32.totalorder %s15, 0
    %p84 = por %p82, %p83
    %s85 = ssub.s32 %s9, %s16
    %p86 = scmp.eq.s32.totalorder %s85, 0
    %s88 = sadd.s32 %s87, 1
    %s89 = scalar_select %p86, %s87, %s88
    %p92 = pneg %p86
    %p93 = scmp.eq.s32.totalorder %s9, 1
    %p94 = por %p92, %p93
    %p95 = scmp.ne.s32.totalorder %s87, %s90
    %p96 = scmp.eq.s32.totalorder %s9, 0
    %p97 = por %p95, %p96
    %p98 = scmp.ne.s32.totalorder %s87, %s90
    %p99 = scmp.eq.s32.totalorder %s14, 1
    %p100 = por %p98, %p99
    %p101 = scmp.ne.s32.totalorder %s90, %s91
    %p102 = scmp.eq.s32.totalorder %s14, 0
    %p103 = por %p101, %p102
    %p104 = scmp.ne.s32.totalorder %s90, %s91
    %p105 = scmp.eq.s32.totalorder %s15, 1
    %p106 = por %p104, %p105
    %p108 = scmp.ne.s32.totalorder %s91, %s107
    %p109 = scmp.eq.s32.totalorder %s15, 0
    %p110 = por %p108, %p109
    %p111 = scmp.le.s32.totalorder 1, %s9
    %p112 = scmp.lt.s32.totalorder %s9, 3
    %p113 = pnand %p111, %p112
    %p114 = pneg %p113
    // Predicated region
    $region9: #{_lambda_.8} parent=5 // pred_check
      _
    $region10: #{_lambda_.8} parent=5 // pred_check_branch
      %116 = sbr.rel (%p113) target = $region12
    $region11: #{_lambda_.8} parent=5 // pred_region
      %s117 = ssub.s32 %s9, 1
      // Predicated region
      $region13: #{_lambda_.8} parent=11 // pred_check
        %p118 = pneg %p56
      $region14: #{_lambda_.8} parent=11 // pred_check_branch
        %120 = sbr.rel (%p118) target = $region16
      $region15: #{_lambda_.8} parent=11 // pred_region
        _
      $region16: #{_lambda_.8} parent=11 // pred_fallthru
        _
      // Predicated region
      $region17: #{_lambda_.8} parent=11 // pred_check
        %p121 = pneg %p77
      $region18: #{_lambda_.8} parent=11 // pred_check_branch
        %123 = sbr.rel (%p121) target = $region20
      $region19: #{_lambda_.8} parent=11 // pred_region
        _
      $region20: #{_lambda_.8} parent=11 // pred_fallthru
        _
    $region12: #{_lambda_.8} parent=5 // pred_fallthru
      _
    %p124 = scmp.lt.s32.totalorder %s9, 2
    // Predicated region
    $region21: #{_lambda_.8} parent=5 // pred_check
      %p125 = pneg %p124
    $region22: #{_lambda_.8} parent=5 // pred_check_branch
      %127 = sbr.rel (%p125) target = $region24
    $region23: #{_lambda_.8} parent=5 // pred_region
      // Predicated region
      $region25: #{_lambda_.8} parent=23 // pred_check
        %p128 = pneg %p29
      $region26: #{_lambda_.8} parent=23 // pred_check_branch
        %130 = sbr.rel (%p128) target = $region28
      $region27: #{_lambda_.8} parent=23 // pred_region
        %p131 = scmp.lt.s32.totalorder %s9, 1
        %s132 = scalar_select %p131, %s9, 1
        %s133 = smul.addr %s132, 51
        %s134 = smul.addr %s133, 4
        %s135 = scalar_lea.vmem %s0, %s134
      $region28: #{_lambda_.8} parent=23 // pred_fallthru
        _
    $region24: #{_lambda_.8} parent=5 // pred_fallthru
      _
    %p136 = scmp.le.s32.totalorder 1, %s9
    %p137 = scmp.lt.s32.totalorder %s9, 3
    %p138 = pnand %p136, %p137
    %p139 = pneg %p138
    // Predicated region
    $region29: #{_lambda_.8} parent=5 // pred_check
      _
    $region30: #{_lambda_.8} parent=5 // pred_check_branch
      %141 = sbr.rel (%p138) target = $region32
    $region31: #{_lambda_.8} parent=5 // pred_region
      %s142 = ssub.s32 %s9, 1
      %p143 = scmp.lt.s32.totalorder %s14, 1
      %s144 = scalar_select %p143, %s14, 1
      %s145 = smul.addr %s144, 51
      %s146 = smul.addr %s145, 4
      %s147 = scalar_lea.vmem %s0, %s146
      %p148 = pneg %p35
      %p149 = pneg %p32
      %p150 = pneg %p56
      %p151 = pneg %p53
      %p152 = pneg %p77
      %p153 = pneg %p74
      %p154 = pneg %p103
      %p155 = pneg %p100
      %p156 = scmp.lt.s32.totalorder %s14, 1
      %s157 = scalar_select %p156, %s14, 1
      %s158 = smul.addr %s157, 32
      %s159 = smul.addr %s158, 4
      %s160 = scalar_lea.vmem %s3, %s159
      %p161 = scmp.lt.s32.totalorder %s14, 1
      %s162 = scalar_select %p161, %s14, 1
      %s163 = smul.addr %s162, 51
      %s164 = smul.addr %s163, 4
      %s165 = scalar_lea.vmem %s0, %s164
      %p166 = scmp.lt.s32.totalorder %s14, 1
      %s167 = scalar_select %p166, %s14, 1
      %s168 = smul.addr %s167, 32
      %s169 = smul.addr %s168, 4
      %s170 = scalar_lea.vmem %s3, %s169
      loop: start=0, step=1, limit=16
      $region33: #{_lambda_.8} parent=31 // loop_pre_header
        _
      $region34: #{_lambda_.8} parent=31 // loop_header
        %s173 = sphi 0, %s177
        %p174 = scmp.ge.s32.totalorder %s173, 16
      $region35: #{_lambda_.8} parent=31 // loop_header_branch
        %176 = sbr.rel (%p174) target = $region39
      $region36: #{_lambda_.8} parent=31 // loop_body
        %s178 = smul.u32 %s173, 3
        %s179 = smul.addr %s178, 4
        %s180 = scalar_lea.vmem %s165, %s179
        %v181 = vld [vmem:[%s180] sm:$0xf]
        %v182 = vld [vmem:[%s180 + $0x4] sm:$0xf]
        %v183 = vld [vmem:[%s1] sm:$0xf]
        %v184 = vld [vmem:[%s1 + $0x4] sm:$0x3]
        %v185 = vld [vmem:[%s180 + $0x8] sm:$0x1]
        %s186 = scalar_lea.vmem %s1, 8
        %v187 = vld [vmem:[%s186] sm:$0xf]
        %v188 = vld [vmem:[%s186 + $0x4] sm:$0x3]
        %v192 = vunpack.c.l.b16 %v181
        %v193 = vunpack.c.l.b16 %v182
        %v194 = vunpack.c.l.b16 %v185
        %v195 = vpack.c.b16 %v193, %v192
        %v196 = vpack.c.b16 %v194, %v194
        %vm197 = vsmask.f32 7424
        %v199 = vshrl.u32 %v195, 16
        %v201 = vshll.u32 %v195, 16
        %v203 = vrot.slane %v201, 1
        %v204 = vor.u32 %v199, %v203
        %v206 = vshll.u32 %v196, 16
        %v208 = vrot.slane %v206, 1
        %v209 = vsel %vm197, %v204, %v208
        %v212 = vunpack.c.l.b16 %v187
        %v213 = vunpack.c.l.b16 %v188
        %v214 = vpack.c.b16 %v213, %v212
        %vm215 = vcmask 97280
        %v217 = vsel %vm215, %v209, 0
        %vm219 = vcmask 1045504
        %v221 = vsel %vm219, %v214, 0
        %223 = vmatprep.subr.bf16.mxu0 0
        %224 = vmatpush1.bf16.msra.mxu0 %v221
        %225 = vmatprep.subr.bf16.mxu0 0
        %226 = vmatpush1.bf16.msra.mxu0 0
        %227 = vmatprep.subr.bf16.mxu0 0
        %228 = vmatpush1.bf16.msra.mxu0 0
        %229 = vmatprep.subr.bf16.mxu0 0
        %230 = vmatpush1.bf16.msra.mxu0 0
        %231 = vmatprep.subr.bf16.mxu0 0
        %232 = vmatpush1.bf16.msra.mxu0 0
        %233 = vmatprep.subr.bf16.mxu0 0
        %234 = vmatpush1.bf16.msra.mxu0 0
        %235 = vmatprep.subr.bf16.mxu0 0
        %236 = vmatpush1.bf16.msra.mxu0 0
        %237 = vmatprep.subr.bf16.mxu0 0
        %238 = vmatpush1.bf16.msra.mxu0 0
        %239 = vmatprep.subr.bf16.mxu0 0
        %240 = vmatpush1.bf16.msra.mxu0 0
        %241 = vmatprep.subr.bf16.mxu0 0
        %242 = vmatpush1.bf16.msra.mxu0 0
        %243 = vmatprep.subr.bf16.mxu0 0
        %244 = vmatpush1.bf16.msra.mxu0 0
        %245 = vmatprep.subr.bf16.mxu0 0
        %246 = vmatpush1.bf16.msra.mxu0 0
        %247 = vmatprep.subr.bf16.mxu0 0
        %248 = vmatpush1.bf16.msra.mxu0 0
        %249 = vmatprep.subr.bf16.mxu0 0
        %250 = vmatpush1.bf16.msra.mxu0 0
        %251 = vmatprep.subr.bf16.mxu0 0
        %252 = vmatpush1.bf16.msra.mxu0 0
        %253 = vmatprep.subr.bf16.mxu0 0
        %254 = vmatpush1.bf16.msra.mxu0 0
        %255 = vmatprep.mubr.bf16.mxu0 0
        %256 = vmatmul.mubr.bf16.gmra.mrb[0].mxu0 %v217
        %v257 = vpop.f32.mrb[0].mxu0
        %v258 = vadd.f32 0.0, %v257
        %v259 = vpop.f32.mrb[0].mxu0
        %v260 = vpop.f32.mrb[0].mxu0
        %v261 = vadd.f32 0.0, %v260
        %v262 = vpop.f32.mrb[0].mxu0
        %263 = vdwg.mxu0
        %v266 = vunpack.c.l.b16 %v183
        %v267 = vunpack.c.l.b16 %v184
        %v268 = vpack.c.b16 %v267, %v266
        %v269 = vsel %vm215, %v195, 0
        %v272 = vsel %vm219, %v268, 0
        %274 = vmatprep.subr.bf16.mxu0 0
        %275 = vmatpush1.bf16.msra.mxu0 %v272
        %276 = vmatprep.subr.bf16.mxu0 0
        %277 = vmatpush1.bf16.msra.mxu0 0
        %278 = vmatprep.subr.bf16.mxu0 0
        %279 = vmatpush1.bf16.msra.mxu0 0
        %280 = vmatprep.subr.bf16.mxu0 0
        %281 = vmatpush1.bf16.msra.mxu0 0
        %282 = vmatprep.subr.bf16.mxu0 0
        %283 = vmatpush1.bf16.msra.mxu0 0
        %284 = vmatprep.subr.bf16.mxu0 0
        %285 = vmatpush1.bf16.msra.mxu0 0
        %286 = vmatprep.subr.bf16.mxu0 0
        %287 = vmatpush1.bf16.msra.mxu0 0
        %288 = vmatprep.subr.bf16.mxu0 0
        %289 = vmatpush1.bf16.msra.mxu0 0
        %290 = vmatprep.subr.bf16.mxu0 0
        %291 = vmatpush1.bf16.msra.mxu0 0
        %292 = vmatprep.subr.bf16.mxu0 0
        %293 = vmatpush1.bf16.msra.mxu0 0
        %294 = vmatprep.subr.bf16.mxu0 0
        %295 = vmatpush1.bf16.msra.mxu0 0
        %296 = vmatprep.subr.bf16.mxu0 0
        %297 = vmatpush1.bf16.msra.mxu0 0
        %298 = vmatprep.subr.bf16.mxu0 0
        %299 = vmatpush1.bf16.msra.mxu0 0
        %300 = vmatprep.subr.bf16.mxu0 0
        %301 = vmatpush1.bf16.msra.mxu0 0
        %302 = vmatprep.subr.bf16.mxu0 0
        %303 = vmatpush1.bf16.msra.mxu0 0
        %304 = vmatprep.subr.bf16.mxu0 0
        %305 = vmatpush1.bf16.msra.mxu0 0
        %306 = vmatprep.mubr.bf16.mxu0 0
        %307 = vmatmul.mubr.bf16.gmra.mrb[0].mxu0 %v269
        %v308 = vpop.f32.mrb[0].mxu0
        %v309 = vadd.f32 %v258, %v308
        %v310 = vpop.f32.mrb[0].mxu0
        %v311 = vpop.f32.mrb[0].mxu0
        %v312 = vadd.f32 %v261, %v311
        %v313 = vpop.f32.mrb[0].mxu0
        %314 = vdwg.mxu0
        %s315 = sadd.s32 %s173, 1
        %s316 = smul.u32 %s315, 3
        %s317 = smul.addr %s316, 4
        %s318 = scalar_lea.vmem %s165, %s317
        %v319 = vld [vmem:[%s318] sm:$0xf]
        %v320 = vld [vmem:[%s318 + $0x4] sm:$0xf]
        %s321 = scalar_lea.vmem %s1, 16
        %v322 = vld [vmem:[%s321] sm:$0xf]
        %v323 = vld [vmem:[%s321 + $0x4] sm:$0x3]
        %v326 = vunpack.c.l.b16 %v319
        %v327 = vunpack.c.l.b16 %v320
        %v328 = vpack.c.b16 %v327, %v326
        %v331 = vunpack.c.l.b16 %v322
        %v332 = vunpack.c.l.b16 %v323
        %v333 = vpack.c.b16 %v332, %v331
        %v335 = vsel %vm215, %v328, 0
        %v338 = vsel %vm219, %v333, 0
        %340 = vmatprep.subr.bf16.mxu0 0
        %341 = vmatpush1.bf16.msra.mxu0 %v338
        %342 = vmatprep.subr.bf16.mxu0 0
        %343 = vmatpush1.bf16.msra.mxu0 0
        %344 = vmatprep.subr.bf16.mxu0 0
        %345 = vmatpush1.bf16.msra.mxu0 0
        %346 = vmatprep.subr.bf16.mxu0 0
        %347 = vmatpush1.bf16.msra.mxu0 0
        %348 = vmatprep.subr.bf16.mxu0 0
        %349 = vmatpush1.bf16.msra.mxu0 0
        %350 = vmatprep.subr.bf16.mxu0 0
        %351 = vmatpush1.bf16.msra.mxu0 0
        %352 = vmatprep.subr.bf16.mxu0 0
        %353 = vmatpush1.bf16.msra.mxu0 0
        %354 = vmatprep.subr.bf16.mxu0 0
        %355 = vmatpush1.bf16.msra.mxu0 0
        %356 = vmatprep.subr.bf16.mxu0 0
        %357 = vmatpush1.bf16.msra.mxu0 0
        %358 = vmatprep.subr.bf16.mxu0 0
        %359 = vmatpush1.bf16.msra.mxu0 0
        %360 = vmatprep.subr.bf16.mxu0 0
        %361 = vmatpush1.bf16.msra.mxu0 0
        %362 = vmatprep.subr.bf16.mxu0 0
        %363 = vmatpush1.bf16.msra.mxu0 0
        %364 = vmatprep.subr.bf16.mxu0 0
        %365 = vmatpush1.bf16.msra.mxu0 0
        %366 = vmatprep.subr.bf16.mxu0 0
        %367 = vmatpush1.bf16.msra.mxu0 0
        %368 = vmatprep.subr.bf16.mxu0 0
        %369 = vmatpush1.bf16.msra.mxu0 0
        %370 = vmatprep.subr.bf16.mxu0 0
        %371 = vmatpush1.bf16.msra.mxu0 0
        %372 = vmatprep.mubr.bf16.mxu0 0
        %373 = vmatmul.mubr.bf16.gmra.mrb[0].mxu0 %v335
        %v374 = vpop.f32.mrb[0].mxu0
        %v375 = vadd.f32 0.0, %v374
        %v376 = vpop.f32.mrb[0].mxu0
        %v377 = vpop.f32.mrb[0].mxu0
        %v378 = vadd.f32 0.0, %v377
        %v379 = vpop.f32.mrb[0].mxu0
        %380 = vdwg.mxu0
        %v381 = vadd.f32 %v309, %v375
        %v382 = vadd.f32 %v312, %v378
        %v383 = vld [vmem:[%s318] sm:$0xf]
        %v384 = vld [vmem:[%s318 + $0x4] sm:$0xf]
        %v385 = vld [vmem:[%s318 + $0x8] sm:$0x1]
        %s386 = scalar_lea.vmem %s1, 24
        %v387 = vld [vmem:[%s386] sm:$0xf]
        %v388 = vld [vmem:[%s386 + $0x4] sm:$0x3]
        %v392 = vunpack.c.l.b16 %v383
        %v393 = vunpack.c.l.b16 %v384
        %v394 = vunpack.c.l.b16 %v385
        %v395 = vpack.c.b16 %v393, %v392
        %v396 = vpack.c.b16 %v394, %v394
        %v398 = vshrl.u32 %v395, 16
        %v400 = vshll.u32 %v395, 16
        %v402 = vrot.slane %v400, 1
        %v403 = vor.u32 %v398, %v402
        %v405 = vshll.u32 %v396, 16
        %v407 = vrot.slane %v405, 1
        %v408 = vsel %vm197, %v403, %v407
        %v411 = vunpack.c.l.b16 %v387
        %v412 = vunpack.c.l.b16 %v388
        %v413 = vpack.c.b16 %v412, %v411
        %v415 = vsel %vm215, %v408, 0
        %v418 = vsel %vm219, %v413, 0
        %420 = vmatprep.subr.bf16.mxu0 0
        %421 = vmatpush1.bf16.msra.mxu0 %v418
        %422 = vmatprep.subr.bf16.mxu0 0
        %423 = vmatpush1.bf16.msra.mxu0 0
        %424 = vmatprep.subr.bf16.mxu0 0
        %425 = vmatpush1.bf16.msra.mxu0 0
        %426 = vmatprep.subr.bf16.mxu0 0
        %427 = vmatpush1.bf16.msra.mxu0 0
        %428 = vmatprep.subr.bf16.mxu0 0
        %429 = vmatpush1.bf16.msra.mxu0 0
        %430 = vmatprep.subr.bf16.mxu0 0
        %431 = vmatpush1.bf16.msra.mxu0 0
        %432 = vmatprep.subr.bf16.mxu0 0
        %433 = vmatpush1.bf16.msra.mxu0 0
        %434 = vmatprep.subr.bf16.mxu0 0
        %435 = vmatpush1.bf16.msra.mxu0 0
        %436 = vmatprep.subr.bf16.mxu0 0
        %437 = vmatpush1.bf16.msra.mxu0 0
        %438 = vmatprep.subr.bf16.mxu0 0
        %439 = vmatpush1.bf16.msra.mxu0 0
        %440 = vmatprep.subr.bf16.mxu0 0
        %441 = vmatpush1.bf16.msra.mxu0 0
        %442 = vmatprep.subr.bf16.mxu0 0
        %443 = vmatpush1.bf16.msra.mxu0 0
        %444 = vmatprep.subr.bf16.mxu0 0
        %445 = vmatpush1.bf16.msra.mxu0 0
        %446 = vmatprep.subr.bf16.mxu0 0
        %447 = vmatpush1.bf16.msra.mxu0 0
        %448 = vmatprep.subr.bf16.mxu0 0
        %449 = vmatpush1.bf16.msra.mxu0 0
        %450 = vmatprep.subr.bf16.mxu0 0
        %451 = vmatpush1.bf16.msra.mxu0 0
        %452 = vmatprep.mubr.bf16.mxu0 0
        %453 = vmatmul.mubr.bf16.gmra.mrb[0].mxu0 %v415
        %v454 = vpop.f32.mrb[0].mxu0
        %v455 = vadd.f32 0.0, %v454
        %v456 = vpop.f32.mrb[0].mxu0
        %v457 = vpop.f32.mrb[0].mxu0
        %v458 = vadd.f32 0.0, %v457
        %v459 = vpop.f32.mrb[0].mxu0
        %460 = vdwg.mxu0
        %v461 = vadd.f32 %v381, %v455
        %v462 = vadd.f32 %v382, %v458
        %v463 = vld [vmem:[%s2] sm:$0x1]
        %v465 = vlaneseq
        %v466 = vshrl.u32 %v465, 7
        %v467 = vsub.s32 0, %v466
        %v468 = vrot.slane %v463, %v467
        %v470 = vadd.f32 %v461, %v468
        %v471 = vadd.f32 %v462, %v468
        %vm472 = vcmp.ge.f32.partialorder %v470, 0.0
        %vm473 = vcmp.ge.f32.partialorder %v471, 0.0
        %v474 = vmul.f32 %v470, 0.2
        %v475 = vmul.f32 %v471, 0.2
        %v476 = vsel %vm472, %v470, %v474
        %v477 = vsel %vm473, %v471, %v475
        %v478 = vpack.c.bf16 %v477, %v476
        %v480 = vunpack.c.l.b16 %v478
        %v481 = vunpack.c.h.b16 %v478
        %v482 = vpack.c.b16 %v480, %v480
        %v483 = vpack.c.b16 %v481, %v481
        %s486 = smul.u32 %s173, 2
        %s487 = smul.addr %s486, 4
        %s488 = scalar_lea.vmem %s170, %s487
        %vm489 = vcmask 125952
        %490 = vst.msk [vmem:[%s488] sm:$0xf] %vm489, %v482
        %491 = vst.msk [vmem:[%s488 + $0x4] sm:$0xf] %vm489, %v483
      $region37: #{_lambda_.8} parent=31 // loop_footer
        %s177 = sadd.s32 1, %s173
      $region38: #{_lambda_.8} parent=31 // loop_footer_branch
        %172 = sbr.rel target = $region34
      $region39: #{_lambda_.8} parent=31 // loop_exit
        _
      %p492 = scmp.lt.s32.totalorder %s14, 1
      %s493 = scalar_select %p492, %s14, 1
      %s494 = smul.addr %s493, 32
      %s495 = smul.addr %s494, 4
      %s496 = scalar_lea.vmem %s3, %s495
      // Predicated region
      $region40: #{_lambda_.8} parent=31 // pred_check
        %p497 = pneg %p100
      $region41: #{_lambda_.8} parent=31 // pred_check_branch
        %499 = sbr.rel (%p497) target = $region43
      $region42: #{_lambda_.8} parent=31 // pred_region
        _
      $region43: #{_lambda_.8} parent=31 // pred_fallthru
        _
    $region32: #{_lambda_.8} parent=5 // pred_fallthru
      _
    %p500 = scmp.le.s32.totalorder 2, %s9
    // Predicated region
    $region44: #{_lambda_.8} parent=5 // pred_check
      %p501 = pneg %p500
    $region45: #{_lambda_.8} parent=5 // pred_check_branch
      %503 = sbr.rel (%p501) target = $region47
    $region46: #{_lambda_.8} parent=5 // pred_region
      %s504 = ssub.s32 %s9, 2
      // Predicated region
      $region48: #{_lambda_.8} parent=46 // pred_check
        %p505 = pneg %p106
      $region49: #{_lambda_.8} parent=46 // pred_check_branch
        %507 = sbr.rel (%p505) target = $region51
      $region50: #{_lambda_.8} parent=46 // pred_region
        %p508 = scmp.lt.s32.totalorder %s15, 1
        %s509 = scalar_select %p508, %s15, 1
        %s510 = smul.addr %s509, 32
        %s511 = smul.addr %s510, 4
        %s512 = scalar_lea.vmem %s3, %s511
      $region51: #{_lambda_.8} parent=46 // pred_fallthru
        _
    $region47: #{_lambda_.8} parent=5 // pred_fallthru
      _
  $region6: #{_lambda_.8} parent=0 // loop_footer
    %s13 = sadd.s32 1, %s9
  $region7: #{_lambda_.8} parent=0 // loop_footer_branch
    %8 = sbr.rel target = $region3
  $region8: #{_lambda_.8} parent=0 // loop_exit
    _

// kernel: _lambda_.9
$region0: #{_lambda_.9}
  #allocation0 [shape = 'u32[]', space=smem, size = 0x4, offset = 0x4, fixed_abs, tag = 'smem constant byte address 0x4 - core index']
  #allocation1 [shape = 'u32[144,128]{1,0:T(1,128)}', space=vmem, size = 0x12000, scoped, tag = 'internal scratch']
  %s0 = inlined_call_operand.vmem [shape: bf16[2,9,9,64], index: 0, kind: input, shape index: {}]
  %s1 = inlined_call_operand.vmem [shape: bf16[4,64,32], index: 1, kind: input, shape index: {}]
  %s2 = inlined_call_operand.vmem [shape: bf16[2,8,8,32], index: 2, kind: output, shape index: {0}]
  %s3 = inlined_call_operand.vmem [shape: f32[2,2,32], index: 3, kind: output, shape index: {1}]
  %4 = xla_tuple %s2, %s3
  %s5 = sld [smem:[#allocation0]]
  $region56: #{_lambda_.9} parent=0
    _
  %s7 = ssub.s32 1, %s5
  %s8 = scalar_select 0, %s7, %s5
  loop: start=0, step=1, limit=4
  $region2: #{_lambda_.9} parent=0 // loop_pre_header
    _
  $region3: #{_lambda_.9} parent=0 // loop_header
    %s10 = sphi 0, %s14
    %p11 = scmp.ge.s32.totalorder %s10, 4
    %s20 = sphi 0, %s22
    %s23 = sphi 0, %s20
    %s24 = sphi 0, %s23
    %s40 = sphi 0, %s24
    %s44 = sphi 0, %s44
    %s46 = sphi 0, %s44
    %s47 = sphi 0, %s46
    %s61 = sphi 0, %s47
    %s67 = sphi 0, %s69
    %s70 = sphi 0, %s67
    %s71 = sphi 0, %s70
    %s87 = sphi 0, %s71
    %s93 = sphi 0, %s95
    %s96 = sphi 0, %s93
    %s97 = sphi 0, %s96
    %s113 = sphi 0, %s97
  $region4: #{_lambda_.9} parent=0 // loop_header_branch
    %13 = sbr.rel (%p11) target = $region8
  $region5: #{_lambda_.9} parent=0 // loop_body
    %s15 = ssub.s32 %s10, 1
    %s16 = ssub.s32 %s10, 2
    %s17 = sadd.s32 %s10, 1
    %s18 = ssub.s32 %s10, %s17
    %p19 = scmp.eq.s32.totalorder %s18, 0
    %s21 = sadd.s32 %s20, 1
    %s22 = scalar_select %p19, %s20, %s21
    %p25 = pneg %p19
    %p26 = scmp.eq.s32.totalorder %s10, 1
    %p27 = por %p25, %p26
    %p28 = scmp.ne.s32.totalorder %s20, %s23
    %p29 = scmp.eq.s32.totalorder %s10, 0
    %p30 = por %p28, %p29
    %p31 = scmp.ne.s32.totalorder %s20, %s23
    %p32 = scmp.eq.s32.totalorder %s15, 1
    %p33 = por %p31, %p32
    %p34 = scmp.ne.s32.totalorder %s23, %s24
    %p35 = scmp.eq.s32.totalorder %s15, 0
    %p36 = por %p34, %p35
    %p37 = scmp.ne.s32.totalorder %s23, %s24
    %p38 = scmp.eq.s32.totalorder %s16, 1
    %p39 = por %p37, %p38
    %p41 = scmp.ne.s32.totalorder %s24, %s40
    %p42 = scmp.eq.s32.totalorder %s16, 0
    %p43 = por %p41, %p42
    %s45 = sadd.s32 %s44, 1
    %p48 = scmp.eq.s32.totalorder %s10, 1
    %p49 = scmp.ne.s32.totalorder %s44, %s46
    %p50 = scmp.eq.s32.totalorder %s10, 0
    %p51 = por %p49, %p50
    %p52 = scmp.ne.s32.totalorder %s44, %s46
    %p53 = scmp.eq.s32.totalorder %s15, 1
    %p54 = por %p52, %p53
    %p55 = scmp.ne.s32.totalorder %s46, %s47
    %p56 = scmp.eq.s32.totalorder %s15, 0
    %p57 = por %p55, %p56
    %p58 = scmp.ne.s32.totalorder %s46, %s47
    %p59 = scmp.eq.s32.totalorder %s16, 1
    %p60 = por %p58, %p59
    %p62 = scmp.ne.s32.totalorder %s47, %s61
    %p63 = scmp.eq.s32.totalorder %s16, 0
    %p64 = por %p62, %p63
    %s65 = ssub.s32 %s10, %s17
    %p66 = scmp.eq.s32.totalorder %s65, 0
    %s68 = sadd.s32 %s67, 1
    %s69 = scalar_select %p66, %s67, %s68
    %p72 = pneg %p66
    %p73 = scmp.eq.s32.totalorder %s10, 1
    %p74 = por %p72, %p73
    %p75 = scmp.ne.s32.totalorder %s67, %s70
    %p76 = scmp.eq.s32.totalorder %s10, 0
    %p77 = por %p75, %p76
    %p78 = scmp.ne.s32.totalorder %s67, %s70
    %p79 = scmp.eq.s32.totalorder %s15, 1
    %p80 = por %p78, %p79
    %p81 = scmp.ne.s32.totalorder %s70, %s71
    %p82 = scmp.eq.s32.totalorder %s15, 0
    %p83 = por %p81, %p82
    %p84 = scmp.ne.s32.totalorder %s70, %s71
    %p85 = scmp.eq.s32.totalorder %s16, 1
    %p86 = por %p84, %p85
    %p88 = scmp.ne.s32.totalorder %s71, %s87
    %p89 = scmp.eq.s32.totalorder %s16, 0
    %p90 = por %p88, %p89
    %s91 = ssub.s32 %s10, %s17
    %p92 = scmp.eq.s32.totalorder %s91, 0
    %s94 = sadd.s32 %s93, 1
    %s95 = scalar_select %p92, %s93, %s94
    %p98 = pneg %p92
    %p99 = scmp.eq.s32.totalorder %s10, 1
    %p100 = por %p98, %p99
    %p101 = scmp.ne.s32.totalorder %s93, %s96
    %p102 = scmp.eq.s32.totalorder %s10, 0
    %p103 = por %p101, %p102
    %p104 = scmp.ne.s32.totalorder %s93, %s96
    %p105 = scmp.eq.s32.totalorder %s15, 1
    %p106 = por %p104, %p105
    %p107 = scmp.ne.s32.totalorder %s96, %s97
    %p108 = scmp.eq.s32.totalorder %s15, 0
    %p109 = por %p107, %p108
    %p110 = scmp.ne.s32.totalorder %s96, %s97
    %p111 = scmp.eq.s32.totalorder %s16, 1
    %p112 = por %p110, %p111
    %p114 = scmp.ne.s32.totalorder %s97, %s113
    %p115 = scmp.eq.s32.totalorder %s16, 0
    %p116 = por %p114, %p115
    %p117 = scmp.le.s32.totalorder 1, %s10
    %p118 = scmp.lt.s32.totalorder %s10, 3
    %p119 = pnand %p117, %p118
    %p120 = pneg %p119
    // Predicated region
    $region9: #{_lambda_.9} parent=5 // pred_check
      _
    $region10: #{_lambda_.9} parent=5 // pred_check_branch
      %122 = sbr.rel (%p119) target = $region12
    $region11: #{_lambda_.9} parent=5 // pred_region
      %s123 = ssub.s32 %s10, 1
      // Predicated region
      $region13: #{_lambda_.9} parent=11 // pred_check
        %p124 = pneg %p57
      $region14: #{_lambda_.9} parent=11 // pred_check_branch
        %126 = sbr.rel (%p124) target = $region16
      $region15: #{_lambda_.9} parent=11 // pred_region
        _
      $region16: #{_lambda_.9} parent=11 // pred_fallthru
        _
    $region12: #{_lambda_.9} parent=5 // pred_fallthru
      _
    %p127 = scmp.lt.s32.totalorder %s10, 2
    // Predicated region
    $region17: #{_lambda_.9} parent=5 // pred_check
      %p128 = pneg %p127
    $region18: #{_lambda_.9} parent=5 // pred_check_branch
      %130 = sbr.rel (%p128) target = $region20
    $region19: #{_lambda_.9} parent=5 // pred_region
      // Predicated region
      $region21: #{_lambda_.9} parent=19 // pred_check
        %p131 = pneg %p30
      $region22: #{_lambda_.9} parent=19 // pred_check_branch
        %133 = sbr.rel (%p131) target = $region24
      $region23: #{_lambda_.9} parent=19 // pred_region
        %p134 = scmp.lt.s32.totalorder %s10, 1
        %s135 = scalar_select %p134, %s10, 1
        %s136 = smul.addr %s135, 18
        %s137 = smul.addr %s136, 4
        %s138 = scalar_lea.vmem %s0, %s137
      $region24: #{_lambda_.9} parent=19 // pred_fallthru
        _
    $region20: #{_lambda_.9} parent=5 // pred_fallthru
      _
    %p139 = scmp.le.s32.totalorder 1, %s10
    %p140 = scmp.lt.s32.totalorder %s10, 3
    %p141 = pnand %p139, %p140
    %p142 = pneg %p141
    // Predicated region
    $region25: #{_lambda_.9} parent=5 // pred_check
      _
    $region26: #{_lambda_.9} parent=5 // pred_check_branch
      %144 = sbr.rel (%p141) target = $region28
    $region27: #{_lambda_.9} parent=5 // pred_region
      %s145 = ssub.s32 %s10, 1
      %p146 = scmp.lt.s32.totalorder %s15, 1
      %s147 = scalar_select %p146, %s15, 1
      %s148 = smul.addr %s147, 18
      %s149 = smul.addr %s148, 4
      %s150 = scalar_lea.vmem %s0, %s149
      %p151 = pneg %p36
      %p152 = pneg %p33
      %p153 = pneg %p57
      %p154 = pneg %p54
      %p155 = pneg %p83
      %p156 = pneg %p80
      %p157 = scmp.lt.s32.totalorder %s15, 1
      %s158 = scalar_select %p157, %s15, 1
      %s159 = smul.addr %s158, 8
      %s160 = smul.addr %s159, 4
      %s161 = scalar_lea.vmem %s2, %s160
      %p162 = pneg %p109
      %p163 = pneg %p106
      %p164 = scmp.lt.s32.totalorder %s15, 1
      %s165 = scalar_select %p164, %s15, 1
      %s166 = smul.addr %s165, 2
      %s167 = scalar_lea.vmem %s3, %s166
      %p168 = scmp.lt.s32.totalorder %s15, 1
      %s169 = scalar_select %p168, %s15, 1
      %s170 = smul.addr %s169, 18
      %s171 = smul.addr %s170, 4
      %s172 = scalar_lea.vmem %s0, %s171
      %p173 = scmp.lt.s32.totalorder %s15, 1
      %s174 = scalar_select %p173, %s15, 1
      %s175 = smul.addr %s174, 8
      %s176 = smul.addr %s175, 4
      %s177 = scalar_lea.vmem %s2, %s176
      %p178 = scmp.lt.s32.totalorder %s15, 1
      %s179 = scalar_select %p178, %s15, 1
      %s180 = smul.addr %s179, 2
      %s181 = scalar_lea.vmem %s3, %s180
      loop: start=0, step=1, limit=8
      $region29: #{_lambda_.9} parent=27 // loop_pre_header
        _
      $region30: #{_lambda_.9} parent=27 // loop_header
        %s184 = sphi 0, %s188
        %p185 = scmp.ge.s32.totalorder %s184, 8
        %v189 = vphi 0.0, %v541
        %v190 = vphi 0.0, %v550
      $region31: #{_lambda_.9} parent=27 // loop_header_branch
        %187 = sbr.rel (%p185) target = $region35
      $region32: #{_lambda_.9} parent=27 // loop_body
        %s191 = smul.u32 %s184, 2
        %s192 = smul.addr %s191, 4
        %s193 = scalar_lea.vmem %s172, %s192
        %v194 = vld [vmem:[%s193] sm:$0xf]
        %v195 = vld [vmem:[%s1] sm:$0xf]
        %v196 = vld [vmem:[%s1 + $0x4] sm:$0xf]
        %v197 = vld [vmem:[%s1 + $0x8] sm:$0xf]
        %v198 = vld [vmem:[%s1 + $0xc] sm:$0xf]
        %v199 = vld [vmem:[%s1 + $0x10] sm:$0xf]
        %v200 = vld [vmem:[%s1 + $0x14] sm:$0xf]
        %v201 = vld [vmem:[%s1 + $0x18] sm:$0xf]
        %v202 = vld [vmem:[%s1 + $0x1c] sm:$0xf]
        %v203 = vld [vmem:[%s193 + $0x4] sm:$0x1]
        %s204 = scalar_lea.vmem %s1, 32
        %v205 = vld [vmem:[%s204] sm:$0xf]
        %v206 = vld [vmem:[%s204 + $0x4] sm:$0xf]
        %v207 = vld [vmem:[%s204 + $0x8] sm:$0xf]
        %v208 = vld [vmem:[%s204 + $0xc] sm:$0xf]
        %v209 = vld [vmem:[%s204 + $0x10] sm:$0xf]
        %v210 = vld [vmem:[%s204 + $0x14] sm:$0xf]
        %v211 = vld [vmem:[%s204 + $0x18] sm:$0xf]
        %v212 = vld [vmem:[%s204 + $0x1c] sm:$0xf]
        %v215 = vunpack.c.l.b16 %v194
        %v216 = vunpack.c.l.b16 %v203
        %v217 = vpack.c.b16 %v216, %v215
        %v219 = vshrl.u32 %v217, 16
        %v221 = vshll.u32 %v217, 16
        %v223 = vrot.slane %v221, 1
        %v224 = vor.u32 %v219, %v223
        %v233 = vunpack.c.l.b16 %v205
        %v234 = vunpack.c.l.b16 %v206
        %v235 = vunpack.c.l.b16 %v207
        %v236 = vunpack.c.l.b16 %v208
        %v237 = vunpack.c.l.b16 %v209
        %v238 = vunpack.c.l.b16 %v210
        %v239 = vunpack.c.l.b16 %v211
        %v240 = vunpack.c.l.b16 %v212
        %v241 = vpack.c.b16 %v234, %v233
        %v242 = vpack.c.b16 %v236, %v235
        %v243 = vpack.c.b16 %v238, %v237
        %v244 = vpack.c.b16 %v240, %v239
        %vm249 = vcmask 523264
        %v251 = vsel %vm249, %v224, 0
        %253 = vmatprep.subr.bf16.mxu0 0
        %254 = vmatpush1.bf16.msra.mxu0 %v241
        %255 = vmatprep.subr.bf16.mxu0 0
        %256 = vmatpush1.bf16.msra.mxu0 %v242
        %257 = vmatprep.subr.bf16.mxu0 0
        %258 = vmatpush1.bf16.msra.mxu0 %v243
        %259 = vmatprep.subr.bf16.mxu0 0
        %260 = vmatpush1.bf16.msra.mxu0 %v244
        %261 = vmatprep.subr.bf16.mxu0 0
        %262 = vmatpush1.bf16.msra.mxu0 0
        %263 = vmatprep.subr.bf16.mxu0 0
        %264 = vmatpush1.bf16.msra.mxu0 0
        %265 = vmatprep.subr.bf16.mxu0 0
        %266 = vmatpush1.bf16.msra.mxu0 0
        %267 = vmatprep.subr.bf16.mxu0 0
        %268 = vmatpush1.bf16.msra.mxu0 0
        %269 = vmatprep.subr.bf16.mxu0 0
        %270 = vmatpush1.bf16.msra.mxu0 0
        %271 = vmatprep.subr.bf16.mxu0 0
        %272 = vmatpush1.bf16.msra.mxu0 0
        %273 = vmatprep.subr.bf16.mxu0 0
        %274 = vmatpush1.bf16.msra.mxu0 0
        %275 = vmatprep.subr.bf16.mxu0 0
        %276 = vmatpush1.bf16.msra.mxu0 0
        %277 = vmatprep.subr.bf16.mxu0 0
        %278 = vmatpush1.bf16.msra.mxu0 0
        %279 = vmatprep.subr.bf16.mxu0 0
        %280 = vmatpush1.bf16.msra.mxu0 0
        %281 = vmatprep.subr.bf16.mxu0 0
        %282 = vmatpush1.bf16.msra.mxu0 0
        %283 = vmatprep.subr.bf16.mxu0 0
        %284 = vmatpush1.bf16.msra.mxu0 0
        %285 = vmatprep.mubr.bf16.mxu0 0
        %286 = vmatmul.mubr.bf16.gmra.mrb[0].mxu0 %v251
        %v287 = vpop.f32.mrb[0].mxu0
        %v288 = vadd.f32 0.0, %v287
        %v289 = vpop.f32.mrb[0].mxu0
        %v290 = vpop.f32.mrb[0].mxu0
        %v291 = vpop.f32.mrb[0].mxu0
        %292 = vdwg.mxu0
        %v301 = vunpack.c.l.b16 %v195
        %v302 = vunpack.c.l.b16 %v196
        %v303 = vunpack.c.l.b16 %v197
        %v304 = vunpack.c.l.b16 %v198
        %v305 = vunpack.c.l.b16 %v199
        %v306 = vunpack.c.l.b16 %v200
        %v307 = vunpack.c.l.b16 %v201
        %v308 = vunpack.c.l.b16 %v202
        %v309 = vpack.c.b16 %v302, %v301
        %v310 = vpack.c.b16 %v304, %v303
        %v311 = vpack.c.b16 %v306, %v305
        %v312 = vpack.c.b16 %v308, %v307
        %v318 = vsel %vm249, %v194, 0
        %320 = vmatprep.subr.bf16.mxu0 0
        %321 = vmatpush1.bf16.msra.mxu0 %v309
        %322 = vmatprep.subr.bf16.mxu0 0
        %323 = vmatpush1.bf16.msra.mxu0 %v310
        %324 = vmatprep.subr.bf16.mxu0 0
        %325 = vmatpush1.bf16.msra.mxu0 %v311
        %326 = vmatprep.subr.bf16.mxu0 0
        %327 = vmatpush1.bf16.msra.mxu0 %v312
        %328 = vmatprep.subr.bf16.mxu0 0
        %329 = vmatpush1.bf16.msra.mxu0 0
        %330 = vmatprep.subr.bf16.mxu0 0
        %331 = vmatpush1.bf16.msra.mxu0 0
        %332 = vmatprep.subr.bf16.mxu0 0
        %333 = vmatpush1.bf16.msra.mxu0 0
        %334 = vmatprep.subr.bf16.mxu0 0
        %335 = vmatpush1.bf16.msra.mxu0 0
        %336 = vmatprep.subr.bf16.mxu0 0
        %337 = vmatpush1.bf16.msra.mxu0 0
        %338 = vmatprep.subr.bf16.mxu0 0
        %339 = vmatpush1.bf16.msra.mxu0 0
        %340 = vmatprep.subr.bf16.mxu0 0
        %341 = vmatpush1.bf16.msra.mxu0 0
        %342 = vmatprep.subr.bf16.mxu0 0
        %343 = vmatpush1.bf16.msra.mxu0 0
        %344 = vmatprep.subr.bf16.mxu0 0
        %345 = vmatpush1.bf16.msra.mxu0 0
        %346 = vmatprep.subr.bf16.mxu0 0
        %347 = vmatpush1.bf16.msra.mxu0 0
        %348 = vmatprep.subr.bf16.mxu0 0
        %349 = vmatpush1.bf16.msra.mxu0 0
        %350 = vmatprep.subr.bf16.mxu0 0
        %351 = vmatpush1.bf16.msra.mxu0 0
        %352 = vmatprep.mubr.bf16.mxu0 0
        %353 = vmatmul.mubr.bf16.gmra.mrb[0].mxu0 %v318
        %v354 = vpop.f32.mrb[0].mxu0
        %v355 = vadd.f32 %v288, %v354
        %v356 = vpop.f32.mrb[0].mxu0
        %v357 = vpop.f32.mrb[0].mxu0
        %v358 = vpop.f32.mrb[0].mxu0
        %359 = vdwg.mxu0
        %s360 = sadd.s32 %s184, 1
        %s361 = smul.u32 %s360, 2
        %s362 = smul.addr %s361, 4
        %s363 = scalar_lea.vmem %s172, %s362
        %v364 = vld [vmem:[%s363] sm:$0xf]
        %s365 = scalar_lea.vmem %s1, 64
        %v366 = vld [vmem:[%s365] sm:$0xf]
        %v367 = vld [vmem:[%s365 + $0x4] sm:$0xf]
        %v368 = vld [vmem:[%s365 + $0x8] sm:$0xf]
        %v369 = vld [vmem:[%s365 + $0xc] sm:$0xf]
        %v370 = vld [vmem:[%s365 + $0x10] sm:$0xf]
        %v371 = vld [vmem:[%s365 + $0x14] sm:$0xf]
        %v372 = vld [vmem:[%s365 + $0x18] sm:$0xf]
        %v373 = vld [vmem:[%s365 + $0x1c] sm:$0xf]
        %v382 = vunpack.c.l.b16 %v366
        %v383 = vunpack.c.l.b16 %v367
        %v384 = vunpack.c.l.b16 %v368
        %v385 = vunpack.c.l.b16 %v369
        %v386 = vunpack.c.l.b16 %v370
        %v387 = vunpack.c.l.b16 %v371
        %v388 = vunpack.c.l.b16 %v372
        %v389 = vunpack.c.l.b16 %v373
        %v390 = vpack.c.b16 %v383, %v382
        %v391 = vpack.c.b16 %v385, %v384
        %v392 = vpack.c.b16 %v387, %v386
        %v393 = vpack.c.b16 %v389, %v388
        %v399 = vsel %vm249, %v364, 0
        %401 = vmatprep.subr.bf16.mxu0 0
        %402 = vmatpush1.bf16.msra.mxu0 %v390
        %403 = vmatprep.subr.bf16.mxu0 0
        %404 = vmatpush1.bf16.msra.mxu0 %v391
        %405 = vmatprep.subr.bf16.mxu0 0
        %406 = vmatpush1.bf16.msra.mxu0 %v392
        %407 = vmatprep.subr.bf16.mxu0 0
        %408 = vmatpush1.bf16.msra.mxu0 %v393
        %409 = vmatprep.subr.bf16.mxu0 0
        %410 = vmatpush1.bf16.msra.mxu0 0
        %411 = vmatprep.subr.bf16.mxu0 0
        %412 = vmatpush1.bf16.msra.mxu0 0
        %413 = vmatprep.subr.bf16.mxu0 0
        %414 = vmatpush1.bf16.msra.mxu0 0
        %415 = vmatprep.subr.bf16.mxu0 0
        %416 = vmatpush1.bf16.msra.mxu0 0
        %417 = vmatprep.subr.bf16.mxu0 0
        %418 = vmatpush1.bf16.msra.mxu0 0
        %419 = vmatprep.subr.bf16.mxu0 0
        %420 = vmatpush1.bf16.msra.mxu0 0
        %421 = vmatprep.subr.bf16.mxu0 0
        %422 = vmatpush1.bf16.msra.mxu0 0
        %423 = vmatprep.subr.bf16.mxu0 0
        %424 = vmatpush1.bf16.msra.mxu0 0
        %425 = vmatprep.subr.bf16.mxu0 0
        %426 = vmatpush1.bf16.msra.mxu0 0
        %427 = vmatprep.subr.bf16.mxu0 0
        %428 = vmatpush1.bf16.msra.mxu0 0
        %429 = vmatprep.subr.bf16.mxu0 0
        %430 = vmatpush1.bf16.msra.mxu0 0
        %431 = vmatprep.subr.bf16.mxu0 0
        %432 = vmatpush1.bf16.msra.mxu0 0
        %433 = vmatprep.mubr.bf16.mxu0 0
        %434 = vmatmul.mubr.bf16.gmra.mrb[0].mxu0 %v399
        %v435 = vpop.f32.mrb[0].mxu0
        %v436 = vadd.f32 0.0, %v435
        %v437 = vpop.f32.mrb[0].mxu0
        %v438 = vpop.f32.mrb[0].mxu0
        %v439 = vpop.f32.mrb[0].mxu0
        %440 = vdwg.mxu0
        %v441 = vadd.f32 %v355, %v436
        %v442 = vld [vmem:[%s363] sm:$0xf]
        %v443 = vld [vmem:[%s363 + $0x4] sm:$0x1]
        %s444 = scalar_lea.vmem %s1, 96
        %v445 = vld [vmem:[%s444] sm:$0xf]
        %v446 = vld [vmem:[%s444 + $0x4] sm:$0xf]
        %v447 = vld [vmem:[%s444 + $0x8] sm:$0xf]
        %v448 = vld [vmem:[%s444 + $0xc] sm:$0xf]
        %v449 = vld [vmem:[%s444 + $0x10] sm:$0xf]
        %v450 = vld [vmem:[%s444 + $0x14] sm:$0xf]
        %v451 = vld [vmem:[%s444 + $0x18] sm:$0xf]
        %v452 = vld [vmem:[%s444 + $0x1c] sm:$0xf]
        %v455 = vunpack.c.l.b16 %v442
        %v456 = vunpack.c.l.b16 %v443
        %v457 = vpack.c.b16 %v456, %v455
        %v459 = vshrl.u32 %v457, 16
        %v461 = vshll.u32 %v457, 16
        %v463 = vrot.slane %v461, 1
        %v464 = vor.u32 %v459, %v463
        %v473 = vunpack.c.l.b16 %v445
        %v474 = vunpack.c.l.b16 %v446
        %v475 = vunpack.c.l.b16 %v447
        %v476 = vunpack.c.l.b16 %v448
        %v477 = vunpack.c.l.b16 %v449
        %v478 = vunpack.c.l.b16 %v450
        %v479 = vunpack.c.l.b16 %v451
        %v480 = vunpack.c.l.b16 %v452
        %v481 = vpack.c.b16 %v474, %v473
        %v482 = vpack.c.b16 %v476, %v475
        %v483 = vpack.c.b16 %v478, %v477
        %v484 = vpack.c.b16 %v480, %v479
        %v490 = vsel %vm249, %v464, 0
        %492 = vmatprep.subr.bf16.mxu0 0
        %493 = vmatpush1.bf16.msra.mxu0 %v481
        %494 = vmatprep.subr.bf16.mxu0 0
        %495 = vmatpush1.bf16.msra.mxu0 %v482
        %496 = vmatprep.subr.bf16.mxu0 0
        %497 = vmatpush1.bf16.msra.mxu0 %v483
        %498 = vmatprep.subr.bf16.mxu0 0
        %499 = vmatpush1.bf16.msra.mxu0 %v484
        %500 = vmatprep.subr.bf16.mxu0 0
        %501 = vmatpush1.bf16.msra.mxu0 0
        %502 = vmatprep.subr.bf16.mxu0 0
        %503 = vmatpush1.bf16.msra.mxu0 0
        %504 = vmatprep.subr.bf16.mxu0 0
        %505 = vmatpush1.bf16.msra.mxu0 0
        %506 = vmatprep.subr.bf16.mxu0 0
        %507 = vmatpush1.bf16.msra.mxu0 0
        %508 = vmatprep.subr.bf16.mxu0 0
        %509 = vmatpush1.bf16.msra.mxu0 0
        %510 = vmatprep.subr.bf16.mxu0 0
        %511 = vmatpush1.bf16.msra.mxu0 0
        %512 = vmatprep.subr.bf16.mxu0 0
        %513 = vmatpush1.bf16.msra.mxu0 0
        %514 = vmatprep.subr.bf16.mxu0 0
        %515 = vmatpush1.bf16.msra.mxu0 0
        %516 = vmatprep.subr.bf16.mxu0 0
        %517 = vmatpush1.bf16.msra.mxu0 0
        %518 = vmatprep.subr.bf16.mxu0 0
        %519 = vmatpush1.bf16.msra.mxu0 0
        %520 = vmatprep.subr.bf16.mxu0 0
        %521 = vmatpush1.bf16.msra.mxu0 0
        %522 = vmatprep.subr.bf16.mxu0 0
        %523 = vmatpush1.bf16.msra.mxu0 0
        %524 = vmatprep.mubr.bf16.mxu0 0
        %525 = vmatmul.mubr.bf16.gmra.mrb[0].mxu0 %v490
        %v526 = vpop.f32.mrb[0].mxu0
        %v527 = vadd.f32 0.0, %v526
        %v528 = vpop.f32.mrb[0].mxu0
        %v529 = vpop.f32.mrb[0].mxu0
        %v530 = vpop.f32.mrb[0].mxu0
        %531 = vdwg.mxu0
        %v532 = vadd.f32 %v441, %v527
        %vm533 = vcmask 261120
        %v534 = vsel %vm533, %v532, 0.0
        %v535 = vrot.slane %v534, 4
        %v536 = vadd.f32 %v534, %v535
        %v537 = vrot.slane %v536, 2
        %v538 = vadd.f32 %v536, %v537
        %v539 = vrot.slane %v538, 1
        %v540 = vadd.f32 %v538, %v539
        %v541 = vadd.f32 %v189, %v540
        %v542 = vmul.f32 %v532, %v532
        %v543 = vsel %vm533, %v542, 0.0
        %v544 = vrot.slane %v543, 4
        %v545 = vadd.f32 %v543, %v544
        %v546 = vrot.slane %v545, 2
        %v547 = vadd.f32 %v545, %v546
        %v548 = vrot.slane %v547, 1
        %v549 = vadd.f32 %v547, %v548
        %v550 = vadd.f32 %v190, %v549
        %v551 = vpack.c.bf16 %v532, %v532
        %s552 = smul.addr %s184, 4
        %s553 = scalar_lea.vmem %s177, %s552
        %vm554 = vcmask 257024
        %555 = vst.msk [vmem:[%s553] sm:$0xf] %vm554, %v551
      $region33: #{_lambda_.9} parent=27 // loop_footer
        %s188 = sadd.s32 1, %s184
      $region34: #{_lambda_.9} parent=27 // loop_footer_branch
        %183 = sbr.rel target = $region30
      $region35: #{_lambda_.9} parent=27 // loop_exit
        _
      %vm556 = vcmask 1040384
      %v557 = vsel %vm556, %v189, %v190
      %vm558 = vcmask 254976
      %559 = vst.msk [vmem:[%s181] sm:$0x3] %vm558, %v557
      %p560 = scmp.lt.s32.totalorder %s15, 1
      %s561 = scalar_select %p560, %s15, 1
      %s562 = smul.addr %s561, 8
      %s563 = smul.addr %s562, 4
      %s564 = scalar_lea.vmem %s2, %s563
      %p565 = scmp.lt.s32.totalorder %s15, 1
      %s566 = scalar_select %p565, %s15, 1
      %s567 = smul.addr %s566, 2
      %s568 = scalar_lea.vmem %s3, %s567
      // Predicated region
      $region36: #{_lambda_.9} parent=27 // pred_check
        %p569 = pneg %p80
      $region37: #{_lambda_.9} parent=27 // pred_check_branch
        %571 = sbr.rel (%p569) target = $region39
      $region38: #{_lambda_.9} parent=27 // pred_region
        _
      $region39: #{_lambda_.9} parent=27 // pred_fallthru
        _
      // Predicated region
      $region40: #{_lambda_.9} parent=27 // pred_check
        %p572 = pneg %p106
      $region41: #{_lambda_.9} parent=27 // pred_check_branch
        %574 = sbr.rel (%p572) target = $region43
      $region42: #{_lambda_.9} parent=27 // pred_region
        _
      $region43: #{_lambda_.9} parent=27 // pred_fallthru
        _
    $region28: #{_lambda_.9} parent=5 // pred_fallthru
      _
    %p575 = scmp.le.s32.totalorder 2, %s10
    // Predicated region
    $region44: #{_lambda_.9} parent=5 // pred_check
      %p576 = pneg %p575
    $region45: #{_lambda_.9} parent=5 // pred_check_branch
      %578 = sbr.rel (%p576) target = $region47
    $region46: #{_lambda_.9} parent=5 // pred_region
      %s579 = ssub.s32 %s10, 2
      // Predicated region
      $region48: #{_lambda_.9} parent=46 // pred_check
        %p580 = pneg %p86
      $region49: #{_lambda_.9} parent=46 // pred_check_branch
        %582 = sbr.rel (%p580) target = $region51
      $region50: #{_lambda_.9} parent=46 // pred_region
        %p583 = scmp.lt.s32.totalorder %s16, 1
        %s584 = scalar_select %p583, %s16, 1
        %s585 = smul.addr %s584, 8
        %s586 = smul.addr %s585, 4
        %s587 = scalar_lea.vmem %s2, %s586
      $region51: #{_lambda_.9} parent=46 // pred_fallthru
        _
      // Predicated region
      $region52: #{_lambda_.9} parent=46 // pred_check
        %p588 = pneg %p112
      $region53: #{_lambda_.9} parent=46 // pred_check_branch
        %590 = sbr.rel (%p588) target = $region55
      $region54: #{_lambda_.9} parent=46 // pred_region
        %p591 = scmp.lt.s32.totalorder %s16, 1
        %s592 = scalar_select %p591, %s16, 1
        %s593 = smul.addr %s592, 2
        %s594 = scalar_lea.vmem %s3, %s593
      $region55: #{_lambda_.9} parent=46 // pred_fallthru
        _
    $region47: #{_lambda_.9} parent=5 // pred_fallthru
      _
  $region6: #{_lambda_.9} parent=0 // loop_footer
    %s14 = sadd.s32 1, %s10
  $region7: #{_lambda_.9} parent=0 // loop_footer_branch
    %9 = sbr.rel target = $region3
  $region8: #{_lambda_.9} parent=0 // loop_exit
    _

// kernel: _lambda_.10
$region0: #{_lambda_.10}
  #allocation0 [shape = 'u32[]', space=smem, size = 0x4, offset = 0x4, fixed_abs, tag = 'smem constant byte address 0x4 - core index']
  #allocation1 [shape = 'u32[144,128]{1,0:T(1,128)}', space=vmem, size = 0x12000, scoped, tag = 'internal scratch']
  %s0 = inlined_call_operand.vmem [shape: bf16[128,32], index: 0, kind: input, shape index: {}]
  %s1 = inlined_call_operand.vmem [shape: f32[1,32], index: 1, kind: input, shape index: {}]
  %s2 = inlined_call_operand.vmem [shape: f32[1,32], index: 2, kind: input, shape index: {}]
  %s3 = inlined_call_operand.vmem [shape: bf16[128,32], index: 3, kind: output, shape index: {}]
  %s4 = sld [smem:[#allocation0]]
  $region22: #{_lambda_.10} parent=0
    _
  %s6 = ssub.s32 1, %s4
  %s7 = scalar_select 0, %s6, %s4
  // Predicated region
  $region2: #{_lambda_.10} parent=0 // pred_check
    _
  $region3: #{_lambda_.10} parent=0 // pred_check_branch
    %9 = sbr.rel (0) target = $region5
  $region4: #{_lambda_.10} parent=0 // pred_region
    _
  $region5: #{_lambda_.10} parent=0 // pred_fallthru
    _
  // Predicated region
  $region6: #{_lambda_.10} parent=0 // pred_check
    _
  $region7: #{_lambda_.10} parent=0 // pred_check_branch
    %11 = sbr.rel (0) target = $region9
  $region8: #{_lambda_.10} parent=0 // pred_region
    _
  $region9: #{_lambda_.10} parent=0 // pred_fallthru
    _
  // Predicated region
  $region10: #{_lambda_.10} parent=0 // pred_check
    _
  $region11: #{_lambda_.10} parent=0 // pred_check_branch
    %13 = sbr.rel (0) target = $region13
  $region12: #{_lambda_.10} parent=0 // pred_region
    _
  $region13: #{_lambda_.10} parent=0 // pred_fallthru
    _
  %v14 = vld [vmem:[%s0] sm:$0xf]
  %v15 = vld [vmem:[%s0 + $0x4] sm:$0xf]
  %v16 = vld [vmem:[%s0 + $0x8] sm:$0xf]
  %v17 = vld [vmem:[%s0 + $0xc] sm:$0xf]
  %v18 = vld [vmem:[%s0 + $0x10] sm:$0xf]
  %v19 = vld [vmem:[%s0 + $0x14] sm:$0xf]
  %v20 = vld [vmem:[%s0 + $0x18] sm:$0xf]
  %v21 = vld [vmem:[%s0 + $0x1c] sm:$0xf]
  %v22 = vld [vmem:[%s0 + $0x20] sm:$0xf]
  %v23 = vld [vmem:[%s0 + $0x24] sm:$0xf]
  %v24 = vld [vmem:[%s0 + $0x28] sm:$0xf]
  %v25 = vld [vmem:[%s0 + $0x2c] sm:$0xf]
  %v26 = vld [vmem:[%s0 + $0x30] sm:$0xf]
  %v27 = vld [vmem:[%s0 + $0x34] sm:$0xf]
  %v28 = vld [vmem:[%s0 + $0x38] sm:$0xf]
  %v29 = vld [vmem:[%s0 + $0x3c] sm:$0xf]
  %v30 = vunpack.c.l.bf16 %v14
  %v31 = vunpack.c.l.bf16 %v15
  %v32 = vunpack.c.l.bf16 %v16
  %v33 = vunpack.c.l.bf16 %v17
  %v34 = vunpack.c.l.bf16 %v18
  %v35 = vunpack.c.l.bf16 %v19
  %v36 = vunpack.c.l.bf16 %v20
  %v37 = vunpack.c.l.bf16 %v21
  %v38 = vunpack.c.l.bf16 %v22
  %v39 = vunpack.c.l.bf16 %v23
  %v40 = vunpack.c.l.bf16 %v24
  %v41 = vunpack.c.l.bf16 %v25
  %v42 = vunpack.c.l.bf16 %v26
  %v43 = vunpack.c.l.bf16 %v27
  %v44 = vunpack.c.l.bf16 %v28
  %v45 = vunpack.c.l.bf16 %v29
  %v46 = vld [vmem:[%s1] sm:$0x1]
  %v48 = vlaneseq
  %v49 = vshrl.u32 %v48, 7
  %v50 = vsub.s32 0, %v49
  %v51 = vrot.slane %v46, %v50
  %v53 = vmul.f32 %v30, %v51
  %v54 = vmul.f32 %v31, %v51
  %v55 = vmul.f32 %v32, %v51
  %v56 = vmul.f32 %v33, %v51
  %v57 = vmul.f32 %v34, %v51
  %v58 = vmul.f32 %v35, %v51
  %v59 = vmul.f32 %v36, %v51
  %v60 = vmul.f32 %v37, %v51
  %v61 = vmul.f32 %v38, %v51
  %v62 = vmul.f32 %v39, %v51
  %v63 = vmul.f32 %v40, %v51
  %v64 = vmul.f32 %v41, %v51
  %v65 = vmul.f32 %v42, %v51
  %v66 = vmul.f32 %v43, %v51
  %v67 = vmul.f32 %v44, %v51
  %v68 = vmul.f32 %v45, %v51
  %v69 = vld [vmem:[%s2] sm:$0x1]
  %v71 = vlaneseq
  %v72 = vshrl.u32 %v71, 7
  %v73 = vsub.s32 0, %v72
  %v74 = vrot.slane %v69, %v73
  %v76 = vadd.f32 %v53, %v74
  %v77 = vadd.f32 %v54, %v74
  %v78 = vadd.f32 %v55, %v74
  %v79 = vadd.f32 %v56, %v74
  %v80 = vadd.f32 %v57, %v74
  %v81 = vadd.f32 %v58, %v74
  %v82 = vadd.f32 %v59, %v74
  %v83 = vadd.f32 %v60, %v74
  %v84 = vadd.f32 %v61, %v74
  %v85 = vadd.f32 %v62, %v74
  %v86 = vadd.f32 %v63, %v74
  %v87 = vadd.f32 %v64, %v74
  %v88 = vadd.f32 %v65, %v74
  %v89 = vadd.f32 %v66, %v74
  %v90 = vadd.f32 %v67, %v74
  %v91 = vadd.f32 %v68, %v74
  %vm92 = vcmp.ge.f32.partialorder %v76, 0.0
  %vm93 = vcmp.ge.f32.partialorder %v77, 0.0
  %vm94 = vcmp.ge.f32.partialorder %v78, 0.0
  %vm95 = vcmp.ge.f32.partialorder %v79, 0.0
  %vm96 = vcmp.ge.f32.partialorder %v80, 0.0
  %vm97 = vcmp.ge.f32.partialorder %v81, 0.0
  %vm98 = vcmp.ge.f32.partialorder %v82, 0.0
  %vm99 = vcmp.ge.f32.partialorder %v83, 0.0
  %vm100 = vcmp.ge.f32.partialorder %v84, 0.0
  %vm101 = vcmp.ge.f32.partialorder %v85, 0.0
  %vm102 = vcmp.ge.f32.partialorder %v86, 0.0
  %vm103 = vcmp.ge.f32.partialorder %v87, 0.0
  %vm104 = vcmp.ge.f32.partialorder %v88, 0.0
  %vm105 = vcmp.ge.f32.partialorder %v89, 0.0
  %vm106 = vcmp.ge.f32.partialorder %v90, 0.0
  %vm107 = vcmp.ge.f32.partialorder %v91, 0.0
  %v108 = vmul.f32 %v76, 0.2
  %v109 = vmul.f32 %v77, 0.2
  %v110 = vmul.f32 %v78, 0.2
  %v111 = vmul.f32 %v79, 0.2
  %v112 = vmul.f32 %v80, 0.2
  %v113 = vmul.f32 %v81, 0.2
  %v114 = vmul.f32 %v82, 0.2
  %v115 = vmul.f32 %v83, 0.2
  %v116 = vmul.f32 %v84, 0.2
  %v117 = vmul.f32 %v85, 0.2
  %v118 = vmul.f32 %v86, 0.2
  %v119 = vmul.f32 %v87, 0.2
  %v120 = vmul.f32 %v88, 0.2
  %v121 = vmul.f32 %v89, 0.2
  %v122 = vmul.f32 %v90, 0.2
  %v123 = vmul.f32 %v91, 0.2
  %v124 = vsel %vm92, %v76, %v108
  %v125 = vsel %vm93, %v77, %v109
  %v126 = vsel %vm94, %v78, %v110
  %v127 = vsel %vm95, %v79, %v111
  %v128 = vsel %vm96, %v80, %v112
  %v129 = vsel %vm97, %v81, %v113
  %v130 = vsel %vm98, %v82, %v114
  %v131 = vsel %vm99, %v83, %v115
  %v132 = vsel %vm100, %v84, %v116
  %v133 = vsel %vm101, %v85, %v117
  %v134 = vsel %vm102, %v86, %v118
  %v135 = vsel %vm103, %v87, %v119
  %v136 = vsel %vm104, %v88, %v120
  %v137 = vsel %vm105, %v89, %v121
  %v138 = vsel %vm106, %v90, %v122
  %v139 = vsel %vm107, %v91, %v123
  %v140 = vpack.c.bf16 %v125, %v124
  %v141 = vpack.c.bf16 %v127, %v126
  %v142 = vpack.c.bf16 %v129, %v128
  %v143 = vpack.c.bf16 %v131, %v130
  %v144 = vpack.c.bf16 %v133, %v132
  %v145 = vpack.c.bf16 %v135, %v134
  %v146 = vpack.c.bf16 %v137, %v136
  %v147 = vpack.c.bf16 %v139, %v138
  %v156 = vunpack.c.l.b16 %v140
  %v157 = vunpack.c.h.b16 %v140
  %v158 = vunpack.c.l.b16 %v141
  %v159 = vunpack.c.h.b16 %v141
  %v160 = vunpack.c.l.b16 %v142
  %v161 = vunpack.c.h.b16 %v142
  %v162 = vunpack.c.l.b16 %v143
  %v163 = vunpack.c.h.b16 %v143
  %v164 = vunpack.c.l.b16 %v144
  %v165 = vunpack.c.h.b16 %v144
  %v166 = vunpack.c.l.b16 %v145
  %v167 = vunpack.c.h.b16 %v145
  %v168 = vunpack.c.l.b16 %v146
  %v169 = vunpack.c.h.b16 %v146
  %v170 = vunpack.c.l.b16 %v147
  %v171 = vunpack.c.h.b16 %v147
  %v172 = vpack.c.b16 %v156, %v156
  %v173 = vpack.c.b16 %v157, %v157
  %v174 = vpack.c.b16 %v158, %v158
  %v175 = vpack.c.b16 %v159, %v159
  %v176 = vpack.c.b16 %v160, %v160
  %v177 = vpack.c.b16 %v161, %v161
  %v178 = vpack.c.b16 %v162, %v162
  %v179 = vpack.c.b16 %v163, %v163
  %v180 = vpack.c.b16 %v164, %v164
  %v181 = vpack.c.b16 %v165, %v165
  %v182 = vpack.c.b16 %v166, %v166
  %v183 = vpack.c.b16 %v167, %v167
  %v184 = vpack.c.b16 %v168, %v168
  %v185 = vpack.c.b16 %v169, %v169
  %v186 = vpack.c.b16 %v170, %v170
  %v187 = vpack.c.b16 %v171, %v171
  %vm204 = vcmask 257024
  %205 = vst.msk [vmem:[%s3] sm:$0xf] %vm204, %v172
  %206 = vst.msk [vmem:[%s3 + $0x4] sm:$0xf] %vm204, %v173
  %207 = vst.msk [vmem:[%s3 + $0x8] sm:$0xf] %vm204, %v174
  %208 = vst.msk [vmem:[%s3 + $0xc] sm:$0xf] %vm204, %v175
  %209 = vst.msk [vmem:[%s3 + $0x10] sm:$0xf] %vm204, %v176
  %210 = vst.msk [vmem:[%s3 + $0x14] sm:$0xf] %vm204, %v177
  %211 = vst.msk [vmem:[%s3 + $0x18] sm:$0xf] %vm204, %v178
  %212 = vst.msk [vmem:[%s3 + $0x1c] sm:$0xf] %vm204, %v179
  %213 = vst.msk [vmem:[%s3 + $0x20] sm:$0xf] %vm204, %v180
  %214 = vst.msk [vmem:[%s3 + $0x24] sm:$0xf] %vm204, %v181
  %215 = vst.msk [vmem:[%s3 + $0x28] sm:$0xf] %vm204, %v182
  %216 = vst.msk [vmem:[%s3 + $0x2c] sm:$0xf] %vm204, %v183
  %217 = vst.msk [vmem:[%s3 + $0x30] sm:$0xf] %vm204, %v184
  %218 = vst.msk [vmem:[%s3 + $0x34] sm:$0xf] %vm204, %v185
  %219 = vst.msk [vmem:[%s3 + $0x38] sm:$0xf] %vm204, %v186
  %220 = vst.msk [vmem:[%s3 + $0x3c] sm:$0xf] %vm204, %v187
  // Predicated region
  $region14: #{_lambda_.10} parent=0 // pred_check
    _
  $region15: #{_lambda_.10} parent=0 // pred_check_branch
    %222 = sbr.rel (0) target = $region17
  $region16: #{_lambda_.10} parent=0 // pred_region
    _
  $region17: #{_lambda_.10} parent=0 // pred_fallthru
    _
  // Predicated region
  $region18: #{_lambda_.10} parent=0 // pred_check
    _
  $region19: #{_lambda_.10} parent=0 // pred_check_branch
    %224 = sbr.rel (0) target = $region21
  $region20: #{_lambda_.10} parent=0 // pred_region
    _
  $region21: #{_lambda_.10} parent=0 // pred_fallthru
    _

// kernel: _lambda_.12
$region0: #{_lambda_.12}
  #allocation0 [shape = 'u32[]', space=smem, size = 0x4, offset = 0x4, fixed_abs, tag = 'smem constant byte address 0x4 - core index']
  #allocation1 [shape = 'u32[144,128]{1,0:T(1,128)}', space=vmem, size = 0x12000, scoped, tag = 'internal scratch']
  %s0 = inlined_call_operand.vmem [shape: bf16[32,64], index: 0, kind: input, shape index: {}]
  %s1 = inlined_call_operand.vmem [shape: f32[1,64], index: 1, kind: input, shape index: {}]
  %s2 = inlined_call_operand.vmem [shape: f32[1,64], index: 2, kind: input, shape index: {}]
  %s3 = inlined_call_operand.vmem [shape: bf16[32,64], index: 3, kind: output, shape index: {}]
  %s4 = sld [smem:[#allocation0]]
  $region22: #{_lambda_.12} parent=0
    _
  %s6 = ssub.s32 1, %s4
  %s7 = scalar_select 0, %s6, %s4
  // Predicated region
  $region2: #{_lambda_.12} parent=0 // pred_check
    _
  $region3: #{_lambda_.12} parent=0 // pred_check_branch
    %9 = sbr.rel (0) target = $region5
  $region4: #{_lambda_.12} parent=0 // pred_region
    _
  $region5: #{_lambda_.12} parent=0 // pred_fallthru
    _
  // Predicated region
  $region6: #{_lambda_.12} parent=0 // pred_check
    _
  $region7: #{_lambda_.12} parent=0 // pred_check_branch
    %11 = sbr.rel (0) target = $region9
  $region8: #{_lambda_.12} parent=0 // pred_region
    _
  $region9: #{_lambda_.12} parent=0 // pred_fallthru
    _
  // Predicated region
  $region10: #{_lambda_.12} parent=0 // pred_check
    _
  $region11: #{_lambda_.12} parent=0 // pred_check_branch
    %13 = sbr.rel (0) target = $region13
  $region12: #{_lambda_.12} parent=0 // pred_region
    _
  $region13: #{_lambda_.12} parent=0 // pred_fallthru
    _
  %v14 = vld [vmem:[%s0] sm:$0xf]
  %v15 = vld [vmem:[%s0 + $0x4] sm:$0xf]
  %v16 = vld [vmem:[%s0 + $0x8] sm:$0xf]
  %v17 = vld [vmem:[%s0 + $0xc] sm:$0xf]
  %v18 = vunpack.c.l.bf16 %v14
  %v19 = vunpack.c.l.bf16 %v15
  %v20 = vunpack.c.l.bf16 %v16
  %v21 = vunpack.c.l.bf16 %v17
  %v22 = vld [vmem:[%s1] sm:$0x1]
  %v24 = vlaneseq
  %v25 = vshrl.u32 %v24, 7
  %v26 = vsub.s32 0, %v25
  %v27 = vrot.slane %v22, %v26
  %v29 = vmul.f32 %v18, %v27
  %v30 = vmul.f32 %v19, %v27
  %v31 = vmul.f32 %v20, %v27
  %v32 = vmul.f32 %v21, %v27
  %v33 = vld [vmem:[%s2] sm:$0x1]
  %v35 = vlaneseq
  %v36 = vshrl.u32 %v35, 7
  %v37 = vsub.s32 0, %v36
  %v38 = vrot.slane %v33, %v37
  %v40 = vadd.f32 %v29, %v38
  %v41 = vadd.f32 %v30, %v38
  %v42 = vadd.f32 %v31, %v38
  %v43 = vadd.f32 %v32, %v38
  %vm44 = vcmp.ge.f32.partialorder %v40, 0.0
  %vm45 = vcmp.ge.f32.partialorder %v41, 0.0
  %vm46 = vcmp.ge.f32.partialorder %v42, 0.0
  %vm47 = vcmp.ge.f32.partialorder %v43, 0.0
  %v48 = vmul.f32 %v40, 0.2
  %v49 = vmul.f32 %v41, 0.2
  %v50 = vmul.f32 %v42, 0.2
  %v51 = vmul.f32 %v43, 0.2
  %v52 = vsel %vm44, %v40, %v48
  %v53 = vsel %vm45, %v41, %v49
  %v54 = vsel %vm46, %v42, %v50
  %v55 = vsel %vm47, %v43, %v51
  %v56 = vpack.c.bf16 %v53, %v52
  %v57 = vpack.c.bf16 %v55, %v54
  %v60 = vunpack.c.l.b16 %v56
  %v61 = vunpack.c.h.b16 %v56
  %v62 = vunpack.c.l.b16 %v57
  %v63 = vunpack.c.h.b16 %v57
  %v64 = vpack.c.b16 %v60, %v60
  %v65 = vpack.c.b16 %v61, %v61
  %v66 = vpack.c.b16 %v62, %v62
  %v67 = vpack.c.b16 %v63, %v63
  %vm72 = vcmask 519168
  %73 = vst.msk [vmem:[%s3] sm:$0xf] %vm72, %v64
  %74 = vst.msk [vmem:[%s3 + $0x4] sm:$0xf] %vm72, %v65
  %75 = vst.msk [vmem:[%s3 + $0x8] sm:$0xf] %vm72, %v66
  %76 = vst.msk [vmem:[%s3 + $0xc] sm:$0xf] %vm72, %v67
  // Predicated region
  $region14: #{_lambda_.12} parent=0 // pred_check
    _
  $region15: #{_lambda_.12} parent=0 // pred_check_branch
    %78 = sbr.rel (0) target = $region17
  $region16: #{_lambda_.12} parent=0 // pred_region
    _
  $region17: #{_lambda_.12} parent=0 // pred_fallthru
    _
  // Predicated region
  $region18: #{_lambda_.12} parent=0 // pred_check
    _
  $region19: #{_lambda_.12} parent=0 // pred_check_branch
    %80 = sbr.rel (0) target = $region21
  $region20: #{_lambda_.12} parent=0 // pred_region
    _
  $region21: #{_lambda_.12} parent=0 // pred_fallthru
    _

// kernel: _lambda_.11
$region0: #{_lambda_.11}
  #allocation0 [shape = 'u32[]', space=smem, size = 0x4, offset = 0x4, fixed_abs, tag = 'smem constant byte address 0x4 - core index']
  #allocation1 [shape = 'u32[144,128]{1,0:T(1,128)}', space=vmem, size = 0x12000, scoped, tag = 'internal scratch']
  %s0 = inlined_call_operand.vmem [shape: bf16[2,5,5,128], index: 0, kind: input, shape index: {}]
  %s1 = inlined_call_operand.vmem [shape: bf16[4,128,64], index: 1, kind: input, shape index: {}]
  %s2 = inlined_call_operand.vmem [shape: bf16[2,4,4,64], index: 2, kind: output, shape index: {0}]
  %s3 = inlined_call_operand.vmem [shape: f32[2,2,64], index: 3, kind: output, shape index: {1}]
  %4 = xla_tuple %s2, %s3
  %s5 = sld [smem:[#allocation0]]
  $region56: #{_lambda_.11} parent=0
    _
  %s7 = ssub.s32 1, %s5
  %s8 = scalar_select 0, %s7, %s5
  loop: start=0, step=1, limit=4
  $region2: #{_lambda_.11} parent=0 // loop_pre_header
    _
  $region3: #{_lambda_.11} parent=0 // loop_header
    %s10 = sphi 0, %s14
    %p11 = scmp.ge.s32.totalorder %s10, 4
    %s20 = sphi 0, %s22
    %s23 = sphi 0, %s20
    %s24 = sphi 0, %s23
    %s40 = sphi 0, %s24
    %s44 = sphi 0, %s44
    %s46 = sphi 0, %s44
    %s47 = sphi 0, %s46
    %s61 = sphi 0, %s47
    %s67 = sphi 0, %s69
    %s70 = sphi 0, %s67
    %s71 = sphi 0, %s70
    %s87 = sphi 0, %s71
    %s93 = sphi 0, %s95
    %s96 = sphi 0, %s93
    %s97 = sphi 0, %s96
    %s113 = sphi 0, %s97
  $region4: #{_lambda_.11} parent=0 // loop_header_branch
    %13 = sbr.rel (%p11) target = $region8
  $region5: #{_lambda_.11} parent=0 // loop_body
    %s15 = ssub.s32 %s10, 1
    %s16 = ssub.s32 %s10, 2
    %s17 = sadd.s32 %s10, 1
    %s18 = ssub.s32 %s10, %s17
    %p19 = scmp.eq.s32.totalorder %s18, 0
    %s21 = sadd.s32 %s20, 1
    %s22 = scalar_select %p19, %s20, %s21
    %p25 = pneg %p19
    %p26 = scmp.eq.s32.totalorder %s10, 1
    %p27 = por %p25, %p26
    %p28 = scmp.ne.s32.totalorder %s20, %s23
    %p29 = scmp.eq.s32.totalorder %s10, 0
    %p30 = por %p28, %p29
    %p31 = scmp.ne.s32.totalorder %s20, %s23
    %p32 = scmp.eq.s32.totalorder %s15, 1
    %p33 = por %p31, %p32
    %p34 = scmp.ne.s32.totalorder %s23, %s24
    %p35 = scmp.eq.s32.totalorder %s15, 0
    %p36 = por %p34, %p35
    %p37 = scmp.ne.s32.totalorder %s23, %s24
    %p38 = scmp.eq.s32.totalorder %s16, 1
    %p39 = por %p37, %p38
    %p41 = scmp.ne.s32.totalorder %s24, %s40
    %p42 = scmp.eq.s32.totalorder %s16, 0
    %p43 = por %p41, %p42
    %s45 = sadd.s32 %s44, 1
    %p48 = scmp.eq.s32.totalorder %s10, 1
    %p49 = scmp.ne.s32.totalorder %s44, %s46
    %p50 = scmp.eq.s32.totalorder %s10, 0
    %p51 = por %p49, %p50
    %p52 = scmp.ne.s32.totalorder %s44, %s46
    %p53 = scmp.eq.s32.totalorder %s15, 1
    %p54 = por %p52, %p53
    %p55 = scmp.ne.s32.totalorder %s46, %s47
    %p56 = scmp.eq.s32.totalorder %s15, 0
    %p57 = por %p55, %p56
    %p58 = scmp.ne.s32.totalorder %s46, %s47
    %p59 = scmp.eq.s32.totalorder %s16, 1
    %p60 = por %p58, %p59
    %p62 = scmp.ne.s32.totalorder %s47, %s61
    %p63 = scmp.eq.s32.totalorder %s16, 0
    %p64 = por %p62, %p63
    %s65 = ssub.s32 %s10, %s17
    %p66 = scmp.eq.s32.totalorder %s65, 0
    %s68 = sadd.s32 %s67, 1
    %s69 = scalar_select %p66, %s67, %s68
    %p72 = pneg %p66
    %p73 = scmp.eq.s32.totalorder %s10, 1
    %p74 = por %p72, %p73
    %p75 = scmp.ne.s32.totalorder %s67, %s70
    %p76 = scmp.eq.s32.totalorder %s10, 0
    %p77 = por %p75, %p76
    %p78 = scmp.ne.s32.totalorder %s67, %s70
    %p79 = scmp.eq.s32.totalorder %s15, 1
    %p80 = por %p78, %p79
    %p81 = scmp.ne.s32.totalorder %s70, %s71
    %p82 = scmp.eq.s32.totalorder %s15, 0
    %p83 = por %p81, %p82
    %p84 = scmp.ne.s32.totalorder %s70, %s71
    %p85 = scmp.eq.s32.totalorder %s16, 1
    %p86 = por %p84, %p85
    %p88 = scmp.ne.s32.totalorder %s71, %s87
    %p89 = scmp.eq.s32.totalorder %s16, 0
    %p90 = por %p88, %p89
    %s91 = ssub.s32 %s10, %s17
    %p92 = scmp.eq.s32.totalorder %s91, 0
    %s94 = sadd.s32 %s93, 1
    %s95 = scalar_select %p92, %s93, %s94
    %p98 = pneg %p92
    %p99 = scmp.eq.s32.totalorder %s10, 1
    %p100 = por %p98, %p99
    %p101 = scmp.ne.s32.totalorder %s93, %s96
    %p102 = scmp.eq.s32.totalorder %s10, 0
    %p103 = por %p101, %p102
    %p104 = scmp.ne.s32.totalorder %s93, %s96
    %p105 = scmp.eq.s32.totalorder %s15, 1
    %p106 = por %p104, %p105
    %p107 = scmp.ne.s32.totalorder %s96, %s97
    %p108 = scmp.eq.s32.totalorder %s15, 0
    %p109 = por %p107, %p108
    %p110 = scmp.ne.s32.totalorder %s96, %s97
    %p111 = scmp.eq.s32.totalorder %s16, 1
    %p112 = por %p110, %p111
    %p114 = scmp.ne.s32.totalorder %s97, %s113
    %p115 = scmp.eq.s32.totalorder %s16, 0
    %p116 = por %p114, %p115
    %p117 = scmp.le.s32.totalorder 1, %s10
    %p118 = scmp.lt.s32.totalorder %s10, 3
    %p119 = pnand %p117, %p118
    %p120 = pneg %p119
    // Predicated region
    $region9: #{_lambda_.11} parent=5 // pred_check
      _
    $region10: #{_lambda_.11} parent=5 // pred_check_branch
      %122 = sbr.rel (%p119) target = $region12
    $region11: #{_lambda_.11} parent=5 // pred_region
      %s123 = ssub.s32 %s10, 1
      // Predicated region
      $region13: #{_lambda_.11} parent=11 // pred_check
        %p124 = pneg %p57
      $region14: #{_lambda_.11} parent=11 // pred_check_branch
        %126 = sbr.rel (%p124) target = $region16
      $region15: #{_lambda_.11} parent=11 // pred_region
        _
      $region16: #{_lambda_.11} parent=11 // pred_fallthru
        _
    $region12: #{_lambda_.11} parent=5 // pred_fallthru
      _
    %p127 = scmp.lt.s32.totalorder %s10, 2
    // Predicated region
    $region17: #{_lambda_.11} parent=5 // pred_check
      %p128 = pneg %p127
    $region18: #{_lambda_.11} parent=5 // pred_check_branch
      %130 = sbr.rel (%p128) target = $region20
    $region19: #{_lambda_.11} parent=5 // pred_region
      // Predicated region
      $region21: #{_lambda_.11} parent=19 // pred_check
        %p131 = pneg %p30
      $region22: #{_lambda_.11} parent=19 // pred_check_branch
        %133 = sbr.rel (%p131) target = $region24
      $region23: #{_lambda_.11} parent=19 // pred_region
        %p134 = scmp.lt.s32.totalorder %s10, 1
        %s135 = scalar_select %p134, %s10, 1
        %s136 = smul.addr %s135, 5
        %s137 = smul.addr %s136, 4
        %s138 = scalar_lea.vmem %s0, %s137
      $region24: #{_lambda_.11} parent=19 // pred_fallthru
        _
    $region20: #{_lambda_.11} parent=5 // pred_fallthru
      _
    %p139 = scmp.le.s32.totalorder 1, %s10
    %p140 = scmp.lt.s32.totalorder %s10, 3
    %p141 = pnand %p139, %p140
    %p142 = pneg %p141
    // Predicated region
    $region25: #{_lambda_.11} parent=5 // pred_check
      _
    $region26: #{_lambda_.11} parent=5 // pred_check_branch
      %144 = sbr.rel (%p141) target = $region28
    $region27: #{_lambda_.11} parent=5 // pred_region
      %s145 = ssub.s32 %s10, 1
      %p146 = scmp.lt.s32.totalorder %s15, 1
      %s147 = scalar_select %p146, %s15, 1
      %s148 = smul.addr %s147, 5
      %s149 = smul.addr %s148, 4
      %s150 = scalar_lea.vmem %s0, %s149
      %p151 = pneg %p36
      %p152 = pneg %p33
      %p153 = pneg %p57
      %p154 = pneg %p54
      %p155 = pneg %p83
      %p156 = pneg %p80
      %p157 = scmp.lt.s32.totalorder %s15, 1
      %s158 = scalar_select %p157, %s15, 1
      %s159 = smul.addr %s158, 4
      %s160 = smul.addr %s159, 2
      %s161 = scalar_lea.vmem %s2, %s160
      %p162 = pneg %p109
      %p163 = pneg %p106
      %p164 = scmp.lt.s32.totalorder %s15, 1
      %s165 = scalar_select %p164, %s15, 1
      %s166 = smul.addr %s165, 2
      %s167 = scalar_lea.vmem %s3, %s166
      %p168 = scmp.lt.s32.totalorder %s15, 1
      %s169 = scalar_select %p168, %s15, 1
      %s170 = smul.addr %s169, 5
      %s171 = smul.addr %s170, 4
      %s172 = scalar_lea.vmem %s0, %s171
      %p173 = scmp.lt.s32.totalorder %s15, 1
      %s174 = scalar_select %p173, %s15, 1
      %s175 = smul.addr %s174, 4
      %s176 = smul.addr %s175, 2
      %s177 = scalar_lea.vmem %s2, %s176
      %p178 = scmp.lt.s32.totalorder %s15, 1
      %s179 = scalar_select %p178, %s15, 1
      %s180 = smul.addr %s179, 2
      %s181 = scalar_lea.vmem %s3, %s180
      loop: start=0, step=1, limit=4
      $region29: #{_lambda_.11} parent=27 // loop_pre_header
        _
      $region30: #{_lambda_.11} parent=27 // loop_header
        %s184 = sphi 0, %s188
        %p185 = scmp.ge.s32.totalorder %s184, 4
        %v189 = vphi 0.0, %v651
        %v190 = vphi 0.0, %v660
      $region31: #{_lambda_.11} parent=27 // loop_header_branch
        %187 = sbr.rel (%p185) target = $region35
      $region32: #{_lambda_.11} parent=27 // loop_body
        %s191 = smul.addr %s184, 4
        %s192 = scalar_lea.vmem %s172, %s191
        %v193 = vld [vmem:[%s192] sm:$0x3]
        %v194 = vld [vmem:[%s1] sm:$0xf]
        %v195 = vld [vmem:[%s1 + $0x4] sm:$0xf]
        %v196 = vld [vmem:[%s1 + $0x8] sm:$0xf]
        %v197 = vld [vmem:[%s1 + $0xc] sm:$0xf]
        %v198 = vld [vmem:[%s1 + $0x10] sm:$0xf]
        %v199 = vld [vmem:[%s1 + $0x14] sm:$0xf]
        %v200 = vld [vmem:[%s1 + $0x18] sm:$0xf]
        %v201 = vld [vmem:[%s1 + $0x1c] sm:$0xf]
        %v202 = vld [vmem:[%s1 + $0x20] sm:$0xf]
        %v203 = vld [vmem:[%s1 + $0x24] sm:$0xf]
        %v204 = vld [vmem:[%s1 + $0x28] sm:$0xf]
        %v205 = vld [vmem:[%s1 + $0x2c] sm:$0xf]
        %v206 = vld [vmem:[%s1 + $0x30] sm:$0xf]
        %v207 = vld [vmem:[%s1 + $0x34] sm:$0xf]
        %v208 = vld [vmem:[%s1 + $0x38] sm:$0xf]
        %v209 = vld [vmem:[%s1 + $0x3c] sm:$0xf]
        %v210 = vld [vmem:[%s192] sm:$0x7]
        %s211 = scalar_lea.vmem %s1, 64
        %v212 = vld [vmem:[%s211] sm:$0xf]
        %v213 = vld [vmem:[%s211 + $0x4] sm:$0xf]
        %v214 = vld [vmem:[%s211 + $0x8] sm:$0xf]
        %v215 = vld [vmem:[%s211 + $0xc] sm:$0xf]
        %v216 = vld [vmem:[%s211 + $0x10] sm:$0xf]
        %v217 = vld [vmem:[%s211 + $0x14] sm:$0xf]
        %v218 = vld [vmem:[%s211 + $0x18] sm:$0xf]
        %v219 = vld [vmem:[%s211 + $0x1c] sm:$0xf]
        %v220 = vld [vmem:[%s211 + $0x20] sm:$0xf]
        %v221 = vld [vmem:[%s211 + $0x24] sm:$0xf]
        %v222 = vld [vmem:[%s211 + $0x28] sm:$0xf]
        %v223 = vld [vmem:[%s211 + $0x2c] sm:$0xf]
        %v224 = vld [vmem:[%s211 + $0x30] sm:$0xf]
        %v225 = vld [vmem:[%s211 + $0x34] sm:$0xf]
        %v226 = vld [vmem:[%s211 + $0x38] sm:$0xf]
        %v227 = vld [vmem:[%s211 + $0x3c] sm:$0xf]
        %v229 = vunpack.c.l.b16 %v210
        %v230 = vpack.c.b16 %v229, %v229
        %v232 = vshrl.u32 %v230, 16
        %v234 = vshll.u32 %v230, 16
        %v236 = vrot.slane %v234, 1
        %v237 = vor.u32 %v232, %v236
        %v255 = vunpack.c.l.b16 %v212
        %v256 = vunpack.c.l.b16 %v213
        %v257 = vunpack.c.l.b16 %v214
        %v258 = vunpack.c.l.b16 %v215
        %v259 = vunpack.c.l.b16 %v216
        %v260 = vunpack.c.l.b16 %v217
        %v261 = vunpack.c.l.b16 %v218
        %v262 = vunpack.c.l.b16 %v219
        %v263 = vunpack.c.l.b16 %v220
        %v264 = vunpack.c.l.b16 %v221
        %v265 = vunpack.c.l.b16 %v222
        %v266 = vunpack.c.l.b16 %v223
        %v267 = vunpack.c.l.b16 %v224
        %v268 = vunpack.c.l.b16 %v225
        %v269 = vunpack.c.l.b16 %v226
        %v270 = vunpack.c.l.b16 %v227
        %v271 = vpack.c.b16 %v256, %v255
        %v272 = vpack.c.b16 %v258, %v257
        %v273 = vpack.c.b16 %v260, %v259
        %v274 = vpack.c.b16 %v262, %v261
        %v275 = vpack.c.b16 %v264, %v263
        %v276 = vpack.c.b16 %v266, %v265
        %v277 = vpack.c.b16 %v268, %v267
        %v278 = vpack.c.b16 %v270, %v269
        %287 = vmatprep.subr.bf16.mxu0 0
        %288 = vmatpush1.bf16.msra.mxu0 %v271
        %289 = vmatprep.subr.bf16.mxu0 0
        %290 = vmatpush1.bf16.msra.mxu0 %v272
        %291 = vmatprep.subr.bf16.mxu0 0
        %292 = vmatpush1.bf16.msra.mxu0 %v273
        %293 = vmatprep.subr.bf16.mxu0 0
        %294 = vmatpush1.bf16.msra.mxu0 %v274
        %295 = vmatprep.subr.bf16.mxu0 0
        %296 = vmatpush1.bf16.msra.mxu0 %v275
        %297 = vmatprep.subr.bf16.mxu0 0
        %298 = vmatpush1.bf16.msra.mxu0 %v276
        %299 = vmatprep.subr.bf16.mxu0 0
        %300 = vmatpush1.bf16.msra.mxu0 %v277
        %301 = vmatprep.subr.bf16.mxu0 0
        %302 = vmatpush1.bf16.msra.mxu0 %v278
        %303 = vmatprep.subr.bf16.mxu0 0
        %304 = vmatpush1.bf16.msra.mxu0 0
        %305 = vmatprep.subr.bf16.mxu0 0
        %306 = vmatpush1.bf16.msra.mxu0 0
        %307 = vmatprep.subr.bf16.mxu0 0
        %308 = vmatpush1.bf16.msra.mxu0 0
        %309 = vmatprep.subr.bf16.mxu0 0
        %310 = vmatpush1.bf16.msra.mxu0 0
        %311 = vmatprep.subr.bf16.mxu0 0
        %312 = vmatpush1.bf16.msra.mxu0 0
        %313 = vmatprep.subr.bf16.mxu0 0
        %314 = vmatpush1.bf16.msra.mxu0 0
        %315 = vmatprep.subr.bf16.mxu0 0
        %316 = vmatpush1.bf16.msra.mxu0 0
        %317 = vmatprep.subr.bf16.mxu0 0
        %318 = vmatpush1.bf16.msra.mxu0 0
        %319 = vmatprep.mubr.bf16.mxu0 0
        %320 = vmatmul.mubr.bf16.gmra.mrb[0].mxu0 %v237
        %v321 = vpop.f32.mrb[0].mxu0
        %v322 = vadd.f32 0.0, %v321
        %v323 = vpop.f32.mrb[0].mxu0
        %v324 = vpop.f32.mrb[0].mxu0
        %v325 = vpop.f32.mrb[0].mxu0
        %326 = vdwg.mxu0
        %v343 = vunpack.c.l.b16 %v194
        %v344 = vunpack.c.l.b16 %v195
        %v345 = vunpack.c.l.b16 %v196
        %v346 = vunpack.c.l.b16 %v197
        %v347 = vunpack.c.l.b16 %v198
        %v348 = vunpack.c.l.b16 %v199
        %v349 = vunpack.c.l.b16 %v200
        %v350 = vunpack.c.l.b16 %v201
        %v351 = vunpack.c.l.b16 %v202
        %v352 = vunpack.c.l.b16 %v203
        %v353 = vunpack.c.l.b16 %v204
        %v354 = vunpack.c.l.b16 %v205
        %v355 = vunpack.c.l.b16 %v206
        %v356 = vunpack.c.l.b16 %v207
        %v357 = vunpack.c.l.b16 %v208
        %v358 = vunpack.c.l.b16 %v209
        %v359 = vpack.c.b16 %v344, %v343
        %v360 = vpack.c.b16 %v346, %v345
        %v361 = vpack.c.b16 %v348, %v347
        %v362 = vpack.c.b16 %v350, %v349
        %v363 = vpack.c.b16 %v352, %v351
        %v364 = vpack.c.b16 %v354, %v353
        %v365 = vpack.c.b16 %v356, %v355
        %v366 = vpack.c.b16 %v358, %v357
        %375 = vmatprep.subr.bf16.mxu0 0
        %376 = vmatpush1.bf16.msra.mxu0 %v359
        %377 = vmatprep.subr.bf16.mxu0 0
        %378 = vmatpush1.bf16.msra.mxu0 %v360
        %379 = vmatprep.subr.bf16.mxu0 0
        %380 = vmatpush1.bf16.msra.mxu0 %v361
        %381 = vmatprep.subr.bf16.mxu0 0
        %382 = vmatpush1.bf16.msra.mxu0 %v362
        %383 = vmatprep.subr.bf16.mxu0 0
        %384 = vmatpush1.bf16.msra.mxu0 %v363
        %385 = vmatprep.subr.bf16.mxu0 0
        %386 = vmatpush1.bf16.msra.mxu0 %v364
        %387 = vmatprep.subr.bf16.mxu0 0
        %388 = vmatpush1.bf16.msra.mxu0 %v365
        %389 = vmatprep.subr.bf16.mxu0 0
        %390 = vmatpush1.bf16.msra.mxu0 %v366
        %391 = vmatprep.subr.bf16.mxu0 0
        %392 = vmatpush1.bf16.msra.mxu0 0
        %393 = vmatprep.subr.bf16.mxu0 0
        %394 = vmatpush1.bf16.msra.mxu0 0
        %395 = vmatprep.subr.bf16.mxu0 0
        %396 = vmatpush1.bf16.msra.mxu0 0
        %397 = vmatprep.subr.bf16.mxu0 0
        %398 = vmatpush1.bf16.msra.mxu0 0
        %399 = vmatprep.subr.bf16.mxu0 0
        %400 = vmatpush1.bf16.msra.mxu0 0
        %401 = vmatprep.subr.bf16.mxu0 0
        %402 = vmatpush1.bf16.msra.mxu0 0
        %403 = vmatprep.subr.bf16.mxu0 0
        %404 = vmatpush1.bf16.msra.mxu0 0
        %405 = vmatprep.subr.bf16.mxu0 0
        %406 = vmatpush1.bf16.msra.mxu0 0
        %407 = vmatprep.mubr.bf16.mxu0 0
        %408 = vmatmul.mubr.bf16.gmra.mrb[0].mxu0 %v193
        %v409 = vpop.f32.mrb[0].mxu0
        %v410 = vadd.f32 %v322, %v409
        %v411 = vpop.f32.mrb[0].mxu0
        %v412 = vpop.f32.mrb[0].mxu0
        %v413 = vpop.f32.mrb[0].mxu0
        %414 = vdwg.mxu0
        %s415 = sadd.s32 %s184, 1
        %s416 = smul.addr %s415, 4
        %s417 = scalar_lea.vmem %s172, %s416
        %v418 = vld [vmem:[%s417] sm:$0x3]
        %s419 = scalar_lea.vmem %s1, 128
        %v420 = vld [vmem:[%s419] sm:$0xf]
        %v421 = vld [vmem:[%s419 + $0x4] sm:$0xf]
        %v422 = vld [vmem:[%s419 + $0x8] sm:$0xf]
        %v423 = vld [vmem:[%s419 + $0xc] sm:$0xf]
        %v424 = vld [vmem:[%s419 + $0x10] sm:$0xf]
        %v425 = vld [vmem:[%s419 + $0x14] sm:$0xf]
        %v426 = vld [vmem:[%s419 + $0x18] sm:$0xf]
        %v427 = vld [vmem:[%s419 + $0x1c] sm:$0xf]
        %v428 = vld [vmem:[%s419 + $0x20] sm:$0xf]
        %v429 = vld [vmem:[%s419 + $0x24] sm:$0xf]
        %v430 = vld [vmem:[%s419 + $0x28] sm:$0xf]
        %v431 = vld [vmem:[%s419 + $0x2c] sm:$0xf]
        %v432 = vld [vmem:[%s419 + $0x30] sm:$0xf]
        %v433 = vld [vmem:[%s419 + $0x34] sm:$0xf]
        %v434 = vld [vmem:[%s419 + $0x38] sm:$0xf]
        %v435 = vld [vmem:[%s419 + $0x3c] sm:$0xf]
        %v452 = vunpack.c.l.b16 %v420
        %v453 = vunpack.c.l.b16 %v421
        %v454 = vunpack.c.l.b16 %v422
        %v455 = vunpack.c.l.b16 %v423
        %v456 = vunpack.c.l.b16 %v424
        %v457 = vunpack.c.l.b16 %v425
        %v458 = vunpack.c.l.b16 %v426
        %v459 = vunpack.c.l.b16 %v427
        %v460 = vunpack.c.l.b16 %v428
        %v461 = vunpack.c.l.b16 %v429
        %v462 = vunpack.c.l.b16 %v430
        %v463 = vunpack.c.l.b16 %v431
        %v464 = vunpack.c.l.b16 %v432
        %v465 = vunpack.c.l.b16 %v433
        %v466 = vunpack.c.l.b16 %v434
        %v467 = vunpack.c.l.b16 %v435
        %v468 = vpack.c.b16 %v453, %v452
        %v469 = vpack.c.b16 %v455, %v454
        %v470 = vpack.c.b16 %v457, %v456
        %v471 = vpack.c.b16 %v459, %v458
        %v472 = vpack.c.b16 %v461, %v460
        %v473 = vpack.c.b16 %v463, %v462
        %v474 = vpack.c.b16 %v465, %v464
        %v475 = vpack.c.b16 %v467, %v466
        %484 = vmatprep.subr.bf16.mxu0 0
        %485 = vmatpush1.bf16.msra.mxu0 %v468
        %486 = vmatprep.subr.bf16.mxu0 0
        %487 = vmatpush1.bf16.msra.mxu0 %v469
        %488 = vmatprep.subr.bf16.mxu0 0
        %489 = vmatpush1.bf16.msra.mxu0 %v470
        %490 = vmatprep.subr.bf16.mxu0 0
        %491 = vmatpush1.bf16.msra.mxu0 %v471
        %492 = vmatprep.subr.bf16.mxu0 0
        %493 = vmatpush1.bf16.msra.mxu0 %v472
        %494 = vmatprep.subr.bf16.mxu0 0
        %495 = vmatpush1.bf16.msra.mxu0 %v473
        %496 = vmatprep.subr.bf16.mxu0 0
        %497 = vmatpush1.bf16.msra.mxu0 %v474
        %498 = vmatprep.subr.bf16.mxu0 0
        %499 = vmatpush1.bf16.msra.mxu0 %v475
        %500 = vmatprep.subr.bf16.mxu0 0
        %501 = vmatpush1.bf16.msra.mxu0 0
        %502 = vmatprep.subr.bf16.mxu0 0
        %503 = vmatpush1.bf16.msra.mxu0 0
        %504 = vmatprep.subr.bf16.mxu0 0
        %505 = vmatpush1.bf16.msra.mxu0 0
        %506 = vmatprep.subr.bf16.mxu0 0
        %507 = vmatpush1.bf16.msra.mxu0 0
        %508 = vmatprep.subr.bf16.mxu0 0
        %509 = vmatpush1.bf16.msra.mxu0 0
        %510 = vmatprep.subr.bf16.mxu0 0
        %511 = vmatpush1.bf16.msra.mxu0 0
        %512 = vmatprep.subr.bf16.mxu0 0
        %513 = vmatpush1.bf16.msra.mxu0 0
        %514 = vmatprep.subr.bf16.mxu0 0
        %515 = vmatpush1.bf16.msra.mxu0 0
        %516 = vmatprep.mubr.bf16.mxu0 0
        %517 = vmatmul.mubr.bf16.gmra.mrb[0].mxu0 %v418
        %v518 = vpop.f32.mrb[0].mxu0
        %v519 = vadd.f32 0.0, %v518
        %v520 = vpop.f32.mrb[0].mxu0
        %v521 = vpop.f32.mrb[0].mxu0
        %v522 = vpop.f32.mrb[0].mxu0
        %523 = vdwg.mxu0
        %v524 = vadd.f32 %v410, %v519
        %v525 = vld [vmem:[%s417] sm:$0x7]
        %s526 = scalar_lea.vmem %s1, 192
        %v527 = vld [vmem:[%s526] sm:$0xf]
        %v528 = vld [vmem:[%s526 + $0x4] sm:$0xf]
        %v529 = vld [vmem:[%s526 + $0x8] sm:$0xf]
        %v530 = vld [vmem:[%s526 + $0xc] sm:$0xf]
        %v531 = vld [vmem:[%s526 + $0x10] sm:$0xf]
        %v532 = vld [vmem:[%s526 + $0x14] sm:$0xf]
        %v533 = vld [vmem:[%s526 + $0x18] sm:$0xf]
        %v534 = vld [vmem:[%s526 + $0x1c] sm:$0xf]
        %v535 = vld [vmem:[%s526 + $0x20] sm:$0xf]
        %v536 = vld [vmem:[%s526 + $0x24] sm:$0xf]
        %v537 = vld [vmem:[%s526 + $0x28] sm:$0xf]
        %v538 = vld [vmem:[%s526 + $0x2c] sm:$0xf]
        %v539 = vld [vmem:[%s526 + $0x30] sm:$0xf]
        %v540 = vld [vmem:[%s526 + $0x34] sm:$0xf]
        %v541 = vld [vmem:[%s526 + $0x38] sm:$0xf]
        %v542 = vld [vmem:[%s526 + $0x3c] sm:$0xf]
        %v544 = vunpack.c.l.b16 %v525
        %v545 = vpack.c.b16 %v544, %v544
        %v547 = vshrl.u32 %v545, 16
        %v549 = vshll.u32 %v545, 16
        %v551 = vrot.slane %v549, 1
        %v552 = vor.u32 %v547, %v551
        %v570 = vunpack.c.l.b16 %v527
        %v571 = vunpack.c.l.b16 %v528
        %v572 = vunpack.c.l.b16 %v529
        %v573 = vunpack.c.l.b16 %v530
        %v574 = vunpack.c.l.b16 %v531
        %v575 = vunpack.c.l.b16 %v532
        %v576 = vunpack.c.l.b16 %v533
        %v577 = vunpack.c.l.b16 %v534
        %v578 = vunpack.c.l.b16 %v535
        %v579 = vunpack.c.l.b16 %v536
        %v580 = vunpack.c.l.b16 %v537
        %v581 = vunpack.c.l.b16 %v538
        %v582 = vunpack.c.l.b16 %v539
        %v583 = vunpack.c.l.b16 %v540
        %v584 = vunpack.c.l.b16 %v541
        %v585 = vunpack.c.l.b16 %v542
        %v586 = vpack.c.b16 %v571, %v570
        %v587 = vpack.c.b16 %v573, %v572
        %v588 = vpack.c.b16 %v575, %v574
        %v589 = vpack.c.b16 %v577, %v576
        %v590 = vpack.c.b16 %v579, %v578
        %v591 = vpack.c.b16 %v581, %v580
        %v592 = vpack.c.b16 %v583, %v582
        %v593 = vpack.c.b16 %v585, %v584
        %602 = vmatprep.subr.bf16.mxu0 0
        %603 = vmatpush1.bf16.msra.mxu0 %v586
        %604 = vmatprep.subr.bf16.mxu0 0
        %605 = vmatpush1.bf16.msra.mxu0 %v587
        %606 = vmatprep.subr.bf16.mxu0 0
        %607 = vmatpush1.bf16.msra.mxu0 %v588
        %608 = vmatprep.subr.bf16.mxu0 0
        %609 = vmatpush1.bf16.msra.mxu0 %v589
        %610 = vmatprep.subr.bf16.mxu0 0
        %611 = vmatpush1.bf16.msra.mxu0 %v590
        %612 = vmatprep.subr.bf16.mxu0 0
        %613 = vmatpush1.bf16.msra.mxu0 %v591
        %614 = vmatprep.subr.bf16.mxu0 0
        %615 = vmatpush1.bf16.msra.mxu0 %v592
        %616 = vmatprep.subr.bf16.mxu0 0
        %617 = vmatpush1.bf16.msra.mxu0 %v593
        %618 = vmatprep.subr.bf16.mxu0 0
        %619 = vmatpush1.bf16.msra.mxu0 0
        %620 = vmatprep.subr.bf16.mxu0 0
        %621 = vmatpush1.bf16.msra.mxu0 0
        %622 = vmatprep.subr.bf16.mxu0 0
        %623 = vmatpush1.bf16.msra.mxu0 0
        %624 = vmatprep.subr.bf16.mxu0 0
        %625 = vmatpush1.bf16.msra.mxu0 0
        %626 = vmatprep.subr.bf16.mxu0 0
        %627 = vmatpush1.bf16.msra.mxu0 0
        %628 = vmatprep.subr.bf16.mxu0 0
        %629 = vmatpush1.bf16.msra.mxu0 0
        %630 = vmatprep.subr.bf16.mxu0 0
        %631 = vmatpush1.bf16.msra.mxu0 0
        %632 = vmatprep.subr.bf16.mxu0 0
        %633 = vmatpush1.bf16.msra.mxu0 0
        %634 = vmatprep.mubr.bf16.mxu0 0
        %635 = vmatmul.mubr.bf16.gmra.mrb[0].mxu0 %v552
        %v636 = vpop.f32.mrb[0].mxu0
        %v637 = vadd.f32 0.0, %v636
        %v638 = vpop.f32.mrb[0].mxu0
        %v639 = vpop.f32.mrb[0].mxu0
        %v640 = vpop.f32.mrb[0].mxu0
        %641 = vdwg.mxu0
        %v642 = vadd.f32 %v524, %v637
        %vm643 = vcmask 519168
        %v644 = vsel %vm643, %v642, 0.0
        %v645 = vrot.slane %v644, 4
        %v646 = vadd.f32 %v644, %v645
        %v647 = vrot.slane %v646, 2
        %v648 = vadd.f32 %v646, %v647
        %v649 = vrot.slane %v648, 1
        %v650 = vadd.f32 %v648, %v649
        %v651 = vadd.f32 %v189, %v650
        %v652 = vmul.f32 %v642, %v642
        %v653 = vsel %vm643, %v652, 0.0
        %v654 = vrot.slane %v653, 4
        %v655 = vadd.f32 %v653, %v654
        %v656 = vrot.slane %v655, 2
        %v657 = vadd.f32 %v655, %v656
        %v658 = vrot.slane %v657, 1
        %v659 = vadd.f32 %v657, %v658
        %v660 = vadd.f32 %v190, %v659
        %v661 = vpack.c.bf16 %v642, %v642
        %s662 = smul.addr %s184, 2
        %s663 = scalar_lea.vmem %s177, %s662
        %vm664 = vcmask 517120
        %665 = vst.msk [vmem:[%s663] sm:$0x3] %vm664, %v661
      $region33: #{_lambda_.11} parent=27 // loop_footer
        %s188 = sadd.s32 1, %s184
      $region34: #{_lambda_.11} parent=27 // loop_footer_branch
        %183 = sbr.rel target = $region30
      $region35: #{_lambda_.11} parent=27 // loop_exit
        _
      %vm666 = vcmask 1040384
      %v667 = vsel %vm666, %v189, %v190
      %vm668 = vcmask 517120
      %669 = vst.msk [vmem:[%s181] sm:$0x3] %vm668, %v667
      %p670 = scmp.lt.s32.totalorder %s15, 1
      %s671 = scalar_select %p670, %s15, 1
      %s672 = smul.addr %s671, 4
      %s673 = smul.addr %s672, 2
      %s674 = scalar_lea.vmem %s2, %s673
      %p675 = scmp.lt.s32.totalorder %s15, 1
      %s676 = scalar_select %p675, %s15, 1
      %s677 = smul.addr %s676, 2
      %s678 = scalar_lea.vmem %s3, %s677
      // Predicated region
      $region36: #{_lambda_.11} parent=27 // pred_check
        %p679 = pneg %p80
      $region37: #{_lambda_.11} parent=27 // pred_check_branch
        %681 = sbr.rel (%p679) target = $region39
      $region38: #{_lambda_.11} parent=27 // pred_region
        _
      $region39: #{_lambda_.11} parent=27 // pred_fallthru
        _
      // Predicated region
      $region40: #{_lambda_.11} parent=27 // pred_check
        %p682 = pneg %p106
      $region41: #{_lambda_.11} parent=27 // pred_check_branch
        %684 = sbr.rel (%p682) target = $region43
      $region42: #{_lambda_.11} parent=27 // pred_region
        _
      $region43: #{_lambda_.11} parent=27 // pred_fallthru
        _
    $region28: #{_lambda_.11} parent=5 // pred_fallthru
      _
    %p685 = scmp.le.s32.totalorder 2, %s10
    // Predicated region
    $region44: #{_lambda_.11} parent=5 // pred_check
      %p686 = pneg %p685
    $region45: #{_lambda_.11} parent=5 // pred_check_branch
      %688 = sbr.rel (%p686) target = $region47
    $region46: #{_lambda_.11} parent=5 // pred_region
      %s689 = ssub.s32 %s10, 2
      // Predicated region
      $region48: #{_lambda_.11} parent=46 // pred_check
        %p690 = pneg %p86
      $region49: #{_lambda_.11} parent=46 // pred_check_branch
        %692 = sbr.rel (%p690) target = $region51
      $region50: #{_lambda_.11} parent=46 // pred_region
        %p693 = scmp.lt.s32.totalorder %s16, 1
        %s694 = scalar_select %p693, %s16, 1
        %s695 = smul.addr %s694, 4
        %s696 = smul.addr %s695, 2
        %s697 = scalar_lea.vmem %s2, %s696
      $region51: #{_lambda_.11} parent=46 // pred_fallthru
        _
      // Predicated region
      $region52: #{_lambda_.11} parent=46 // pred_check
        %p698 = pneg %p112
      $region53: #{_lambda_.11} parent=46 // pred_check_branch
        %700 = sbr.rel (%p698) target = $region55
      $region54: #{_lambda_.11} parent=46 // pred_region
        %p701 = scmp.lt.s32.totalorder %s16, 1
        %s702 = scalar_select %p701, %s16, 1
        %s703 = smul.addr %s702, 2
        %s704 = scalar_lea.vmem %s3, %s703
      $region55: #{_lambda_.11} parent=46 // pred_fallthru
        _
    $region47: #{_lambda_.11} parent=5 // pred_fallthru
      _
  $region6: #{_lambda_.11} parent=0 // loop_footer
    %s14 = sadd.s32 1, %s10
  $region7: #{_lambda_.11} parent=0 // loop_footer_branch
    %9 = sbr.rel target = $region3
  $region8: #{_lambda_.11} parent=0 // loop_exit
    _

// kernel: _lambda_.14
$region0: #{_lambda_.14}
  #allocation0 [shape = 'u32[]', space=smem, size = 0x4, offset = 0x4, fixed_abs, tag = 'smem constant byte address 0x4 - core index']
  #allocation1 [shape = 'u32[144,128]{1,0:T(1,128)}', space=vmem, size = 0x12000, scoped, tag = 'internal scratch']
  %s0 = inlined_call_operand.vmem [shape: bf16[18,128], index: 0, kind: input, shape index: {}]
  %s1 = inlined_call_operand.vmem [shape: f32[1,128], index: 1, kind: input, shape index: {}]
  %s2 = inlined_call_operand.vmem [shape: f32[1,128], index: 2, kind: input, shape index: {}]
  %s3 = inlined_call_operand.vmem [shape: bf16[18,128], index: 3, kind: output, shape index: {}]
  %s4 = sld [smem:[#allocation0]]
  $region22: #{_lambda_.14} parent=0
    _
  %s6 = ssub.s32 1, %s4
  %s7 = scalar_select 0, %s6, %s4
  // Predicated region
  $region2: #{_lambda_.14} parent=0 // pred_check
    _
  $region3: #{_lambda_.14} parent=0 // pred_check_branch
    %9 = sbr.rel (0) target = $region5
  $region4: #{_lambda_.14} parent=0 // pred_region
    _
  $region5: #{_lambda_.14} parent=0 // pred_fallthru
    _
  // Predicated region
  $region6: #{_lambda_.14} parent=0 // pred_check
    _
  $region7: #{_lambda_.14} parent=0 // pred_check_branch
    %11 = sbr.rel (0) target = $region9
  $region8: #{_lambda_.14} parent=0 // pred_region
    _
  $region9: #{_lambda_.14} parent=0 // pred_fallthru
    _
  // Predicated region
  $region10: #{_lambda_.14} parent=0 // pred_check
    _
  $region11: #{_lambda_.14} parent=0 // pred_check_branch
    %13 = sbr.rel (0) target = $region13
  $region12: #{_lambda_.14} parent=0 // pred_region
    _
  $region13: #{_lambda_.14} parent=0 // pred_fallthru
    _
  %v14 = vld [vmem:[%s0] sm:$0xf]
  %v15 = vld [vmem:[%s0 + $0x4] sm:$0xf]
  %v16 = vld [vmem:[%s0 + $0x8] sm:$0x1]
  %v17 = vunpack.c.l.bf16 %v14
  %v18 = vunpack.c.l.bf16 %v15
  %v19 = vunpack.c.l.bf16 %v16
  %v20 = vld [vmem:[%s1] sm:$0x1]
  %v22 = vlaneseq
  %v23 = vshrl.u32 %v22, 7
  %v24 = vsub.s32 0, %v23
  %v25 = vrot.slane %v20, %v24
  %v27 = vmul.f32 %v17, %v25
  %v28 = vmul.f32 %v18, %v25
  %v29 = vmul.f32 %v19, %v25
  %v30 = vld [vmem:[%s2] sm:$0x1]
  %v32 = vlaneseq
  %v33 = vshrl.u32 %v32, 7
  %v34 = vsub.s32 0, %v33
  %v35 = vrot.slane %v30, %v34
  %v37 = vadd.f32 %v27, %v35
  %v38 = vadd.f32 %v28, %v35
  %v39 = vadd.f32 %v29, %v35
  %vm40 = vcmp.ge.f32.partialorder %v37, 0.0
  %vm41 = vcmp.ge.f32.partialorder %v38, 0.0
  %vm42 = vcmp.ge.f32.partialorder %v39, 0.0
  %v43 = vmul.f32 %v37, 0.2
  %v44 = vmul.f32 %v38, 0.2
  %v45 = vmul.f32 %v39, 0.2
  %v46 = vsel %vm40, %v37, %v43
  %v47 = vsel %vm41, %v38, %v44
  %v48 = vsel %vm42, %v39, %v45
  %v49 = vpack.c.bf16 %v47, %v46
  %v50 = vpack.c.bf16 %v48, %v48
  %v53 = vunpack.c.l.b16 %v49
  %v54 = vunpack.c.h.b16 %v49
  %v55 = vunpack.c.l.b16 %v50
  %v56 = vpack.c.b16 %v53, %v53
  %v57 = vpack.c.b16 %v54, %v54
  %v58 = vpack.c.b16 %v55, %v55
  %62 = vst [vmem:[%s3] sm:$0xf] %v56
  %63 = vst [vmem:[%s3 + $0x4] sm:$0xf] %v57
  %64 = vst [vmem:[%s3 + $0x8] sm:$0x1] %v58
  // Predicated region
  $region14: #{_lambda_.14} parent=0 // pred_check
    _
  $region15: #{_lambda_.14} parent=0 // pred_check_branch
    %66 = sbr.rel (0) target = $region17
  $region16: #{_lambda_.14} parent=0 // pred_region
    _
  $region17: #{_lambda_.14} parent=0 // pred_fallthru
    _
  // Predicated region
  $region18: #{_lambda_.14} parent=0 // pred_check
    _
  $region19: #{_lambda_.14} parent=0 // pred_check_branch
    %68 = sbr.rel (0) target = $region21
  $region20: #{_lambda_.14} parent=0 // pred_region
    _
  $region21: #{_lambda_.14} parent=0 // pred_fallthru
    _

// kernel: _lambda_.13
$region0: #{_lambda_.13}
  #allocation0 [shape = 'u32[]', space=smem, size = 0x4, offset = 0x4, fixed_abs, tag = 'smem constant byte address 0x4 - core index']
  #allocation1 [shape = 'u32[144,128]{1,0:T(1,128)}', space=vmem, size = 0x12000, scoped, tag = 'internal scratch']
  %s0 = inlined_call_operand.vmem [shape: bf16[2,6,6,64], index: 0, kind: input, shape index: {}]
  %s1 = inlined_call_operand.vmem [shape: bf16[16,64,128], index: 1, kind: input, shape index: {}]
  %s2 = inlined_call_operand.vmem [shape: bf16[2,3,3,128], index: 2, kind: output, shape index: {0}]
  %s3 = inlined_call_operand.vmem [shape: f32[2,2,128], index: 3, kind: output, shape index: {1}]
  %4 = xla_tuple %s2, %s3
  %s5 = sld [smem:[#allocation0]]
  $region56: #{_lambda_.13} parent=0
    _
  %s7 = ssub.s32 1, %s5
  %s8 = scalar_select 0, %s7, %s5
  loop: start=0, step=1, limit=4
  $region2: #{_lambda_.13} parent=0 // loop_pre_header
    _
  $region3: #{_lambda_.13} parent=0 // loop_header
    %s10 = sphi 0, %s14
    %p11 = scmp.ge.s32.totalorder %s10, 4
    %s20 = sphi 0, %s22
    %s23 = sphi 0, %s20
    %s24 = sphi 0, %s23
    %s40 = sphi 0, %s24
    %s44 = sphi 0, %s44
    %s46 = sphi 0, %s44
    %s47 = sphi 0, %s46
    %s61 = sphi 0, %s47
    %s67 = sphi 0, %s69
    %s70 = sphi 0, %s67
    %s71 = sphi 0, %s70
    %s87 = sphi 0, %s71
    %s93 = sphi 0, %s95
    %s96 = sphi 0, %s93
    %s97 = sphi 0, %s96
    %s113 = sphi 0, %s97
  $region4: #{_lambda_.13} parent=0 // loop_header_branch
    %13 = sbr.rel (%p11) target = $region8
  $region5: #{_lambda_.13} parent=0 // loop_body
    %s15 = ssub.s32 %s10, 1
    %s16 = ssub.s32 %s10, 2
    %s17 = sadd.s32 %s10, 1
    %s18 = ssub.s32 %s10, %s17
    %p19 = scmp.eq.s32.totalorder %s18, 0
    %s21 = sadd.s32 %s20, 1
    %s22 = scalar_select %p19, %s20, %s21
    %p25 = pneg %p19
    %p26 = scmp.eq.s32.totalorder %s10, 1
    %p27 = por %p25, %p26
    %p28 = scmp.ne.s32.totalorder %s20, %s23
    %p29 = scmp.eq.s32.totalorder %s10, 0
    %p30 = por %p28, %p29
    %p31 = scmp.ne.s32.totalorder %s20, %s23
    %p32 = scmp.eq.s32.totalorder %s15, 1
    %p33 = por %p31, %p32
    %p34 = scmp.ne.s32.totalorder %s23, %s24
    %p35 = scmp.eq.s32.totalorder %s15, 0
    %p36 = por %p34, %p35
    %p37 = scmp.ne.s32.totalorder %s23, %s24
    %p38 = scmp.eq.s32.totalorder %s16, 1
    %p39 = por %p37, %p38
    %p41 = scmp.ne.s32.totalorder %s24, %s40
    %p42 = scmp.eq.s32.totalorder %s16, 0
    %p43 = por %p41, %p42
    %s45 = sadd.s32 %s44, 1
    %p48 = scmp.eq.s32.totalorder %s10, 1
    %p49 = scmp.ne.s32.totalorder %s44, %s46
    %p50 = scmp.eq.s32.totalorder %s10, 0
    %p51 = por %p49, %p50
    %p52 = scmp.ne.s32.totalorder %s44, %s46
    %p53 = scmp.eq.s32.totalorder %s15, 1
    %p54 = por %p52, %p53
    %p55 = scmp.ne.s32.totalorder %s46, %s47
    %p56 = scmp.eq.s32.totalorder %s15, 0
    %p57 = por %p55, %p56
    %p58 = scmp.ne.s32.totalorder %s46, %s47
    %p59 = scmp.eq.s32.totalorder %s16, 1
    %p60 = por %p58, %p59
    %p62 = scmp.ne.s32.totalorder %s47, %s61
    %p63 = scmp.eq.s32.totalorder %s16, 0
    %p64 = por %p62, %p63
    %s65 = ssub.s32 %s10, %s17
    %p66 = scmp.eq.s32.totalorder %s65, 0
    %s68 = sadd.s32 %s67, 1
    %s69 = scalar_select %p66, %s67, %s68
    %p72 = pneg %p66
    %p73 = scmp.eq.s32.totalorder %s10, 1
    %p74 = por %p72, %p73
    %p75 = scmp.ne.s32.totalorder %s67, %s70
    %p76 = scmp.eq.s32.totalorder %s10, 0
    %p77 = por %p75, %p76
    %p78 = scmp.ne.s32.totalorder %s67, %s70
    %p79 = scmp.eq.s32.totalorder %s15, 1
    %p80 = por %p78, %p79
    %p81 = scmp.ne.s32.totalorder %s70, %s71
    %p82 = scmp.eq.s32.totalorder %s15, 0
    %p83 = por %p81, %p82
    %p84 = scmp.ne.s32.totalorder %s70, %s71
    %p85 = scmp.eq.s32.totalorder %s16, 1
    %p86 = por %p84, %p85
    %p88 = scmp.ne.s32.totalorder %s71, %s87
    %p89 = scmp.eq.s32.totalorder %s16, 0
    %p90 = por %p88, %p89
    %s91 = ssub.s32 %s10, %s17
    %p92 = scmp.eq.s32.totalorder %s91, 0
    %s94 = sadd.s32 %s93, 1
    %s95 = scalar_select %p92, %s93, %s94
    %p98 = pneg %p92
    %p99 = scmp.eq.s32.totalorder %s10, 1
    %p100 = por %p98, %p99
    %p101 = scmp.ne.s32.totalorder %s93, %s96
    %p102 = scmp.eq.s32.totalorder %s10, 0
    %p103 = por %p101, %p102
    %p104 = scmp.ne.s32.totalorder %s93, %s96
    %p105 = scmp.eq.s32.totalorder %s15, 1
    %p106 = por %p104, %p105
    %p107 = scmp.ne.s32.totalorder %s96, %s97
    %p108 = scmp.eq.s32.totalorder %s15, 0
    %p109 = por %p107, %p108
    %p110 = scmp.ne.s32.totalorder %s96, %s97
    %p111 = scmp.eq.s32.totalorder %s16, 1
    %p112 = por %p110, %p111
    %p114 = scmp.ne.s32.totalorder %s97, %s113
    %p115 = scmp.eq.s32.totalorder %s16, 0
    %p116 = por %p114, %p115
    %p117 = scmp.le.s32.totalorder 1, %s10
    %p118 = scmp.lt.s32.totalorder %s10, 3
    %p119 = pnand %p117, %p118
    %p120 = pneg %p119
    // Predicated region
    $region9: #{_lambda_.13} parent=5 // pred_check
      _
    $region10: #{_lambda_.13} parent=5 // pred_check_branch
      %122 = sbr.rel (%p119) target = $region12
    $region11: #{_lambda_.13} parent=5 // pred_region
      %s123 = ssub.s32 %s10, 1
      // Predicated region
      $region13: #{_lambda_.13} parent=11 // pred_check
        %p124 = pneg %p57
      $region14: #{_lambda_.13} parent=11 // pred_check_branch
        %126 = sbr.rel (%p124) target = $region16
      $region15: #{_lambda_.13} parent=11 // pred_region
        _
      $region16: #{_lambda_.13} parent=11 // pred_fallthru
        _
    $region12: #{_lambda_.13} parent=5 // pred_fallthru
      _
    %p127 = scmp.lt.s32.totalorder %s10, 2
    // Predicated region
    $region17: #{_lambda_.13} parent=5 // pred_check
      %p128 = pneg %p127
    $region18: #{_lambda_.13} parent=5 // pred_check_branch
      %130 = sbr.rel (%p128) target = $region20
    $region19: #{_lambda_.13} parent=5 // pred_region
      // Predicated region
      $region21: #{_lambda_.13} parent=19 // pred_check
        %p131 = pneg %p30
      $region22: #{_lambda_.13} parent=19 // pred_check_branch
        %133 = sbr.rel (%p131) target = $region24
      $region23: #{_lambda_.13} parent=19 // pred_region
        %p134 = scmp.lt.s32.totalorder %s10, 1
        %s135 = scalar_select %p134, %s10, 1
        %s136 = smul.addr %s135, 6
        %s137 = smul.addr %s136, 4
        %s138 = scalar_lea.vmem %s0, %s137
      $region24: #{_lambda_.13} parent=19 // pred_fallthru
        _
    $region20: #{_lambda_.13} parent=5 // pred_fallthru
      _
    %p139 = scmp.le.s32.totalorder 1, %s10
    %p140 = scmp.lt.s32.totalorder %s10, 3
    %p141 = pnand %p139, %p140
    %p142 = pneg %p141
    // Predicated region
    $region25: #{_lambda_.13} parent=5 // pred_check
      _
    $region26: #{_lambda_.13} parent=5 // pred_check_branch
      %144 = sbr.rel (%p141) target = $region28
    $region27: #{_lambda_.13} parent=5 // pred_region
      %s145 = ssub.s32 %s10, 1
      %p146 = scmp.lt.s32.totalorder %s15, 1
      %s147 = scalar_select %p146, %s15, 1
      %s148 = smul.addr %s147, 6
      %s149 = smul.addr %s148, 4
      %s150 = scalar_lea.vmem %s0, %s149
      %p151 = pneg %p36
      %p152 = pneg %p33
      %p153 = pneg %p57
      %p154 = pneg %p54
      %p155 = pneg %p83
      %p156 = pneg %p80
      %p157 = scmp.lt.s32.totalorder %s15, 1
      %s158 = scalar_select %p157, %s15, 1
      %s159 = smul.addr %s158, 3
      %s160 = smul.addr %s159, 2
      %s161 = scalar_lea.vmem %s2, %s160
      %p162 = pneg %p109
      %p163 = pneg %p106
      %p164 = scmp.lt.s32.totalorder %s15, 1
      %s165 = scalar_select %p164, %s15, 1
      %s166 = smul.addr %s165, 2
      %s167 = scalar_lea.vmem %s3, %s166
      %p168 = scmp.lt.s32.totalorder %s15, 1
      %s169 = scalar_select %p168, %s15, 1
      %s170 = smul.addr %s169, 6
      %s171 = smul.addr %s170, 4
      %s172 = scalar_lea.vmem %s0, %s171
      %p173 = scmp.lt.s32.totalorder %s15, 1
      %s174 = scalar_select %p173, %s15, 1
      %s175 = smul.addr %s174, 3
      %s176 = smul.addr %s175, 2
      %s177 = scalar_lea.vmem %s2, %s176
      %p178 = scmp.lt.s32.totalorder %s15, 1
      %s179 = scalar_select %p178, %s15, 1
      %s180 = smul.addr %s179, 2
      %s181 = scalar_lea.vmem %s3, %s180
      loop: start=0, step=1, limit=3
      $region29: #{_lambda_.13} parent=27 // loop_pre_header
        _
      $region30: #{_lambda_.13} parent=27 // loop_header
        %s184 = sphi 0, %s188
        %p185 = scmp.ge.s32.totalorder %s184, 3
        %v189 = vphi 0.0, %v1536
        %v190 = vphi 0.0, %v1545
      $region31: #{_lambda_.13} parent=27 // loop_header_branch
        %187 = sbr.rel (%p185) target = $region35
      $region32: #{_lambda_.13} parent=27 // loop_body
        %s191 = smul.addr %s184, 4
        %s192 = scalar_lea.vmem %s172, %s191
        %v193 = vld [vmem:[%s192] sm:$0x3]
        %v194 = vld [vmem:[%s1] sm:$0xf]
        %v195 = vld [vmem:[%s1 + $0x4] sm:$0xf]
        %v196 = vld [vmem:[%s1 + $0x8] sm:$0xf]
        %v197 = vld [vmem:[%s1 + $0xc] sm:$0xf]
        %v198 = vld [vmem:[%s1 + $0x10] sm:$0xf]
        %v199 = vld [vmem:[%s1 + $0x14] sm:$0xf]
        %v200 = vld [vmem:[%s1 + $0x18] sm:$0xf]
        %v201 = vld [vmem:[%s1 + $0x1c] sm:$0xf]
        %s202 = scalar_lea.vmem %s1, 32
        %v203 = vld [vmem:[%s202] sm:$0xf]
        %v204 = vld [vmem:[%s202 + $0x4] sm:$0xf]
        %v205 = vld [vmem:[%s202 + $0x8] sm:$0xf]
        %v206 = vld [vmem:[%s202 + $0xc] sm:$0xf]
        %v207 = vld [vmem:[%s202 + $0x10] sm:$0xf]
        %v208 = vld [vmem:[%s202 + $0x14] sm:$0xf]
        %v209 = vld [vmem:[%s202 + $0x18] sm:$0xf]
        %v210 = vld [vmem:[%s202 + $0x1c] sm:$0xf]
        %v212 = vunpack.c.l.b16 %v193
        %v213 = vpack.c.b16 %v212, %v212
        %v215 = vshrl.u32 %v213, 16
        %v217 = vshll.u32 %v213, 16
        %v219 = vrot.slane %v217, 1
        %v220 = vor.u32 %v215, %v219
        %v229 = vunpack.c.l.b16 %v203
        %v230 = vunpack.c.l.b16 %v204
        %v231 = vunpack.c.l.b16 %v205
        %v232 = vunpack.c.l.b16 %v206
        %v233 = vunpack.c.l.b16 %v207
        %v234 = vunpack.c.l.b16 %v208
        %v235 = vunpack.c.l.b16 %v209
        %v236 = vunpack.c.l.b16 %v210
        %v237 = vpack.c.b16 %v230, %v229
        %v238 = vpack.c.b16 %v232, %v231
        %v239 = vpack.c.b16 %v234, %v233
        %v240 = vpack.c.b16 %v236, %v235
        %vm245 = vcmask 523264
        %v247 = vsel %vm245, %v220, 0
        %249 = vmatprep.subr.bf16.mxu0 0
        %250 = vmatpush1.bf16.msra.mxu0 %v237
        %251 = vmatprep.subr.bf16.mxu0 0
        %252 = vmatpush1.bf16.msra.mxu0 %v238
        %253 = vmatprep.subr.bf16.mxu0 0
        %254 = vmatpush1.bf16.msra.mxu0 %v239
        %255 = vmatprep.subr.bf16.mxu0 0
        %256 = vmatpush1.bf16.msra.mxu0 %v240
        %257 = vmatprep.subr.bf16.mxu0 0
        %258 = vmatpush1.bf16.msra.mxu0 0
        %259 = vmatprep.subr.bf16.mxu0 0
        %260 = vmatpush1.bf16.msra.mxu0 0
        %261 = vmatprep.subr.bf16.mxu0 0
        %262 = vmatpush1.bf16.msra.mxu0 0
        %263 = vmatprep.subr.bf16.mxu0 0
        %264 = vmatpush1.bf16.msra.mxu0 0
        %265 = vmatprep.subr.bf16.mxu0 0
        %266 = vmatpush1.bf16.msra.mxu0 0
        %267 = vmatprep.subr.bf16.mxu0 0
        %268 = vmatpush1.bf16.msra.mxu0 0
        %269 = vmatprep.subr.bf16.mxu0 0
        %270 = vmatpush1.bf16.msra.mxu0 0
        %271 = vmatprep.subr.bf16.mxu0 0
        %272 = vmatpush1.bf16.msra.mxu0 0
        %273 = vmatprep.subr.bf16.mxu0 0
        %274 = vmatpush1.bf16.msra.mxu0 0
        %275 = vmatprep.subr.bf16.mxu0 0
        %276 = vmatpush1.bf16.msra.mxu0 0
        %277 = vmatprep.subr.bf16.mxu0 0
        %278 = vmatpush1.bf16.msra.mxu0 0
        %279 = vmatprep.subr.bf16.mxu0 0
        %280 = vmatpush1.bf16.msra.mxu0 0
        %281 = vmatprep.mubr.bf16.mxu0 0
        %282 = vmatmul.mubr.bf16.gmra.mrb[0].mxu0 %v247
        %v283 = vpop.f32.mrb[0].mxu0
        %v284 = vadd.f32 0.0, %v283
        %v285 = vpop.f32.mrb[0].mxu0
        %v286 = vpop.f32.mrb[0].mxu0
        %v287 = vpop.f32.mrb[0].mxu0
        %288 = vdwg.mxu0
        %v297 = vunpack.c.l.b16 %v194
        %v298 = vunpack.c.l.b16 %v195
        %v299 = vunpack.c.l.b16 %v196
        %v300 = vunpack.c.l.b16 %v197
        %v301 = vunpack.c.l.b16 %v198
        %v302 = vunpack.c.l.b16 %v199
        %v303 = vunpack.c.l.b16 %v200
        %v304 = vunpack.c.l.b16 %v201
        %v305 = vpack.c.b16 %v298, %v297
        %v306 = vpack.c.b16 %v300, %v299
        %v307 = vpack.c.b16 %v302, %v301
        %v308 = vpack.c.b16 %v304, %v303
        %v314 = vsel %vm245, %v193, 0
        %316 = vmatprep.subr.bf16.mxu0 0
        %317 = vmatpush1.bf16.msra.mxu0 %v305
        %318 = vmatprep.subr.bf16.mxu0 0
        %319 = vmatpush1.bf16.msra.mxu0 %v306
        %320 = vmatprep.subr.bf16.mxu0 0
        %321 = vmatpush1.bf16.msra.mxu0 %v307
        %322 = vmatprep.subr.bf16.mxu0 0
        %323 = vmatpush1.bf16.msra.mxu0 %v308
        %324 = vmatprep.subr.bf16.mxu0 0
        %325 = vmatpush1.bf16.msra.mxu0 0
        %326 = vmatprep.subr.bf16.mxu0 0
        %327 = vmatpush1.bf16.msra.mxu0 0
        %328 = vmatprep.subr.bf16.mxu0 0
        %329 = vmatpush1.bf16.msra.mxu0 0
        %330 = vmatprep.subr.bf16.mxu0 0
        %331 = vmatpush1.bf16.msra.mxu0 0
        %332 = vmatprep.subr.bf16.mxu0 0
        %333 = vmatpush1.bf16.msra.mxu0 0
        %334 = vmatprep.subr.bf16.mxu0 0
        %335 = vmatpush1.bf16.msra.mxu0 0
        %336 = vmatprep.subr.bf16.mxu0 0
        %337 = vmatpush1.bf16.msra.mxu0 0
        %338 = vmatprep.subr.bf16.mxu0 0
        %339 = vmatpush1.bf16.msra.mxu0 0
        %340 = vmatprep.subr.bf16.mxu0 0
        %341 = vmatpush1.bf16.msra.mxu0 0
        %342 = vmatprep.subr.bf16.mxu0 0
        %343 = vmatpush1.bf16.msra.mxu0 0
        %344 = vmatprep.subr.bf16.mxu0 0
        %345 = vmatpush1.bf16.msra.mxu0 0
        %346 = vmatprep.subr.bf16.mxu0 0
        %347 = vmatpush1.bf16.msra.mxu0 0
        %348 = vmatprep.mubr.bf16.mxu0 0
        %349 = vmatmul.mubr.bf16.gmra.mrb[0].mxu0 %v314
        %v350 = vpop.f32.mrb[0].mxu0
        %v351 = vadd.f32 %v284, %v350
        %v352 = vpop.f32.mrb[0].mxu0
        %v353 = vpop.f32.mrb[0].mxu0
        %v354 = vpop.f32.mrb[0].mxu0
        %355 = vdwg.mxu0
        %v356 = vld [vmem:[%s192] sm:$0x6]
        %s357 = scalar_lea.vmem %s1, 64
        %v358 = vld [vmem:[%s357] sm:$0xf]
        %v359 = vld [vmem:[%s357 + $0x4] sm:$0xf]
        %v360 = vld [vmem:[%s357 + $0x8] sm:$0xf]
        %v361 = vld [vmem:[%s357 + $0xc] sm:$0xf]
        %v362 = vld [vmem:[%s357 + $0x10] sm:$0xf]
        %v363 = vld [vmem:[%s357 + $0x14] sm:$0xf]
        %v364 = vld [vmem:[%s357 + $0x18] sm:$0xf]
        %v365 = vld [vmem:[%s357 + $0x1c] sm:$0xf]
        %v367 = vunpack.c.l.b16 %v356
        %v368 = vpack.c.b16 %v367, %v367
        %v369 = vrot.slane %v368, 1
        %v378 = vunpack.c.l.b16 %v358
        %v379 = vunpack.c.l.b16 %v359
        %v380 = vunpack.c.l.b16 %v360
        %v381 = vunpack.c.l.b16 %v361
        %v382 = vunpack.c.l.b16 %v362
        %v383 = vunpack.c.l.b16 %v363
        %v384 = vunpack.c.l.b16 %v364
        %v385 = vunpack.c.l.b16 %v365
        %v386 = vpack.c.b16 %v379, %v378
        %v387 = vpack.c.b16 %v381, %v380
        %v388 = vpack.c.b16 %v383, %v382
        %v389 = vpack.c.b16 %v385, %v384
        %v395 = vsel %vm245, %v369, 0
        %397 = vmatprep.subr.bf16.mxu0 0
        %398 = vmatpush1.bf16.msra.mxu0 %v386
        %399 = vmatprep.subr.bf16.mxu0 0
        %400 = vmatpush1.bf16.msra.mxu0 %v387
        %401 = vmatprep.subr.bf16.mxu0 0
        %402 = vmatpush1.bf16.msra.mxu0 %v388
        %403 = vmatprep.subr.bf16.mxu0 0
        %404 = vmatpush1.bf16.msra.mxu0 %v389
        %405 = vmatprep.subr.bf16.mxu0 0
        %406 = vmatpush1.bf16.msra.mxu0 0
        %407 = vmatprep.subr.bf16.mxu0 0
        %408 = vmatpush1.bf16.msra.mxu0 0
        %409 = vmatprep.subr.bf16.mxu0 0
        %410 = vmatpush1.bf16.msra.mxu0 0
        %411 = vmatprep.subr.bf16.mxu0 0
        %412 = vmatpush1.bf16.msra.mxu0 0
        %413 = vmatprep.subr.bf16.mxu0 0
        %414 = vmatpush1.bf16.msra.mxu0 0
        %415 = vmatprep.subr.bf16.mxu0 0
        %416 = vmatpush1.bf16.msra.mxu0 0
        %417 = vmatprep.subr.bf16.mxu0 0
        %418 = vmatpush1.bf16.msra.mxu0 0
        %419 = vmatprep.subr.bf16.mxu0 0
        %420 = vmatpush1.bf16.msra.mxu0 0
        %421 = vmatprep.subr.bf16.mxu0 0
        %422 = vmatpush1.bf16.msra.mxu0 0
        %423 = vmatprep.subr.bf16.mxu0 0
        %424 = vmatpush1.bf16.msra.mxu0 0
        %425 = vmatprep.subr.bf16.mxu0 0
        %426 = vmatpush1.bf16.msra.mxu0 0
        %427 = vmatprep.subr.bf16.mxu0 0
        %428 = vmatpush1.bf16.msra.mxu0 0
        %429 = vmatprep.mubr.bf16.mxu0 0
        %430 = vmatmul.mubr.bf16.gmra.mrb[0].mxu0 %v395
        %v431 = vpop.f32.mrb[0].mxu0
        %v432 = vadd.f32 0.0, %v431
        %v433 = vpop.f32.mrb[0].mxu0
        %v434 = vpop.f32.mrb[0].mxu0
        %v435 = vpop.f32.mrb[0].mxu0
        %436 = vdwg.mxu0
        %v437 = vadd.f32 %v351, %v432
        %s438 = scalar_lea.vmem %s1, 96
        %v439 = vld [vmem:[%s438] sm:$0xf]
        %v440 = vld [vmem:[%s438 + $0x4] sm:$0xf]
        %v441 = vld [vmem:[%s438 + $0x8] sm:$0xf]
        %v442 = vld [vmem:[%s438 + $0xc] sm:$0xf]
        %v443 = vld [vmem:[%s438 + $0x10] sm:$0xf]
        %v444 = vld [vmem:[%s438 + $0x14] sm:$0xf]
        %v445 = vld [vmem:[%s438 + $0x18] sm:$0xf]
        %v446 = vld [vmem:[%s438 + $0x1c] sm:$0xf]
        %v448 = vshrl.u32 %v368, 16
        %v450 = vrot.slane %v448, 1
        %v451 = vshll.u32 %v368, 16
        %v453 = vrot.slane %v451, 2
        %v454 = vor.u32 %v450, %v453
        %v463 = vunpack.c.l.b16 %v439
        %v464 = vunpack.c.l.b16 %v440
        %v465 = vunpack.c.l.b16 %v441
        %v466 = vunpack.c.l.b16 %v442
        %v467 = vunpack.c.l.b16 %v443
        %v468 = vunpack.c.l.b16 %v444
        %v469 = vunpack.c.l.b16 %v445
        %v470 = vunpack.c.l.b16 %v446
        %v471 = vpack.c.b16 %v464, %v463
        %v472 = vpack.c.b16 %v466, %v465
        %v473 = vpack.c.b16 %v468, %v467
        %v474 = vpack.c.b16 %v470, %v469
        %v480 = vsel %vm245, %v454, 0
        %482 = vmatprep.subr.bf16.mxu0 0
        %483 = vmatpush1.bf16.msra.mxu0 %v471
        %484 = vmatprep.subr.bf16.mxu0 0
        %485 = vmatpush1.bf16.msra.mxu0 %v472
        %486 = vmatprep.subr.bf16.mxu0 0
        %487 = vmatpush1.bf16.msra.mxu0 %v473
        %488 = vmatprep.subr.bf16.mxu0 0
        %489 = vmatpush1.bf16.msra.mxu0 %v474
        %490 = vmatprep.subr.bf16.mxu0 0
        %491 = vmatpush1.bf16.msra.mxu0 0
        %492 = vmatprep.subr.bf16.mxu0 0
        %493 = vmatpush1.bf16.msra.mxu0 0
        %494 = vmatprep.subr.bf16.mxu0 0
        %495 = vmatpush1.bf16.msra.mxu0 0
        %496 = vmatprep.subr.bf16.mxu0 0
        %497 = vmatpush1.bf16.msra.mxu0 0
        %498 = vmatprep.subr.bf16.mxu0 0
        %499 = vmatpush1.bf16.msra.mxu0 0
        %500 = vmatprep.subr.bf16.mxu0 0
        %501 = vmatpush1.bf16.msra.mxu0 0
        %502 = vmatprep.subr.bf16.mxu0 0
        %503 = vmatpush1.bf16.msra.mxu0 0
        %504 = vmatprep.subr.bf16.mxu0 0
        %505 = vmatpush1.bf16.msra.mxu0 0
        %506 = vmatprep.subr.bf16.mxu0 0
        %507 = vmatpush1.bf16.msra.mxu0 0
        %508 = vmatprep.subr.bf16.mxu0 0
        %509 = vmatpush1.bf16.msra.mxu0 0
        %510 = vmatprep.subr.bf16.mxu0 0
        %511 = vmatpush1.bf16.msra.mxu0 0
        %512 = vmatprep.subr.bf16.mxu0 0
        %513 = vmatpush1.bf16.msra.mxu0 0
        %514 = vmatprep.mubr.bf16.mxu0 0
        %515 = vmatmul.mubr.bf16.gmra.mrb[0].mxu0 %v480
        %v516 = vpop.f32.mrb[0].mxu0
        %v517 = vadd.f32 0.0, %v516
        %v518 = vpop.f32.mrb[0].mxu0
        %v519 = vpop.f32.mrb[0].mxu0
        %v520 = vpop.f32.mrb[0].mxu0
        %521 = vdwg.mxu0
        %v522 = vadd.f32 %v437, %v517
        %s523 = sadd.s32 %s184, 1
        %s524 = smul.addr %s523, 4
        %s525 = scalar_lea.vmem %s172, %s524
        %v526 = vld [vmem:[%s525] sm:$0x3]
        %s527 = scalar_lea.vmem %s1, 128
        %v528 = vld [vmem:[%s527] sm:$0xf]
        %v529 = vld [vmem:[%s527 + $0x4] sm:$0xf]
        %v530 = vld [vmem:[%s527 + $0x8] sm:$0xf]
        %v531 = vld [vmem:[%s527 + $0xc] sm:$0xf]
        %v532 = vld [vmem:[%s527 + $0x10] sm:$0xf]
        %v533 = vld [vmem:[%s527 + $0x14] sm:$0xf]
        %v534 = vld [vmem:[%s527 + $0x18] sm:$0xf]
        %v535 = vld [vmem:[%s527 + $0x1c] sm:$0xf]
        %v544 = vunpack.c.l.b16 %v528
        %v545 = vunpack.c.l.b16 %v529
        %v546 = vunpack.c.l.b16 %v530
        %v547 = vunpack.c.l.b16 %v531
        %v548 = vunpack.c.l.b16 %v532
        %v549 = vunpack.c.l.b16 %v533
        %v550 = vunpack.c.l.b16 %v534
        %v551 = vunpack.c.l.b16 %v535
        %v552 = vpack.c.b16 %v545, %v544
        %v553 = vpack.c.b16 %v547, %v546
        %v554 = vpack.c.b16 %v549, %v548
        %v555 = vpack.c.b16 %v551, %v550
        %v561 = vsel %vm245, %v526, 0
        %563 = vmatprep.subr.bf16.mxu0 0
        %564 = vmatpush1.bf16.msra.mxu0 %v552
        %565 = vmatprep.subr.bf16.mxu0 0
        %566 = vmatpush1.bf16.msra.mxu0 %v553
        %567 = vmatprep.subr.bf16.mxu0 0
        %568 = vmatpush1.bf16.msra.mxu0 %v554
        %569 = vmatprep.subr.bf16.mxu0 0
        %570 = vmatpush1.bf16.msra.mxu0 %v555
        %571 = vmatprep.subr.bf16.mxu0 0
        %572 = vmatpush1.bf16.msra.mxu0 0
        %573 = vmatprep.subr.bf16.mxu0 0
        %574 = vmatpush1.bf16.msra.mxu0 0
        %575 = vmatprep.subr.bf16.mxu0 0
        %576 = vmatpush1.bf16.msra.mxu0 0
        %577 = vmatprep.subr.bf16.mxu0 0
        %578 = vmatpush1.bf16.msra.mxu0 0
        %579 = vmatprep.subr.bf16.mxu0 0
        %580 = vmatpush1.bf16.msra.mxu0 0
        %581 = vmatprep.subr.bf16.mxu0 0
        %582 = vmatpush1.bf16.msra.mxu0 0
        %583 = vmatprep.subr.bf16.mxu0 0
        %584 = vmatpush1.bf16.msra.mxu0 0
        %585 = vmatprep.subr.bf16.mxu0 0
        %586 = vmatpush1.bf16.msra.mxu0 0
        %587 = vmatprep.subr.bf16.mxu0 0
        %588 = vmatpush1.bf16.msra.mxu0 0
        %589 = vmatprep.subr.bf16.mxu0 0
        %590 = vmatpush1.bf16.msra.mxu0 0
        %591 = vmatprep.subr.bf16.mxu0 0
        %592 = vmatpush1.bf16.msra.mxu0 0
        %593 = vmatprep.subr.bf16.mxu0 0
        %594 = vmatpush1.bf16.msra.mxu0 0
        %595 = vmatprep.mubr.bf16.mxu0 0
        %596 = vmatmul.mubr.bf16.gmra.mrb[0].mxu0 %v561
        %v597 = vpop.f32.mrb[0].mxu0
        %v598 = vadd.f32 0.0, %v597
        %v599 = vpop.f32.mrb[0].mxu0
        %v600 = vpop.f32.mrb[0].mxu0
        %v601 = vpop.f32.mrb[0].mxu0
        %602 = vdwg.mxu0
        %v603 = vadd.f32 %v522, %v598
        %s604 = scalar_lea.vmem %s1, 160
        %v605 = vld [vmem:[%s604] sm:$0xf]
        %v606 = vld [vmem:[%s604 + $0x4] sm:$0xf]
        %v607 = vld [vmem:[%s604 + $0x8] sm:$0xf]
        %v608 = vld [vmem:[%s604 + $0xc] sm:$0xf]
        %v609 = vld [vmem:[%s604 + $0x10] sm:$0xf]
        %v610 = vld [vmem:[%s604 + $0x14] sm:$0xf]
        %v611 = vld [vmem:[%s604 + $0x18] sm:$0xf]
        %v612 = vld [vmem:[%s604 + $0x1c] sm:$0xf]
        %v614 = vunpack.c.l.b16 %v526
        %v615 = vpack.c.b16 %v614, %v614
        %v617 = vshrl.u32 %v615, 16
        %v619 = vshll.u32 %v615, 16
        %v621 = vrot.slane %v619, 1
        %v622 = vor.u32 %v617, %v621
        %v631 = vunpack.c.l.b16 %v605
        %v632 = vunpack.c.l.b16 %v606
        %v633 = vunpack.c.l.b16 %v607
        %v634 = vunpack.c.l.b16 %v608
        %v635 = vunpack.c.l.b16 %v609
        %v636 = vunpack.c.l.b16 %v610
        %v637 = vunpack.c.l.b16 %v611
        %v638 = vunpack.c.l.b16 %v612
        %v639 = vpack.c.b16 %v632, %v631
        %v640 = vpack.c.b16 %v634, %v633
        %v641 = vpack.c.b16 %v636, %v635
        %v642 = vpack.c.b16 %v638, %v637
        %v648 = vsel %vm245, %v622, 0
        %650 = vmatprep.subr.bf16.mxu0 0
        %651 = vmatpush1.bf16.msra.mxu0 %v639
        %652 = vmatprep.subr.bf16.mxu0 0
        %653 = vmatpush1.bf16.msra.mxu0 %v640
        %654 = vmatprep.subr.bf16.mxu0 0
        %655 = vmatpush1.bf16.msra.mxu0 %v641
        %656 = vmatprep.subr.bf16.mxu0 0
        %657 = vmatpush1.bf16.msra.mxu0 %v642
        %658 = vmatprep.subr.bf16.mxu0 0
        %659 = vmatpush1.bf16.msra.mxu0 0
        %660 = vmatprep.subr.bf16.mxu0 0
        %661 = vmatpush1.bf16.msra.mxu0 0
        %662 = vmatprep.subr.bf16.mxu0 0
        %663 = vmatpush1.bf16.msra.mxu0 0
        %664 = vmatprep.subr.bf16.mxu0 0
        %665 = vmatpush1.bf16.msra.mxu0 0
        %666 = vmatprep.subr.bf16.mxu0 0
        %667 = vmatpush1.bf16.msra.mxu0 0
        %668 = vmatprep.subr.bf16.mxu0 0
        %669 = vmatpush1.bf16.msra.mxu0 0
        %670 = vmatprep.subr.bf16.mxu0 0
        %671 = vmatpush1.bf16.msra.mxu0 0
        %672 = vmatprep.subr.bf16.mxu0 0
        %673 = vmatpush1.bf16.msra.mxu0 0
        %674 = vmatprep.subr.bf16.mxu0 0
        %675 = vmatpush1.bf16.msra.mxu0 0
        %676 = vmatprep.subr.bf16.mxu0 0
        %677 = vmatpush1.bf16.msra.mxu0 0
        %678 = vmatprep.subr.bf16.mxu0 0
        %679 = vmatpush1.bf16.msra.mxu0 0
        %680 = vmatprep.subr.bf16.mxu0 0
        %681 = vmatpush1.bf16.msra.mxu0 0
        %682 = vmatprep.mubr.bf16.mxu0 0
        %683 = vmatmul.mubr.bf16.gmra.mrb[0].mxu0 %v648
        %v684 = vpop.f32.mrb[0].mxu0
        %v685 = vadd.f32 0.0, %v684
        %v686 = vpop.f32.mrb[0].mxu0
        %v687 = vpop.f32.mrb[0].mxu0
        %v688 = vpop.f32.mrb[0].mxu0
        %689 = vdwg.mxu0
        %v690 = vadd.f32 %v603, %v685
        %v691 = vld [vmem:[%s525] sm:$0x6]
        %s692 = scalar_lea.vmem %s1, 192
        %v693 = vld [vmem:[%s692] sm:$0xf]
        %v694 = vld [vmem:[%s692 + $0x4] sm:$0xf]
        %v695 = vld [vmem:[%s692 + $0x8] sm:$0xf]
        %v696 = vld [vmem:[%s692 + $0xc] sm:$0xf]
        %v697 = vld [vmem:[%s692 + $0x10] sm:$0xf]
        %v698 = vld [vmem:[%s692 + $0x14] sm:$0xf]
        %v699 = vld [vmem:[%s692 + $0x18] sm:$0xf]
        %v700 = vld [vmem:[%s692 + $0x1c] sm:$0xf]
        %v702 = vunpack.c.l.b16 %v691
        %v703 = vpack.c.b16 %v702, %v702
        %v704 = vrot.slane %v703, 1
        %v713 = vunpack.c.l.b16 %v693
        %v714 = vunpack.c.l.b16 %v694
        %v715 = vunpack.c.l.b16 %v695
        %v716 = vunpack.c.l.b16 %v696
        %v717 = vunpack.c.l.b16 %v697
        %v718 = vunpack.c.l.b16 %v698
        %v719 = vunpack.c.l.b16 %v699
        %v720 = vunpack.c.l.b16 %v700
        %v721 = vpack.c.b16 %v714, %v713
        %v722 = vpack.c.b16 %v716, %v715
        %v723 = vpack.c.b16 %v718, %v717
        %v724 = vpack.c.b16 %v720, %v719
        %v730 = vsel %vm245, %v704, 0
        %732 = vmatprep.subr.bf16.mxu0 0
        %733 = vmatpush1.bf16.msra.mxu0 %v721
        %734 = vmatprep.subr.bf16.mxu0 0
        %735 = vmatpush1.bf16.msra.mxu0 %v722
        %736 = vmatprep.subr.bf16.mxu0 0
        %737 = vmatpush1.bf16.msra.mxu0 %v723
        %738 = vmatprep.subr.bf16.mxu0 0
        %739 = vmatpush1.bf16.msra.mxu0 %v724
        %740 = vmatprep.subr.bf16.mxu0 0
        %741 = vmatpush1.bf16.msra.mxu0 0
        %742 = vmatprep.subr.bf16.mxu0 0
        %743 = vmatpush1.bf16.msra.mxu0 0
        %744 = vmatprep.subr.bf16.mxu0 0
        %745 = vmatpush1.bf16.msra.mxu0 0
        %746 = vmatprep.subr.bf16.mxu0 0
        %747 = vmatpush1.bf16.msra.mxu0 0
        %748 = vmatprep.subr.bf16.mxu0 0
        %749 = vmatpush1.bf16.msra.mxu0 0
        %750 = vmatprep.subr.bf16.mxu0 0
        %751 = vmatpush1.bf16.msra.mxu0 0
        %752 = vmatprep.subr.bf16.mxu0 0
        %753 = vmatpush1.bf16.msra.mxu0 0
        %754 = vmatprep.subr.bf16.mxu0 0
        %755 = vmatpush1.bf16.msra.mxu0 0
        %756 = vmatprep.subr.bf16.mxu0 0
        %757 = vmatpush1.bf16.msra.mxu0 0
        %758 = vmatprep.subr.bf16.mxu0 0
        %759 = vmatpush1.bf16.msra.mxu0 0
        %760 = vmatprep.subr.bf16.mxu0 0
        %761 = vmatpush1.bf16.msra.mxu0 0
        %762 = vmatprep.subr.bf16.mxu0 0
        %763 = vmatpush1.bf16.msra.mxu0 0
        %764 = vmatprep.mubr.bf16.mxu0 0
        %765 = vmatmul.mubr.bf16.gmra.mrb[0].mxu0 %v730
        %v766 = vpop.f32.mrb[0].mxu0
        %v767 = vadd.f32 0.0, %v766
        %v768 = vpop.f32.mrb[0].mxu0
        %v769 = vpop.f32.mrb[0].mxu0
        %v770 = vpop.f32.mrb[0].mxu0
        %771 = vdwg.mxu0
        %v772 = vadd.f32 %v690, %v767
        %s773 = scalar_lea.vmem %s1, 224
        %v774 = vld [vmem:[%s773] sm:$0xf]
        %v775 = vld [vmem:[%s773 + $0x4] sm:$0xf]
        %v776 = vld [vmem:[%s773 + $0x8] sm:$0xf]
        %v777 = vld [vmem:[%s773 + $0xc] sm:$0xf]
        %v778 = vld [vmem:[%s773 + $0x10] sm:$0xf]
        %v779 = vld [vmem:[%s773 + $0x14] sm:$0xf]
        %v780 = vld [vmem:[%s773 + $0x18] sm:$0xf]
        %v781 = vld [vmem:[%s773 + $0x1c] sm:$0xf]
        %v783 = vshrl.u32 %v703, 16
        %v785 = vrot.slane %v783, 1
        %v786 = vshll.u32 %v703, 16
        %v788 = vrot.slane %v786, 2
        %v789 = vor.u32 %v785, %v788
        %v798 = vunpack.c.l.b16 %v774
        %v799 = vunpack.c.l.b16 %v775
        %v800 = vunpack.c.l.b16 %v776
        %v801 = vunpack.c.l.b16 %v777
        %v802 = vunpack.c.l.b16 %v778
        %v803 = vunpack.c.l.b16 %v779
        %v804 = vunpack.c.l.b16 %v780
        %v805 = vunpack.c.l.b16 %v781
        %v806 = vpack.c.b16 %v799, %v798
        %v807 = vpack.c.b16 %v801, %v800
        %v808 = vpack.c.b16 %v803, %v802
        %v809 = vpack.c.b16 %v805, %v804
        %v815 = vsel %vm245, %v789, 0
        %817 = vmatprep.subr.bf16.mxu0 0
        %818 = vmatpush1.bf16.msra.mxu0 %v806
        %819 = vmatprep.subr.bf16.mxu0 0
        %820 = vmatpush1.bf16.msra.mxu0 %v807
        %821 = vmatprep.subr.bf16.mxu0 0
        %822 = vmatpush1.bf16.msra.mxu0 %v808
        %823 = vmatprep.subr.bf16.mxu0 0
        %824 = vmatpush1.bf16.msra.mxu0 %v809
        %825 = vmatprep.subr.bf16.mxu0 0
        %826 = vmatpush1.bf16.msra.mxu0 0
        %827 = vmatprep.subr.bf16.mxu0 0
        %828 = vmatpush1.bf16.msra.mxu0 0
        %829 = vmatprep.subr.bf16.mxu0 0
        %830 = vmatpush1.bf16.msra.mxu0 0
        %831 = vmatprep.subr.bf16.mxu0 0
        %832 = vmatpush1.bf16.msra.mxu0 0
        %833 = vmatprep.subr.bf16.mxu0 0
        %834 = vmatpush1.bf16.msra.mxu0 0
        %835 = vmatprep.subr.bf16.mxu0 0
        %836 = vmatpush1.bf16.msra.mxu0 0
        %837 = vmatprep.subr.bf16.mxu0 0
        %838 = vmatpush1.bf16.msra.mxu0 0
        %839 = vmatprep.subr.bf16.mxu0 0
        %840 = vmatpush1.bf16.msra.mxu0 0
        %841 = vmatprep.subr.bf16.mxu0 0
        %842 = vmatpush1.bf16.msra.mxu0 0
        %843 = vmatprep.subr.bf16.mxu0 0
        %844 = vmatpush1.bf16.msra.mxu0 0
        %845 = vmatprep.subr.bf16.mxu0 0
        %846 = vmatpush1.bf16.msra.mxu0 0
        %847 = vmatprep.subr.bf16.mxu0 0
        %848 = vmatpush1.bf16.msra.mxu0 0
        %849 = vmatprep.mubr.bf16.mxu0 0
        %850 = vmatmul.mubr.bf16.gmra.mrb[0].mxu0 %v815
        %v851 = vpop.f32.mrb[0].mxu0
        %v852 = vadd.f32 0.0, %v851
        %v853 = vpop.f32.mrb[0].mxu0
        %v854 = vpop.f32.mrb[0].mxu0
        %v855 = vpop.f32.mrb[0].mxu0
        %856 = vdwg.mxu0
        %v857 = vadd.f32 %v772, %v852
        %s858 = sadd.s32 %s184, 2
        %s859 = smul.addr %s858, 4
        %s860 = scalar_lea.vmem %s172, %s859
        %v861 = vld [vmem:[%s860] sm:$0x3]
        %s862 = scalar_lea.vmem %s1, 256
        %v863 = vld [vmem:[%s862] sm:$0xf]
        %v864 = vld [vmem:[%s862 + $0x4] sm:$0xf]
        %v865 = vld [vmem:[%s862 + $0x8] sm:$0xf]
        %v866 = vld [vmem:[%s862 + $0xc] sm:$0xf]
        %v867 = vld [vmem:[%s862 + $0x10] sm:$0xf]
        %v868 = vld [vmem:[%s862 + $0x14] sm:$0xf]
        %v869 = vld [vmem:[%s862 + $0x18] sm:$0xf]
        %v870 = vld [vmem:[%s862 + $0x1c] sm:$0xf]
        %v879 = vunpack.c.l.b16 %v863
        %v880 = vunpack.c.l.b16 %v864
        %v881 = vunpack.c.l.b16 %v865
        %v882 = vunpack.c.l.b16 %v866
        %v883 = vunpack.c.l.b16 %v867
        %v884 = vunpack.c.l.b16 %v868
        %v885 = vunpack.c.l.b16 %v869
        %v886 = vunpack.c.l.b16 %v870
        %v887 = vpack.c.b16 %v880, %v879
        %v888 = vpack.c.b16 %v882, %v881
        %v889 = vpack.c.b16 %v884, %v883
        %v890 = vpack.c.b16 %v886, %v885
        %v896 = vsel %vm245, %v861, 0
        %898 = vmatprep.subr.bf16.mxu0 0
        %899 = vmatpush1.bf16.msra.mxu0 %v887
        %900 = vmatprep.subr.bf16.mxu0 0
        %901 = vmatpush1.bf16.msra.mxu0 %v888
        %902 = vmatprep.subr.bf16.mxu0 0
        %903 = vmatpush1.bf16.msra.mxu0 %v889
        %904 = vmatprep.subr.bf16.mxu0 0
        %905 = vmatpush1.bf16.msra.mxu0 %v890
        %906 = vmatprep.subr.bf16.mxu0 0
        %907 = vmatpush1.bf16.msra.mxu0 0
        %908 = vmatprep.subr.bf16.mxu0 0
        %909 = vmatpush1.bf16.msra.mxu0 0
        %910 = vmatprep.subr.bf16.mxu0 0
        %911 = vmatpush1.bf16.msra.mxu0 0
        %912 = vmatprep.subr.bf16.mxu0 0
        %913 = vmatpush1.bf16.msra.mxu0 0
        %914 = vmatprep.subr.bf16.mxu0 0
        %915 = vmatpush1.bf16.msra.mxu0 0
        %916 = vmatprep.subr.bf16.mxu0 0
        %917 = vmatpush1.bf16.msra.mxu0 0
        %918 = vmatprep.subr.bf16.mxu0 0
        %919 = vmatpush1.bf16.msra.mxu0 0
        %920 = vmatprep.subr.bf16.mxu0 0
        %921 = vmatpush1.bf16.msra.mxu0 0
        %922 = vmatprep.subr.bf16.mxu0 0
        %923 = vmatpush1.bf16.msra.mxu0 0
        %924 = vmatprep.subr.bf16.mxu0 0
        %925 = vmatpush1.bf16.msra.mxu0 0
        %926 = vmatprep.subr.bf16.mxu0 0
        %927 = vmatpush1.bf16.msra.mxu0 0
        %928 = vmatprep.subr.bf16.mxu0 0
        %929 = vmatpush1.bf16.msra.mxu0 0
        %930 = vmatprep.mubr.bf16.mxu0 0
        %931 = vmatmul.mubr.bf16.gmra.mrb[0].mxu0 %v896
        %v932 = vpop.f32.mrb[0].mxu0
        %v933 = vadd.f32 0.0, %v932
        %v934 = vpop.f32.mrb[0].mxu0
        %v935 = vpop.f32.mrb[0].mxu0
        %v936 = vpop.f32.mrb[0].mxu0
        %937 = vdwg.mxu0
        %v938 = vadd.f32 %v857, %v933
        %s939 = scalar_lea.vmem %s1, 288
        %v940 = vld [vmem:[%s939] sm:$0xf]
        %v941 = vld [vmem:[%s939 + $0x4] sm:$0xf]
        %v942 = vld [vmem:[%s939 + $0x8] sm:$0xf]
        %v943 = vld [vmem:[%s939 + $0xc] sm:$0xf]
        %v944 = vld [vmem:[%s939 + $0x10] sm:$0xf]
        %v945 = vld [vmem:[%s939 + $0x14] sm:$0xf]
        %v946 = vld [vmem:[%s939 + $0x18] sm:$0xf]
        %v947 = vld [vmem:[%s939 + $0x1c] sm:$0xf]
        %v949 = vunpack.c.l.b16 %v861
        %v950 = vpack.c.b16 %v949, %v949
        %v952 = vshrl.u32 %v950, 16
        %v954 = vshll.u32 %v950, 16
        %v956 = vrot.slane %v954, 1
        %v957 = vor.u32 %v952, %v956
        %v966 = vunpack.c.l.b16 %v940
        %v967 = vunpack.c.l.b16 %v941
        %v968 = vunpack.c.l.b16 %v942
        %v969 = vunpack.c.l.b16 %v943
        %v970 = vunpack.c.l.b16 %v944
        %v971 = vunpack.c.l.b16 %v945
        %v972 = vunpack.c.l.b16 %v946
        %v973 = vunpack.c.l.b16 %v947
        %v974 = vpack.c.b16 %v967, %v966
        %v975 = vpack.c.b16 %v969, %v968
        %v976 = vpack.c.b16 %v971, %v970
        %v977 = vpack.c.b16 %v973, %v972
        %v983 = vsel %vm245, %v957, 0
        %985 = vmatprep.subr.bf16.mxu0 0
        %986 = vmatpush1.bf16.msra.mxu0 %v974
        %987 = vmatprep.subr.bf16.mxu0 0
        %988 = vmatpush1.bf16.msra.mxu0 %v975
        %989 = vmatprep.subr.bf16.mxu0 0
        %990 = vmatpush1.bf16.msra.mxu0 %v976
        %991 = vmatprep.subr.bf16.mxu0 0
        %992 = vmatpush1.bf16.msra.mxu0 %v977
        %993 = vmatprep.subr.bf16.mxu0 0
        %994 = vmatpush1.bf16.msra.mxu0 0
        %995 = vmatprep.subr.bf16.mxu0 0
        %996 = vmatpush1.bf16.msra.mxu0 0
        %997 = vmatprep.subr.bf16.mxu0 0
        %998 = vmatpush1.bf16.msra.mxu0 0
        %999 = vmatprep.subr.bf16.mxu0 0
        %1000 = vmatpush1.bf16.msra.mxu0 0
        %1001 = vmatprep.subr.bf16.mxu0 0
        %1002 = vmatpush1.bf16.msra.mxu0 0
        %1003 = vmatprep.subr.bf16.mxu0 0
        %1004 = vmatpush1.bf16.msra.mxu0 0
        %1005 = vmatprep.subr.bf16.mxu0 0
        %1006 = vmatpush1.bf16.msra.mxu0 0
        %1007 = vmatprep.subr.bf16.mxu0 0
        %1008 = vmatpush1.bf16.msra.mxu0 0
        %1009 = vmatprep.subr.bf16.mxu0 0
        %1010 = vmatpush1.bf16.msra.mxu0 0
        %1011 = vmatprep.subr.bf16.mxu0 0
        %1012 = vmatpush1.bf16.msra.mxu0 0
        %1013 = vmatprep.subr.bf16.mxu0 0
        %1014 = vmatpush1.bf16.msra.mxu0 0
        %1015 = vmatprep.subr.bf16.mxu0 0
        %1016 = vmatpush1.bf16.msra.mxu0 0
        %1017 = vmatprep.mubr.bf16.mxu0 0
        %1018 = vmatmul.mubr.bf16.gmra.mrb[0].mxu0 %v983
        %v1019 = vpop.f32.mrb[0].mxu0
        %v1020 = vadd.f32 0.0, %v1019
        %v1021 = vpop.f32.mrb[0].mxu0
        %v1022 = vpop.f32.mrb[0].mxu0
        %v1023 = vpop.f32.mrb[0].mxu0
        %1024 = vdwg.mxu0
        %v1025 = vadd.f32 %v938, %v1020
        %v1026 = vld [vmem:[%s860] sm:$0x6]
        %s1027 = scalar_lea.vmem %s1, 320
        %v1028 = vld [vmem:[%s1027] sm:$0xf]
        %v1029 = vld [vmem:[%s1027 + $0x4] sm:$0xf]
        %v1030 = vld [vmem:[%s1027 + $0x8] sm:$0xf]
        %v1031 = vld [vmem:[%s1027 + $0xc] sm:$0xf]
        %v1032 = vld [vmem:[%s1027 + $0x10] sm:$0xf]
        %v1033 = vld [vmem:[%s1027 + $0x14] sm:$0xf]
        %v1034 = vld [vmem:[%s1027 + $0x18] sm:$0xf]
        %v1035 = vld [vmem:[%s1027 + $0x1c] sm:$0xf]
        %v1037 = vunpack.c.l.b16 %v1026
        %v1038 = vpack.c.b16 %v1037, %v1037
        %v1039 = vrot.slane %v1038, 1
        %v1048 = vunpack.c.l.b16 %v1028
        %v1049 = vunpack.c.l.b16 %v1029
        %v1050 = vunpack.c.l.b16 %v1030
        %v1051 = vunpack.c.l.b16 %v1031
        %v1052 = vunpack.c.l.b16 %v1032
        %v1053 = vunpack.c.l.b16 %v1033
        %v1054 = vunpack.c.l.b16 %v1034
        %v1055 = vunpack.c.l.b16 %v1035
        %v1056 = vpack.c.b16 %v1049, %v1048
        %v1057 = vpack.c.b16 %v1051, %v1050
        %v1058 = vpack.c.b16 %v1053, %v1052
        %v1059 = vpack.c.b16 %v1055, %v1054
        %v1065 = vsel %vm245, %v1039, 0
        %1067 = vmatprep.subr.bf16.mxu0 0
        %1068 = vmatpush1.bf16.msra.mxu0 %v1056
        %1069 = vmatprep.subr.bf16.mxu0 0
        %1070 = vmatpush1.bf16.msra.mxu0 %v1057
        %1071 = vmatprep.subr.bf16.mxu0 0
        %1072 = vmatpush1.bf16.msra.mxu0 %v1058
        %1073 = vmatprep.subr.bf16.mxu0 0
        %1074 = vmatpush1.bf16.msra.mxu0 %v1059
        %1075 = vmatprep.subr.bf16.mxu0 0
        %1076 = vmatpush1.bf16.msra.mxu0 0
        %1077 = vmatprep.subr.bf16.mxu0 0
        %1078 = vmatpush1.bf16.msra.mxu0 0
        %1079 = vmatprep.subr.bf16.mxu0 0
        %1080 = vmatpush1.bf16.msra.mxu0 0
        %1081 = vmatprep.subr.bf16.mxu0 0
        %1082 = vmatpush1.bf16.msra.mxu0 0
        %1083 = vmatprep.subr.bf16.mxu0 0
        %1084 = vmatpush1.bf16.msra.mxu0 0
        %1085 = vmatprep.subr.bf16.mxu0 0
        %1086 = vmatpush1.bf16.msra.mxu0 0
        %1087 = vmatprep.subr.bf16.mxu0 0
        %1088 = vmatpush1.bf16.msra.mxu0 0
        %1089 = vmatprep.subr.bf16.mxu0 0
        %1090 = vmatpush1.bf16.msra.mxu0 0
        %1091 = vmatprep.subr.bf16.mxu0 0
        %1092 = vmatpush1.bf16.msra.mxu0 0
        %1093 = vmatprep.subr.bf16.mxu0 0
        %1094 = vmatpush1.bf16.msra.mxu0 0
        %1095 = vmatprep.subr.bf16.mxu0 0
        %1096 = vmatpush1.bf16.msra.mxu0 0
        %1097 = vmatprep.subr.bf16.mxu0 0
        %1098 = vmatpush1.bf16.msra.mxu0 0
        %1099 = vmatprep.mubr.bf16.mxu0 0
        %1100 = vmatmul.mubr.bf16.gmra.mrb[0].mxu0 %v1065
        %v1101 = vpop.f32.mrb[0].mxu0
        %v1102 = vadd.f32 0.0, %v1101
        %v1103 = vpop.f32.mrb[0].mxu0
        %v1104 = vpop.f32.mrb[0].mxu0
        %v1105 = vpop.f32.mrb[0].mxu0
        %1106 = vdwg.mxu0
        %v1107 = vadd.f32 %v1025, %v1102
        %s1108 = scalar_lea.vmem %s1, 352
        %v1109 = vld [vmem:[%s1108] sm:$0xf]
        %v1110 = vld [vmem:[%s1108 + $0x4] sm:$0xf]
        %v1111 = vld [vmem:[%s1108 + $0x8] sm:$0xf]
        %v1112 = vld [vmem:[%s1108 + $0xc] sm:$0xf]
        %v1113 = vld [vmem:[%s1108 + $0x10] sm:$0xf]
        %v1114 = vld [vmem:[%s1108 + $0x14] sm:$0xf]
        %v1115 = vld [vmem:[%s1108 + $0x18] sm:$0xf]
        %v1116 = vld [vmem:[%s1108 + $0x1c] sm:$0xf]
        %v1118 = vshrl.u32 %v1038, 16
        %v1120 = vrot.slane %v1118, 1
        %v1121 = vshll.u32 %v1038, 16
        %v1123 = vrot.slane %v1121, 2
        %v1124 = vor.u32 %v1120, %v1123
        %v1133 = vunpack.c.l.b16 %v1109
        %v1134 = vunpack.c.l.b16 %v1110
        %v1135 = vunpack.c.l.b16 %v1111
        %v1136 = vunpack.c.l.b16 %v1112
        %v1137 = vunpack.c.l.b16 %v1113
        %v1138 = vunpack.c.l.b16 %v1114
        %v1139 = vunpack.c.l.b16 %v1115
        %v1140 = vunpack.c.l.b16 %v1116
        %v1141 = vpack.c.b16 %v1134, %v1133
        %v1142 = vpack.c.b16 %v1136, %v1135
        %v1143 = vpack.c.b16 %v1138, %v1137
        %v1144 = vpack.c.b16 %v1140, %v1139
        %v1150 = vsel %vm245, %v1124, 0
        %1152 = vmatprep.subr.bf16.mxu0 0
        %1153 = vmatpush1.bf16.msra.mxu0 %v1141
        %1154 = vmatprep.subr.bf16.mxu0 0
        %1155 = vmatpush1.bf16.msra.mxu0 %v1142
        %1156 = vmatprep.subr.bf16.mxu0 0
        %1157 = vmatpush1.bf16.msra.mxu0 %v1143
        %1158 = vmatprep.subr.bf16.mxu0 0
        %1159 = vmatpush1.bf16.msra.mxu0 %v1144
        %1160 = vmatprep.subr.bf16.mxu0 0
        %1161 = vmatpush1.bf16.msra.mxu0 0
        %1162 = vmatprep.subr.bf16.mxu0 0
        %1163 = vmatpush1.bf16.msra.mxu0 0
        %1164 = vmatprep.subr.bf16.mxu0 0
        %1165 = vmatpush1.bf16.msra.mxu0 0
        %1166 = vmatprep.subr.bf16.mxu0 0
        %1167 = vmatpush1.bf16.msra.mxu0 0
        %1168 = vmatprep.subr.bf16.mxu0 0
        %1169 = vmatpush1.bf16.msra.mxu0 0
        %1170 = vmatprep.subr.bf16.mxu0 0
        %1171 = vmatpush1.bf16.msra.mxu0 0
        %1172 = vmatprep.subr.bf16.mxu0 0
        %1173 = vmatpush1.bf16.msra.mxu0 0
        %1174 = vmatprep.subr.bf16.mxu0 0
        %1175 = vmatpush1.bf16.msra.mxu0 0
        %1176 = vmatprep.subr.bf16.mxu0 0
        %1177 = vmatpush1.bf16.msra.mxu0 0
        %1178 = vmatprep.subr.bf16.mxu0 0
        %1179 = vmatpush1.bf16.msra.mxu0 0
        %1180 = vmatprep.subr.bf16.mxu0 0
        %1181 = vmatpush1.bf16.msra.mxu0 0
        %1182 = vmatprep.subr.bf16.mxu0 0
        %1183 = vmatpush1.bf16.msra.mxu0 0
        %1184 = vmatprep.mubr.bf16.mxu0 0
        %1185 = vmatmul.mubr.bf16.gmra.mrb[0].mxu0 %v1150
        %v1186 = vpop.f32.mrb[0].mxu0
        %v1187 = vadd.f32 0.0, %v1186
        %v1188 = vpop.f32.mrb[0].mxu0
        %v1189 = vpop.f32.mrb[0].mxu0
        %v1190 = vpop.f32.mrb[0].mxu0
        %1191 = vdwg.mxu0
        %v1192 = vadd.f32 %v1107, %v1187
        %s1193 = sadd.s32 %s184, 3
        %s1194 = smul.addr %s1193, 4
        %s1195 = scalar_lea.vmem %s172, %s1194
        %v1196 = vld [vmem:[%s1195] sm:$0x3]
        %s1197 = scalar_lea.vmem %s1, 384
        %v1198 = vld [vmem:[%s1197] sm:$0xf]
        %v1199 = vld [vmem:[%s1197 + $0x4] sm:$0xf]
        %v1200 = vld [vmem:[%s1197 + $0x8] sm:$0xf]
        %v1201 = vld [vmem:[%s1197 + $0xc] sm:$0xf]
        %v1202 = vld [vmem:[%s1197 + $0x10] sm:$0xf]
        %v1203 = vld [vmem:[%s1197 + $0x14] sm:$0xf]
        %v1204 = vld [vmem:[%s1197 + $0x18] sm:$0xf]
        %v1205 = vld [vmem:[%s1197 + $0x1c] sm:$0xf]
        %v1214 = vunpack.c.l.b16 %v1198
        %v1215 = vunpack.c.l.b16 %v1199
        %v1216 = vunpack.c.l.b16 %v1200
        %v1217 = vunpack.c.l.b16 %v1201
        %v1218 = vunpack.c.l.b16 %v1202
        %v1219 = vunpack.c.l.b16 %v1203
        %v1220 = vunpack.c.l.b16 %v1204
        %v1221 = vunpack.c.l.b16 %v1205
        %v1222 = vpack.c.b16 %v1215, %v1214
        %v1223 = vpack.c.b16 %v1217, %v1216
        %v1224 = vpack.c.b16 %v1219, %v1218
        %v1225 = vpack.c.b16 %v1221, %v1220
        %v1231 = vsel %vm245, %v1196, 0
        %1233 = vmatprep.subr.bf16.mxu0 0
        %1234 = vmatpush1.bf16.msra.mxu0 %v1222
        %1235 = vmatprep.subr.bf16.mxu0 0
        %1236 = vmatpush1.bf16.msra.mxu0 %v1223
        %1237 = vmatprep.subr.bf16.mxu0 0
        %1238 = vmatpush1.bf16.msra.mxu0 %v1224
        %1239 = vmatprep.subr.bf16.mxu0 0
        %1240 = vmatpush1.bf16.msra.mxu0 %v1225
        %1241 = vmatprep.subr.bf16.mxu0 0
        %1242 = vmatpush1.bf16.msra.mxu0 0
        %1243 = vmatprep.subr.bf16.mxu0 0
        %1244 = vmatpush1.bf16.msra.mxu0 0
        %1245 = vmatprep.subr.bf16.mxu0 0
        %1246 = vmatpush1.bf16.msra.mxu0 0
        %1247 = vmatprep.subr.bf16.mxu0 0
        %1248 = vmatpush1.bf16.msra.mxu0 0
        %1249 = vmatprep.subr.bf16.mxu0 0
        %1250 = vmatpush1.bf16.msra.mxu0 0
        %1251 = vmatprep.subr.bf16.mxu0 0
        %1252 = vmatpush1.bf16.msra.mxu0 0
        %1253 = vmatprep.subr.bf16.mxu0 0
        %1254 = vmatpush1.bf16.msra.mxu0 0
        %1255 = vmatprep.subr.bf16.mxu0 0
        %1256 = vmatpush1.bf16.msra.mxu0 0
        %1257 = vmatprep.subr.bf16.mxu0 0
        %1258 = vmatpush1.bf16.msra.mxu0 0
        %1259 = vmatprep.subr.bf16.mxu0 0
        %1260 = vmatpush1.bf16.msra.mxu0 0
        %1261 = vmatprep.subr.bf16.mxu0 0
        %1262 = vmatpush1.bf16.msra.mxu0 0
        %1263 = vmatprep.subr.bf16.mxu0 0
        %1264 = vmatpush1.bf16.msra.mxu0 0
        %1265 = vmatprep.mubr.bf16.mxu0 0
        %1266 = vmatmul.mubr.bf16.gmra.mrb[0].mxu0 %v1231
        %v1267 = vpop.f32.mrb[0].mxu0
        %v1268 = vadd.f32 0.0, %v1267
        %v1269 = vpop.f32.mrb[0].mxu0
        %v1270 = vpop.f32.mrb[0].mxu0
        %v1271 = vpop.f32.mrb[0].mxu0
        %1272 = vdwg.mxu0
        %v1273 = vadd.f32 %v1192, %v1268
        %s1274 = scalar_lea.vmem %s1, 416
        %v1275 = vld [vmem:[%s1274] sm:$0xf]
        %v1276 = vld [vmem:[%s1274 + $0x4] sm:$0xf]
        %v1277 = vld [vmem:[%s1274 + $0x8] sm:$0xf]
        %v1278 = vld [vmem:[%s1274 + $0xc] sm:$0xf]
        %v1279 = vld [vmem:[%s1274 + $0x10] sm:$0xf]
        %v1280 = vld [vmem:[%s1274 + $0x14] sm:$0xf]
        %v1281 = vld [vmem:[%s1274 + $0x18] sm:$0xf]
        %v1282 = vld [vmem:[%s1274 + $0x1c] sm:$0xf]
        %v1284 = vunpack.c.l.b16 %v1196
        %v1285 = vpack.c.b16 %v1284, %v1284
        %v1287 = vshrl.u32 %v1285, 16
        %v1289 = vshll.u32 %v1285, 16
        %v1291 = vrot.slane %v1289, 1
        %v1292 = vor.u32 %v1287, %v1291
        %v1301 = vunpack.c.l.b16 %v1275
        %v1302 = vunpack.c.l.b16 %v1276
        %v1303 = vunpack.c.l.b16 %v1277
        %v1304 = vunpack.c.l.b16 %v1278
        %v1305 = vunpack.c.l.b16 %v1279
        %v1306 = vunpack.c.l.b16 %v1280
        %v1307 = vunpack.c.l.b16 %v1281
        %v1308 = vunpack.c.l.b16 %v1282
        %v1309 = vpack.c.b16 %v1302, %v1301
        %v1310 = vpack.c.b16 %v1304, %v1303
        %v1311 = vpack.c.b16 %v1306, %v1305
        %v1312 = vpack.c.b16 %v1308, %v1307
        %v1318 = vsel %vm245, %v1292, 0
        %1320 = vmatprep.subr.bf16.mxu0 0
        %1321 = vmatpush1.bf16.msra.mxu0 %v1309
        %1322 = vmatprep.subr.bf16.mxu0 0
        %1323 = vmatpush1.bf16.msra.mxu0 %v1310
        %1324 = vmatprep.subr.bf16.mxu0 0
        %1325 = vmatpush1.bf16.msra.mxu0 %v1311
        %1326 = vmatprep.subr.bf16.mxu0 0
        %1327 = vmatpush1.bf16.msra.mxu0 %v1312
        %1328 = vmatprep.subr.bf16.mxu0 0
        %1329 = vmatpush1.bf16.msra.mxu0 0
        %1330 = vmatprep.subr.bf16.mxu0 0
        %1331 = vmatpush1.bf16.msra.mxu0 0
        %1332 = vmatprep.subr.bf16.mxu0 0
        %1333 = vmatpush1.bf16.msra.mxu0 0
        %1334 = vmatprep.subr.bf16.mxu0 0
        %1335 = vmatpush1.bf16.msra.mxu0 0
        %1336 = vmatprep.subr.bf16.mxu0 0
        %1337 = vmatpush1.bf16.msra.mxu0 0
        %1338 = vmatprep.subr.bf16.mxu0 0
        %1339 = vmatpush1.bf16.msra.mxu0 0
        %1340 = vmatprep.subr.bf16.mxu0 0
        %1341 = vmatpush1.bf16.msra.mxu0 0
        %1342 = vmatprep.subr.bf16.mxu0 0
        %1343 = vmatpush1.bf16.msra.mxu0 0
        %1344 = vmatprep.subr.bf16.mxu0 0
        %1345 = vmatpush1.bf16.msra.mxu0 0
        %1346 = vmatprep.subr.bf16.mxu0 0
        %1347 = vmatpush1.bf16.msra.mxu0 0
        %1348 = vmatprep.subr.bf16.mxu0 0
        %1349 = vmatpush1.bf16.msra.mxu0 0
        %1350 = vmatprep.subr.bf16.mxu0 0
        %1351 = vmatpush1.bf16.msra.mxu0 0
        %1352 = vmatprep.mubr.bf16.mxu0 0
        %1353 = vmatmul.mubr.bf16.gmra.mrb[0].mxu0 %v1318
        %v1354 = vpop.f32.mrb[0].mxu0
        %v1355 = vadd.f32 0.0, %v1354
        %v1356 = vpop.f32.mrb[0].mxu0
        %v1357 = vpop.f32.mrb[0].mxu0
        %v1358 = vpop.f32.mrb[0].mxu0
        %1359 = vdwg.mxu0
        %v1360 = vadd.f32 %v1273, %v1355
        %v1361 = vld [vmem:[%s1195] sm:$0x6]
        %s1362 = scalar_lea.vmem %s1, 448
        %v1363 = vld [vmem:[%s1362] sm:$0xf]
        %v1364 = vld [vmem:[%s1362 + $0x4] sm:$0xf]
        %v1365 = vld [vmem:[%s1362 + $0x8] sm:$0xf]
        %v1366 = vld [vmem:[%s1362 + $0xc] sm:$0xf]
        %v1367 = vld [vmem:[%s1362 + $0x10] sm:$0xf]
        %v1368 = vld [vmem:[%s1362 + $0x14] sm:$0xf]
        %v1369 = vld [vmem:[%s1362 + $0x18] sm:$0xf]
        %v1370 = vld [vmem:[%s1362 + $0x1c] sm:$0xf]
        %v1372 = vunpack.c.l.b16 %v1361
        %v1373 = vpack.c.b16 %v1372, %v1372
        %v1374 = vrot.slane %v1373, 1
        %v1383 = vunpack.c.l.b16 %v1363
        %v1384 = vunpack.c.l.b16 %v1364
        %v1385 = vunpack.c.l.b16 %v1365
        %v1386 = vunpack.c.l.b16 %v1366
        %v1387 = vunpack.c.l.b16 %v1367
        %v1388 = vunpack.c.l.b16 %v1368
        %v1389 = vunpack.c.l.b16 %v1369
        %v1390 = vunpack.c.l.b16 %v1370
        %v1391 = vpack.c.b16 %v1384, %v1383
        %v1392 = vpack.c.b16 %v1386, %v1385
        %v1393 = vpack.c.b16 %v1388, %v1387
        %v1394 = vpack.c.b16 %v1390, %v1389
        %v1400 = vsel %vm245, %v1374, 0
        %1402 = vmatprep.subr.bf16.mxu0 0
        %1403 = vmatpush1.bf16.msra.mxu0 %v1391
        %1404 = vmatprep.subr.bf16.mxu0 0
        %1405 = vmatpush1.bf16.msra.mxu0 %v1392
        %1406 = vmatprep.subr.bf16.mxu0 0
        %1407 = vmatpush1.bf16.msra.mxu0 %v1393
        %1408 = vmatprep.subr.bf16.mxu0 0
        %1409 = vmatpush1.bf16.msra.mxu0 %v1394
        %1410 = vmatprep.subr.bf16.mxu0 0
        %1411 = vmatpush1.bf16.msra.mxu0 0
        %1412 = vmatprep.subr.bf16.mxu0 0
        %1413 = vmatpush1.bf16.msra.mxu0 0
        %1414 = vmatprep.subr.bf16.mxu0 0
        %1415 = vmatpush1.bf16.msra.mxu0 0
        %1416 = vmatprep.subr.bf16.mxu0 0
        %1417 = vmatpush1.bf16.msra.mxu0 0
        %1418 = vmatprep.subr.bf16.mxu0 0
        %1419 = vmatpush1.bf16.msra.mxu0 0
        %1420 = vmatprep.subr.bf16.mxu0 0
        %1421 = vmatpush1.bf16.msra.mxu0 0
        %1422 = vmatprep.subr.bf16.mxu0 0
        %1423 = vmatpush1.bf16.msra.mxu0 0
        %1424 = vmatprep.subr.bf16.mxu0 0
        %1425 = vmatpush1.bf16.msra.mxu0 0
        %1426 = vmatprep.subr.bf16.mxu0 0
        %1427 = vmatpush1.bf16.msra.mxu0 0
        %1428 = vmatprep.subr.bf16.mxu0 0
        %1429 = vmatpush1.bf16.msra.mxu0 0
        %1430 = vmatprep.subr.bf16.mxu0 0
        %1431 = vmatpush1.bf16.msra.mxu0 0
        %1432 = vmatprep.subr.bf16.mxu0 0
        %1433 = vmatpush1.bf16.msra.mxu0 0
        %1434 = vmatprep.mubr.bf16.mxu0 0
        %1435 = vmatmul.mubr.bf16.gmra.mrb[0].mxu0 %v1400
        %v1436 = vpop.f32.mrb[0].mxu0
        %v1437 = vadd.f32 0.0, %v1436
        %v1438 = vpop.f32.mrb[0].mxu0
        %v1439 = vpop.f32.mrb[0].mxu0
        %v1440 = vpop.f32.mrb[0].mxu0
        %1441 = vdwg.mxu0
        %v1442 = vadd.f32 %v1360, %v1437
        %s1443 = scalar_lea.vmem %s1, 480
        %v1444 = vld [vmem:[%s1443] sm:$0xf]
        %v1445 = vld [vmem:[%s1443 + $0x4] sm:$0xf]
        %v1446 = vld [vmem:[%s1443 + $0x8] sm:$0xf]
        %v1447 = vld [vmem:[%s1443 + $0xc] sm:$0xf]
        %v1448 = vld [vmem:[%s1443 + $0x10] sm:$0xf]
        %v1449 = vld [vmem:[%s1443 + $0x14] sm:$0xf]
        %v1450 = vld [vmem:[%s1443 + $0x18] sm:$0xf]
        %v1451 = vld [vmem:[%s1443 + $0x1c] sm:$0xf]
        %v1453 = vshrl.u32 %v1373, 16
        %v1455 = vrot.slane %v1453, 1
        %v1456 = vshll.u32 %v1373, 16
        %v1458 = vrot.slane %v1456, 2
        %v1459 = vor.u32 %v1455, %v1458
        %v1468 = vunpack.c.l.b16 %v1444
        %v1469 = vunpack.c.l.b16 %v1445
        %v1470 = vunpack.c.l.b16 %v1446
        %v1471 = vunpack.c.l.b16 %v1447
        %v1472 = vunpack.c.l.b16 %v1448
        %v1473 = vunpack.c.l.b16 %v1449
        %v1474 = vunpack.c.l.b16 %v1450
        %v1475 = vunpack.c.l.b16 %v1451
        %v1476 = vpack.c.b16 %v1469, %v1468
        %v1477 = vpack.c.b16 %v1471, %v1470
        %v1478 = vpack.c.b16 %v1473, %v1472
        %v1479 = vpack.c.b16 %v1475, %v1474
        %v1485 = vsel %vm245, %v1459, 0
        %1487 = vmatprep.subr.bf16.mxu0 0
        %1488 = vmatpush1.bf16.msra.mxu0 %v1476
        %1489 = vmatprep.subr.bf16.mxu0 0
        %1490 = vmatpush1.bf16.msra.mxu0 %v1477
        %1491 = vmatprep.subr.bf16.mxu0 0
        %1492 = vmatpush1.bf16.msra.mxu0 %v1478
        %1493 = vmatprep.subr.bf16.mxu0 0
        %1494 = vmatpush1.bf16.msra.mxu0 %v1479
        %1495 = vmatprep.subr.bf16.mxu0 0
        %1496 = vmatpush1.bf16.msra.mxu0 0
        %1497 = vmatprep.subr.bf16.mxu0 0
        %1498 = vmatpush1.bf16.msra.mxu0 0
        %1499 = vmatprep.subr.bf16.mxu0 0
        %1500 = vmatpush1.bf16.msra.mxu0 0
        %1501 = vmatprep.subr.bf16.mxu0 0
        %1502 = vmatpush1.bf16.msra.mxu0 0
        %1503 = vmatprep.subr.bf16.mxu0 0
        %1504 = vmatpush1.bf16.msra.mxu0 0
        %1505 = vmatprep.subr.bf16.mxu0 0
        %1506 = vmatpush1.bf16.msra.mxu0 0
        %1507 = vmatprep.subr.bf16.mxu0 0
        %1508 = vmatpush1.bf16.msra.mxu0 0
        %1509 = vmatprep.subr.bf16.mxu0 0
        %1510 = vmatpush1.bf16.msra.mxu0 0
        %1511 = vmatprep.subr.bf16.mxu0 0
        %1512 = vmatpush1.bf16.msra.mxu0 0
        %1513 = vmatprep.subr.bf16.mxu0 0
        %1514 = vmatpush1.bf16.msra.mxu0 0
        %1515 = vmatprep.subr.bf16.mxu0 0
        %1516 = vmatpush1.bf16.msra.mxu0 0
        %1517 = vmatprep.subr.bf16.mxu0 0
        %1518 = vmatpush1.bf16.msra.mxu0 0
        %1519 = vmatprep.mubr.bf16.mxu0 0
        %1520 = vmatmul.mubr.bf16.gmra.mrb[0].mxu0 %v1485
        %v1521 = vpop.f32.mrb[0].mxu0
        %v1522 = vadd.f32 0.0, %v1521
        %v1523 = vpop.f32.mrb[0].mxu0
        %v1524 = vpop.f32.mrb[0].mxu0
        %v1525 = vpop.f32.mrb[0].mxu0
        %1526 = vdwg.mxu0
        %v1527 = vadd.f32 %v1442, %v1522
        %vm1528 = vcmask 1042432
        %v1529 = vsel %vm1528, %v1527, 0.0
        %v1530 = vrot.slane %v1529, 4
        %v1531 = vadd.f32 %v1529, %v1530
        %v1532 = vrot.slane %v1531, 2
        %v1533 = vadd.f32 %v1531, %v1532
        %v1534 = vrot.slane %v1533, 1
        %v1535 = vadd.f32 %v1533, %v1534
        %v1536 = vadd.f32 %v189, %v1535
        %v1537 = vmul.f32 %v1527, %v1527
        %v1538 = vsel %vm1528, %v1537, 0.0
        %v1539 = vrot.slane %v1538, 4
        %v1540 = vadd.f32 %v1538, %v1539
        %v1541 = vrot.slane %v1540, 2
        %v1542 = vadd.f32 %v1540, %v1541
        %v1543 = vrot.slane %v1542, 1
        %v1544 = vadd.f32 %v1542, %v1543
        %v1545 = vadd.f32 %v190, %v1544
        %v1546 = vpack.c.bf16 %v1527, %v1527
        %s1547 = smul.addr %s184, 2
        %s1548 = scalar_lea.vmem %s177, %s1547
        %vm1549 = vcmask 1041408
        %vm1550 = vsmask.f32 1280
        %vm1551 = vmand %vm1549, %vm1550
        %v1552 = vld [vmem:[%s1548] sm:$0x3]
        %v1553 = vsel %vm1551, %v1546, %v1552
        %1554 = vst [vmem:[%s1548] sm:$0x3] %v1553
      $region33: #{_lambda_.13} parent=27 // loop_footer
        %s188 = sadd.s32 1, %s184
      $region34: #{_lambda_.13} parent=27 // loop_footer_branch
        %183 = sbr.rel target = $region30
      $region35: #{_lambda_.13} parent=27 // loop_exit
        _
      %vm1555 = vcmask 1040384
      %v1556 = vsel %vm1555, %v189, %v190
      %1557 = vst [vmem:[%s181] sm:$0x3] %v1556
      %p1558 = scmp.lt.s32.totalorder %s15, 1
      %s1559 = scalar_select %p1558, %s15, 1
      %s1560 = smul.addr %s1559, 3
      %s1561 = smul.addr %s1560, 2
      %s1562 = scalar_lea.vmem %s2, %s1561
      %p1563 = scmp.lt.s32.totalorder %s15, 1
      %s1564 = scalar_select %p1563, %s15, 1
      %s1565 = smul.addr %s1564, 2
      %s1566 = scalar_lea.vmem %s3, %s1565
      // Predicated region
      $region36: #{_lambda_.13} parent=27 // pred_check
        %p1567 = pneg %p80
      $region37: #{_lambda_.13} parent=27 // pred_check_branch
        %1569 = sbr.rel (%p1567) target = $region39
      $region38: #{_lambda_.13} parent=27 // pred_region
        _
      $region39: #{_lambda_.13} parent=27 // pred_fallthru
        _
      // Predicated region
      $region40: #{_lambda_.13} parent=27 // pred_check
        %p1570 = pneg %p106
      $region41: #{_lambda_.13} parent=27 // pred_check_branch
        %1572 = sbr.rel (%p1570) target = $region43
      $region42: #{_lambda_.13} parent=27 // pred_region
        _
      $region43: #{_lambda_.13} parent=27 // pred_fallthru
        _
    $region28: #{_lambda_.13} parent=5 // pred_fallthru
      _
    %p1573 = scmp.le.s32.totalorder 2, %s10
    // Predicated region
    $region44: #{_lambda_.13} parent=5 // pred_check
      %p1574 = pneg %p1573
    $region45: #{_lambda_.13} parent=5 // pred_check_branch
      %1576 = sbr.rel (%p1574) target = $region47
    $region46: #{_lambda_.13} parent=5 // pred_region
      %s1577 = ssub.s32 %s10, 2
      // Predicated region
      $region48: #{_lambda_.13} parent=46 // pred_check
        %p1578 = pneg %p86
      $region49: #{_lambda_.13} parent=46 // pred_check_branch
        %1580 = sbr.rel (%p1578) target = $region51
      $region50: #{_lambda_.13} parent=46 // pred_region
        %p1581 = scmp.lt.s32.totalorder %s16, 1
        %s1582 = scalar_select %p1581, %s16, 1
        %s1583 = smul.addr %s1582, 3
        %s1584 = smul.addr %s1583, 2
        %s1585 = scalar_lea.vmem %s2, %s1584
      $region51: #{_lambda_.13} parent=46 // pred_fallthru
        _
      // Predicated region
      $region52: #{_lambda_.13} parent=46 // pred_check
        %p1586 = pneg %p112
      $region53: #{_lambda_.13} parent=46 // pred_check_branch
        %1588 = sbr.rel (%p1586) target = $region55
      $region54: #{_lambda_.13} parent=46 // pred_region
        %p1589 = scmp.lt.s32.totalorder %s16, 1
        %s1590 = scalar_select %p1589, %s16, 1
        %s1591 = smul.addr %s1590, 2
        %s1592 = scalar_lea.vmem %s3, %s1591
      $region55: #{_lambda_.13} parent=46 // pred_fallthru
        _
    $region47: #{_lambda_.13} parent=5 // pred_fallthru
      _
  $region6: #{_lambda_.13} parent=0 // loop_footer
    %s14 = sadd.s32 1, %s10
  $region7: #{_lambda_.13} parent=0 // loop_footer_branch
    %9 = sbr.rel target = $region3
  $region8: #{_lambda_.13} parent=0 // loop_exit
    _

// kernel: _lambda_.15
$region0: #{_lambda_.15}
  #allocation0 [shape = 'u32[]', space=smem, size = 0x4, offset = 0x4, fixed_abs, tag = 'smem constant byte address 0x4 - core index']
  #allocation1 [shape = 'u32[144,128]{1,0:T(1,128)}', space=vmem, size = 0x12000, scoped, tag = 'internal scratch']
  %s0 = inlined_call_operand.vmem [shape: bf16[2,5,5,128], index: 0, kind: input, shape index: {}]
  %s1 = inlined_call_operand.vmem [shape: bf16[16,128,128], index: 1, kind: input, shape index: {}]
  %s2 = inlined_call_operand.vmem [shape: f32[1,128], index: 2, kind: input, shape index: {}]
  %s3 = inlined_call_operand.vmem [shape: f32[2,2,2,128], index: 3, kind: output, shape index: {}]
  %s4 = sld [smem:[#allocation0]]
  $region52: #{_lambda_.15} parent=0
    _
  %s6 = ssub.s32 1, %s4
  %s7 = scalar_select 0, %s6, %s4
  loop: start=0, step=1, limit=4
  $region2: #{_lambda_.15} parent=0 // loop_pre_header
    _
  $region3: #{_lambda_.15} parent=0 // loop_header
    %s9 = sphi 0, %s13
    %p10 = scmp.ge.s32.totalorder %s9, 4
    %s19 = sphi 0, %s21
    %s22 = sphi 0, %s19
    %s23 = sphi 0, %s22
    %s39 = sphi 0, %s23
    %s43 = sphi 0, %s43
    %s45 = sphi 0, %s43
    %s46 = sphi 0, %s45
    %s60 = sphi 0, %s46
    %s64 = sphi 0, %s64
    %s66 = sphi 0, %s64
    %s67 = sphi 0, %s66
    %s81 = sphi 0, %s67
    %s87 = sphi 0, %s89
    %s90 = sphi 0, %s87
    %s91 = sphi 0, %s90
    %s107 = sphi 0, %s91
  $region4: #{_lambda_.15} parent=0 // loop_header_branch
    %12 = sbr.rel (%p10) target = $region8
  $region5: #{_lambda_.15} parent=0 // loop_body
    %s14 = ssub.s32 %s9, 1
    %s15 = ssub.s32 %s9, 2
    %s16 = sadd.s32 %s9, 1
    %s17 = ssub.s32 %s9, %s16
    %p18 = scmp.eq.s32.totalorder %s17, 0
    %s20 = sadd.s32 %s19, 1
    %s21 = scalar_select %p18, %s19, %s20
    %p24 = pneg %p18
    %p25 = scmp.eq.s32.totalorder %s9, 1
    %p26 = por %p24, %p25
    %p27 = scmp.ne.s32.totalorder %s19, %s22
    %p28 = scmp.eq.s32.totalorder %s9, 0
    %p29 = por %p27, %p28
    %p30 = scmp.ne.s32.totalorder %s19, %s22
    %p31 = scmp.eq.s32.totalorder %s14, 1
    %p32 = por %p30, %p31
    %p33 = scmp.ne.s32.totalorder %s22, %s23
    %p34 = scmp.eq.s32.totalorder %s14, 0
    %p35 = por %p33, %p34
    %p36 = scmp.ne.s32.totalorder %s22, %s23
    %p37 = scmp.eq.s32.totalorder %s15, 1
    %p38 = por %p36, %p37
    %p40 = scmp.ne.s32.totalorder %s23, %s39
    %p41 = scmp.eq.s32.totalorder %s15, 0
    %p42 = por %p40, %p41
    %s44 = sadd.s32 %s43, 1
    %p47 = scmp.eq.s32.totalorder %s9, 1
    %p48 = scmp.ne.s32.totalorder %s43, %s45
    %p49 = scmp.eq.s32.totalorder %s9, 0
    %p50 = por %p48, %p49
    %p51 = scmp.ne.s32.totalorder %s43, %s45
    %p52 = scmp.eq.s32.totalorder %s14, 1
    %p53 = por %p51, %p52
    %p54 = scmp.ne.s32.totalorder %s45, %s46
    %p55 = scmp.eq.s32.totalorder %s14, 0
    %p56 = por %p54, %p55
    %p57 = scmp.ne.s32.totalorder %s45, %s46
    %p58 = scmp.eq.s32.totalorder %s15, 1
    %p59 = por %p57, %p58
    %p61 = scmp.ne.s32.totalorder %s46, %s60
    %p62 = scmp.eq.s32.totalorder %s15, 0
    %p63 = por %p61, %p62
    %s65 = sadd.s32 %s64, 1
    %p68 = scmp.eq.s32.totalorder %s9, 1
    %p69 = scmp.ne.s32.totalorder %s64, %s66
    %p70 = scmp.eq.s32.totalorder %s9, 0
    %p71 = por %p69, %p70
    %p72 = scmp.ne.s32.totalorder %s64, %s66
    %p73 = scmp.eq.s32.totalorder %s14, 1
    %p74 = por %p72, %p73
    %p75 = scmp.ne.s32.totalorder %s66, %s67
    %p76 = scmp.eq.s32.totalorder %s14, 0
    %p77 = por %p75, %p76
    %p78 = scmp.ne.s32.totalorder %s66, %s67
    %p79 = scmp.eq.s32.totalorder %s15, 1
    %p80 = por %p78, %p79
    %p82 = scmp.ne.s32.totalorder %s67, %s81
    %p83 = scmp.eq.s32.totalorder %s15, 0
    %p84 = por %p82, %p83
    %s85 = ssub.s32 %s9, %s16
    %p86 = scmp.eq.s32.totalorder %s85, 0
    %s88 = sadd.s32 %s87, 1
    %s89 = scalar_select %p86, %s87, %s88
    %p92 = pneg %p86
    %p93 = scmp.eq.s32.totalorder %s9, 1
    %p94 = por %p92, %p93
    %p95 = scmp.ne.s32.totalorder %s87, %s90
    %p96 = scmp.eq.s32.totalorder %s9, 0
    %p97 = por %p95, %p96
    %p98 = scmp.ne.s32.totalorder %s87, %s90
    %p99 = scmp.eq.s32.totalorder %s14, 1
    %p100 = por %p98, %p99
    %p101 = scmp.ne.s32.totalorder %s90, %s91
    %p102 = scmp.eq.s32.totalorder %s14, 0
    %p103 = por %p101, %p102
    %p104 = scmp.ne.s32.totalorder %s90, %s91
    %p105 = scmp.eq.s32.totalorder %s15, 1
    %p106 = por %p104, %p105
    %p108 = scmp.ne.s32.totalorder %s91, %s107
    %p109 = scmp.eq.s32.totalorder %s15, 0
    %p110 = por %p108, %p109
    %p111 = scmp.le.s32.totalorder 1, %s9
    %p112 = scmp.lt.s32.totalorder %s9, 3
    %p113 = pnand %p111, %p112
    %p114 = pneg %p113
    // Predicated region
    $region9: #{_lambda_.15} parent=5 // pred_check
      _
    $region10: #{_lambda_.15} parent=5 // pred_check_branch
      %116 = sbr.rel (%p113) target = $region12
    $region11: #{_lambda_.15} parent=5 // pred_region
      %s117 = ssub.s32 %s9, 1
      // Predicated region
      $region13: #{_lambda_.15} parent=11 // pred_check
        %p118 = pneg %p56
      $region14: #{_lambda_.15} parent=11 // pred_check_branch
        %120 = sbr.rel (%p118) target = $region16
      $region15: #{_lambda_.15} parent=11 // pred_region
        _
      $region16: #{_lambda_.15} parent=11 // pred_fallthru
        _
      // Predicated region
      $region17: #{_lambda_.15} parent=11 // pred_check
        %p121 = pneg %p77
      $region18: #{_lambda_.15} parent=11 // pred_check_branch
        %123 = sbr.rel (%p121) target = $region20
      $region19: #{_lambda_.15} parent=11 // pred_region
        _
      $region20: #{_lambda_.15} parent=11 // pred_fallthru
        _
    $region12: #{_lambda_.15} parent=5 // pred_fallthru
      _
    %p124 = scmp.lt.s32.totalorder %s9, 2
    // Predicated region
    $region21: #{_lambda_.15} parent=5 // pred_check
      %p125 = pneg %p124
    $region22: #{_lambda_.15} parent=5 // pred_check_branch
      %127 = sbr.rel (%p125) target = $region24
    $region23: #{_lambda_.15} parent=5 // pred_region
      // Predicated region
      $region25: #{_lambda_.15} parent=23 // pred_check
        %p128 = pneg %p29
      $region26: #{_lambda_.15} parent=23 // pred_check_branch
        %130 = sbr.rel (%p128) target = $region28
      $region27: #{_lambda_.15} parent=23 // pred_region
        %p131 = scmp.lt.s32.totalorder %s9, 1
        %s132 = scalar_select %p131, %s9, 1
        %s133 = smul.addr %s132, 5
        %s134 = smul.addr %s133, 4
        %s135 = scalar_lea.vmem %s0, %s134
      $region28: #{_lambda_.15} parent=23 // pred_fallthru
        _
    $region24: #{_lambda_.15} parent=5 // pred_fallthru
      _
    %p136 = scmp.le.s32.totalorder 1, %s9
    %p137 = scmp.lt.s32.totalorder %s9, 3
    %p138 = pnand %p136, %p137
    %p139 = pneg %p138
    // Predicated region
    $region29: #{_lambda_.15} parent=5 // pred_check
      _
    $region30: #{_lambda_.15} parent=5 // pred_check_branch
      %141 = sbr.rel (%p138) target = $region32
    $region31: #{_lambda_.15} parent=5 // pred_region
      %s142 = ssub.s32 %s9, 1
      %p143 = scmp.lt.s32.totalorder %s14, 1
      %s144 = scalar_select %p143, %s14, 1
      %s145 = smul.addr %s144, 5
      %s146 = smul.addr %s145, 4
      %s147 = scalar_lea.vmem %s0, %s146
      %p148 = pneg %p35
      %p149 = pneg %p32
      %p150 = pneg %p56
      %p151 = pneg %p53
      %p152 = pneg %p77
      %p153 = pneg %p74
      %p154 = pneg %p103
      %p155 = pneg %p100
      %p156 = scmp.lt.s32.totalorder %s14, 1
      %s157 = scalar_select %p156, %s14, 1
      %s158 = smul.addr %s157, 2
      %s159 = smul.addr %s158, 2
      %s160 = scalar_lea.vmem %s3, %s159
      %p161 = scmp.lt.s32.totalorder %s14, 1
      %s162 = scalar_select %p161, %s14, 1
      %s163 = smul.addr %s162, 5
      %s164 = smul.addr %s163, 4
      %s165 = scalar_lea.vmem %s0, %s164
      %p166 = scmp.lt.s32.totalorder %s14, 1
      %s167 = scalar_select %p166, %s14, 1
      %s168 = smul.addr %s167, 2
      %s169 = smul.addr %s168, 2
      %s170 = scalar_lea.vmem %s3, %s169
      loop: start=0, step=1, limit=2
      $region33: #{_lambda_.15} parent=31 // loop_pre_header
        _
      $region34: #{_lambda_.15} parent=31 // loop_header
        %s173 = sphi 0, %s177
        %p174 = scmp.ge.s32.totalorder %s173, 2
      $region35: #{_lambda_.15} parent=31 // loop_header_branch
        %176 = sbr.rel (%p174) target = $region39
      $region36: #{_lambda_.15} parent=31 // loop_body
        %s178 = smul.addr %s173, 4
        %s179 = scalar_lea.vmem %s165, %s178
        %v180 = vld [vmem:[%s179] sm:$0x1]
        %v181 = vld [vmem:[%s1] sm:$0xf]
        %v182 = vld [vmem:[%s1 + $0x4] sm:$0xf]
        %v183 = vld [vmem:[%s1 + $0x8] sm:$0xf]
        %v184 = vld [vmem:[%s1 + $0xc] sm:$0xf]
        %v185 = vld [vmem:[%s1 + $0x10] sm:$0xf]
        %v186 = vld [vmem:[%s1 + $0x14] sm:$0xf]
        %v187 = vld [vmem:[%s1 + $0x18] sm:$0xf]
        %v188 = vld [vmem:[%s1 + $0x1c] sm:$0xf]
        %v189 = vld [vmem:[%s1 + $0x20] sm:$0xf]
        %v190 = vld [vmem:[%s1 + $0x24] sm:$0xf]
        %v191 = vld [vmem:[%s1 + $0x28] sm:$0xf]
        %v192 = vld [vmem:[%s1 + $0x2c] sm:$0xf]
        %v193 = vld [vmem:[%s1 + $0x30] sm:$0xf]
        %v194 = vld [vmem:[%s1 + $0x34] sm:$0xf]
        %v195 = vld [vmem:[%s1 + $0x38] sm:$0xf]
        %v196 = vld [vmem:[%s1 + $0x3c] sm:$0xf]
        %v197 = vld [vmem:[%s179] sm:$0x3]
        %s198 = scalar_lea.vmem %s1, 64
        %v199 = vld [vmem:[%s198] sm:$0xf]
        %v200 = vld [vmem:[%s198 + $0x4] sm:$0xf]
        %v201 = vld [vmem:[%s198 + $0x8] sm:$0xf]
        %v202 = vld [vmem:[%s198 + $0xc] sm:$0xf]
        %v203 = vld [vmem:[%s198 + $0x10] sm:$0xf]
        %v204 = vld [vmem:[%s198 + $0x14] sm:$0xf]
        %v205 = vld [vmem:[%s198 + $0x18] sm:$0xf]
        %v206 = vld [vmem:[%s198 + $0x1c] sm:$0xf]
        %v207 = vld [vmem:[%s198 + $0x20] sm:$0xf]
        %v208 = vld [vmem:[%s198 + $0x24] sm:$0xf]
        %v209 = vld [vmem:[%s198 + $0x28] sm:$0xf]
        %v210 = vld [vmem:[%s198 + $0x2c] sm:$0xf]
        %v211 = vld [vmem:[%s198 + $0x30] sm:$0xf]
        %v212 = vld [vmem:[%s198 + $0x34] sm:$0xf]
        %v213 = vld [vmem:[%s198 + $0x38] sm:$0xf]
        %v214 = vld [vmem:[%s198 + $0x3c] sm:$0xf]
        %v216 = vunpack.c.l.b16 %v197
        %v217 = vpack.c.b16 %v216, %v216
        %v219 = vshrl.u32 %v217, 16
        %v221 = vshll.u32 %v217, 16
        %v223 = vrot.slane %v221, 1
        %v224 = vor.u32 %v219, %v223
        %v242 = vunpack.c.l.b16 %v199
        %v243 = vunpack.c.l.b16 %v200
        %v244 = vunpack.c.l.b16 %v201
        %v245 = vunpack.c.l.b16 %v202
        %v246 = vunpack.c.l.b16 %v203
        %v247 = vunpack.c.l.b16 %v204
        %v248 = vunpack.c.l.b16 %v205
        %v249 = vunpack.c.l.b16 %v206
        %v250 = vunpack.c.l.b16 %v207
        %v251 = vunpack.c.l.b16 %v208
        %v252 = vunpack.c.l.b16 %v209
        %v253 = vunpack.c.l.b16 %v210
        %v254 = vunpack.c.l.b16 %v211
        %v255 = vunpack.c.l.b16 %v212
        %v256 = vunpack.c.l.b16 %v213
        %v257 = vunpack.c.l.b16 %v214
        %v258 = vpack.c.b16 %v243, %v242
        %v259 = vpack.c.b16 %v245, %v244
        %v260 = vpack.c.b16 %v247, %v246
        %v261 = vpack.c.b16 %v249, %v248
        %v262 = vpack.c.b16 %v251, %v250
        %v263 = vpack.c.b16 %v253, %v252
        %v264 = vpack.c.b16 %v255, %v254
        %v265 = vpack.c.b16 %v257, %v256
        %274 = vmatprep.subr.bf16.mxu0 0
        %275 = vmatpush1.bf16.msra.mxu0 %v258
        %276 = vmatprep.subr.bf16.mxu0 0
        %277 = vmatpush1.bf16.msra.mxu0 %v259
        %278 = vmatprep.subr.bf16.mxu0 0
        %279 = vmatpush1.bf16.msra.mxu0 %v260
        %280 = vmatprep.subr.bf16.mxu0 0
        %281 = vmatpush1.bf16.msra.mxu0 %v261
        %282 = vmatprep.subr.bf16.mxu0 0
        %283 = vmatpush1.bf16.msra.mxu0 %v262
        %284 = vmatprep.subr.bf16.mxu0 0
        %285 = vmatpush1.bf16.msra.mxu0 %v263
        %286 = vmatprep.subr.bf16.mxu0 0
        %287 = vmatpush1.bf16.msra.mxu0 %v264
        %288 = vmatprep.subr.bf16.mxu0 0
        %289 = vmatpush1.bf16.msra.mxu0 %v265
        %290 = vmatprep.subr.bf16.mxu0 0
        %291 = vmatpush1.bf16.msra.mxu0 0
        %292 = vmatprep.subr.bf16.mxu0 0
        %293 = vmatpush1.bf16.msra.mxu0 0
        %294 = vmatprep.subr.bf16.mxu0 0
        %295 = vmatpush1.bf16.msra.mxu0 0
        %296 = vmatprep.subr.bf16.mxu0 0
        %297 = vmatpush1.bf16.msra.mxu0 0
        %298 = vmatprep.subr.bf16.mxu0 0
        %299 = vmatpush1.bf16.msra.mxu0 0
        %300 = vmatprep.subr.bf16.mxu0 0
        %301 = vmatpush1.bf16.msra.mxu0 0
        %302 = vmatprep.subr.bf16.mxu0 0
        %303 = vmatpush1.bf16.msra.mxu0 0
        %304 = vmatprep.subr.bf16.mxu0 0
        %305 = vmatpush1.bf16.msra.mxu0 0
        %306 = vmatprep.mubr.bf16.mxu0 0
        %307 = vmatmul.mubr.bf16.gmra.mrb[0].mxu0 %v224
        %v308 = vpop.f32.mrb[0].mxu0
        %v309 = vadd.f32 0.0, %v308
        %v310 = vpop.f32.mrb[0].mxu0
        %v311 = vpop.f32.mrb[0].mxu0
        %v312 = vpop.f32.mrb[0].mxu0
        %313 = vdwg.mxu0
        %v330 = vunpack.c.l.b16 %v181
        %v331 = vunpack.c.l.b16 %v182
        %v332 = vunpack.c.l.b16 %v183
        %v333 = vunpack.c.l.b16 %v184
        %v334 = vunpack.c.l.b16 %v185
        %v335 = vunpack.c.l.b16 %v186
        %v336 = vunpack.c.l.b16 %v187
        %v337 = vunpack.c.l.b16 %v188
        %v338 = vunpack.c.l.b16 %v189
        %v339 = vunpack.c.l.b16 %v190
        %v340 = vunpack.c.l.b16 %v191
        %v341 = vunpack.c.l.b16 %v192
        %v342 = vunpack.c.l.b16 %v193
        %v343 = vunpack.c.l.b16 %v194
        %v344 = vunpack.c.l.b16 %v195
        %v345 = vunpack.c.l.b16 %v196
        %v346 = vpack.c.b16 %v331, %v330
        %v347 = vpack.c.b16 %v333, %v332
        %v348 = vpack.c.b16 %v335, %v334
        %v349 = vpack.c.b16 %v337, %v336
        %v350 = vpack.c.b16 %v339, %v338
        %v351 = vpack.c.b16 %v341, %v340
        %v352 = vpack.c.b16 %v343, %v342
        %v353 = vpack.c.b16 %v345, %v344
        %362 = vmatprep.subr.bf16.mxu0 0
        %363 = vmatpush1.bf16.msra.mxu0 %v346
        %364 = vmatprep.subr.bf16.mxu0 0
        %365 = vmatpush1.bf16.msra.mxu0 %v347
        %366 = vmatprep.subr.bf16.mxu0 0
        %367 = vmatpush1.bf16.msra.mxu0 %v348
        %368 = vmatprep.subr.bf16.mxu0 0
        %369 = vmatpush1.bf16.msra.mxu0 %v349
        %370 = vmatprep.subr.bf16.mxu0 0
        %371 = vmatpush1.bf16.msra.mxu0 %v350
        %372 = vmatprep.subr.bf16.mxu0 0
        %373 = vmatpush1.bf16.msra.mxu0 %v351
        %374 = vmatprep.subr.bf16.mxu0 0
        %375 = vmatpush1.bf16.msra.mxu0 %v352
        %376 = vmatprep.subr.bf16.mxu0 0
        %377 = vmatpush1.bf16.msra.mxu0 %v353
        %378 = vmatprep.subr.bf16.mxu0 0
        %379 = vmatpush1.bf16.msra.mxu0 0
        %380 = vmatprep.subr.bf16.mxu0 0
        %381 = vmatpush1.bf16.msra.mxu0 0
        %382 = vmatprep.subr.bf16.mxu0 0
        %383 = vmatpush1.bf16.msra.mxu0 0
        %384 = vmatprep.subr.bf16.mxu0 0
        %385 = vmatpush1.bf16.msra.mxu0 0
        %386 = vmatprep.subr.bf16.mxu0 0
        %387 = vmatpush1.bf16.msra.mxu0 0
        %388 = vmatprep.subr.bf16.mxu0 0
        %389 = vmatpush1.bf16.msra.mxu0 0
        %390 = vmatprep.subr.bf16.mxu0 0
        %391 = vmatpush1.bf16.msra.mxu0 0
        %392 = vmatprep.subr.bf16.mxu0 0
        %393 = vmatpush1.bf16.msra.mxu0 0
        %394 = vmatprep.mubr.bf16.mxu0 0
        %395 = vmatmul.mubr.bf16.gmra.mrb[0].mxu0 %v180
        %v396 = vpop.f32.mrb[0].mxu0
        %v397 = vadd.f32 %v309, %v396
        %v398 = vpop.f32.mrb[0].mxu0
        %v399 = vpop.f32.mrb[0].mxu0
        %v400 = vpop.f32.mrb[0].mxu0
        %401 = vdwg.mxu0
        %v402 = vld [vmem:[%s179] sm:$0x2]
        %s403 = scalar_lea.vmem %s1, 128
        %v404 = vld [vmem:[%s403] sm:$0xf]
        %v405 = vld [vmem:[%s403 + $0x4] sm:$0xf]
        %v406 = vld [vmem:[%s403 + $0x8] sm:$0xf]
        %v407 = vld [vmem:[%s403 + $0xc] sm:$0xf]
        %v408 = vld [vmem:[%s403 + $0x10] sm:$0xf]
        %v409 = vld [vmem:[%s403 + $0x14] sm:$0xf]
        %v410 = vld [vmem:[%s403 + $0x18] sm:$0xf]
        %v411 = vld [vmem:[%s403 + $0x1c] sm:$0xf]
        %v412 = vld [vmem:[%s403 + $0x20] sm:$0xf]
        %v413 = vld [vmem:[%s403 + $0x24] sm:$0xf]
        %v414 = vld [vmem:[%s403 + $0x28] sm:$0xf]
        %v415 = vld [vmem:[%s403 + $0x2c] sm:$0xf]
        %v416 = vld [vmem:[%s403 + $0x30] sm:$0xf]
        %v417 = vld [vmem:[%s403 + $0x34] sm:$0xf]
        %v418 = vld [vmem:[%s403 + $0x38] sm:$0xf]
        %v419 = vld [vmem:[%s403 + $0x3c] sm:$0xf]
        %v421 = vunpack.c.l.b16 %v402
        %v422 = vpack.c.b16 %v421, %v421
        %v423 = vrot.slane %v422, 1
        %v441 = vunpack.c.l.b16 %v404
        %v442 = vunpack.c.l.b16 %v405
        %v443 = vunpack.c.l.b16 %v406
        %v444 = vunpack.c.l.b16 %v407
        %v445 = vunpack.c.l.b16 %v408
        %v446 = vunpack.c.l.b16 %v409
        %v447 = vunpack.c.l.b16 %v410
        %v448 = vunpack.c.l.b16 %v411
        %v449 = vunpack.c.l.b16 %v412
        %v450 = vunpack.c.l.b16 %v413
        %v451 = vunpack.c.l.b16 %v414
        %v452 = vunpack.c.l.b16 %v415
        %v453 = vunpack.c.l.b16 %v416
        %v454 = vunpack.c.l.b16 %v417
        %v455 = vunpack.c.l.b16 %v418
        %v456 = vunpack.c.l.b16 %v419
        %v457 = vpack.c.b16 %v442, %v441
        %v458 = vpack.c.b16 %v444, %v443
        %v459 = vpack.c.b16 %v446, %v445
        %v460 = vpack.c.b16 %v448, %v447
        %v461 = vpack.c.b16 %v450, %v449
        %v462 = vpack.c.b16 %v452, %v451
        %v463 = vpack.c.b16 %v454, %v453
        %v464 = vpack.c.b16 %v456, %v455
        %473 = vmatprep.subr.bf16.mxu0 0
        %474 = vmatpush1.bf16.msra.mxu0 %v457
        %475 = vmatprep.subr.bf16.mxu0 0
        %476 = vmatpush1.bf16.msra.mxu0 %v458
        %477 = vmatprep.subr.bf16.mxu0 0
        %478 = vmatpush1.bf16.msra.mxu0 %v459
        %479 = vmatprep.subr.bf16.mxu0 0
        %480 = vmatpush1.bf16.msra.mxu0 %v460
        %481 = vmatprep.subr.bf16.mxu0 0
        %482 = vmatpush1.bf16.msra.mxu0 %v461
        %483 = vmatprep.subr.bf16.mxu0 0
        %484 = vmatpush1.bf16.msra.mxu0 %v462
        %485 = vmatprep.subr.bf16.mxu0 0
        %486 = vmatpush1.bf16.msra.mxu0 %v463
        %487 = vmatprep.subr.bf16.mxu0 0
        %488 = vmatpush1.bf16.msra.mxu0 %v464
        %489 = vmatprep.subr.bf16.mxu0 0
        %490 = vmatpush1.bf16.msra.mxu0 0
        %491 = vmatprep.subr.bf16.mxu0 0
        %492 = vmatpush1.bf16.msra.mxu0 0
        %493 = vmatprep.subr.bf16.mxu0 0
        %494 = vmatpush1.bf16.msra.mxu0 0
        %495 = vmatprep.subr.bf16.mxu0 0
        %496 = vmatpush1.bf16.msra.mxu0 0
        %497 = vmatprep.subr.bf16.mxu0 0
        %498 = vmatpush1.bf16.msra.mxu0 0
        %499 = vmatprep.subr.bf16.mxu0 0
        %500 = vmatpush1.bf16.msra.mxu0 0
        %501 = vmatprep.subr.bf16.mxu0 0
        %502 = vmatpush1.bf16.msra.mxu0 0
        %503 = vmatprep.subr.bf16.mxu0 0
        %504 = vmatpush1.bf16.msra.mxu0 0
        %505 = vmatprep.mubr.bf16.mxu0 0
        %506 = vmatmul.mubr.bf16.gmra.mrb[0].mxu0 %v423
        %v507 = vpop.f32.mrb[0].mxu0
        %v508 = vadd.f32 0.0, %v507
        %v509 = vpop.f32.mrb[0].mxu0
        %v510 = vpop.f32.mrb[0].mxu0
        %v511 = vpop.f32.mrb[0].mxu0
        %512 = vdwg.mxu0
        %v513 = vadd.f32 %v397, %v508
        %v514 = vld [vmem:[%s179] sm:$0x6]
        %s515 = scalar_lea.vmem %s1, 192
        %v516 = vld [vmem:[%s515] sm:$0xf]
        %v517 = vld [vmem:[%s515 + $0x4] sm:$0xf]
        %v518 = vld [vmem:[%s515 + $0x8] sm:$0xf]
        %v519 = vld [vmem:[%s515 + $0xc] sm:$0xf]
        %v520 = vld [vmem:[%s515 + $0x10] sm:$0xf]
        %v521 = vld [vmem:[%s515 + $0x14] sm:$0xf]
        %v522 = vld [vmem:[%s515 + $0x18] sm:$0xf]
        %v523 = vld [vmem:[%s515 + $0x1c] sm:$0xf]
        %v524 = vld [vmem:[%s515 + $0x20] sm:$0xf]
        %v525 = vld [vmem:[%s515 + $0x24] sm:$0xf]
        %v526 = vld [vmem:[%s515 + $0x28] sm:$0xf]
        %v527 = vld [vmem:[%s515 + $0x2c] sm:$0xf]
        %v528 = vld [vmem:[%s515 + $0x30] sm:$0xf]
        %v529 = vld [vmem:[%s515 + $0x34] sm:$0xf]
        %v530 = vld [vmem:[%s515 + $0x38] sm:$0xf]
        %v531 = vld [vmem:[%s515 + $0x3c] sm:$0xf]
        %v533 = vunpack.c.l.b16 %v514
        %v534 = vpack.c.b16 %v533, %v533
        %v536 = vshrl.u32 %v534, 16
        %v538 = vrot.slane %v536, 1
        %v539 = vshll.u32 %v534, 16
        %v541 = vrot.slane %v539, 2
        %v542 = vor.u32 %v538, %v541
        %v560 = vunpack.c.l.b16 %v516
        %v561 = vunpack.c.l.b16 %v517
        %v562 = vunpack.c.l.b16 %v518
        %v563 = vunpack.c.l.b16 %v519
        %v564 = vunpack.c.l.b16 %v520
        %v565 = vunpack.c.l.b16 %v521
        %v566 = vunpack.c.l.b16 %v522
        %v567 = vunpack.c.l.b16 %v523
        %v568 = vunpack.c.l.b16 %v524
        %v569 = vunpack.c.l.b16 %v525
        %v570 = vunpack.c.l.b16 %v526
        %v571 = vunpack.c.l.b16 %v527
        %v572 = vunpack.c.l.b16 %v528
        %v573 = vunpack.c.l.b16 %v529
        %v574 = vunpack.c.l.b16 %v530
        %v575 = vunpack.c.l.b16 %v531
        %v576 = vpack.c.b16 %v561, %v560
        %v577 = vpack.c.b16 %v563, %v562
        %v578 = vpack.c.b16 %v565, %v564
        %v579 = vpack.c.b16 %v567, %v566
        %v580 = vpack.c.b16 %v569, %v568
        %v581 = vpack.c.b16 %v571, %v570
        %v582 = vpack.c.b16 %v573, %v572
        %v583 = vpack.c.b16 %v575, %v574
        %592 = vmatprep.subr.bf16.mxu0 0
        %593 = vmatpush1.bf16.msra.mxu0 %v576
        %594 = vmatprep.subr.bf16.mxu0 0
        %595 = vmatpush1.bf16.msra.mxu0 %v577
        %596 = vmatprep.subr.bf16.mxu0 0
        %597 = vmatpush1.bf16.msra.mxu0 %v578
        %598 = vmatprep.subr.bf16.mxu0 0
        %599 = vmatpush1.bf16.msra.mxu0 %v579
        %600 = vmatprep.subr.bf16.mxu0 0
        %601 = vmatpush1.bf16.msra.mxu0 %v580
        %602 = vmatprep.subr.bf16.mxu0 0
        %603 = vmatpush1.bf16.msra.mxu0 %v581
        %604 = vmatprep.subr.bf16.mxu0 0
        %605 = vmatpush1.bf16.msra.mxu0 %v582
        %606 = vmatprep.subr.bf16.mxu0 0
        %607 = vmatpush1.bf16.msra.mxu0 %v583
        %608 = vmatprep.subr.bf16.mxu0 0
        %609 = vmatpush1.bf16.msra.mxu0 0
        %610 = vmatprep.subr.bf16.mxu0 0
        %611 = vmatpush1.bf16.msra.mxu0 0
        %612 = vmatprep.subr.bf16.mxu0 0
        %613 = vmatpush1.bf16.msra.mxu0 0
        %614 = vmatprep.subr.bf16.mxu0 0
        %615 = vmatpush1.bf16.msra.mxu0 0
        %616 = vmatprep.subr.bf16.mxu0 0
        %617 = vmatpush1.bf16.msra.mxu0 0
        %618 = vmatprep.subr.bf16.mxu0 0
        %619 = vmatpush1.bf16.msra.mxu0 0
        %620 = vmatprep.subr.bf16.mxu0 0
        %621 = vmatpush1.bf16.msra.mxu0 0
        %622 = vmatprep.subr.bf16.mxu0 0
        %623 = vmatpush1.bf16.msra.mxu0 0
        %624 = vmatprep.mubr.bf16.mxu0 0
        %625 = vmatmul.mubr.bf16.gmra.mrb[0].mxu0 %v542
        %v626 = vpop.f32.mrb[0].mxu0
        %v627 = vadd.f32 0.0, %v626
        %v628 = vpop.f32.mrb[0].mxu0
        %v629 = vpop.f32.mrb[0].mxu0
        %v630 = vpop.f32.mrb[0].mxu0
        %631 = vdwg.mxu0
        %v632 = vadd.f32 %v513, %v627
        %s633 = sadd.s32 %s173, 1
        %s634 = smul.addr %s633, 4
        %s635 = scalar_lea.vmem %s165, %s634
        %v636 = vld [vmem:[%s635] sm:$0x1]
        %s637 = scalar_lea.vmem %s1, 256
        %v638 = vld [vmem:[%s637] sm:$0xf]
        %v639 = vld [vmem:[%s637 + $0x4] sm:$0xf]
        %v640 = vld [vmem:[%s637 + $0x8] sm:$0xf]
        %v641 = vld [vmem:[%s637 + $0xc] sm:$0xf]
        %v642 = vld [vmem:[%s637 + $0x10] sm:$0xf]
        %v643 = vld [vmem:[%s637 + $0x14] sm:$0xf]
        %v644 = vld [vmem:[%s637 + $0x18] sm:$0xf]
        %v645 = vld [vmem:[%s637 + $0x1c] sm:$0xf]
        %v646 = vld [vmem:[%s637 + $0x20] sm:$0xf]
        %v647 = vld [vmem:[%s637 + $0x24] sm:$0xf]
        %v648 = vld [vmem:[%s637 + $0x28] sm:$0xf]
        %v649 = vld [vmem:[%s637 + $0x2c] sm:$0xf]
        %v650 = vld [vmem:[%s637 + $0x30] sm:$0xf]
        %v651 = vld [vmem:[%s637 + $0x34] sm:$0xf]
        %v652 = vld [vmem:[%s637 + $0x38] sm:$0xf]
        %v653 = vld [vmem:[%s637 + $0x3c] sm:$0xf]
        %v670 = vunpack.c.l.b16 %v638
        %v671 = vunpack.c.l.b16 %v639
        %v672 = vunpack.c.l.b16 %v640
        %v673 = vunpack.c.l.b16 %v641
        %v674 = vunpack.c.l.b16 %v642
        %v675 = vunpack.c.l.b16 %v643
        %v676 = vunpack.c.l.b16 %v644
        %v677 = vunpack.c.l.b16 %v645
        %v678 = vunpack.c.l.b16 %v646
        %v679 = vunpack.c.l.b16 %v647
        %v680 = vunpack.c.l.b16 %v648
        %v681 = vunpack.c.l.b16 %v649
        %v682 = vunpack.c.l.b16 %v650
        %v683 = vunpack.c.l.b16 %v651
        %v684 = vunpack.c.l.b16 %v652
        %v685 = vunpack.c.l.b16 %v653
        %v686 = vpack.c.b16 %v671, %v670
        %v687 = vpack.c.b16 %v673, %v672
        %v688 = vpack.c.b16 %v675, %v674
        %v689 = vpack.c.b16 %v677, %v676
        %v690 = vpack.c.b16 %v679, %v678
        %v691 = vpack.c.b16 %v681, %v680
        %v692 = vpack.c.b16 %v683, %v682
        %v693 = vpack.c.b16 %v685, %v684
        %702 = vmatprep.subr.bf16.mxu0 0
        %703 = vmatpush1.bf16.msra.mxu0 %v686
        %704 = vmatprep.subr.bf16.mxu0 0
        %705 = vmatpush1.bf16.msra.mxu0 %v687
        %706 = vmatprep.subr.bf16.mxu0 0
        %707 = vmatpush1.bf16.msra.mxu0 %v688
        %708 = vmatprep.subr.bf16.mxu0 0
        %709 = vmatpush1.bf16.msra.mxu0 %v689
        %710 = vmatprep.subr.bf16.mxu0 0
        %711 = vmatpush1.bf16.msra.mxu0 %v690
        %712 = vmatprep.subr.bf16.mxu0 0
        %713 = vmatpush1.bf16.msra.mxu0 %v691
        %714 = vmatprep.subr.bf16.mxu0 0
        %715 = vmatpush1.bf16.msra.mxu0 %v692
        %716 = vmatprep.subr.bf16.mxu0 0
        %717 = vmatpush1.bf16.msra.mxu0 %v693
        %718 = vmatprep.subr.bf16.mxu0 0
        %719 = vmatpush1.bf16.msra.mxu0 0
        %720 = vmatprep.subr.bf16.mxu0 0
        %721 = vmatpush1.bf16.msra.mxu0 0
        %722 = vmatprep.subr.bf16.mxu0 0
        %723 = vmatpush1.bf16.msra.mxu0 0
        %724 = vmatprep.subr.bf16.mxu0 0
        %725 = vmatpush1.bf16.msra.mxu0 0
        %726 = vmatprep.subr.bf16.mxu0 0
        %727 = vmatpush1.bf16.msra.mxu0 0
        %728 = vmatprep.subr.bf16.mxu0 0
        %729 = vmatpush1.bf16.msra.mxu0 0
        %730 = vmatprep.subr.bf16.mxu0 0
        %731 = vmatpush1.bf16.msra.mxu0 0
        %732 = vmatprep.subr.bf16.mxu0 0
        %733 = vmatpush1.bf16.msra.mxu0 0
        %734 = vmatprep.mubr.bf16.mxu0 0
        %735 = vmatmul.mubr.bf16.gmra.mrb[0].mxu0 %v636
        %v736 = vpop.f32.mrb[0].mxu0
        %v737 = vadd.f32 0.0, %v736
        %v738 = vpop.f32.mrb[0].mxu0
        %v739 = vpop.f32.mrb[0].mxu0
        %v740 = vpop.f32.mrb[0].mxu0
        %741 = vdwg.mxu0
        %v742 = vadd.f32 %v632, %v737
        %v743 = vld [vmem:[%s635] sm:$0x3]
        %s744 = scalar_lea.vmem %s1, 320
        %v745 = vld [vmem:[%s744] sm:$0xf]
        %v746 = vld [vmem:[%s744 + $0x4] sm:$0xf]
        %v747 = vld [vmem:[%s744 + $0x8] sm:$0xf]
        %v748 = vld [vmem:[%s744 + $0xc] sm:$0xf]
        %v749 = vld [vmem:[%s744 + $0x10] sm:$0xf]
        %v750 = vld [vmem:[%s744 + $0x14] sm:$0xf]
        %v751 = vld [vmem:[%s744 + $0x18] sm:$0xf]
        %v752 = vld [vmem:[%s744 + $0x1c] sm:$0xf]
        %v753 = vld [vmem:[%s744 + $0x20] sm:$0xf]
        %v754 = vld [vmem:[%s744 + $0x24] sm:$0xf]
        %v755 = vld [vmem:[%s744 + $0x28] sm:$0xf]
        %v756 = vld [vmem:[%s744 + $0x2c] sm:$0xf]
        %v757 = vld [vmem:[%s744 + $0x30] sm:$0xf]
        %v758 = vld [vmem:[%s744 + $0x34] sm:$0xf]
        %v759 = vld [vmem:[%s744 + $0x38] sm:$0xf]
        %v760 = vld [vmem:[%s744 + $0x3c] sm:$0xf]
        %v762 = vunpack.c.l.b16 %v743
        %v763 = vpack.c.b16 %v762, %v762
        %v765 = vshrl.u32 %v763, 16
        %v767 = vshll.u32 %v763, 16
        %v769 = vrot.slane %v767, 1
        %v770 = vor.u32 %v765, %v769
        %v788 = vunpack.c.l.b16 %v745
        %v789 = vunpack.c.l.b16 %v746
        %v790 = vunpack.c.l.b16 %v747
        %v791 = vunpack.c.l.b16 %v748
        %v792 = vunpack.c.l.b16 %v749
        %v793 = vunpack.c.l.b16 %v750
        %v794 = vunpack.c.l.b16 %v751
        %v795 = vunpack.c.l.b16 %v752
        %v796 = vunpack.c.l.b16 %v753
        %v797 = vunpack.c.l.b16 %v754
        %v798 = vunpack.c.l.b16 %v755
        %v799 = vunpack.c.l.b16 %v756
        %v800 = vunpack.c.l.b16 %v757
        %v801 = vunpack.c.l.b16 %v758
        %v802 = vunpack.c.l.b16 %v759
        %v803 = vunpack.c.l.b16 %v760
        %v804 = vpack.c.b16 %v789, %v788
        %v805 = vpack.c.b16 %v791, %v790
        %v806 = vpack.c.b16 %v793, %v792
        %v807 = vpack.c.b16 %v795, %v794
        %v808 = vpack.c.b16 %v797, %v796
        %v809 = vpack.c.b16 %v799, %v798
        %v810 = vpack.c.b16 %v801, %v800
        %v811 = vpack.c.b16 %v803, %v802
        %820 = vmatprep.subr.bf16.mxu0 0
        %821 = vmatpush1.bf16.msra.mxu0 %v804
        %822 = vmatprep.subr.bf16.mxu0 0
        %823 = vmatpush1.bf16.msra.mxu0 %v805
        %824 = vmatprep.subr.bf16.mxu0 0
        %825 = vmatpush1.bf16.msra.mxu0 %v806
        %826 = vmatprep.subr.bf16.mxu0 0
        %827 = vmatpush1.bf16.msra.mxu0 %v807
        %828 = vmatprep.subr.bf16.mxu0 0
        %829 = vmatpush1.bf16.msra.mxu0 %v808
        %830 = vmatprep.subr.bf16.mxu0 0
        %831 = vmatpush1.bf16.msra.mxu0 %v809
        %832 = vmatprep.subr.bf16.mxu0 0
        %833 = vmatpush1.bf16.msra.mxu0 %v810
        %834 = vmatprep.subr.bf16.mxu0 0
        %835 = vmatpush1.bf16.msra.mxu0 %v811
        %836 = vmatprep.subr.bf16.mxu0 0
        %837 = vmatpush1.bf16.msra.mxu0 0
        %838 = vmatprep.subr.bf16.mxu0 0
        %839 = vmatpush1.bf16.msra.mxu0 0
        %840 = vmatprep.subr.bf16.mxu0 0
        %841 = vmatpush1.bf16.msra.mxu0 0
        %842 = vmatprep.subr.bf16.mxu0 0
        %843 = vmatpush1.bf16.msra.mxu0 0
        %844 = vmatprep.subr.bf16.mxu0 0
        %845 = vmatpush1.bf16.msra.mxu0 0
        %846 = vmatprep.subr.bf16.mxu0 0
        %847 = vmatpush1.bf16.msra.mxu0 0
        %848 = vmatprep.subr.bf16.mxu0 0
        %849 = vmatpush1.bf16.msra.mxu0 0
        %850 = vmatprep.subr.bf16.mxu0 0
        %851 = vmatpush1.bf16.msra.mxu0 0
        %852 = vmatprep.mubr.bf16.mxu0 0
        %853 = vmatmul.mubr.bf16.gmra.mrb[0].mxu0 %v770
        %v854 = vpop.f32.mrb[0].mxu0
        %v855 = vadd.f32 0.0, %v854
        %v856 = vpop.f32.mrb[0].mxu0
        %v857 = vpop.f32.mrb[0].mxu0
        %v858 = vpop.f32.mrb[0].mxu0
        %859 = vdwg.mxu0
        %v860 = vadd.f32 %v742, %v855
        %v861 = vld [vmem:[%s635] sm:$0x2]
        %s862 = scalar_lea.vmem %s1, 384
        %v863 = vld [vmem:[%s862] sm:$0xf]
        %v864 = vld [vmem:[%s862 + $0x4] sm:$0xf]
        %v865 = vld [vmem:[%s862 + $0x8] sm:$0xf]
        %v866 = vld [vmem:[%s862 + $0xc] sm:$0xf]
        %v867 = vld [vmem:[%s862 + $0x10] sm:$0xf]
        %v868 = vld [vmem:[%s862 + $0x14] sm:$0xf]
        %v869 = vld [vmem:[%s862 + $0x18] sm:$0xf]
        %v870 = vld [vmem:[%s862 + $0x1c] sm:$0xf]
        %v871 = vld [vmem:[%s862 + $0x20] sm:$0xf]
        %v872 = vld [vmem:[%s862 + $0x24] sm:$0xf]
        %v873 = vld [vmem:[%s862 + $0x28] sm:$0xf]
        %v874 = vld [vmem:[%s862 + $0x2c] sm:$0xf]
        %v875 = vld [vmem:[%s862 + $0x30] sm:$0xf]
        %v876 = vld [vmem:[%s862 + $0x34] sm:$0xf]
        %v877 = vld [vmem:[%s862 + $0x38] sm:$0xf]
        %v878 = vld [vmem:[%s862 + $0x3c] sm:$0xf]
        %v880 = vunpack.c.l.b16 %v861
        %v881 = vpack.c.b16 %v880, %v880
        %v882 = vrot.slane %v881, 1
        %v900 = vunpack.c.l.b16 %v863
        %v901 = vunpack.c.l.b16 %v864
        %v902 = vunpack.c.l.b16 %v865
        %v903 = vunpack.c.l.b16 %v866
        %v904 = vunpack.c.l.b16 %v867
        %v905 = vunpack.c.l.b16 %v868
        %v906 = vunpack.c.l.b16 %v869
        %v907 = vunpack.c.l.b16 %v870
        %v908 = vunpack.c.l.b16 %v871
        %v909 = vunpack.c.l.b16 %v872
        %v910 = vunpack.c.l.b16 %v873
        %v911 = vunpack.c.l.b16 %v874
        %v912 = vunpack.c.l.b16 %v875
        %v913 = vunpack.c.l.b16 %v876
        %v914 = vunpack.c.l.b16 %v877
        %v915 = vunpack.c.l.b16 %v878
        %v916 = vpack.c.b16 %v901, %v900
        %v917 = vpack.c.b16 %v903, %v902
        %v918 = vpack.c.b16 %v905, %v904
        %v919 = vpack.c.b16 %v907, %v906
        %v920 = vpack.c.b16 %v909, %v908
        %v921 = vpack.c.b16 %v911, %v910
        %v922 = vpack.c.b16 %v913, %v912
        %v923 = vpack.c.b16 %v915, %v914
        %932 = vmatprep.subr.bf16.mxu0 0
        %933 = vmatpush1.bf16.msra.mxu0 %v916
        %934 = vmatprep.subr.bf16.mxu0 0
        %935 = vmatpush1.bf16.msra.mxu0 %v917
        %936 = vmatprep.subr.bf16.mxu0 0
        %937 = vmatpush1.bf16.msra.mxu0 %v918
        %938 = vmatprep.subr.bf16.mxu0 0
        %939 = vmatpush1.bf16.msra.mxu0 %v919
        %940 = vmatprep.subr.bf16.mxu0 0
        %941 = vmatpush1.bf16.msra.mxu0 %v920
        %942 = vmatprep.subr.bf16.mxu0 0
        %943 = vmatpush1.bf16.msra.mxu0 %v921
        %944 = vmatprep.subr.bf16.mxu0 0
        %945 = vmatpush1.bf16.msra.mxu0 %v922
        %946 = vmatprep.subr.bf16.mxu0 0
        %947 = vmatpush1.bf16.msra.mxu0 %v923
        %948 = vmatprep.subr.bf16.mxu0 0
        %949 = vmatpush1.bf16.msra.mxu0 0
        %950 = vmatprep.subr.bf16.mxu0 0
        %951 = vmatpush1.bf16.msra.mxu0 0
        %952 = vmatprep.subr.bf16.mxu0 0
        %953 = vmatpush1.bf16.msra.mxu0 0
        %954 = vmatprep.subr.bf16.mxu0 0
        %955 = vmatpush1.bf16.msra.mxu0 0
        %956 = vmatprep.subr.bf16.mxu0 0
        %957 = vmatpush1.bf16.msra.mxu0 0
        %958 = vmatprep.subr.bf16.mxu0 0
        %959 = vmatpush1.bf16.msra.mxu0 0
        %960 = vmatprep.subr.bf16.mxu0 0
        %961 = vmatpush1.bf16.msra.mxu0 0
        %962 = vmatprep.subr.bf16.mxu0 0
        %963 = vmatpush1.bf16.msra.mxu0 0
        %964 = vmatprep.mubr.bf16.mxu0 0
        %965 = vmatmul.mubr.bf16.gmra.mrb[0].mxu0 %v882
        %v966 = vpop.f32.mrb[0].mxu0
        %v967 = vadd.f32 0.0, %v966
        %v968 = vpop.f32.mrb[0].mxu0
        %v969 = vpop.f32.mrb[0].mxu0
        %v970 = vpop.f32.mrb[0].mxu0
        %971 = vdwg.mxu0
        %v972 = vadd.f32 %v860, %v967
        %v973 = vld [vmem:[%s635] sm:$0x6]
        %s974 = scalar_lea.vmem %s1, 448
        %v975 = vld [vmem:[%s974] sm:$0xf]
        %v976 = vld [vmem:[%s974 + $0x4] sm:$0xf]
        %v977 = vld [vmem:[%s974 + $0x8] sm:$0xf]
        %v978 = vld [vmem:[%s974 + $0xc] sm:$0xf]
        %v979 = vld [vmem:[%s974 + $0x10] sm:$0xf]
        %v980 = vld [vmem:[%s974 + $0x14] sm:$0xf]
        %v981 = vld [vmem:[%s974 + $0x18] sm:$0xf]
        %v982 = vld [vmem:[%s974 + $0x1c] sm:$0xf]
        %v983 = vld [vmem:[%s974 + $0x20] sm:$0xf]
        %v984 = vld [vmem:[%s974 + $0x24] sm:$0xf]
        %v985 = vld [vmem:[%s974 + $0x28] sm:$0xf]
        %v986 = vld [vmem:[%s974 + $0x2c] sm:$0xf]
        %v987 = vld [vmem:[%s974 + $0x30] sm:$0xf]
        %v988 = vld [vmem:[%s974 + $0x34] sm:$0xf]
        %v989 = vld [vmem:[%s974 + $0x38] sm:$0xf]
        %v990 = vld [vmem:[%s974 + $0x3c] sm:$0xf]
        %v992 = vunpack.c.l.b16 %v973
        %v993 = vpack.c.b16 %v992, %v992
        %v995 = vshrl.u32 %v993, 16
        %v997 = vrot.slane %v995, 1
        %v998 = vshll.u32 %v993, 16
        %v1000 = vrot.slane %v998, 2
        %v1001 = vor.u32 %v997, %v1000
        %v1019 = vunpack.c.l.b16 %v975
        %v1020 = vunpack.c.l.b16 %v976
        %v1021 = vunpack.c.l.b16 %v977
        %v1022 = vunpack.c.l.b16 %v978
        %v1023 = vunpack.c.l.b16 %v979
        %v1024 = vunpack.c.l.b16 %v980
        %v1025 = vunpack.c.l.b16 %v981
        %v1026 = vunpack.c.l.b16 %v982
        %v1027 = vunpack.c.l.b16 %v983
        %v1028 = vunpack.c.l.b16 %v984
        %v1029 = vunpack.c.l.b16 %v985
        %v1030 = vunpack.c.l.b16 %v986
        %v1031 = vunpack.c.l.b16 %v987
        %v1032 = vunpack.c.l.b16 %v988
        %v1033 = vunpack.c.l.b16 %v989
        %v1034 = vunpack.c.l.b16 %v990
        %v1035 = vpack.c.b16 %v1020, %v1019
        %v1036 = vpack.c.b16 %v1022, %v1021
        %v1037 = vpack.c.b16 %v1024, %v1023
        %v1038 = vpack.c.b16 %v1026, %v1025
        %v1039 = vpack.c.b16 %v1028, %v1027
        %v1040 = vpack.c.b16 %v1030, %v1029
        %v1041 = vpack.c.b16 %v1032, %v1031
        %v1042 = vpack.c.b16 %v1034, %v1033
        %1051 = vmatprep.subr.bf16.mxu0 0
        %1052 = vmatpush1.bf16.msra.mxu0 %v1035
        %1053 = vmatprep.subr.bf16.mxu0 0
        %1054 = vmatpush1.bf16.msra.mxu0 %v1036
        %1055 = vmatprep.subr.bf16.mxu0 0
        %1056 = vmatpush1.bf16.msra.mxu0 %v1037
        %1057 = vmatprep.subr.bf16.mxu0 0
        %1058 = vmatpush1.bf16.msra.mxu0 %v1038
        %1059 = vmatprep.subr.bf16.mxu0 0
        %1060 = vmatpush1.bf16.msra.mxu0 %v1039
        %1061 = vmatprep.subr.bf16.mxu0 0
        %1062 = vmatpush1.bf16.msra.mxu0 %v1040
        %1063 = vmatprep.subr.bf16.mxu0 0
        %1064 = vmatpush1.bf16.msra.mxu0 %v1041
        %1065 = vmatprep.subr.bf16.mxu0 0
        %1066 = vmatpush1.bf16.msra.mxu0 %v1042
        %1067 = vmatprep.subr.bf16.mxu0 0
        %1068 = vmatpush1.bf16.msra.mxu0 0
        %1069 = vmatprep.subr.bf16.mxu0 0
        %1070 = vmatpush1.bf16.msra.mxu0 0
        %1071 = vmatprep.subr.bf16.mxu0 0
        %1072 = vmatpush1.bf16.msra.mxu0 0
        %1073 = vmatprep.subr.bf16.mxu0 0
        %1074 = vmatpush1.bf16.msra.mxu0 0
        %1075 = vmatprep.subr.bf16.mxu0 0
        %1076 = vmatpush1.bf16.msra.mxu0 0
        %1077 = vmatprep.subr.bf16.mxu0 0
        %1078 = vmatpush1.bf16.msra.mxu0 0
        %1079 = vmatprep.subr.bf16.mxu0 0
        %1080 = vmatpush1.bf16.msra.mxu0 0
        %1081 = vmatprep.subr.bf16.mxu0 0
        %1082 = vmatpush1.bf16.msra.mxu0 0
        %1083 = vmatprep.mubr.bf16.mxu0 0
        %1084 = vmatmul.mubr.bf16.gmra.mrb[0].mxu0 %v1001
        %v1085 = vpop.f32.mrb[0].mxu0
        %v1086 = vadd.f32 0.0, %v1085
        %v1087 = vpop.f32.mrb[0].mxu0
        %v1088 = vpop.f32.mrb[0].mxu0
        %v1089 = vpop.f32.mrb[0].mxu0
        %1090 = vdwg.mxu0
        %v1091 = vadd.f32 %v972, %v1086
        %s1092 = sadd.s32 %s173, 2
        %s1093 = smul.addr %s1092, 4
        %s1094 = scalar_lea.vmem %s165, %s1093
        %v1095 = vld [vmem:[%s1094] sm:$0x1]
        %s1096 = scalar_lea.vmem %s1, 512
        %v1097 = vld [vmem:[%s1096] sm:$0xf]
        %v1098 = vld [vmem:[%s1096 + $0x4] sm:$0xf]
        %v1099 = vld [vmem:[%s1096 + $0x8] sm:$0xf]
        %v1100 = vld [vmem:[%s1096 + $0xc] sm:$0xf]
        %v1101 = vld [vmem:[%s1096 + $0x10] sm:$0xf]
        %v1102 = vld [vmem:[%s1096 + $0x14] sm:$0xf]
        %v1103 = vld [vmem:[%s1096 + $0x18] sm:$0xf]
        %v1104 = vld [vmem:[%s1096 + $0x1c] sm:$0xf]
        %v1105 = vld [vmem:[%s1096 + $0x20] sm:$0xf]
        %v1106 = vld [vmem:[%s1096 + $0x24] sm:$0xf]
        %v1107 = vld [vmem:[%s1096 + $0x28] sm:$0xf]
        %v1108 = vld [vmem:[%s1096 + $0x2c] sm:$0xf]
        %v1109 = vld [vmem:[%s1096 + $0x30] sm:$0xf]
        %v1110 = vld [vmem:[%s1096 + $0x34] sm:$0xf]
        %v1111 = vld [vmem:[%s1096 + $0x38] sm:$0xf]
        %v1112 = vld [vmem:[%s1096 + $0x3c] sm:$0xf]
        %v1129 = vunpack.c.l.b16 %v1097
        %v1130 = vunpack.c.l.b16 %v1098
        %v1131 = vunpack.c.l.b16 %v1099
        %v1132 = vunpack.c.l.b16 %v1100
        %v1133 = vunpack.c.l.b16 %v1101
        %v1134 = vunpack.c.l.b16 %v1102
        %v1135 = vunpack.c.l.b16 %v1103
        %v1136 = vunpack.c.l.b16 %v1104
        %v1137 = vunpack.c.l.b16 %v1105
        %v1138 = vunpack.c.l.b16 %v1106
        %v1139 = vunpack.c.l.b16 %v1107
        %v1140 = vunpack.c.l.b16 %v1108
        %v1141 = vunpack.c.l.b16 %v1109
        %v1142 = vunpack.c.l.b16 %v1110
        %v1143 = vunpack.c.l.b16 %v1111
        %v1144 = vunpack.c.l.b16 %v1112
        %v1145 = vpack.c.b16 %v1130, %v1129
        %v1146 = vpack.c.b16 %v1132, %v1131
        %v1147 = vpack.c.b16 %v1134, %v1133
        %v1148 = vpack.c.b16 %v1136, %v1135
        %v1149 = vpack.c.b16 %v1138, %v1137
        %v1150 = vpack.c.b16 %v1140, %v1139
        %v1151 = vpack.c.b16 %v1142, %v1141
        %v1152 = vpack.c.b16 %v1144, %v1143
        %1161 = vmatprep.subr.bf16.mxu0 0
        %1162 = vmatpush1.bf16.msra.mxu0 %v1145
        %1163 = vmatprep.subr.bf16.mxu0 0
        %1164 = vmatpush1.bf16.msra.mxu0 %v1146
        %1165 = vmatprep.subr.bf16.mxu0 0
        %1166 = vmatpush1.bf16.msra.mxu0 %v1147
        %1167 = vmatprep.subr.bf16.mxu0 0
        %1168 = vmatpush1.bf16.msra.mxu0 %v1148
        %1169 = vmatprep.subr.bf16.mxu0 0
        %1170 = vmatpush1.bf16.msra.mxu0 %v1149
        %1171 = vmatprep.subr.bf16.mxu0 0
        %1172 = vmatpush1.bf16.msra.mxu0 %v1150
        %1173 = vmatprep.subr.bf16.mxu0 0
        %1174 = vmatpush1.bf16.msra.mxu0 %v1151
        %1175 = vmatprep.subr.bf16.mxu0 0
        %1176 = vmatpush1.bf16.msra.mxu0 %v1152
        %1177 = vmatprep.subr.bf16.mxu0 0
        %1178 = vmatpush1.bf16.msra.mxu0 0
        %1179 = vmatprep.subr.bf16.mxu0 0
        %1180 = vmatpush1.bf16.msra.mxu0 0
        %1181 = vmatprep.subr.bf16.mxu0 0
        %1182 = vmatpush1.bf16.msra.mxu0 0
        %1183 = vmatprep.subr.bf16.mxu0 0
        %1184 = vmatpush1.bf16.msra.mxu0 0
        %1185 = vmatprep.subr.bf16.mxu0 0
        %1186 = vmatpush1.bf16.msra.mxu0 0
        %1187 = vmatprep.subr.bf16.mxu0 0
        %1188 = vmatpush1.bf16.msra.mxu0 0
        %1189 = vmatprep.subr.bf16.mxu0 0
        %1190 = vmatpush1.bf16.msra.mxu0 0
        %1191 = vmatprep.subr.bf16.mxu0 0
        %1192 = vmatpush1.bf16.msra.mxu0 0
        %1193 = vmatprep.mubr.bf16.mxu0 0
        %1194 = vmatmul.mubr.bf16.gmra.mrb[0].mxu0 %v1095
        %v1195 = vpop.f32.mrb[0].mxu0
        %v1196 = vadd.f32 0.0, %v1195
        %v1197 = vpop.f32.mrb[0].mxu0
        %v1198 = vpop.f32.mrb[0].mxu0
        %v1199 = vpop.f32.mrb[0].mxu0
        %1200 = vdwg.mxu0
        %v1201 = vadd.f32 %v1091, %v1196
        %v1202 = vld [vmem:[%s1094] sm:$0x3]
        %s1203 = scalar_lea.vmem %s1, 576
        %v1204 = vld [vmem:[%s1203] sm:$0xf]
        %v1205 = vld [vmem:[%s1203 + $0x4] sm:$0xf]
        %v1206 = vld [vmem:[%s1203 + $0x8] sm:$0xf]
        %v1207 = vld [vmem:[%s1203 + $0xc] sm:$0xf]
        %v1208 = vld [vmem:[%s1203 + $0x10] sm:$0xf]
        %v1209 = vld [vmem:[%s1203 + $0x14] sm:$0xf]
        %v1210 = vld [vmem:[%s1203 + $0x18] sm:$0xf]
        %v1211 = vld [vmem:[%s1203 + $0x1c] sm:$0xf]
        %v1212 = vld [vmem:[%s1203 + $0x20] sm:$0xf]
        %v1213 = vld [vmem:[%s1203 + $0x24] sm:$0xf]
        %v1214 = vld [vmem:[%s1203 + $0x28] sm:$0xf]
        %v1215 = vld [vmem:[%s1203 + $0x2c] sm:$0xf]
        %v1216 = vld [vmem:[%s1203 + $0x30] sm:$0xf]
        %v1217 = vld [vmem:[%s1203 + $0x34] sm:$0xf]
        %v1218 = vld [vmem:[%s1203 + $0x38] sm:$0xf]
        %v1219 = vld [vmem:[%s1203 + $0x3c] sm:$0xf]
        %v1221 = vunpack.c.l.b16 %v1202
        %v1222 = vpack.c.b16 %v1221, %v1221
        %v1224 = vshrl.u32 %v1222, 16
        %v1226 = vshll.u32 %v1222, 16
        %v1228 = vrot.slane %v1226, 1
        %v1229 = vor.u32 %v1224, %v1228
        %v1247 = vunpack.c.l.b16 %v1204
        %v1248 = vunpack.c.l.b16 %v1205
        %v1249 = vunpack.c.l.b16 %v1206
        %v1250 = vunpack.c.l.b16 %v1207
        %v1251 = vunpack.c.l.b16 %v1208
        %v1252 = vunpack.c.l.b16 %v1209
        %v1253 = vunpack.c.l.b16 %v1210
        %v1254 = vunpack.c.l.b16 %v1211
        %v1255 = vunpack.c.l.b16 %v1212
        %v1256 = vunpack.c.l.b16 %v1213
        %v1257 = vunpack.c.l.b16 %v1214
        %v1258 = vunpack.c.l.b16 %v1215
        %v1259 = vunpack.c.l.b16 %v1216
        %v1260 = vunpack.c.l.b16 %v1217
        %v1261 = vunpack.c.l.b16 %v1218
        %v1262 = vunpack.c.l.b16 %v1219
        %v1263 = vpack.c.b16 %v1248, %v1247
        %v1264 = vpack.c.b16 %v1250, %v1249
        %v1265 = vpack.c.b16 %v1252, %v1251
        %v1266 = vpack.c.b16 %v1254, %v1253
        %v1267 = vpack.c.b16 %v1256, %v1255
        %v1268 = vpack.c.b16 %v1258, %v1257
        %v1269 = vpack.c.b16 %v1260, %v1259
        %v1270 = vpack.c.b16 %v1262, %v1261
        %1279 = vmatprep.subr.bf16.mxu0 0
        %1280 = vmatpush1.bf16.msra.mxu0 %v1263
        %1281 = vmatprep.subr.bf16.mxu0 0
        %1282 = vmatpush1.bf16.msra.mxu0 %v1264
        %1283 = vmatprep.subr.bf16.mxu0 0
        %1284 = vmatpush1.bf16.msra.mxu0 %v1265
        %1285 = vmatprep.subr.bf16.mxu0 0
        %1286 = vmatpush1.bf16.msra.mxu0 %v1266
        %1287 = vmatprep.subr.bf16.mxu0 0
        %1288 = vmatpush1.bf16.msra.mxu0 %v1267
        %1289 = vmatprep.subr.bf16.mxu0 0
        %1290 = vmatpush1.bf16.msra.mxu0 %v1268
        %1291 = vmatprep.subr.bf16.mxu0 0
        %1292 = vmatpush1.bf16.msra.mxu0 %v1269
        %1293 = vmatprep.subr.bf16.mxu0 0
        %1294 = vmatpush1.bf16.msra.mxu0 %v1270
        %1295 = vmatprep.subr.bf16.mxu0 0
        %1296 = vmatpush1.bf16.msra.mxu0 0
        %1297 = vmatprep.subr.bf16.mxu0 0
        %1298 = vmatpush1.bf16.msra.mxu0 0
        %1299 = vmatprep.subr.bf16.mxu0 0
        %1300 = vmatpush1.bf16.msra.mxu0 0
        %1301 = vmatprep.subr.bf16.mxu0 0
        %1302 = vmatpush1.bf16.msra.mxu0 0
        %1303 = vmatprep.subr.bf16.mxu0 0
        %1304 = vmatpush1.bf16.msra.mxu0 0
        %1305 = vmatprep.subr.bf16.mxu0 0
        %1306 = vmatpush1.bf16.msra.mxu0 0
        %1307 = vmatprep.subr.bf16.mxu0 0
        %1308 = vmatpush1.bf16.msra.mxu0 0
        %1309 = vmatprep.subr.bf16.mxu0 0
        %1310 = vmatpush1.bf16.msra.mxu0 0
        %1311 = vmatprep.mubr.bf16.mxu0 0
        %1312 = vmatmul.mubr.bf16.gmra.mrb[0].mxu0 %v1229
        %v1313 = vpop.f32.mrb[0].mxu0
        %v1314 = vadd.f32 0.0, %v1313
        %v1315 = vpop.f32.mrb[0].mxu0
        %v1316 = vpop.f32.mrb[0].mxu0
        %v1317 = vpop.f32.mrb[0].mxu0
        %1318 = vdwg.mxu0
        %v1319 = vadd.f32 %v1201, %v1314
        %v1320 = vld [vmem:[%s1094] sm:$0x2]
        %s1321 = scalar_lea.vmem %s1, 640
        %v1322 = vld [vmem:[%s1321] sm:$0xf]
        %v1323 = vld [vmem:[%s1321 + $0x4] sm:$0xf]
        %v1324 = vld [vmem:[%s1321 + $0x8] sm:$0xf]
        %v1325 = vld [vmem:[%s1321 + $0xc] sm:$0xf]
        %v1326 = vld [vmem:[%s1321 + $0x10] sm:$0xf]
        %v1327 = vld [vmem:[%s1321 + $0x14] sm:$0xf]
        %v1328 = vld [vmem:[%s1321 + $0x18] sm:$0xf]
        %v1329 = vld [vmem:[%s1321 + $0x1c] sm:$0xf]
        %v1330 = vld [vmem:[%s1321 + $0x20] sm:$0xf]
        %v1331 = vld [vmem:[%s1321 + $0x24] sm:$0xf]
        %v1332 = vld [vmem:[%s1321 + $0x28] sm:$0xf]
        %v1333 = vld [vmem:[%s1321 + $0x2c] sm:$0xf]
        %v1334 = vld [vmem:[%s1321 + $0x30] sm:$0xf]
        %v1335 = vld [vmem:[%s1321 + $0x34] sm:$0xf]
        %v1336 = vld [vmem:[%s1321 + $0x38] sm:$0xf]
        %v1337 = vld [vmem:[%s1321 + $0x3c] sm:$0xf]
        %v1339 = vunpack.c.l.b16 %v1320
        %v1340 = vpack.c.b16 %v1339, %v1339
        %v1341 = vrot.slane %v1340, 1
        %v1359 = vunpack.c.l.b16 %v1322
        %v1360 = vunpack.c.l.b16 %v1323
        %v1361 = vunpack.c.l.b16 %v1324
        %v1362 = vunpack.c.l.b16 %v1325
        %v1363 = vunpack.c.l.b16 %v1326
        %v1364 = vunpack.c.l.b16 %v1327
        %v1365 = vunpack.c.l.b16 %v1328
        %v1366 = vunpack.c.l.b16 %v1329
        %v1367 = vunpack.c.l.b16 %v1330
        %v1368 = vunpack.c.l.b16 %v1331
        %v1369 = vunpack.c.l.b16 %v1332
        %v1370 = vunpack.c.l.b16 %v1333
        %v1371 = vunpack.c.l.b16 %v1334
        %v1372 = vunpack.c.l.b16 %v1335
        %v1373 = vunpack.c.l.b16 %v1336
        %v1374 = vunpack.c.l.b16 %v1337
        %v1375 = vpack.c.b16 %v1360, %v1359
        %v1376 = vpack.c.b16 %v1362, %v1361
        %v1377 = vpack.c.b16 %v1364, %v1363
        %v1378 = vpack.c.b16 %v1366, %v1365
        %v1379 = vpack.c.b16 %v1368, %v1367
        %v1380 = vpack.c.b16 %v1370, %v1369
        %v1381 = vpack.c.b16 %v1372, %v1371
        %v1382 = vpack.c.b16 %v1374, %v1373
        %1391 = vmatprep.subr.bf16.mxu0 0
        %1392 = vmatpush1.bf16.msra.mxu0 %v1375
        %1393 = vmatprep.subr.bf16.mxu0 0
        %1394 = vmatpush1.bf16.msra.mxu0 %v1376
        %1395 = vmatprep.subr.bf16.mxu0 0
        %1396 = vmatpush1.bf16.msra.mxu0 %v1377
        %1397 = vmatprep.subr.bf16.mxu0 0
        %1398 = vmatpush1.bf16.msra.mxu0 %v1378
        %1399 = vmatprep.subr.bf16.mxu0 0
        %1400 = vmatpush1.bf16.msra.mxu0 %v1379
        %1401 = vmatprep.subr.bf16.mxu0 0
        %1402 = vmatpush1.bf16.msra.mxu0 %v1380
        %1403 = vmatprep.subr.bf16.mxu0 0
        %1404 = vmatpush1.bf16.msra.mxu0 %v1381
        %1405 = vmatprep.subr.bf16.mxu0 0
        %1406 = vmatpush1.bf16.msra.mxu0 %v1382
        %1407 = vmatprep.subr.bf16.mxu0 0
        %1408 = vmatpush1.bf16.msra.mxu0 0
        %1409 = vmatprep.subr.bf16.mxu0 0
        %1410 = vmatpush1.bf16.msra.mxu0 0
        %1411 = vmatprep.subr.bf16.mxu0 0
        %1412 = vmatpush1.bf16.msra.mxu0 0
        %1413 = vmatprep.subr.bf16.mxu0 0
        %1414 = vmatpush1.bf16.msra.mxu0 0
        %1415 = vmatprep.subr.bf16.mxu0 0
        %1416 = vmatpush1.bf16.msra.mxu0 0
        %1417 = vmatprep.subr.bf16.mxu0 0
        %1418 = vmatpush1.bf16.msra.mxu0 0
        %1419 = vmatprep.subr.bf16.mxu0 0
        %1420 = vmatpush1.bf16.msra.mxu0 0
        %1421 = vmatprep.subr.bf16.mxu0 0
        %1422 = vmatpush1.bf16.msra.mxu0 0
        %1423 = vmatprep.mubr.bf16.mxu0 0
        %1424 = vmatmul.mubr.bf16.gmra.mrb[0].mxu0 %v1341
        %v1425 = vpop.f32.mrb[0].mxu0
        %v1426 = vadd.f32 0.0, %v1425
        %v1427 = vpop.f32.mrb[0].mxu0
        %v1428 = vpop.f32.mrb[0].mxu0
        %v1429 = vpop.f32.mrb[0].mxu0
        %1430 = vdwg.mxu0
        %v1431 = vadd.f32 %v1319, %v1426
        %v1432 = vld [vmem:[%s1094] sm:$0x6]
        %s1433 = scalar_lea.vmem %s1, 704
        %v1434 = vld [vmem:[%s1433] sm:$0xf]
        %v1435 = vld [vmem:[%s1433 + $0x4] sm:$0xf]
        %v1436 = vld [vmem:[%s1433 + $0x8] sm:$0xf]
        %v1437 = vld [vmem:[%s1433 + $0xc] sm:$0xf]
        %v1438 = vld [vmem:[%s1433 + $0x10] sm:$0xf]
        %v1439 = vld [vmem:[%s1433 + $0x14] sm:$0xf]
        %v1440 = vld [vmem:[%s1433 + $0x18] sm:$0xf]
        %v1441 = vld [vmem:[%s1433 + $0x1c] sm:$0xf]
        %v1442 = vld [vmem:[%s1433 + $0x20] sm:$0xf]
        %v1443 = vld [vmem:[%s1433 + $0x24] sm:$0xf]
        %v1444 = vld [vmem:[%s1433 + $0x28] sm:$0xf]
        %v1445 = vld [vmem:[%s1433 + $0x2c] sm:$0xf]
        %v1446 = vld [vmem:[%s1433 + $0x30] sm:$0xf]
        %v1447 = vld [vmem:[%s1433 + $0x34] sm:$0xf]
        %v1448 = vld [vmem:[%s1433 + $0x38] sm:$0xf]
        %v1449 = vld [vmem:[%s1433 + $0x3c] sm:$0xf]
        %v1451 = vunpack.c.l.b16 %v1432
        %v1452 = vpack.c.b16 %v1451, %v1451
        %v1454 = vshrl.u32 %v1452, 16
        %v1456 = vrot.slane %v1454, 1
        %v1457 = vshll.u32 %v1452, 16
        %v1459 = vrot.slane %v1457, 2
        %v1460 = vor.u32 %v1456, %v1459
        %v1478 = vunpack.c.l.b16 %v1434
        %v1479 = vunpack.c.l.b16 %v1435
        %v1480 = vunpack.c.l.b16 %v1436
        %v1481 = vunpack.c.l.b16 %v1437
        %v1482 = vunpack.c.l.b16 %v1438
        %v1483 = vunpack.c.l.b16 %v1439
        %v1484 = vunpack.c.l.b16 %v1440
        %v1485 = vunpack.c.l.b16 %v1441
        %v1486 = vunpack.c.l.b16 %v1442
        %v1487 = vunpack.c.l.b16 %v1443
        %v1488 = vunpack.c.l.b16 %v1444
        %v1489 = vunpack.c.l.b16 %v1445
        %v1490 = vunpack.c.l.b16 %v1446
        %v1491 = vunpack.c.l.b16 %v1447
        %v1492 = vunpack.c.l.b16 %v1448
        %v1493 = vunpack.c.l.b16 %v1449
        %v1494 = vpack.c.b16 %v1479, %v1478
        %v1495 = vpack.c.b16 %v1481, %v1480
        %v1496 = vpack.c.b16 %v1483, %v1482
        %v1497 = vpack.c.b16 %v1485, %v1484
        %v1498 = vpack.c.b16 %v1487, %v1486
        %v1499 = vpack.c.b16 %v1489, %v1488
        %v1500 = vpack.c.b16 %v1491, %v1490
        %v1501 = vpack.c.b16 %v1493, %v1492
        %1510 = vmatprep.subr.bf16.mxu0 0
        %1511 = vmatpush1.bf16.msra.mxu0 %v1494
        %1512 = vmatprep.subr.bf16.mxu0 0
        %1513 = vmatpush1.bf16.msra.mxu0 %v1495
        %1514 = vmatprep.subr.bf16.mxu0 0
        %1515 = vmatpush1.bf16.msra.mxu0 %v1496
        %1516 = vmatprep.subr.bf16.mxu0 0
        %1517 = vmatpush1.bf16.msra.mxu0 %v1497
        %1518 = vmatprep.subr.bf16.mxu0 0
        %1519 = vmatpush1.bf16.msra.mxu0 %v1498
        %1520 = vmatprep.subr.bf16.mxu0 0
        %1521 = vmatpush1.bf16.msra.mxu0 %v1499
        %1522 = vmatprep.subr.bf16.mxu0 0
        %1523 = vmatpush1.bf16.msra.mxu0 %v1500
        %1524 = vmatprep.subr.bf16.mxu0 0
        %1525 = vmatpush1.bf16.msra.mxu0 %v1501
        %1526 = vmatprep.subr.bf16.mxu0 0
        %1527 = vmatpush1.bf16.msra.mxu0 0
        %1528 = vmatprep.subr.bf16.mxu0 0
        %1529 = vmatpush1.bf16.msra.mxu0 0
        %1530 = vmatprep.subr.bf16.mxu0 0
        %1531 = vmatpush1.bf16.msra.mxu0 0
        %1532 = vmatprep.subr.bf16.mxu0 0
        %1533 = vmatpush1.bf16.msra.mxu0 0
        %1534 = vmatprep.subr.bf16.mxu0 0
        %1535 = vmatpush1.bf16.msra.mxu0 0
        %1536 = vmatprep.subr.bf16.mxu0 0
        %1537 = vmatpush1.bf16.msra.mxu0 0
        %1538 = vmatprep.subr.bf16.mxu0 0
        %1539 = vmatpush1.bf16.msra.mxu0 0
        %1540 = vmatprep.subr.bf16.mxu0 0
        %1541 = vmatpush1.bf16.msra.mxu0 0
        %1542 = vmatprep.mubr.bf16.mxu0 0
        %1543 = vmatmul.mubr.bf16.gmra.mrb[0].mxu0 %v1460
        %v1544 = vpop.f32.mrb[0].mxu0
        %v1545 = vadd.f32 0.0, %v1544
        %v1546 = vpop.f32.mrb[0].mxu0
        %v1547 = vpop.f32.mrb[0].mxu0
        %v1548 = vpop.f32.mrb[0].mxu0
        %1549 = vdwg.mxu0
        %v1550 = vadd.f32 %v1431, %v1545
        %s1551 = sadd.s32 %s173, 3
        %s1552 = smul.addr %s1551, 4
        %s1553 = scalar_lea.vmem %s165, %s1552
        %v1554 = vld [vmem:[%s1553] sm:$0x1]
        %s1555 = scalar_lea.vmem %s1, 768
        %v1556 = vld [vmem:[%s1555] sm:$0xf]
        %v1557 = vld [vmem:[%s1555 + $0x4] sm:$0xf]
        %v1558 = vld [vmem:[%s1555 + $0x8] sm:$0xf]
        %v1559 = vld [vmem:[%s1555 + $0xc] sm:$0xf]
        %v1560 = vld [vmem:[%s1555 + $0x10] sm:$0xf]
        %v1561 = vld [vmem:[%s1555 + $0x14] sm:$0xf]
        %v1562 = vld [vmem:[%s1555 + $0x18] sm:$0xf]
        %v1563 = vld [vmem:[%s1555 + $0x1c] sm:$0xf]
        %v1564 = vld [vmem:[%s1555 + $0x20] sm:$0xf]
        %v1565 = vld [vmem:[%s1555 + $0x24] sm:$0xf]
        %v1566 = vld [vmem:[%s1555 + $0x28] sm:$0xf]
        %v1567 = vld [vmem:[%s1555 + $0x2c] sm:$0xf]
        %v1568 = vld [vmem:[%s1555 + $0x30] sm:$0xf]
        %v1569 = vld [vmem:[%s1555 + $0x34] sm:$0xf]
        %v1570 = vld [vmem:[%s1555 + $0x38] sm:$0xf]
        %v1571 = vld [vmem:[%s1555 + $0x3c] sm:$0xf]
        %v1588 = vunpack.c.l.b16 %v1556
        %v1589 = vunpack.c.l.b16 %v1557
        %v1590 = vunpack.c.l.b16 %v1558
        %v1591 = vunpack.c.l.b16 %v1559
        %v1592 = vunpack.c.l.b16 %v1560
        %v1593 = vunpack.c.l.b16 %v1561
        %v1594 = vunpack.c.l.b16 %v1562
        %v1595 = vunpack.c.l.b16 %v1563
        %v1596 = vunpack.c.l.b16 %v1564
        %v1597 = vunpack.c.l.b16 %v1565
        %v1598 = vunpack.c.l.b16 %v1566
        %v1599 = vunpack.c.l.b16 %v1567
        %v1600 = vunpack.c.l.b16 %v1568
        %v1601 = vunpack.c.l.b16 %v1569
        %v1602 = vunpack.c.l.b16 %v1570
        %v1603 = vunpack.c.l.b16 %v1571
        %v1604 = vpack.c.b16 %v1589, %v1588
        %v1605 = vpack.c.b16 %v1591, %v1590
        %v1606 = vpack.c.b16 %v1593, %v1592
        %v1607 = vpack.c.b16 %v1595, %v1594
        %v1608 = vpack.c.b16 %v1597, %v1596
        %v1609 = vpack.c.b16 %v1599, %v1598
        %v1610 = vpack.c.b16 %v1601, %v1600
        %v1611 = vpack.c.b16 %v1603, %v1602
        %1620 = vmatprep.subr.bf16.mxu0 0
        %1621 = vmatpush1.bf16.msra.mxu0 %v1604
        %1622 = vmatprep.subr.bf16.mxu0 0
        %1623 = vmatpush1.bf16.msra.mxu0 %v1605
        %1624 = vmatprep.subr.bf16.mxu0 0
        %1625 = vmatpush1.bf16.msra.mxu0 %v1606
        %1626 = vmatprep.subr.bf16.mxu0 0
        %1627 = vmatpush1.bf16.msra.mxu0 %v1607
        %1628 = vmatprep.subr.bf16.mxu0 0
        %1629 = vmatpush1.bf16.msra.mxu0 %v1608
        %1630 = vmatprep.subr.bf16.mxu0 0
        %1631 = vmatpush1.bf16.msra.mxu0 %v1609
        %1632 = vmatprep.subr.bf16.mxu0 0
        %1633 = vmatpush1.bf16.msra.mxu0 %v1610
        %1634 = vmatprep.subr.bf16.mxu0 0
        %1635 = vmatpush1.bf16.msra.mxu0 %v1611
        %1636 = vmatprep.subr.bf16.mxu0 0
        %1637 = vmatpush1.bf16.msra.mxu0 0
        %1638 = vmatprep.subr.bf16.mxu0 0
        %1639 = vmatpush1.bf16.msra.mxu0 0
        %1640 = vmatprep.subr.bf16.mxu0 0
        %1641 = vmatpush1.bf16.msra.mxu0 0
        %1642 = vmatprep.subr.bf16.mxu0 0
        %1643 = vmatpush1.bf16.msra.mxu0 0
        %1644 = vmatprep.subr.bf16.mxu0 0
        %1645 = vmatpush1.bf16.msra.mxu0 0
        %1646 = vmatprep.subr.bf16.mxu0 0
        %1647 = vmatpush1.bf16.msra.mxu0 0
        %1648 = vmatprep.subr.bf16.mxu0 0
        %1649 = vmatpush1.bf16.msra.mxu0 0
        %1650 = vmatprep.subr.bf16.mxu0 0
        %1651 = vmatpush1.bf16.msra.mxu0 0
        %1652 = vmatprep.mubr.bf16.mxu0 0
        %1653 = vmatmul.mubr.bf16.gmra.mrb[0].mxu0 %v1554
        %v1654 = vpop.f32.mrb[0].mxu0
        %v1655 = vadd.f32 0.0, %v1654
        %v1656 = vpop.f32.mrb[0].mxu0
        %v1657 = vpop.f32.mrb[0].mxu0
        %v1658 = vpop.f32.mrb[0].mxu0
        %1659 = vdwg.mxu0
        %v1660 = vadd.f32 %v1550, %v1655
        %v1661 = vld [vmem:[%s1553] sm:$0x3]
        %s1662 = scalar_lea.vmem %s1, 832
        %v1663 = vld [vmem:[%s1662] sm:$0xf]
        %v1664 = vld [vmem:[%s1662 + $0x4] sm:$0xf]
        %v1665 = vld [vmem:[%s1662 + $0x8] sm:$0xf]
        %v1666 = vld [vmem:[%s1662 + $0xc] sm:$0xf]
        %v1667 = vld [vmem:[%s1662 + $0x10] sm:$0xf]
        %v1668 = vld [vmem:[%s1662 + $0x14] sm:$0xf]
        %v1669 = vld [vmem:[%s1662 + $0x18] sm:$0xf]
        %v1670 = vld [vmem:[%s1662 + $0x1c] sm:$0xf]
        %v1671 = vld [vmem:[%s1662 + $0x20] sm:$0xf]
        %v1672 = vld [vmem:[%s1662 + $0x24] sm:$0xf]
        %v1673 = vld [vmem:[%s1662 + $0x28] sm:$0xf]
        %v1674 = vld [vmem:[%s1662 + $0x2c] sm:$0xf]
        %v1675 = vld [vmem:[%s1662 + $0x30] sm:$0xf]
        %v1676 = vld [vmem:[%s1662 + $0x34] sm:$0xf]
        %v1677 = vld [vmem:[%s1662 + $0x38] sm:$0xf]
        %v1678 = vld [vmem:[%s1662 + $0x3c] sm:$0xf]
        %v1680 = vunpack.c.l.b16 %v1661
        %v1681 = vpack.c.b16 %v1680, %v1680
        %v1683 = vshrl.u32 %v1681, 16
        %v1685 = vshll.u32 %v1681, 16
        %v1687 = vrot.slane %v1685, 1
        %v1688 = vor.u32 %v1683, %v1687
        %v1706 = vunpack.c.l.b16 %v1663
        %v1707 = vunpack.c.l.b16 %v1664
        %v1708 = vunpack.c.l.b16 %v1665
        %v1709 = vunpack.c.l.b16 %v1666
        %v1710 = vunpack.c.l.b16 %v1667
        %v1711 = vunpack.c.l.b16 %v1668
        %v1712 = vunpack.c.l.b16 %v1669
        %v1713 = vunpack.c.l.b16 %v1670
        %v1714 = vunpack.c.l.b16 %v1671
        %v1715 = vunpack.c.l.b16 %v1672
        %v1716 = vunpack.c.l.b16 %v1673
        %v1717 = vunpack.c.l.b16 %v1674
        %v1718 = vunpack.c.l.b16 %v1675
        %v1719 = vunpack.c.l.b16 %v1676
        %v1720 = vunpack.c.l.b16 %v1677
        %v1721 = vunpack.c.l.b16 %v1678
        %v1722 = vpack.c.b16 %v1707, %v1706
        %v1723 = vpack.c.b16 %v1709, %v1708
        %v1724 = vpack.c.b16 %v1711, %v1710
        %v1725 = vpack.c.b16 %v1713, %v1712
        %v1726 = vpack.c.b16 %v1715, %v1714
        %v1727 = vpack.c.b16 %v1717, %v1716
        %v1728 = vpack.c.b16 %v1719, %v1718
        %v1729 = vpack.c.b16 %v1721, %v1720
        %1738 = vmatprep.subr.bf16.mxu0 0
        %1739 = vmatpush1.bf16.msra.mxu0 %v1722
        %1740 = vmatprep.subr.bf16.mxu0 0
        %1741 = vmatpush1.bf16.msra.mxu0 %v1723
        %1742 = vmatprep.subr.bf16.mxu0 0
        %1743 = vmatpush1.bf16.msra.mxu0 %v1724
        %1744 = vmatprep.subr.bf16.mxu0 0
        %1745 = vmatpush1.bf16.msra.mxu0 %v1725
        %1746 = vmatprep.subr.bf16.mxu0 0
        %1747 = vmatpush1.bf16.msra.mxu0 %v1726
        %1748 = vmatprep.subr.bf16.mxu0 0
        %1749 = vmatpush1.bf16.msra.mxu0 %v1727
        %1750 = vmatprep.subr.bf16.mxu0 0
        %1751 = vmatpush1.bf16.msra.mxu0 %v1728
        %1752 = vmatprep.subr.bf16.mxu0 0
        %1753 = vmatpush1.bf16.msra.mxu0 %v1729
        %1754 = vmatprep.subr.bf16.mxu0 0
        %1755 = vmatpush1.bf16.msra.mxu0 0
        %1756 = vmatprep.subr.bf16.mxu0 0
        %1757 = vmatpush1.bf16.msra.mxu0 0
        %1758 = vmatprep.subr.bf16.mxu0 0
        %1759 = vmatpush1.bf16.msra.mxu0 0
        %1760 = vmatprep.subr.bf16.mxu0 0
        %1761 = vmatpush1.bf16.msra.mxu0 0
        %1762 = vmatprep.subr.bf16.mxu0 0
        %1763 = vmatpush1.bf16.msra.mxu0 0
        %1764 = vmatprep.subr.bf16.mxu0 0
        %1765 = vmatpush1.bf16.msra.mxu0 0
        %1766 = vmatprep.subr.bf16.mxu0 0
        %1767 = vmatpush1.bf16.msra.mxu0 0
        %1768 = vmatprep.subr.bf16.mxu0 0
        %1769 = vmatpush1.bf16.msra.mxu0 0
        %1770 = vmatprep.mubr.bf16.mxu0 0
        %1771 = vmatmul.mubr.bf16.gmra.mrb[0].mxu0 %v1688
        %v1772 = vpop.f32.mrb[0].mxu0
        %v1773 = vadd.f32 0.0, %v1772
        %v1774 = vpop.f32.mrb[0].mxu0
        %v1775 = vpop.f32.mrb[0].mxu0
        %v1776 = vpop.f32.mrb[0].mxu0
        %1777 = vdwg.mxu0
        %v1778 = vadd.f32 %v1660, %v1773
        %v1779 = vld [vmem:[%s1553] sm:$0x2]
        %s1780 = scalar_lea.vmem %s1, 896
        %v1781 = vld [vmem:[%s1780] sm:$0xf]
        %v1782 = vld [vmem:[%s1780 + $0x4] sm:$0xf]
        %v1783 = vld [vmem:[%s1780 + $0x8] sm:$0xf]
        %v1784 = vld [vmem:[%s1780 + $0xc] sm:$0xf]
        %v1785 = vld [vmem:[%s1780 + $0x10] sm:$0xf]
        %v1786 = vld [vmem:[%s1780 + $0x14] sm:$0xf]
        %v1787 = vld [vmem:[%s1780 + $0x18] sm:$0xf]
        %v1788 = vld [vmem:[%s1780 + $0x1c] sm:$0xf]
        %v1789 = vld [vmem:[%s1780 + $0x20] sm:$0xf]
        %v1790 = vld [vmem:[%s1780 + $0x24] sm:$0xf]
        %v1791 = vld [vmem:[%s1780 + $0x28] sm:$0xf]
        %v1792 = vld [vmem:[%s1780 + $0x2c] sm:$0xf]
        %v1793 = vld [vmem:[%s1780 + $0x30] sm:$0xf]
        %v1794 = vld [vmem:[%s1780 + $0x34] sm:$0xf]
        %v1795 = vld [vmem:[%s1780 + $0x38] sm:$0xf]
        %v1796 = vld [vmem:[%s1780 + $0x3c] sm:$0xf]
        %v1798 = vunpack.c.l.b16 %v1779
        %v1799 = vpack.c.b16 %v1798, %v1798
        %v1800 = vrot.slane %v1799, 1
        %v1818 = vunpack.c.l.b16 %v1781
        %v1819 = vunpack.c.l.b16 %v1782
        %v1820 = vunpack.c.l.b16 %v1783
        %v1821 = vunpack.c.l.b16 %v1784
        %v1822 = vunpack.c.l.b16 %v1785
        %v1823 = vunpack.c.l.b16 %v1786
        %v1824 = vunpack.c.l.b16 %v1787
        %v1825 = vunpack.c.l.b16 %v1788
        %v1826 = vunpack.c.l.b16 %v1789
        %v1827 = vunpack.c.l.b16 %v1790
        %v1828 = vunpack.c.l.b16 %v1791
        %v1829 = vunpack.c.l.b16 %v1792
        %v1830 = vunpack.c.l.b16 %v1793
        %v1831 = vunpack.c.l.b16 %v1794
        %v1832 = vunpack.c.l.b16 %v1795
        %v1833 = vunpack.c.l.b16 %v1796
        %v1834 = vpack.c.b16 %v1819, %v1818
        %v1835 = vpack.c.b16 %v1821, %v1820
        %v1836 = vpack.c.b16 %v1823, %v1822
        %v1837 = vpack.c.b16 %v1825, %v1824
        %v1838 = vpack.c.b16 %v1827, %v1826
        %v1839 = vpack.c.b16 %v1829, %v1828
        %v1840 = vpack.c.b16 %v1831, %v1830
        %v1841 = vpack.c.b16 %v1833, %v1832
        %1850 = vmatprep.subr.bf16.mxu0 0
        %1851 = vmatpush1.bf16.msra.mxu0 %v1834
        %1852 = vmatprep.subr.bf16.mxu0 0
        %1853 = vmatpush1.bf16.msra.mxu0 %v1835
        %1854 = vmatprep.subr.bf16.mxu0 0
        %1855 = vmatpush1.bf16.msra.mxu0 %v1836
        %1856 = vmatprep.subr.bf16.mxu0 0
        %1857 = vmatpush1.bf16.msra.mxu0 %v1837
        %1858 = vmatprep.subr.bf16.mxu0 0
        %1859 = vmatpush1.bf16.msra.mxu0 %v1838
        %1860 = vmatprep.subr.bf16.mxu0 0
        %1861 = vmatpush1.bf16.msra.mxu0 %v1839
        %1862 = vmatprep.subr.bf16.mxu0 0
        %1863 = vmatpush1.bf16.msra.mxu0 %v1840
        %1864 = vmatprep.subr.bf16.mxu0 0
        %1865 = vmatpush1.bf16.msra.mxu0 %v1841
        %1866 = vmatprep.subr.bf16.mxu0 0
        %1867 = vmatpush1.bf16.msra.mxu0 0
        %1868 = vmatprep.subr.bf16.mxu0 0
        %1869 = vmatpush1.bf16.msra.mxu0 0
        %1870 = vmatprep.subr.bf16.mxu0 0
        %1871 = vmatpush1.bf16.msra.mxu0 0
        %1872 = vmatprep.subr.bf16.mxu0 0
        %1873 = vmatpush1.bf16.msra.mxu0 0
        %1874 = vmatprep.subr.bf16.mxu0 0
        %1875 = vmatpush1.bf16.msra.mxu0 0
        %1876 = vmatprep.subr.bf16.mxu0 0
        %1877 = vmatpush1.bf16.msra.mxu0 0
        %1878 = vmatprep.subr.bf16.mxu0 0
        %1879 = vmatpush1.bf16.msra.mxu0 0
        %1880 = vmatprep.subr.bf16.mxu0 0
        %1881 = vmatpush1.bf16.msra.mxu0 0
        %1882 = vmatprep.mubr.bf16.mxu0 0
        %1883 = vmatmul.mubr.bf16.gmra.mrb[0].mxu0 %v1800
        %v1884 = vpop.f32.mrb[0].mxu0
        %v1885 = vadd.f32 0.0, %v1884
        %v1886 = vpop.f32.mrb[0].mxu0
        %v1887 = vpop.f32.mrb[0].mxu0
        %v1888 = vpop.f32.mrb[0].mxu0
        %1889 = vdwg.mxu0
        %v1890 = vadd.f32 %v1778, %v1885
        %v1891 = vld [vmem:[%s1553] sm:$0x6]
        %s1892 = scalar_lea.vmem %s1, 960
        %v1893 = vld [vmem:[%s1892] sm:$0xf]
        %v1894 = vld [vmem:[%s1892 + $0x4] sm:$0xf]
        %v1895 = vld [vmem:[%s1892 + $0x8] sm:$0xf]
        %v1896 = vld [vmem:[%s1892 + $0xc] sm:$0xf]
        %v1897 = vld [vmem:[%s1892 + $0x10] sm:$0xf]
        %v1898 = vld [vmem:[%s1892 + $0x14] sm:$0xf]
        %v1899 = vld [vmem:[%s1892 + $0x18] sm:$0xf]
        %v1900 = vld [vmem:[%s1892 + $0x1c] sm:$0xf]
        %v1901 = vld [vmem:[%s1892 + $0x20] sm:$0xf]
        %v1902 = vld [vmem:[%s1892 + $0x24] sm:$0xf]
        %v1903 = vld [vmem:[%s1892 + $0x28] sm:$0xf]
        %v1904 = vld [vmem:[%s1892 + $0x2c] sm:$0xf]
        %v1905 = vld [vmem:[%s1892 + $0x30] sm:$0xf]
        %v1906 = vld [vmem:[%s1892 + $0x34] sm:$0xf]
        %v1907 = vld [vmem:[%s1892 + $0x38] sm:$0xf]
        %v1908 = vld [vmem:[%s1892 + $0x3c] sm:$0xf]
        %v1910 = vunpack.c.l.b16 %v1891
        %v1911 = vpack.c.b16 %v1910, %v1910
        %v1913 = vshrl.u32 %v1911, 16
        %v1915 = vrot.slane %v1913, 1
        %v1916 = vshll.u32 %v1911, 16
        %v1918 = vrot.slane %v1916, 2
        %v1919 = vor.u32 %v1915, %v1918
        %v1937 = vunpack.c.l.b16 %v1893
        %v1938 = vunpack.c.l.b16 %v1894
        %v1939 = vunpack.c.l.b16 %v1895
        %v1940 = vunpack.c.l.b16 %v1896
        %v1941 = vunpack.c.l.b16 %v1897
        %v1942 = vunpack.c.l.b16 %v1898
        %v1943 = vunpack.c.l.b16 %v1899
        %v1944 = vunpack.c.l.b16 %v1900
        %v1945 = vunpack.c.l.b16 %v1901
        %v1946 = vunpack.c.l.b16 %v1902
        %v1947 = vunpack.c.l.b16 %v1903
        %v1948 = vunpack.c.l.b16 %v1904
        %v1949 = vunpack.c.l.b16 %v1905
        %v1950 = vunpack.c.l.b16 %v1906
        %v1951 = vunpack.c.l.b16 %v1907
        %v1952 = vunpack.c.l.b16 %v1908
        %v1953 = vpack.c.b16 %v1938, %v1937
        %v1954 = vpack.c.b16 %v1940, %v1939
        %v1955 = vpack.c.b16 %v1942, %v1941
        %v1956 = vpack.c.b16 %v1944, %v1943
        %v1957 = vpack.c.b16 %v1946, %v1945
        %v1958 = vpack.c.b16 %v1948, %v1947
        %v1959 = vpack.c.b16 %v1950, %v1949
        %v1960 = vpack.c.b16 %v1952, %v1951
        %1969 = vmatprep.subr.bf16.mxu0 0
        %1970 = vmatpush1.bf16.msra.mxu0 %v1953
        %1971 = vmatprep.subr.bf16.mxu0 0
        %1972 = vmatpush1.bf16.msra.mxu0 %v1954
        %1973 = vmatprep.subr.bf16.mxu0 0
        %1974 = vmatpush1.bf16.msra.mxu0 %v1955
        %1975 = vmatprep.subr.bf16.mxu0 0
        %1976 = vmatpush1.bf16.msra.mxu0 %v1956
        %1977 = vmatprep.subr.bf16.mxu0 0
        %1978 = vmatpush1.bf16.msra.mxu0 %v1957
        %1979 = vmatprep.subr.bf16.mxu0 0
        %1980 = vmatpush1.bf16.msra.mxu0 %v1958
        %1981 = vmatprep.subr.bf16.mxu0 0
        %1982 = vmatpush1.bf16.msra.mxu0 %v1959
        %1983 = vmatprep.subr.bf16.mxu0 0
        %1984 = vmatpush1.bf16.msra.mxu0 %v1960
        %1985 = vmatprep.subr.bf16.mxu0 0
        %1986 = vmatpush1.bf16.msra.mxu0 0
        %1987 = vmatprep.subr.bf16.mxu0 0
        %1988 = vmatpush1.bf16.msra.mxu0 0
        %1989 = vmatprep.subr.bf16.mxu0 0
        %1990 = vmatpush1.bf16.msra.mxu0 0
        %1991 = vmatprep.subr.bf16.mxu0 0
        %1992 = vmatpush1.bf16.msra.mxu0 0
        %1993 = vmatprep.subr.bf16.mxu0 0
        %1994 = vmatpush1.bf16.msra.mxu0 0
        %1995 = vmatprep.subr.bf16.mxu0 0
        %1996 = vmatpush1.bf16.msra.mxu0 0
        %1997 = vmatprep.subr.bf16.mxu0 0
        %1998 = vmatpush1.bf16.msra.mxu0 0
        %1999 = vmatprep.subr.bf16.mxu0 0
        %2000 = vmatpush1.bf16.msra.mxu0 0
        %2001 = vmatprep.mubr.bf16.mxu0 0
        %2002 = vmatmul.mubr.bf16.gmra.mrb[0].mxu0 %v1919
        %v2003 = vpop.f32.mrb[0].mxu0
        %v2004 = vadd.f32 0.0, %v2003
        %v2005 = vpop.f32.mrb[0].mxu0
        %v2006 = vpop.f32.mrb[0].mxu0
        %v2007 = vpop.f32.mrb[0].mxu0
        %2008 = vdwg.mxu0
        %v2009 = vadd.f32 %v1890, %v2004
        %v2010 = vld [vmem:[%s2] sm:$0x1]
        %v2012 = vlaneseq
        %v2013 = vshrl.u32 %v2012, 7
        %v2014 = vsub.s32 0, %v2013
        %v2015 = vrot.slane %v2010, %v2014
        %v2017 = vadd.f32 %v2009, %v2015
        %s2018 = smul.u32 %s173, 2
        %s2019 = scalar_lea.vmem %s170, %s2018
        %2020 = vst [vmem:[%s2019] sm:$0x3] %v2017
      $region37: #{_lambda_.15} parent=31 // loop_footer
        %s177 = sadd.s32 1, %s173
      $region38: #{_lambda_.15} parent=31 // loop_footer_branch
        %172 = sbr.rel target = $region34
      $region39: #{_lambda_.15} parent=31 // loop_exit
        _
      %p2021 = scmp.lt.s32.totalorder %s14, 1
      %s2022 = scalar_select %p2021, %s14, 1
      %s2023 = smul.addr %s2022, 2
      %s2024 = smul.addr %s2023, 2
      %s2025 = scalar_lea.vmem %s3, %s2024
      // Predicated region
      $region40: #{_lambda_.15} parent=31 // pred_check
        %p2026 = pneg %p100
      $region41: #{_lambda_.15} parent=31 // pred_check_branch
        %2028 = sbr.rel (%p2026) target = $region43
      $region42: #{_lambda_.15} parent=31 // pred_region
        _
      $region43: #{_lambda_.15} parent=31 // pred_fallthru
        _
    $region32: #{_lambda_.15} parent=5 // pred_fallthru
      _
    %p2029 = scmp.le.s32.totalorder 2, %s9
    // Predicated region
    $region44: #{_lambda_.15} parent=5 // pred_check
      %p2030 = pneg %p2029
    $region45: #{_lambda_.15} parent=5 // pred_check_branch
      %2032 = sbr.rel (%p2030) target = $region47
    $region46: #{_lambda_.15} parent=5 // pred_region
      %s2033 = ssub.s32 %s9, 2
      // Predicated region
      $region48: #{_lambda_.15} parent=46 // pred_check
        %p2034 = pneg %p106
      $region49: #{_lambda_.15} parent=46 // pred_check_branch
        %2036 = sbr.rel (%p2034) target = $region51
      $region50: #{_lambda_.15} parent=46 // pred_region
        %p2037 = scmp.lt.s32.totalorder %s15, 1
        %s2038 = scalar_select %p2037, %s15, 1
        %s2039 = smul.addr %s2038, 2
        %s2040 = smul.addr %s2039, 2
        %s2041 = scalar_lea.vmem %s3, %s2040
      $region51: #{_lambda_.15} parent=46 // pred_fallthru
        _
    $region47: #{_lambda_.15} parent=5 // pred_fallthru
      _
  $region6: #{_lambda_.15} parent=0 // loop_footer
    %s13 = sadd.s32 1, %s9
  $region7: #{_lambda_.15} parent=0 // loop_footer_branch
    %8 = sbr.rel target = $region3
  $region8: #{_lambda_.15} parent=0 // loop_exit
    _

</llo_original>
